<compile_context>
chip_gen: v5e
topology: v5e:2x2
jax: 0.10.0
libtpu: 0.0.40
codegen_flags: <defaults>
</compile_context>

<pallas_src>
import numpy as np
import jax
import jax.numpy as jnp
from jax.experimental import pallas as pl
from jax.experimental.pallas import tpu as pltpu

EPS = 1e-5
KH = KW = 5          # conv kernel size
STRIDE = 2

# Network geometry: (N, 3, 40, 80) -> 16x18x38 -> 32x7x17 -> 32x2x7 -> 448 -> 2
C0, H0, W0 = 3, 40, 80
C1, H1, W1 = 16, 18, 38
C2, H2, W2 = 32, 7, 17
C3, H3, W3 = 32, 2, 7
ACT = 2

# Space-to-depth fold factor of each stored activation (input, l1 out, l2 out, l3 out).
F0, F1, F2, F3 = 8, 4, 2, 1
D0, D1, D2, D3 = F0 * F0 * C0, F1 * F1 * C1, F2 * F2 * C2, F3 * F3 * C3  # 192, 256, 128, 32
D3P = 128            # layer-3 channels zero-padded to a full lane tile (lane-dense stores, head K=128)

# Common padded cell grid shared by every folded activation, flattened row-major per image.
# GRID_J=12 so CELLS per image is a multiple of 8 (sublane-aligned image blocks).
GRID_I, GRID_J = 6, 12
CELLS = GRID_I * GRID_J            # 72 rows per image (multiple of 8)
PAD_ROWS = 32                      # >= largest row shift (layer 3: 2*GRID_J+2 = 26), multiple of 8


# ----------------------------------------------------------------------------
# Host-side, once-per-parameter preparation
# ----------------------------------------------------------------------------
def fold_conv_weight(w, f_in, f_out, a_max):
    """Embed a (C_out, C_in, 5, 5) stride-2 conv weight into a_max**2 dense matrices
    acting on space-to-depth folded activations (stride-1 shifted-slab form)."""
    c_out, c_in = int(w.shape[0]), int(w.shape[1])
    d_in, d_out = f_in * f_in * c_in, f_out * f_out * c_out
    wf = np.zeros((a_max, a_max, d_in, d_out), np.float32)
    for a in range(a_max):
        for b in range(a_max):
            for ri in range(f_in):
                for si in range(f_in):
                    for ro in range(f_out):
                        for so in range(f_out):
                            kh = f_in * a + ri - 2 * ro
                            kw = f_in * b + si - 2 * so
                            if 0 <= kh < KH and 0 <= kw < KW:
                                di = (ri * f_in + si) * c_in
                                do = (ro * f_out + so) * c_out
                                wf[a, b, di:di + c_in, do:do + c_out] = w[:, :, kh, kw].T
    return wf.reshape(a_max * a_max, d_in, d_out)


def build_mask(f_out, c_out, h_out, w_out):
    """Single-image (CELLS, f_out*f_out*c_out) 0/1 mask of valid output positions in
    the folded layout; BatchNorm statistics only see real (H, W) positions."""
    m = np.zeros((CELLS, f_out * f_out * c_out), np.float32)
    for i in range(GRID_I):
        for j in range(GRID_J):
            for ro in range(f_out):
                for so in range(f_out):
                    if f_out * i + ro < h_out and f_out * j + so < w_out:
                        d = (ro * f_out + so) * c_out
                        m[i * GRID_J + j, d:d + c_out] = 1.0
    return m


def phase_fold_mats(f_out, c_out):
    """G pools per-(phase, channel) sums into per-channel sums; G.T expands back."""
    g = np.tile(np.eye(c_out, dtype=np.float32), (f_out * f_out, 1))
    return g, np.ascontiguousarray(g.T)


def prepare(params):
    """Fold weights / build masks / pre-expand BN params.  Done once per parameter set."""
    p = {k: np.asarray(v, np.float32) for k, v in params.items()}
    g1, gt1 = phase_fold_mats(F1, C1)
    g2, gt2 = phase_fold_mats(F2, C2)

    # Head weight permuted to consume the (h, w, c)-ordered folded layer-3 output
    # exactly like PyTorch's .view(N, -1) on NCHW (feature index = c*14 + h*7 + w),
    # channel dim zero-padded to D3P.
    wh = np.zeros((H3 * W3, D3P, ACT), np.float32)
    for h in range(H3):
        for w in range(W3):
            for ci in range(C3):
                wh[h * W3 + w, ci, :] = p["head_w"][:, ci * (H3 * W3) + h * W3 + w]

    # Layer-3 conv weight / BN params zero-padded to 128 output channels (lane-dense).
    w3 = np.zeros((9, D2, D3P), np.float32)
    w3[:, :, :D3] = fold_conv_weight(p["conv3_w"], F2, F3, 3)
    gam3 = np.zeros((1, D3P), np.float32); gam3[0, :C3] = p["bn3_g"]
    bet3 = np.zeros((1, D3P), np.float32); bet3[0, :C3] = p["bn3_b"]

    m1 = build_mask(F1, C1, H1, W1)
    m2 = build_mask(F2, C2, H2, W2)
    m3 = build_mask(F3, 1, H3, W3)                 # (CELLS, 1), broadcasts over channels
    assert int(m1.sum()) == H1 * W1 * C1
    assert int(m2.sum()) == H2 * W2 * C2
    assert int(m3.sum()) == H3 * W3

    prep = {
        # NOTE: conv biases intentionally dropped -- train-mode BatchNorm subtracts the
        # batch mean, so a per-channel constant added by the conv cancels exactly.
        "w1": fold_conv_weight(p["conv1_w"], F0, F1, 2),   # (4, 192, 256)
        "w2": fold_conv_weight(p["conv2_w"], F1, F2, 2),   # (4, 256, 128)
        "w3": w3,                                          # (9, 128, 128)
        "wh": wh,                                          # (14, 128, 2)
        "bh": p["head_b"].reshape(1, ACT),
        "m1": m1, "m2": m2, "m3": m3,
        "g1": g1, "gt1": gt1, "g2": g2, "gt2": gt2,
        "gam1": np.tile(p["bn1_g"], F1 * F1).reshape(1, D1),
        "bet1": np.tile(p["bn1_b"], F1 * F1).reshape(1, D1),
        "gam2": np.tile(p["bn2_g"], F2 * F2).reshape(1, D2),
        "bet2": np.tile(p["bn2_b"], F2 * F2).reshape(1, D2),
        "gam3": gam3, "bet3": bet3,
    }
    # MXU operand weights in bf16; masks / BN fold-expand / gamma-beta stay f32.
    bf16_keys = {"w1", "w2", "w3", "wh"}
    return {k: jnp.asarray(v, dtype=jnp.bfloat16 if k in bf16_keys else jnp.float32)
            for k, v in prep.items()}


def space_to_depth_input(x_nchw, n):
    """(n,3,40,80) NCHW -> fold-by-8 layout on the padded 6x12 cell grid, flattened to
    (n*CELLS + PAD_ROWS, 192) f32 with zero padding.  Pure layout plumbing."""
    t = jnp.transpose(x_nchw, (0, 2, 3, 1))                       # NHWC
    t = t.reshape(n, H0 // F0, F0, W0 // F0, F0, C0)
    t = jnp.transpose(t, (0, 1, 3, 2, 4, 5))                      # (n, 5, 10, 8, 8, 3)
    t = t.reshape(n, H0 // F0, W0 // F0, D0)
    t = jnp.pad(t, ((0, 0), (0, GRID_I - H0 // F0), (0, GRID_J - W0 // F0), (0, 0)))
    t = t.reshape(n * CELLS, D0)
    return jnp.pad(t, ((0, PAD_ROWS), (0, 0)))


# ----------------------------------------------------------------------------
# Fused Pallas kernel (3x conv+BN+ReLU + linear head)
# ----------------------------------------------------------------------------
def build_forward(n_batch):
    rows = n_batch * CELLS              # multiple of 8
    total_rows = rows + PAD_ROWS        # multiple of 8
    shifts4 = [(a, b) for a in range(2) for b in range(2)]
    shifts9 = [(a, b) for a in range(3) for b in range(3)]
    head_offs = [h * GRID_J + w for h in range(H3) for w in range(W3)]

    def conv_bn_relu(in_ref, w_ref, shifts, mask_ref, fold_ref, expand_ref,
                     gamma_ref, beta_ref, count, out_ref):
        d_out = out_ref.shape[1]
        # --- Conv: shifted-slab matmuls, bf16 operands, f32 accumulation directly
        #     into the VMEM activation scratch (no vreg add tree / spills). ---
        for idx, (a, b) in enumerate(shifts):
            off = a * GRID_J + b
            slab = in_ref[off:off + rows, :].astype(jnp.bfloat16)
            term = jnp.dot(slab, w_ref[idx], preferred_element_type=jnp.float32)
            if idx == 0:
                out_ref[0:rows, :] = term
            else:
                out_ref[0:rows, :] += term
        # --- Train-mode BatchNorm statistics: masked one-pass sum / sum-of-squares,
        #     f32, accumulated per image with one shared single-image mask. ---
        mask = mask_ref[...]
        s1 = jnp.zeros((1, d_out), jnp.float32)
        s2 = jnp.zeros((1, d_out), jnp.float32)
        for i in range(n_batch):
            xm = out_ref[i * CELLS:(i + 1) * CELLS, :] * mask
            s1 = s1 + jnp.sum(xm, axis=0, keepdims=True)
            s2 = s2 + jnp.sum(xm * xm, axis=0, keepdims=True)
        # Phase pooling -> per-channel stats (one stacked (2, D) matmul), normalize,
        # expand back (one stacked (2, C) matmul).  All f32.
        st = jnp.concatenate([s1, s2], axis=0)
        if fold_ref is not None:
            st = jnp.dot(st, fold_ref[...], preferred_element_type=jnp.float32)
        inv_n = 1.0 / count
        mean = st[0:1, :] * inv_n
        var = jnp.maximum(st[1:2, :] * inv_n - mean * mean, 0.0)
        scale = jax.lax.rsqrt(var + EPS)
        ms = jnp.concatenate([mean, scale], axis=0)
        if expand_ref is not None:
            ms = jnp.dot(ms, expand_ref[...], preferred_element_type=jnp.float32)
        mean_e = ms[0:1, :]
        scale_e = ms[1:2, :] * gamma_ref[...]
        # --- Normalize + ReLU in place; zero the 8-aligned pad rows that the next
        #     layer's shifted slabs read (keeps them finite / out of statistics). ---
        out_ref[0:rows, :] = jnp.maximum(
            (out_ref[0:rows, :] - mean_e) * scale_e + beta_ref[...], 0.0)
        out_ref[rows:total_rows, :] = jnp.zeros((PAD_ROWS, d_out), jnp.float32)

    def kernel(x8_ref, w1_ref, w2_ref, w3_ref, wh_ref, bh_ref,
               m1_ref, m2_ref, m3_ref, g1_ref, gt1_ref, g2_ref, gt2_ref,
               gam1_ref, bet1_ref, gam2_ref, bet2_ref, gam3_ref, bet3_ref,
               q_ref, a1_ref, a2_ref, a3_ref):
        conv_bn_relu(x8_ref, w1_ref, shifts4, m1_ref, g1_ref, gt1_ref,
                     gam1_ref, bet1_ref, float(n_batch * H1 * W1), a1_ref)
        conv_bn_relu(a1_ref, w2_ref, shifts4, m2_ref, g2_ref, gt2_ref,
                     gam2_ref, bet2_ref, float(n_batch * H2 * W2), a2_ref)
        conv_bn_relu(a2_ref, w3_ref, shifts9, m3_ref, None, None,
                     gam3_ref, bet3_ref, float(n_batch * H3 * W3), a3_ref)
        # Linear head = 2x7 "conv" with one output position per image.  Only the
        # n_batch rows that matter are read (stride-CELLS slab per shift); result is
        # written with a single contiguous store.
        q = None
        for idx, off in enumerate(head_offs):
            slab = a3_ref[pl.ds(off, n_batch, stride=CELLS), :].astype(jnp.bfloat16)
            term = jnp.dot(slab, wh_ref[idx], preferred_element_type=jnp.float32)
            q = term if q is None else q + term
        q_ref[...] = q + bh_ref[...]

    call = pl.pallas_call(
        kernel,
        out_shape=jax.ShapeDtypeStruct((n_batch, ACT), jnp.float32),
        scratch_shapes=[
            pltpu.VMEM((total_rows, D1), jnp.float32),    # layer-1 f32 acc / activation
            pltpu.VMEM((total_rows, D2), jnp.float32),    # layer-2 f32 acc / activation
            pltpu.VMEM((total_rows, D3P), jnp.float32),   # layer-3 f32 acc / activation (lane-padded)
        ],
    )

    @jax.jit
    def forward(prep, x):
        if x.ndim < 4:
            x = x[None]
        x8 = space_to_depth_input(x, n_batch)
        return call(x8, prep["w1"], prep["w2"], prep["w3"], prep["wh"], prep["bh"],
                    prep["m1"], prep["m2"], prep["m3"],
                    prep["g1"], prep["gt1"], prep["g2"], prep["gt2"],
                    prep["gam1"], prep["bet1"], prep["gam2"], prep["bet2"],
                    prep["gam3"], prep["bet3"])

    return forward


# ----------------------------------------------------------------------------
# Parameters and pure-XLA reference (PyTorch module in train() mode)
# ----------------------------------------------------------------------------
def init_params(key):
    def conv_layer(k, cin, cout):
        k1, k2 = jax.random.split(k)
        bound = 1.0 / float(np.sqrt(cin * KH * KW))
        w = jax.random.uniform(k1, (cout, cin, KH, KW), jnp.float32, -bound, bound)
        b = jax.random.uniform(k2, (cout,), jnp.float32, -bound, bound)
        return w, b

    keys = jax.random.split(key, 4)
    p = {}
    p["conv1_w"], p["conv1_b"] = conv_layer(keys[0], C0, C1)
    p["conv2_w"], p["conv2_b"] = conv_layer(keys[1], C1, C2)
    p["conv3_w"], p["conv3_b"] = conv_layer(keys[2], C2, C3)
    p["bn1_g"], p["bn1_b"] = jnp.ones((C1,), jnp.float32), jnp.zeros((C1,), jnp.float32)
    p["bn2_g"], p["bn2_b"] = jnp.ones((C2,), jnp.float32), jnp.zeros((C2,), jnp.float32)
    p["bn3_g"], p["bn3_b"] = jnp.ones((C3,), jnp.float32), jnp.zeros((C3,), jnp.float32)
    k1, k2 = jax.random.split(keys[3])
    feat = C3 * H3 * W3
    bound = 1.0 / float(np.sqrt(feat))
    p["head_w"] = jax.random.uniform(k1, (ACT, feat), jnp.float32, -bound, bound)
    p["head_b"] = jax.random.uniform(k2, (ACT,), jnp.float32, -bound, bound)
    return p


def reference_forward(params, x):
    if x.ndim < 4:
        x = x[None]

    def conv(h, w, b):
        out = jax.lax.conv_general_dilated(
            h, w, window_strides=(STRIDE, STRIDE), padding="VALID",
            dimension_numbers=("NCHW", "OIHW", "NCHW"),
            precision=jax.lax.Precision.HIGHEST)
        return out + b.reshape(1, -1, 1, 1)

    def bn(h, g, b):
        mean = jnp.mean(h, axis=(0, 2, 3), keepdims=True)
        var = jnp.mean(jnp.square(h - mean), axis=(0, 2, 3), keepdims=True)
        return (h - mean) * jax.lax.rsqrt(var + EPS) * g.reshape(1, -1, 1, 1) \
            + b.reshape(1, -1, 1, 1)

    h = jax.nn.relu(bn(conv(x, params["conv1_w"], params["conv1_b"]),
                       params["bn1_g"], params["bn1_b"]))
    h = jax.nn.relu(bn(conv(h, params["conv2_w"], params["conv2_b"]),
                       params["bn2_g"], params["bn2_b"]))
    h = jax.nn.relu(bn(conv(h, params["conv3_w"], params["conv3_b"]),
                       params["bn3_g"], params["bn3_b"]))
    flat = h.reshape(h.shape[0], -1)
    return jnp.dot(flat, params["head_w"].T,
                   precision=jax.lax.Precision.HIGHEST) + params["head_b"]


if __name__ == "__main__":
    key = jax.random.PRNGKey(0)
    k_param, k_x = jax.random.split(key)
    params = init_params(k_param)

    n_batch = 2
    x = jax.random.uniform(k_x, (n_batch, C0, H0, W0), jnp.float32)

    prep = prepare(params)
    forward = build_forward(n_batch)
    q = forward(prep, x)
    jax.block_until_ready(q)
    assert q.shape == (n_batch, ACT) and q.dtype == jnp.float32

    # Tolerance: kernel uses bf16 MXU operands (per perf review) with f32 accumulation
    # and f32 BN statistics; reference is full f32 with Precision.HIGHEST.
    q_ref = reference_forward(params, x)
    err = float(jnp.max(jnp.abs(q - q_ref)))
    assert err < 2e-2, f"kernel/reference mismatch: max abs err = {err}"
    print("KERNEL_OK")
</pallas_src>

<mosaic_0001>
module attributes {stable_mosaic.version = 11 : i64} {
  func.func @kernel(%arg0: memref<176x192xf32, #tpu.memory_space<vmem>>, %arg1: memref<4x192x256xbf16, #tpu.memory_space<vmem>>, %arg2: memref<4x256x128xbf16, #tpu.memory_space<vmem>>, %arg3: memref<9x128x128xbf16, #tpu.memory_space<vmem>>, %arg4: memref<14x128x2xbf16, #tpu.memory_space<vmem>>, %arg5: memref<1x2xf32, #tpu.memory_space<vmem>>, %arg6: memref<72x256xf32, #tpu.memory_space<vmem>>, %arg7: memref<72x128xf32, #tpu.memory_space<vmem>>, %arg8: memref<72x1xf32, #tpu.memory_space<vmem>>, %arg9: memref<256x16xf32, #tpu.memory_space<vmem>>, %arg10: memref<16x256xf32, #tpu.memory_space<vmem>>, %arg11: memref<128x32xf32, #tpu.memory_space<vmem>>, %arg12: memref<32x128xf32, #tpu.memory_space<vmem>>, %arg13: memref<1x256xf32, #tpu.memory_space<vmem>>, %arg14: memref<1x256xf32, #tpu.memory_space<vmem>>, %arg15: memref<1x128xf32, #tpu.memory_space<vmem>>, %arg16: memref<1x128xf32, #tpu.memory_space<vmem>>, %arg17: memref<1x128xf32, #tpu.memory_space<vmem>>, %arg18: memref<1x128xf32, #tpu.memory_space<vmem>>, %arg19: memref<2x2xf32, #tpu.memory_space<vmem>>, %arg20: memref<176x256xf32, #tpu.memory_space<vmem>>, %arg21: memref<176x128xf32, #tpu.memory_space<vmem>>, %arg22: memref<176x128xf32, #tpu.memory_space<vmem>>) attributes {dimension_semantics = [], scalar_prefetch = 0 : i64, scratch_operands = 3 : i64, tpu.core_type = #tpu.core_type<tc>} {
    %c0 = arith.constant 0 : index
    %c0_0 = arith.constant 0 : index
    %0 = vector.load %arg0[%c0, %c0_0] : memref<176x192xf32, #tpu.memory_space<vmem>>, vector<144x192xf32>
    %1 = arith.truncf %0 : vector<144x192xf32> to vector<144x192xbf16>
    %c0_1 = arith.constant 0 : index
    %c0_2 = arith.constant 0 : index
    %c0_3 = arith.constant 0 : index
    %2 = vector.load %arg1[%c0_1, %c0_2, %c0_3] : memref<4x192x256xbf16, #tpu.memory_space<vmem>>, vector<1x192x256xbf16>
    %3 = vector.shape_cast %2 : vector<1x192x256xbf16> to vector<192x256xbf16>
    %cst = arith.constant dense<0.000000e+00> : vector<144x256xf32>
    %4 = tpu.matmul %1, %3, %cst {dimension_numbers = #tpu.dot_dimension_numbers<[1], [0], [0], [1], [0, 0, 1, 1], [], []>} : vector<144x192xbf16>, vector<192x256xbf16>, vector<144x256xf32> -> vector<144x256xf32>
    %c0_4 = arith.constant 0 : index
    %c0_5 = arith.constant 0 : index
    %5 = vector.load %arg20[%c0_4, %c0_5] : memref<176x256xf32, #tpu.memory_space<vmem>>, vector<144x256xf32>
    tpu.vector_store %arg20[%c0_4, %c0_5], %4 {strides = array<i32>} : memref<176x256xf32, #tpu.memory_space<vmem>>, vector<144x256xf32>,
    %c1 = arith.constant 1 : index
    %c0_6 = arith.constant 0 : index
    %6 = vector.load %arg0[%c1, %c0_6] : memref<176x192xf32, #tpu.memory_space<vmem>>, vector<144x192xf32>
    %7 = arith.truncf %6 : vector<144x192xf32> to vector<144x192xbf16>
    %c1_7 = arith.constant 1 : index
    %c0_8 = arith.constant 0 : index
    %c0_9 = arith.constant 0 : index
    %8 = vector.load %arg1[%c1_7, %c0_8, %c0_9] : memref<4x192x256xbf16, #tpu.memory_space<vmem>>, vector<1x192x256xbf16>
    %9 = vector.shape_cast %8 : vector<1x192x256xbf16> to vector<192x256xbf16>
    %cst_10 = arith.constant dense<0.000000e+00> : vector<144x256xf32>
    %10 = tpu.matmul %7, %9, %cst_10 {dimension_numbers = #tpu.dot_dimension_numbers<[1], [0], [0], [1], [0, 0, 1, 1], [], []>} : vector<144x192xbf16>, vector<192x256xbf16>, vector<144x256xf32> -> vector<144x256xf32>
    %c0_11 = arith.constant 0 : index
    %c0_12 = arith.constant 0 : index
    %11 = vector.load %arg20[%c0_11, %c0_12] : memref<176x256xf32, #tpu.memory_space<vmem>>, vector<144x256xf32>
    %12 = arith.addf %11, %10 : vector<144x256xf32>
    %c0_13 = arith.constant 0 : index
    %c0_14 = arith.constant 0 : index
    %13 = vector.load %arg20[%c0_13, %c0_14] : memref<176x256xf32, #tpu.memory_space<vmem>>, vector<144x256xf32>
    tpu.vector_store %arg20[%c0_13, %c0_14], %12 {strides = array<i32>} : memref<176x256xf32, #tpu.memory_space<vmem>>, vector<144x256xf32>,
    %c12 = arith.constant 12 : index
    %c0_15 = arith.constant 0 : index
    %14 = vector.load %arg0[%c12, %c0_15] : memref<176x192xf32, #tpu.memory_space<vmem>>, vector<144x192xf32>
    %15 = arith.truncf %14 : vector<144x192xf32> to vector<144x192xbf16>
    %c2 = arith.constant 2 : index
    %c0_16 = arith.constant 0 : index
    %c0_17 = arith.constant 0 : index
    %16 = vector.load %arg1[%c2, %c0_16, %c0_17] : memref<4x192x256xbf16, #tpu.memory_space<vmem>>, vector<1x192x256xbf16>
    %17 = vector.shape_cast %16 : vector<1x192x256xbf16> to vector<192x256xbf16>
    %cst_18 = arith.constant dense<0.000000e+00> : vector<144x256xf32>
    %18 = tpu.matmul %15, %17, %cst_18 {dimension_numbers = #tpu.dot_dimension_numbers<[1], [0], [0], [1], [0, 0, 1, 1], [], []>} : vector<144x192xbf16>, vector<192x256xbf16>, vector<144x256xf32> -> vector<144x256xf32>
    %c0_19 = arith.constant 0 : index
    %c0_20 = arith.constant 0 : index
    %19 = vector.load %arg20[%c0_19, %c0_20] : memref<176x256xf32, #tpu.memory_space<vmem>>, vector<144x256xf32>
    %20 = arith.addf %19, %18 : vector<144x256xf32>
    %c0_21 = arith.constant 0 : index
    %c0_22 = arith.constant 0 : index
    %21 = vector.load %arg20[%c0_21, %c0_22] : memref<176x256xf32, #tpu.memory_space<vmem>>, vector<144x256xf32>
    tpu.vector_store %arg20[%c0_21, %c0_22], %20 {strides = array<i32>} : memref<176x256xf32, #tpu.memory_space<vmem>>, vector<144x256xf32>,
    %c13 = arith.constant 13 : index
    %c0_23 = arith.constant 0 : index
    %22 = vector.load %arg0[%c13, %c0_23] : memref<176x192xf32, #tpu.memory_space<vmem>>, vector<144x192xf32>
    %23 = arith.truncf %22 : vector<144x192xf32> to vector<144x192xbf16>
    %c3 = arith.constant 3 : index
    %c0_24 = arith.constant 0 : index
    %c0_25 = arith.constant 0 : index
    %24 = vector.load %arg1[%c3, %c0_24, %c0_25] : memref<4x192x256xbf16, #tpu.memory_space<vmem>>, vector<1x192x256xbf16>
    %25 = vector.shape_cast %24 : vector<1x192x256xbf16> to vector<192x256xbf16>
    %cst_26 = arith.constant dense<0.000000e+00> : vector<144x256xf32>
    %26 = tpu.matmul %23, %25, %cst_26 {dimension_numbers = #tpu.dot_dimension_numbers<[1], [0], [0], [1], [0, 0, 1, 1], [], []>} : vector<144x192xbf16>, vector<192x256xbf16>, vector<144x256xf32> -> vector<144x256xf32>
    %c0_27 = arith.constant 0 : index
    %c0_28 = arith.constant 0 : index
    %27 = vector.load %arg20[%c0_27, %c0_28] : memref<176x256xf32, #tpu.memory_space<vmem>>, vector<144x256xf32>
    %28 = arith.addf %27, %26 : vector<144x256xf32>
    %c0_29 = arith.constant 0 : index
    %c0_30 = arith.constant 0 : index
    %29 = vector.load %arg20[%c0_29, %c0_30] : memref<176x256xf32, #tpu.memory_space<vmem>>, vector<144x256xf32>
    tpu.vector_store %arg20[%c0_29, %c0_30], %28 {strides = array<i32>} : memref<176x256xf32, #tpu.memory_space<vmem>>, vector<144x256xf32>,
    %c0_31 = arith.constant 0 : index
    %c0_32 = arith.constant 0 : index
    %30 = vector.load %arg6[%c0_31, %c0_32] : memref<72x256xf32, #tpu.memory_space<vmem>>, vector<72x256xf32>
    %cst_33 = arith.constant 0.000000e+00 : f32
    %31 = vector.broadcast %cst_33 : f32 to vector<1x256xf32>
    %cst_34 = arith.constant 0.000000e+00 : f32
    %32 = vector.broadcast %cst_34 : f32 to vector<1x256xf32>
    %c0_35 = arith.constant 0 : index
    %c0_36 = arith.constant 0 : index
    %33 = vector.load %arg20[%c0_35, %c0_36] : memref<176x256xf32, #tpu.memory_space<vmem>>, vector<72x256xf32>
    %34 = arith.mulf %33, %30 : vector<72x256xf32>
    %cst_37 = arith.constant dense<0.000000e+00> : vector<256xf32>
    %35 = vector.multi_reduction <add>, %34, %cst_37 [0] : vector<72x256xf32> to vector<256xf32>
    %36 = vector.shape_cast %35 : vector<256xf32> to vector<1x256xf32>
    %37 = arith.addf %31, %36 : vector<1x256xf32>
    %38 = arith.mulf %34, %34 : vector<72x256xf32>
    %cst_38 = arith.constant dense<0.000000e+00> : vector<256xf32>
    %39 = vector.multi_reduction <add>, %38, %cst_38 [0] : vector<72x256xf32> to vector<256xf32>
    %40 = vector.shape_cast %39 : vector<256xf32> to vector<1x256xf32>
    %41 = arith.addf %32, %40 : vector<1x256xf32>
    %c72 = arith.constant 72 : index
    %c0_39 = arith.constant 0 : index
    %42 = vector.load %arg20[%c72, %c0_39] : memref<176x256xf32, #tpu.memory_space<vmem>>, vector<72x256xf32>
    %43 = arith.mulf %42, %30 : vector<72x256xf32>
    %cst_40 = arith.constant dense<0.000000e+00> : vector<256xf32>
    %44 = vector.multi_reduction <add>, %43, %cst_40 [0] : vector<72x256xf32> to vector<256xf32>
    %45 = vector.shape_cast %44 : vector<256xf32> to vector<1x256xf32>
    %46 = arith.addf %37, %45 : vector<1x256xf32>
    %47 = arith.mulf %43, %43 : vector<72x256xf32>
    %cst_41 = arith.constant dense<0.000000e+00> : vector<256xf32>
    %48 = vector.multi_reduction <add>, %47, %cst_41 [0] : vector<72x256xf32> to vector<256xf32>
    %49 = vector.shape_cast %48 : vector<256xf32> to vector<1x256xf32>
    %50 = arith.addf %41, %49 : vector<1x256xf32>
    %51 = tpu.concatenate %46, %50 in 0 : vector<1x256xf32>, vector<1x256xf32> -> vector<2x256xf32>
    %c0_42 = arith.constant 0 : index
    %c0_43 = arith.constant 0 : index
    %52 = vector.load %arg9[%c0_42, %c0_43] : memref<256x16xf32, #tpu.memory_space<vmem>>, vector<256x16xf32>
    %cst_44 = arith.constant dense<0.000000e+00> : vector<2x16xf32>
    %53 = tpu.matmul %51, %52, %cst_44 {dimension_numbers = #tpu.dot_dimension_numbers<[1], [0], [0], [1], [0, 0, 1, 1], [], []>} : vector<2x256xf32>, vector<256x16xf32>, vector<2x16xf32> -> vector<2x16xf32>
    %54 = vector.extract_strided_slice %53 {offsets = [0, 0], sizes = [1, 16], strides = [1, 1]} : vector<2x16xf32> to vector<1x16xf32>
    %cst_45 = arith.constant 7.30994157E-4 : f32
    %55 = vector.broadcast %cst_45 : f32 to vector<1x16xf32>
    %56 = arith.mulf %54, %55 : vector<1x16xf32>
    %57 = vector.extract_strided_slice %53 {offsets = [1, 0], sizes = [1, 16], strides = [1, 1]} : vector<2x16xf32> to vector<1x16xf32>
    %cst_46 = arith.constant 7.30994157E-4 : f32
    %58 = vector.broadcast %cst_46 : f32 to vector<1x16xf32>
    %59 = arith.mulf %57, %58 : vector<1x16xf32>
    %60 = arith.mulf %56, %56 : vector<1x16xf32>
    %61 = arith.subf %59, %60 : vector<1x16xf32>
    %cst_47 = arith.constant 0.000000e+00 : f32
    %62 = vector.broadcast %cst_47 : f32 to vector<1x16xf32>
    %63 = arith.maximumf %61, %62 : vector<1x16xf32>
    %cst_48 = arith.constant 9.99999974E-6 : f32
    %64 = vector.broadcast %cst_48 : f32 to vector<1x16xf32>
    %65 = arith.addf %63, %64 : vector<1x16xf32>
    %66 = math.rsqrt %65 : vector<1x16xf32>
    %67 = tpu.concatenate %56, %66 in 0 : vector<1x16xf32>, vector<1x16xf32> -> vector<2x16xf32>
    %c0_49 = arith.constant 0 : index
    %c0_50 = arith.constant 0 : index
    %68 = vector.load %arg10[%c0_49, %c0_50] : memref<16x256xf32, #tpu.memory_space<vmem>>, vector<16x256xf32>
    %cst_51 = arith.constant dense<0.000000e+00> : vector<2x256xf32>
    %69 = tpu.matmul %67, %68, %cst_51 {dimension_numbers = #tpu.dot_dimension_numbers<[1], [0], [0], [1], [0, 0, 1, 1], [], []>} : vector<2x16xf32>, vector<16x256xf32>, vector<2x256xf32> -> vector<2x256xf32>
    %70 = vector.extract_strided_slice %69 {offsets = [0, 0], sizes = [1, 256], strides = [1, 1]} : vector<2x256xf32> to vector<1x256xf32>
    %71 = vector.extract_strided_slice %69 {offsets = [1, 0], sizes = [1, 256], strides = [1, 1]} : vector<2x256xf32> to vector<1x256xf32>
    %c0_52 = arith.constant 0 : index
    %c0_53 = arith.constant 0 : index
    %72 = vector.load %arg13[%c0_52, %c0_53] : memref<1x256xf32, #tpu.memory_space<vmem>>, vector<1x256xf32>
    %73 = arith.mulf %71, %72 : vector<1x256xf32>
    %c0_54 = arith.constant 0 : index
    %c0_55 = arith.constant 0 : index
    %74 = vector.load %arg20[%c0_54, %c0_55] : memref<176x256xf32, #tpu.memory_space<vmem>>, vector<144x256xf32>
    %75 = vector.broadcast %70 : vector<1x256xf32> to vector<144x256xf32>
    %76 = arith.subf %74, %75 : vector<144x256xf32>
    %77 = vector.broadcast %73 : vector<1x256xf32> to vector<144x256xf32>
    %78 = arith.mulf %76, %77 : vector<144x256xf32>
    %c0_56 = arith.constant 0 : index
    %c0_57 = arith.constant 0 : index
    %79 = vector.load %arg14[%c0_56, %c0_57] : memref<1x256xf32, #tpu.memory_space<vmem>>, vector<1x256xf32>
    %80 = vector.broadcast %79 : vector<1x256xf32> to vector<144x256xf32>
    %81 = arith.addf %78, %80 : vector<144x256xf32>
    %cst_58 = arith.constant 0.000000e+00 : f32
    %82 = vector.broadcast %cst_58 : f32 to vector<144x256xf32>
    %83 = arith.maximumf %81, %82 : vector<144x256xf32>
    %c0_59 = arith.constant 0 : index
    %c0_60 = arith.constant 0 : index
    %84 = vector.load %arg20[%c0_59, %c0_60] : memref<176x256xf32, #tpu.memory_space<vmem>>, vector<144x256xf32>
    tpu.vector_store %arg20[%c0_59, %c0_60], %83 {strides = array<i32>} : memref<176x256xf32, #tpu.memory_space<vmem>>, vector<144x256xf32>,
    %cst_61 = arith.constant 0.000000e+00 : f32
    %85 = vector.broadcast %cst_61 : f32 to vector<32x256xf32>
    %c144 = arith.constant 144 : index
    %c0_62 = arith.constant 0 : index
    %86 = vector.load %arg20[%c144, %c0_62] : memref<176x256xf32, #tpu.memory_space<vmem>>, vector<32x256xf32>
    tpu.vector_store %arg20[%c144, %c0_62], %85 {strides = array<i32>} : memref<176x256xf32, #tpu.memory_space<vmem>>, vector<32x256xf32>,
    %c0_63 = arith.constant 0 : index
    %c0_64 = arith.constant 0 : index
    %87 = vector.load %arg20[%c0_63, %c0_64] : memref<176x256xf32, #tpu.memory_space<vmem>>, vector<144x256xf32>
    %88 = arith.truncf %87 : vector<144x256xf32> to vector<144x256xbf16>
    %c0_65 = arith.constant 0 : index
    %c0_66 = arith.constant 0 : index
    %c0_67 = arith.constant 0 : index
    %89 = vector.load %arg2[%c0_65, %c0_66, %c0_67] : memref<4x256x128xbf16, #tpu.memory_space<vmem>>, vector<1x256x128xbf16>
    %90 = vector.shape_cast %89 : vector<1x256x128xbf16> to vector<256x128xbf16>
    %cst_68 = arith.constant dense<0.000000e+00> : vector<144x128xf32>
    %91 = tpu.matmul %88, %90, %cst_68 {dimension_numbers = #tpu.dot_dimension_numbers<[1], [0], [0], [1], [0, 0, 1, 1], [], []>} : vector<144x256xbf16>, vector<256x128xbf16>, vector<144x128xf32> -> vector<144x128xf32>
    %c0_69 = arith.constant 0 : index
    %c0_70 = arith.constant 0 : index
    %92 = vector.load %arg21[%c0_69, %c0_70] : memref<176x128xf32, #tpu.memory_space<vmem>>, vector<144x128xf32>
    tpu.vector_store %arg21[%c0_69, %c0_70], %91 {strides = array<i32>} : memref<176x128xf32, #tpu.memory_space<vmem>>, vector<144x128xf32>,
    %c1_71 = arith.constant 1 : index
    %c0_72 = arith.constant 0 : index
    %93 = vector.load %arg20[%c1_71, %c0_72] : memref<176x256xf32, #tpu.memory_space<vmem>>, vector<144x256xf32>
    %94 = arith.truncf %93 : vector<144x256xf32> to vector<144x256xbf16>
    %c1_73 = arith.constant 1 : index
    %c0_74 = arith.constant 0 : index
    %c0_75 = arith.constant 0 : index
    %95 = vector.load %arg2[%c1_73, %c0_74, %c0_75] : memref<4x256x128xbf16, #tpu.memory_space<vmem>>, vector<1x256x128xbf16>
    %96 = vector.shape_cast %95 : vector<1x256x128xbf16> to vector<256x128xbf16>
    %cst_76 = arith.constant dense<0.000000e+00> : vector<144x128xf32>
    %97 = tpu.matmul %94, %96, %cst_76 {dimension_numbers = #tpu.dot_dimension_numbers<[1], [0], [0], [1], [0, 0, 1, 1], [], []>} : vector<144x256xbf16>, vector<256x128xbf16>, vector<144x128xf32> -> vector<144x128xf32>
    %c0_77 = arith.constant 0 : index
    %c0_78 = arith.constant 0 : index
    %98 = vector.load %arg21[%c0_77, %c0_78] : memref<176x128xf32, #tpu.memory_space<vmem>>, vector<144x128xf32>
    %99 = arith.addf %98, %97 : vector<144x128xf32>
    %c0_79 = arith.constant 0 : index
    %c0_80 = arith.constant 0 : index
    %100 = vector.load %arg21[%c0_79, %c0_80] : memref<176x128xf32, #tpu.memory_space<vmem>>, vector<144x128xf32>
    tpu.vector_store %arg21[%c0_79, %c0_80], %99 {strides = array<i32>} : memref<176x128xf32, #tpu.memory_space<vmem>>, vector<144x128xf32>,
    %c12_81 = arith.constant 12 : index
    %c0_82 = arith.constant 0 : index
    %101 = vector.load %arg20[%c12_81, %c0_82] : memref<176x256xf32, #tpu.memory_space<vmem>>, vector<144x256xf32>
    %102 = arith.truncf %101 : vector<144x256xf32> to vector<144x256xbf16>
    %c2_83 = arith.constant 2 : index
    %c0_84 = arith.constant 0 : index
    %c0_85 = arith.constant 0 : index
    %103 = vector.load %arg2[%c2_83, %c0_84, %c0_85] : memref<4x256x128xbf16, #tpu.memory_space<vmem>>, vector<1x256x128xbf16>
    %104 = vector.shape_cast %103 : vector<1x256x128xbf16> to vector<256x128xbf16>
    %cst_86 = arith.constant dense<0.000000e+00> : vector<144x128xf32>
    %105 = tpu.matmul %102, %104, %cst_86 {dimension_numbers = #tpu.dot_dimension_numbers<[1], [0], [0], [1], [0, 0, 1, 1], [], []>} : vector<144x256xbf16>, vector<256x128xbf16>, vector<144x128xf32> -> vector<144x128xf32>
    %c0_87 = arith.constant 0 : index
    %c0_88 = arith.constant 0 : index
    %106 = vector.load %arg21[%c0_87, %c0_88] : memref<176x128xf32, #tpu.memory_space<vmem>>, vector<144x128xf32>
    %107 = arith.addf %106, %105 : vector<144x128xf32>
    %c0_89 = arith.constant 0 : index
    %c0_90 = arith.constant 0 : index
    %108 = vector.load %arg21[%c0_89, %c0_90] : memref<176x128xf32, #tpu.memory_space<vmem>>, vector<144x128xf32>
    tpu.vector_store %arg21[%c0_89, %c0_90], %107 {strides = array<i32>} : memref<176x128xf32, #tpu.memory_space<vmem>>, vector<144x128xf32>,
    %c13_91 = arith.constant 13 : index
    %c0_92 = arith.constant 0 : index
    %109 = vector.load %arg20[%c13_91, %c0_92] : memref<176x256xf32, #tpu.memory_space<vmem>>, vector<144x256xf32>
    %110 = arith.truncf %109 : vector<144x256xf32> to vector<144x256xbf16>
    %c3_93 = arith.constant 3 : index
    %c0_94 = arith.constant 0 : index
    %c0_95 = arith.constant 0 : index
    %111 = vector.load %arg2[%c3_93, %c0_94, %c0_95] : memref<4x256x128xbf16, #tpu.memory_space<vmem>>, vector<1x256x128xbf16>
    %112 = vector.shape_cast %111 : vector<1x256x128xbf16> to vector<256x128xbf16>
    %cst_96 = arith.constant dense<0.000000e+00> : vector<144x128xf32>
    %113 = tpu.matmul %110, %112, %cst_96 {dimension_numbers = #tpu.dot_dimension_numbers<[1], [0], [0], [1], [0, 0, 1, 1], [], []>} : vector<144x256xbf16>, vector<256x128xbf16>, vector<144x128xf32> -> vector<144x128xf32>
    %c0_97 = arith.constant 0 : index
    %c0_98 = arith.constant 0 : index
    %114 = vector.load %arg21[%c0_97, %c0_98] : memref<176x128xf32, #tpu.memory_space<vmem>>, vector<144x128xf32>
    %115 = arith.addf %114, %113 : vector<144x128xf32>
    %c0_99 = arith.constant 0 : index
    %c0_100 = arith.constant 0 : index
    %116 = vector.load %arg21[%c0_99, %c0_100] : memref<176x128xf32, #tpu.memory_space<vmem>>, vector<144x128xf32>
    tpu.vector_store %arg21[%c0_99, %c0_100], %115 {strides = array<i32>} : memref<176x128xf32, #tpu.memory_space<vmem>>, vector<144x128xf32>,
    %c0_101 = arith.constant 0 : index
    %c0_102 = arith.constant 0 : index
    %117 = vector.load %arg7[%c0_101, %c0_102] : memref<72x128xf32, #tpu.memory_space<vmem>>, vector<72x128xf32>
    %cst_103 = arith.constant 0.000000e+00 : f32
    %118 = vector.broadcast %cst_103 : f32 to vector<1x128xf32>
    %cst_104 = arith.constant 0.000000e+00 : f32
    %119 = vector.broadcast %cst_104 : f32 to vector<1x128xf32>
    %c0_105 = arith.constant 0 : index
    %c0_106 = arith.constant 0 : index
    %120 = vector.load %arg21[%c0_105, %c0_106] : memref<176x128xf32, #tpu.memory_space<vmem>>, vector<72x128xf32>
    %121 = arith.mulf %120, %117 : vector<72x128xf32>
    %cst_107 = arith.constant dense<0.000000e+00> : vector<128xf32>
    %122 = vector.multi_reduction <add>, %121, %cst_107 [0] : vector<72x128xf32> to vector<128xf32>
    %123 = vector.shape_cast %122 : vector<128xf32> to vector<1x128xf32>
    %124 = arith.addf %118, %123 : vector<1x128xf32>
    %125 = arith.mulf %121, %121 : vector<72x128xf32>
    %cst_108 = arith.constant dense<0.000000e+00> : vector<128xf32>
    %126 = vector.multi_reduction <add>, %125, %cst_108 [0] : vector<72x128xf32> to vector<128xf32>
    %127 = vector.shape_cast %126 : vector<128xf32> to vector<1x128xf32>
    %128 = arith.addf %119, %127 : vector<1x128xf32>
    %c72_109 = arith.constant 72 : index
    %c0_110 = arith.constant 0 : index
    %129 = vector.load %arg21[%c72_109, %c0_110] : memref<176x128xf32, #tpu.memory_space<vmem>>, vector<72x128xf32>
    %130 = arith.mulf %129, %117 : vector<72x128xf32>
    %cst_111 = arith.constant dense<0.000000e+00> : vector<128xf32>
    %131 = vector.multi_reduction <add>, %130, %cst_111 [0] : vector<72x128xf32> to vector<128xf32>
    %132 = vector.shape_cast %131 : vector<128xf32> to vector<1x128xf32>
    %133 = arith.addf %124, %132 : vector<1x128xf32>
    %134 = arith.mulf %130, %130 : vector<72x128xf32>
    %cst_112 = arith.constant dense<0.000000e+00> : vector<128xf32>
    %135 = vector.multi_reduction <add>, %134, %cst_112 [0] : vector<72x128xf32> to vector<128xf32>
    %136 = vector.shape_cast %135 : vector<128xf32> to vector<1x128xf32>
    %137 = arith.addf %128, %136 : vector<1x128xf32>
    %138 = tpu.concatenate %133, %137 in 0 : vector<1x128xf32>, vector<1x128xf32> -> vector<2x128xf32>
    %c0_113 = arith.constant 0 : index
    %c0_114 = arith.constant 0 : index
    %139 = vector.load %arg11[%c0_113, %c0_114] : memref<128x32xf32, #tpu.memory_space<vmem>>, vector<128x32xf32>
    %cst_115 = arith.constant dense<0.000000e+00> : vector<2x32xf32>
    %140 = tpu.matmul %138, %139, %cst_115 {dimension_numbers = #tpu.dot_dimension_numbers<[1], [0], [0], [1], [0, 0, 1, 1], [], []>} : vector<2x128xf32>, vector<128x32xf32>, vector<2x32xf32> -> vector<2x32xf32>
    %141 = vector.extract_strided_slice %140 {offsets = [0, 0], sizes = [1, 32], strides = [1, 1]} : vector<2x32xf32> to vector<1x32xf32>
    %cst_116 = arith.constant 0.00420168089 : f32
    %142 = vector.broadcast %cst_116 : f32 to vector<1x32xf32>
    %143 = arith.mulf %141, %142 : vector<1x32xf32>
    %144 = vector.extract_strided_slice %140 {offsets = [1, 0], sizes = [1, 32], strides = [1, 1]} : vector<2x32xf32> to vector<1x32xf32>
    %cst_117 = arith.constant 0.00420168089 : f32
    %145 = vector.broadcast %cst_117 : f32 to vector<1x32xf32>
    %146 = arith.mulf %144, %145 : vector<1x32xf32>
    %147 = arith.mulf %143, %143 : vector<1x32xf32>
    %148 = arith.subf %146, %147 : vector<1x32xf32>
    %cst_118 = arith.constant 0.000000e+00 : f32
    %149 = vector.broadcast %cst_118 : f32 to vector<1x32xf32>
    %150 = arith.maximumf %148, %149 : vector<1x32xf32>
    %cst_119 = arith.constant 9.99999974E-6 : f32
    %151 = vector.broadcast %cst_119 : f32 to vector<1x32xf32>
    %152 = arith.addf %150, %151 : vector<1x32xf32>
    %153 = math.rsqrt %152 : vector<1x32xf32>
    %154 = tpu.concatenate %143, %153 in 0 : vector<1x32xf32>, vector<1x32xf32> -> vector<2x32xf32>
    %c0_120 = arith.constant 0 : index
    %c0_121 = arith.constant 0 : index
    %155 = vector.load %arg12[%c0_120, %c0_121] : memref<32x128xf32, #tpu.memory_space<vmem>>, vector<32x128xf32>
    %cst_122 = arith.constant dense<0.000000e+00> : vector<2x128xf32>
    %156 = tpu.matmul %154, %155, %cst_122 {dimension_numbers = #tpu.dot_dimension_numbers<[1], [0], [0], [1], [0, 0, 1, 1], [], []>} : vector<2x32xf32>, vector<32x128xf32>, vector<2x128xf32> -> vector<2x128xf32>
    %157 = vector.extract_strided_slice %156 {offsets = [0, 0], sizes = [1, 128], strides = [1, 1]} : vector<2x128xf32> to vector<1x128xf32>
    %158 = vector.extract_strided_slice %156 {offsets = [1, 0], sizes = [1, 128], strides = [1, 1]} : vector<2x128xf32> to vector<1x128xf32>
    %c0_123 = arith.constant 0 : index
    %c0_124 = arith.constant 0 : index
    %159 = vector.load %arg15[%c0_123, %c0_124] : memref<1x128xf32, #tpu.memory_space<vmem>>, vector<1x128xf32>
    %160 = arith.mulf %158, %159 : vector<1x128xf32>
    %c0_125 = arith.constant 0 : index
    %c0_126 = arith.constant 0 : index
    %161 = vector.load %arg21[%c0_125, %c0_126] : memref<176x128xf32, #tpu.memory_space<vmem>>, vector<144x128xf32>
    %162 = vector.broadcast %157 : vector<1x128xf32> to vector<144x128xf32>
    %163 = arith.subf %161, %162 : vector<144x128xf32>
    %164 = vector.broadcast %160 : vector<1x128xf32> to vector<144x128xf32>
    %165 = arith.mulf %163, %164 : vector<144x128xf32>
    %c0_127 = arith.constant 0 : index
    %c0_128 = arith.constant 0 : index
    %166 = vector.load %arg16[%c0_127, %c0_128] : memref<1x128xf32, #tpu.memory_space<vmem>>, vector<1x128xf32>
    %167 = vector.broadcast %166 : vector<1x128xf32> to vector<144x128xf32>
    %168 = arith.addf %165, %167 : vector<144x128xf32>
    %cst_129 = arith.constant 0.000000e+00 : f32
    %169 = vector.broadcast %cst_129 : f32 to vector<144x128xf32>
    %170 = arith.maximumf %168, %169 : vector<144x128xf32>
    %c0_130 = arith.constant 0 : index
    %c0_131 = arith.constant 0 : index
    %171 = vector.load %arg21[%c0_130, %c0_131] : memref<176x128xf32, #tpu.memory_space<vmem>>, vector<144x128xf32>
    tpu.vector_store %arg21[%c0_130, %c0_131], %170 {strides = array<i32>} : memref<176x128xf32, #tpu.memory_space<vmem>>, vector<144x128xf32>,
    %cst_132 = arith.constant 0.000000e+00 : f32
    %172 = vector.broadcast %cst_132 : f32 to vector<32x128xf32>
    %c144_133 = arith.constant 144 : index
    %c0_134 = arith.constant 0 : index
    %173 = vector.load %arg21[%c144_133, %c0_134] : memref<176x128xf32, #tpu.memory_space<vmem>>, vector<32x128xf32>
    tpu.vector_store %arg21[%c144_133, %c0_134], %172 {strides = array<i32>} : memref<176x128xf32, #tpu.memory_space<vmem>>, vector<32x128xf32>,
    %c0_135 = arith.constant 0 : index
    %c0_136 = arith.constant 0 : index
    %174 = vector.load %arg21[%c0_135, %c0_136] : memref<176x128xf32, #tpu.memory_space<vmem>>, vector<144x128xf32>
    %175 = arith.truncf %174 : vector<144x128xf32> to vector<144x128xbf16>
    %c0_137 = arith.constant 0 : index
    %c0_138 = arith.constant 0 : index
    %c0_139 = arith.constant 0 : index
    %176 = vector.load %arg3[%c0_137, %c0_138, %c0_139] : memref<9x128x128xbf16, #tpu.memory_space<vmem>>, vector<1x128x128xbf16>
    %177 = vector.shape_cast %176 : vector<1x128x128xbf16> to vector<128x128xbf16>
    %cst_140 = arith.constant dense<0.000000e+00> : vector<144x128xf32>
    %178 = tpu.matmul %175, %177, %cst_140 {dimension_numbers = #tpu.dot_dimension_numbers<[1], [0], [0], [1], [0, 0, 1, 1], [], []>} : vector<144x128xbf16>, vector<128x128xbf16>, vector<144x128xf32> -> vector<144x128xf32>
    %c0_141 = arith.constant 0 : index
    %c0_142 = arith.constant 0 : index
    %179 = vector.load %arg22[%c0_141, %c0_142] : memref<176x128xf32, #tpu.memory_space<vmem>>, vector<144x128xf32>
    tpu.vector_store %arg22[%c0_141, %c0_142], %178 {strides = array<i32>} : memref<176x128xf32, #tpu.memory_space<vmem>>, vector<144x128xf32>,
    %c1_143 = arith.constant 1 : index
    %c0_144 = arith.constant 0 : index
    %180 = vector.load %arg21[%c1_143, %c0_144] : memref<176x128xf32, #tpu.memory_space<vmem>>, vector<144x128xf32>
    %181 = arith.truncf %180 : vector<144x128xf32> to vector<144x128xbf16>
    %c1_145 = arith.constant 1 : index
    %c0_146 = arith.constant 0 : index
    %c0_147 = arith.constant 0 : index
    %182 = vector.load %arg3[%c1_145, %c0_146, %c0_147] : memref<9x128x128xbf16, #tpu.memory_space<vmem>>, vector<1x128x128xbf16>
    %183 = vector.shape_cast %182 : vector<1x128x128xbf16> to vector<128x128xbf16>
    %cst_148 = arith.constant dense<0.000000e+00> : vector<144x128xf32>
    %184 = tpu.matmul %181, %183, %cst_148 {dimension_numbers = #tpu.dot_dimension_numbers<[1], [0], [0], [1], [0, 0, 1, 1], [], []>} : vector<144x128xbf16>, vector<128x128xbf16>, vector<144x128xf32> -> vector<144x128xf32>
    %c0_149 = arith.constant 0 : index
    %c0_150 = arith.constant 0 : index
    %185 = vector.load %arg22[%c0_149, %c0_150] : memref<176x128xf32, #tpu.memory_space<vmem>>, vector<144x128xf32>
    %186 = arith.addf %185, %184 : vector<144x128xf32>
    %c0_151 = arith.constant 0 : index
    %c0_152 = arith.constant 0 : index
    %187 = vector.load %arg22[%c0_151, %c0_152] : memref<176x128xf32, #tpu.memory_space<vmem>>, vector<144x128xf32>
    tpu.vector_store %arg22[%c0_151, %c0_152], %186 {strides = array<i32>} : memref<176x128xf32, #tpu.memory_space<vmem>>, vector<144x128xf32>,
    %c2_153 = arith.constant 2 : index
    %c0_154 = arith.constant 0 : index
    %188 = vector.load %arg21[%c2_153, %c0_154] : memref<176x128xf32, #tpu.memory_space<vmem>>, vector<144x128xf32>
    %189 = arith.truncf %188 : vector<144x128xf32> to vector<144x128xbf16>
    %c2_155 = arith.constant 2 : index
    %c0_156 = arith.constant 0 : index
    %c0_157 = arith.constant 0 : index
    %190 = vector.load %arg3[%c2_155, %c0_156, %c0_157] : memref<9x128x128xbf16, #tpu.memory_space<vmem>>, vector<1x128x128xbf16>
    %191 = vector.shape_cast %190 : vector<1x128x128xbf16> to vector<128x128xbf16>
    %cst_158 = arith.constant dense<0.000000e+00> : vector<144x128xf32>
    %192 = tpu.matmul %189, %191, %cst_158 {dimension_numbers = #tpu.dot_dimension_numbers<[1], [0], [0], [1], [0, 0, 1, 1], [], []>} : vector<144x128xbf16>, vector<128x128xbf16>, vector<144x128xf32> -> vector<144x128xf32>
    %c0_159 = arith.constant 0 : index
    %c0_160 = arith.constant 0 : index
    %193 = vector.load %arg22[%c0_159, %c0_160] : memref<176x128xf32, #tpu.memory_space<vmem>>, vector<144x128xf32>
    %194 = arith.addf %193, %192 : vector<144x128xf32>
    %c0_161 = arith.constant 0 : index
    %c0_162 = arith.constant 0 : index
    %195 = vector.load %arg22[%c0_161, %c0_162] : memref<176x128xf32, #tpu.memory_space<vmem>>, vector<144x128xf32>
    tpu.vector_store %arg22[%c0_161, %c0_162], %194 {strides = array<i32>} : memref<176x128xf32, #tpu.memory_space<vmem>>, vector<144x128xf32>,
    %c12_163 = arith.constant 12 : index
    %c0_164 = arith.constant 0 : index
    %196 = vector.load %arg21[%c12_163, %c0_164] : memref<176x128xf32, #tpu.memory_space<vmem>>, vector<144x128xf32>
    %197 = arith.truncf %196 : vector<144x128xf32> to vector<144x128xbf16>
    %c3_165 = arith.constant 3 : index
    %c0_166 = arith.constant 0 : index
    %c0_167 = arith.constant 0 : index
    %198 = vector.load %arg3[%c3_165, %c0_166, %c0_167] : memref<9x128x128xbf16, #tpu.memory_space<vmem>>, vector<1x128x128xbf16>
    %199 = vector.shape_cast %198 : vector<1x128x128xbf16> to vector<128x128xbf16>
    %cst_168 = arith.constant dense<0.000000e+00> : vector<144x128xf32>
    %200 = tpu.matmul %197, %199, %cst_168 {dimension_numbers = #tpu.dot_dimension_numbers<[1], [0], [0], [1], [0, 0, 1, 1], [], []>} : vector<144x128xbf16>, vector<128x128xbf16>, vector<144x128xf32> -> vector<144x128xf32>
    %c0_169 = arith.constant 0 : index
    %c0_170 = arith.constant 0 : index
    %201 = vector.load %arg22[%c0_169, %c0_170] : memref<176x128xf32, #tpu.memory_space<vmem>>, vector<144x128xf32>
    %202 = arith.addf %201, %200 : vector<144x128xf32>
    %c0_171 = arith.constant 0 : index
    %c0_172 = arith.constant 0 : index
    %203 = vector.load %arg22[%c0_171, %c0_172] : memref<176x128xf32, #tpu.memory_space<vmem>>, vector<144x128xf32>
    tpu.vector_store %arg22[%c0_171, %c0_172], %202 {strides = array<i32>} : memref<176x128xf32, #tpu.memory_space<vmem>>, vector<144x128xf32>,
    %c13_173 = arith.constant 13 : index
    %c0_174 = arith.constant 0 : index
    %204 = vector.load %arg21[%c13_173, %c0_174] : memref<176x128xf32, #tpu.memory_space<vmem>>, vector<144x128xf32>
    %205 = arith.truncf %204 : vector<144x128xf32> to vector<144x128xbf16>
    %c4 = arith.constant 4 : index
    %c0_175 = arith.constant 0 : index
    %c0_176 = arith.constant 0 : index
    %206 = vector.load %arg3[%c4, %c0_175, %c0_176] : memref<9x128x128xbf16, #tpu.memory_space<vmem>>, vector<1x128x128xbf16>
    %207 = vector.shape_cast %206 : vector<1x128x128xbf16> to vector<128x128xbf16>
    %cst_177 = arith.constant dense<0.000000e+00> : vector<144x128xf32>
    %208 = tpu.matmul %205, %207, %cst_177 {dimension_numbers = #tpu.dot_dimension_numbers<[1], [0], [0], [1], [0, 0, 1, 1], [], []>} : vector<144x128xbf16>, vector<128x128xbf16>, vector<144x128xf32> -> vector<144x128xf32>
    %c0_178 = arith.constant 0 : index
    %c0_179 = arith.constant 0 : index
    %209 = vector.load %arg22[%c0_178, %c0_179] : memref<176x128xf32, #tpu.memory_space<vmem>>, vector<144x128xf32>
    %210 = arith.addf %209, %208 : vector<144x128xf32>
    %c0_180 = arith.constant 0 : index
    %c0_181 = arith.constant 0 : index
    %211 = vector.load %arg22[%c0_180, %c0_181] : memref<176x128xf32, #tpu.memory_space<vmem>>, vector<144x128xf32>
    tpu.vector_store %arg22[%c0_180, %c0_181], %210 {strides = array<i32>} : memref<176x128xf32, #tpu.memory_space<vmem>>, vector<144x128xf32>,
    %c14 = arith.constant 14 : index
    %c0_182 = arith.constant 0 : index
    %212 = vector.load %arg21[%c14, %c0_182] : memref<176x128xf32, #tpu.memory_space<vmem>>, vector<144x128xf32>
    %213 = arith.truncf %212 : vector<144x128xf32> to vector<144x128xbf16>
    %c5 = arith.constant 5 : index
    %c0_183 = arith.constant 0 : index
    %c0_184 = arith.constant 0 : index
    %214 = vector.load %arg3[%c5, %c0_183, %c0_184] : memref<9x128x128xbf16, #tpu.memory_space<vmem>>, vector<1x128x128xbf16>
    %215 = vector.shape_cast %214 : vector<1x128x128xbf16> to vector<128x128xbf16>
    %cst_185 = arith.constant dense<0.000000e+00> : vector<144x128xf32>
    %216 = tpu.matmul %213, %215, %cst_185 {dimension_numbers = #tpu.dot_dimension_numbers<[1], [0], [0], [1], [0, 0, 1, 1], [], []>} : vector<144x128xbf16>, vector<128x128xbf16>, vector<144x128xf32> -> vector<144x128xf32>
    %c0_186 = arith.constant 0 : index
    %c0_187 = arith.constant 0 : index
    %217 = vector.load %arg22[%c0_186, %c0_187] : memref<176x128xf32, #tpu.memory_space<vmem>>, vector<144x128xf32>
    %218 = arith.addf %217, %216 : vector<144x128xf32>
    %c0_188 = arith.constant 0 : index
    %c0_189 = arith.constant 0 : index
    %219 = vector.load %arg22[%c0_188, %c0_189] : memref<176x128xf32, #tpu.memory_space<vmem>>, vector<144x128xf32>
    tpu.vector_store %arg22[%c0_188, %c0_189], %218 {strides = array<i32>} : memref<176x128xf32, #tpu.memory_space<vmem>>, vector<144x128xf32>,
    %c24 = arith.constant 24 : index
    %c0_190 = arith.constant 0 : index
    %220 = vector.load %arg21[%c24, %c0_190] : memref<176x128xf32, #tpu.memory_space<vmem>>, vector<144x128xf32>
    %221 = arith.truncf %220 : vector<144x128xf32> to vector<144x128xbf16>
    %c6 = arith.constant 6 : index
    %c0_191 = arith.constant 0 : index
    %c0_192 = arith.constant 0 : index
    %222 = vector.load %arg3[%c6, %c0_191, %c0_192] : memref<9x128x128xbf16, #tpu.memory_space<vmem>>, vector<1x128x128xbf16>
    %223 = vector.shape_cast %222 : vector<1x128x128xbf16> to vector<128x128xbf16>
    %cst_193 = arith.constant dense<0.000000e+00> : vector<144x128xf32>
    %224 = tpu.matmul %221, %223, %cst_193 {dimension_numbers = #tpu.dot_dimension_numbers<[1], [0], [0], [1], [0, 0, 1, 1], [], []>} : vector<144x128xbf16>, vector<128x128xbf16>, vector<144x128xf32> -> vector<144x128xf32>
    %c0_194 = arith.constant 0 : index
    %c0_195 = arith.constant 0 : index
    %225 = vector.load %arg22[%c0_194, %c0_195] : memref<176x128xf32, #tpu.memory_space<vmem>>, vector<144x128xf32>
    %226 = arith.addf %225, %224 : vector<144x128xf32>
    %c0_196 = arith.constant 0 : index
    %c0_197 = arith.constant 0 : index
    %227 = vector.load %arg22[%c0_196, %c0_197] : memref<176x128xf32, #tpu.memory_space<vmem>>, vector<144x128xf32>
    tpu.vector_store %arg22[%c0_196, %c0_197], %226 {strides = array<i32>} : memref<176x128xf32, #tpu.memory_space<vmem>>, vector<144x128xf32>,
    %c25 = arith.constant 25 : index
    %c0_198 = arith.constant 0 : index
    %228 = vector.load %arg21[%c25, %c0_198] : memref<176x128xf32, #tpu.memory_space<vmem>>, vector<144x128xf32>
    %229 = arith.truncf %228 : vector<144x128xf32> to vector<144x128xbf16>
    %c7 = arith.constant 7 : index
    %c0_199 = arith.constant 0 : index
    %c0_200 = arith.constant 0 : index
    %230 = vector.load %arg3[%c7, %c0_199, %c0_200] : memref<9x128x128xbf16, #tpu.memory_space<vmem>>, vector<1x128x128xbf16>
    %231 = vector.shape_cast %230 : vector<1x128x128xbf16> to vector<128x128xbf16>
    %cst_201 = arith.constant dense<0.000000e+00> : vector<144x128xf32>
    %232 = tpu.matmul %229, %231, %cst_201 {dimension_numbers = #tpu.dot_dimension_numbers<[1], [0], [0], [1], [0, 0, 1, 1], [], []>} : vector<144x128xbf16>, vector<128x128xbf16>, vector<144x128xf32> -> vector<144x128xf32>
    %c0_202 = arith.constant 0 : index
    %c0_203 = arith.constant 0 : index
    %233 = vector.load %arg22[%c0_202, %c0_203] : memref<176x128xf32, #tpu.memory_space<vmem>>, vector<144x128xf32>
    %234 = arith.addf %233, %232 : vector<144x128xf32>
    %c0_204 = arith.constant 0 : index
    %c0_205 = arith.constant 0 : index
    %235 = vector.load %arg22[%c0_204, %c0_205] : memref<176x128xf32, #tpu.memory_space<vmem>>, vector<144x128xf32>
    tpu.vector_store %arg22[%c0_204, %c0_205], %234 {strides = array<i32>} : memref<176x128xf32, #tpu.memory_space<vmem>>, vector<144x128xf32>,
    %c26 = arith.constant 26 : index
    %c0_206 = arith.constant 0 : index
    %236 = vector.load %arg21[%c26, %c0_206] : memref<176x128xf32, #tpu.memory_space<vmem>>, vector<144x128xf32>
    %237 = arith.truncf %236 : vector<144x128xf32> to vector<144x128xbf16>
    %c8 = arith.constant 8 : index
    %c0_207 = arith.constant 0 : index
    %c0_208 = arith.constant 0 : index
    %238 = vector.load %arg3[%c8, %c0_207, %c0_208] : memref<9x128x128xbf16, #tpu.memory_space<vmem>>, vector<1x128x128xbf16>
    %239 = vector.shape_cast %238 : vector<1x128x128xbf16> to vector<128x128xbf16>
    %cst_209 = arith.constant dense<0.000000e+00> : vector<144x128xf32>
    %240 = tpu.matmul %237, %239, %cst_209 {dimension_numbers = #tpu.dot_dimension_numbers<[1], [0], [0], [1], [0, 0, 1, 1], [], []>} : vector<144x128xbf16>, vector<128x128xbf16>, vector<144x128xf32> -> vector<144x128xf32>
    %c0_210 = arith.constant 0 : index
    %c0_211 = arith.constant 0 : index
    %241 = vector.load %arg22[%c0_210, %c0_211] : memref<176x128xf32, #tpu.memory_space<vmem>>, vector<144x128xf32>
    %242 = arith.addf %241, %240 : vector<144x128xf32>
    %c0_212 = arith.constant 0 : index
    %c0_213 = arith.constant 0 : index
    %243 = vector.load %arg22[%c0_212, %c0_213] : memref<176x128xf32, #tpu.memory_space<vmem>>, vector<144x128xf32>
    tpu.vector_store %arg22[%c0_212, %c0_213], %242 {strides = array<i32>} : memref<176x128xf32, #tpu.memory_space<vmem>>, vector<144x128xf32>,
    %c0_214 = arith.constant 0 : index
    %c0_215 = arith.constant 0 : index
    %244 = vector.load %arg8[%c0_214, %c0_215] : memref<72x1xf32, #tpu.memory_space<vmem>>, vector<72x1xf32>
    %cst_216 = arith.constant 0.000000e+00 : f32
    %245 = vector.broadcast %cst_216 : f32 to vector<1x128xf32>
    %cst_217 = arith.constant 0.000000e+00 : f32
    %246 = vector.broadcast %cst_217 : f32 to vector<1x128xf32>
    %c0_218 = arith.constant 0 : index
    %c0_219 = arith.constant 0 : index
    %247 = vector.load %arg22[%c0_218, %c0_219] : memref<176x128xf32, #tpu.memory_space<vmem>>, vector<72x128xf32>
    %248 = vector.broadcast %244 : vector<72x1xf32> to vector<72x128xf32>
    %249 = arith.mulf %247, %248 : vector<72x128xf32>
    %cst_220 = arith.constant dense<0.000000e+00> : vector<128xf32>
    %250 = vector.multi_reduction <add>, %249, %cst_220 [0] : vector<72x128xf32> to vector<128xf32>
    %251 = vector.shape_cast %250 : vector<128xf32> to vector<1x128xf32>
    %252 = arith.addf %245, %251 : vector<1x128xf32>
    %253 = arith.mulf %249, %249 : vector<72x128xf32>
    %cst_221 = arith.constant dense<0.000000e+00> : vector<128xf32>
    %254 = vector.multi_reduction <add>, %253, %cst_221 [0] : vector<72x128xf32> to vector<128xf32>
    %255 = vector.shape_cast %254 : vector<128xf32> to vector<1x128xf32>
    %256 = arith.addf %246, %255 : vector<1x128xf32>
    %c72_222 = arith.constant 72 : index
    %c0_223 = arith.constant 0 : index
    %257 = vector.load %arg22[%c72_222, %c0_223] : memref<176x128xf32, #tpu.memory_space<vmem>>, vector<72x128xf32>
    %258 = vector.broadcast %244 : vector<72x1xf32> to vector<72x128xf32>
    %259 = arith.mulf %257, %258 : vector<72x128xf32>
    %cst_224 = arith.constant dense<0.000000e+00> : vector<128xf32>
    %260 = vector.multi_reduction <add>, %259, %cst_224 [0] : vector<72x128xf32> to vector<128xf32>
    %261 = vector.shape_cast %260 : vector<128xf32> to vector<1x128xf32>
    %262 = arith.addf %252, %261 : vector<1x128xf32>
    %263 = arith.mulf %259, %259 : vector<72x128xf32>
    %cst_225 = arith.constant dense<0.000000e+00> : vector<128xf32>
    %264 = vector.multi_reduction <add>, %263, %cst_225 [0] : vector<72x128xf32> to vector<128xf32>
    %265 = vector.shape_cast %264 : vector<128xf32> to vector<1x128xf32>
    %266 = arith.addf %256, %265 : vector<1x128xf32>
    %267 = tpu.concatenate %262, %266 in 0 : vector<1x128xf32>, vector<1x128xf32> -> vector<2x128xf32>
    %268 = vector.extract_strided_slice %267 {offsets = [0, 0], sizes = [1, 128], strides = [1, 1]} : vector<2x128xf32> to vector<1x128xf32>
    %cst_226 = arith.constant 0.0357142873 : f32
    %269 = vector.broadcast %cst_226 : f32 to vector<1x128xf32>
    %270 = arith.mulf %268, %269 : vector<1x128xf32>
    %271 = vector.extract_strided_slice %267 {offsets = [1, 0], sizes = [1, 128], strides = [1, 1]} : vector<2x128xf32> to vector<1x128xf32>
    %cst_227 = arith.constant 0.0357142873 : f32
    %272 = vector.broadcast %cst_227 : f32 to vector<1x128xf32>
    %273 = arith.mulf %271, %272 : vector<1x128xf32>
    %274 = arith.mulf %270, %270 : vector<1x128xf32>
    %275 = arith.subf %273, %274 : vector<1x128xf32>
    %cst_228 = arith.constant 0.000000e+00 : f32
    %276 = vector.broadcast %cst_228 : f32 to vector<1x128xf32>
    %277 = arith.maximumf %275, %276 : vector<1x128xf32>
    %cst_229 = arith.constant 9.99999974E-6 : f32
    %278 = vector.broadcast %cst_229 : f32 to vector<1x128xf32>
    %279 = arith.addf %277, %278 : vector<1x128xf32>
    %280 = math.rsqrt %279 : vector<1x128xf32>
    %281 = tpu.concatenate %270, %280 in 0 : vector<1x128xf32>, vector<1x128xf32> -> vector<2x128xf32>
    %282 = vector.extract_strided_slice %281 {offsets = [0, 0], sizes = [1, 128], strides = [1, 1]} : vector<2x128xf32> to vector<1x128xf32>
    %283 = vector.extract_strided_slice %281 {offsets = [1, 0], sizes = [1, 128], strides = [1, 1]} : vector<2x128xf32> to vector<1x128xf32>
    %c0_230 = arith.constant 0 : index
    %c0_231 = arith.constant 0 : index
    %284 = vector.load %arg17[%c0_230, %c0_231] : memref<1x128xf32, #tpu.memory_space<vmem>>, vector<1x128xf32>
    %285 = arith.mulf %283, %284 : vector<1x128xf32>
    %c0_232 = arith.constant 0 : index
    %c0_233 = arith.constant 0 : index
    %286 = vector.load %arg22[%c0_232, %c0_233] : memref<176x128xf32, #tpu.memory_space<vmem>>, vector<144x128xf32>
    %287 = vector.broadcast %282 : vector<1x128xf32> to vector<144x128xf32>
    %288 = arith.subf %286, %287 : vector<144x128xf32>
    %289 = vector.broadcast %285 : vector<1x128xf32> to vector<144x128xf32>
    %290 = arith.mulf %288, %289 : vector<144x128xf32>
    %c0_234 = arith.constant 0 : index
    %c0_235 = arith.constant 0 : index
    %291 = vector.load %arg18[%c0_234, %c0_235] : memref<1x128xf32, #tpu.memory_space<vmem>>, vector<1x128xf32>
    %292 = vector.broadcast %291 : vector<1x128xf32> to vector<144x128xf32>
    %293 = arith.addf %290, %292 : vector<144x128xf32>
    %cst_236 = arith.constant 0.000000e+00 : f32
    %294 = vector.broadcast %cst_236 : f32 to vector<144x128xf32>
    %295 = arith.maximumf %293, %294 : vector<144x128xf32>
    %c0_237 = arith.constant 0 : index
    %c0_238 = arith.constant 0 : index
    %296 = vector.load %arg22[%c0_237, %c0_238] : memref<176x128xf32, #tpu.memory_space<vmem>>, vector<144x128xf32>
    tpu.vector_store %arg22[%c0_237, %c0_238], %295 {strides = array<i32>} : memref<176x128xf32, #tpu.memory_space<vmem>>, vector<144x128xf32>,
    %cst_239 = arith.constant 0.000000e+00 : f32
    %297 = vector.broadcast %cst_239 : f32 to vector<32x128xf32>
    %c144_240 = arith.constant 144 : index
    %c0_241 = arith.constant 0 : index
    %298 = vector.load %arg22[%c144_240, %c0_241] : memref<176x128xf32, #tpu.memory_space<vmem>>, vector<32x128xf32>
    tpu.vector_store %arg22[%c144_240, %c0_241], %297 {strides = array<i32>} : memref<176x128xf32, #tpu.memory_space<vmem>>, vector<32x128xf32>,
    %c0_242 = arith.constant 0 : index
    %c0_243 = arith.constant 0 : index
    %299 = tpu.strided_load %arg22[%c0_242, %c0_243] {strides = array<i32: 72, 1>} : memref<176x128xf32, #tpu.memory_space<vmem>>, vector<2x128xf32>
    %300 = arith.truncf %299 : vector<2x128xf32> to vector<2x128xbf16>
    %c0_244 = arith.constant 0 : index
    %c0_245 = arith.constant 0 : index
    %c0_246 = arith.constant 0 : index
    %301 = vector.load %arg4[%c0_244, %c0_245, %c0_246] : memref<14x128x2xbf16, #tpu.memory_space<vmem>>, vector<1x128x2xbf16>
    %302 = vector.shape_cast %301 : vector<1x128x2xbf16> to vector<128x2xbf16>
    %cst_247 = arith.constant dense<0.000000e+00> : vector<2x2xf32>
    %303 = tpu.matmul %300, %302, %cst_247 {dimension_numbers = #tpu.dot_dimension_numbers<[1], [0], [0], [1], [0, 0, 1, 1], [], []>} : vector<2x128xbf16>, vector<128x2xbf16>, vector<2x2xf32> -> vector<2x2xf32>
    %c1_248 = arith.constant 1 : index
    %c0_249 = arith.constant 0 : index
    %304 = tpu.strided_load %arg22[%c1_248, %c0_249] {strides = array<i32: 72, 1>} : memref<176x128xf32, #tpu.memory_space<vmem>>, vector<2x128xf32>
    %305 = arith.truncf %304 : vector<2x128xf32> to vector<2x128xbf16>
    %c1_250 = arith.constant 1 : index
    %c0_251 = arith.constant 0 : index
    %c0_252 = arith.constant 0 : index
    %306 = vector.load %arg4[%c1_250, %c0_251, %c0_252] : memref<14x128x2xbf16, #tpu.memory_space<vmem>>, vector<1x128x2xbf16>
    %307 = vector.shape_cast %306 : vector<1x128x2xbf16> to vector<128x2xbf16>
    %cst_253 = arith.constant dense<0.000000e+00> : vector<2x2xf32>
    %308 = tpu.matmul %305, %307, %cst_253 {dimension_numbers = #tpu.dot_dimension_numbers<[1], [0], [0], [1], [0, 0, 1, 1], [], []>} : vector<2x128xbf16>, vector<128x2xbf16>, vector<2x2xf32> -> vector<2x2xf32>
    %309 = arith.addf %303, %308 : vector<2x2xf32>
    %c2_254 = arith.constant 2 : index
    %c0_255 = arith.constant 0 : index
    %310 = tpu.strided_load %arg22[%c2_254, %c0_255] {strides = array<i32: 72, 1>} : memref<176x128xf32, #tpu.memory_space<vmem>>, vector<2x128xf32>
    %311 = arith.truncf %310 : vector<2x128xf32> to vector<2x128xbf16>
    %c2_256 = arith.constant 2 : index
    %c0_257 = arith.constant 0 : index
    %c0_258 = arith.constant 0 : index
    %312 = vector.load %arg4[%c2_256, %c0_257, %c0_258] : memref<14x128x2xbf16, #tpu.memory_space<vmem>>, vector<1x128x2xbf16>
    %313 = vector.shape_cast %312 : vector<1x128x2xbf16> to vector<128x2xbf16>
    %cst_259 = arith.constant dense<0.000000e+00> : vector<2x2xf32>
    %314 = tpu.matmul %311, %313, %cst_259 {dimension_numbers = #tpu.dot_dimension_numbers<[1], [0], [0], [1], [0, 0, 1, 1], [], []>} : vector<2x128xbf16>, vector<128x2xbf16>, vector<2x2xf32> -> vector<2x2xf32>
    %315 = arith.addf %309, %314 : vector<2x2xf32>
    %c3_260 = arith.constant 3 : index
    %c0_261 = arith.constant 0 : index
    %316 = tpu.strided_load %arg22[%c3_260, %c0_261] {strides = array<i32: 72, 1>} : memref<176x128xf32, #tpu.memory_space<vmem>>, vector<2x128xf32>
    %317 = arith.truncf %316 : vector<2x128xf32> to vector<2x128xbf16>
    %c3_262 = arith.constant 3 : index
    %c0_263 = arith.constant 0 : index
    %c0_264 = arith.constant 0 : index
    %318 = vector.load %arg4[%c3_262, %c0_263, %c0_264] : memref<14x128x2xbf16, #tpu.memory_space<vmem>>, vector<1x128x2xbf16>
    %319 = vector.shape_cast %318 : vector<1x128x2xbf16> to vector<128x2xbf16>
    %cst_265 = arith.constant dense<0.000000e+00> : vector<2x2xf32>
    %320 = tpu.matmul %317, %319, %cst_265 {dimension_numbers = #tpu.dot_dimension_numbers<[1], [0], [0], [1], [0, 0, 1, 1], [], []>} : vector<2x128xbf16>, vector<128x2xbf16>, vector<2x2xf32> -> vector<2x2xf32>
    %321 = arith.addf %315, %320 : vector<2x2xf32>
    %c4_266 = arith.constant 4 : index
    %c0_267 = arith.constant 0 : index
    %322 = tpu.strided_load %arg22[%c4_266, %c0_267] {strides = array<i32: 72, 1>} : memref<176x128xf32, #tpu.memory_space<vmem>>, vector<2x128xf32>
    %323 = arith.truncf %322 : vector<2x128xf32> to vector<2x128xbf16>
    %c4_268 = arith.constant 4 : index
    %c0_269 = arith.constant 0 : index
    %c0_270 = arith.constant 0 : index
    %324 = vector.load %arg4[%c4_268, %c0_269, %c0_270] : memref<14x128x2xbf16, #tpu.memory_space<vmem>>, vector<1x128x2xbf16>
    %325 = vector.shape_cast %324 : vector<1x128x2xbf16> to vector<128x2xbf16>
    %cst_271 = arith.constant dense<0.000000e+00> : vector<2x2xf32>
    %326 = tpu.matmul %323, %325, %cst_271 {dimension_numbers = #tpu.dot_dimension_numbers<[1], [0], [0], [1], [0, 0, 1, 1], [], []>} : vector<2x128xbf16>, vector<128x2xbf16>, vector<2x2xf32> -> vector<2x2xf32>
    %327 = arith.addf %321, %326 : vector<2x2xf32>
    %c5_272 = arith.constant 5 : index
    %c0_273 = arith.constant 0 : index
    %328 = tpu.strided_load %arg22[%c5_272, %c0_273] {strides = array<i32: 72, 1>} : memref<176x128xf32, #tpu.memory_space<vmem>>, vector<2x128xf32>
    %329 = arith.truncf %328 : vector<2x128xf32> to vector<2x128xbf16>
    %c5_274 = arith.constant 5 : index
    %c0_275 = arith.constant 0 : index
    %c0_276 = arith.constant 0 : index
    %330 = vector.load %arg4[%c5_274, %c0_275, %c0_276] : memref<14x128x2xbf16, #tpu.memory_space<vmem>>, vector<1x128x2xbf16>
    %331 = vector.shape_cast %330 : vector<1x128x2xbf16> to vector<128x2xbf16>
    %cst_277 = arith.constant dense<0.000000e+00> : vector<2x2xf32>
    %332 = tpu.matmul %329, %331, %cst_277 {dimension_numbers = #tpu.dot_dimension_numbers<[1], [0], [0], [1], [0, 0, 1, 1], [], []>} : vector<2x128xbf16>, vector<128x2xbf16>, vector<2x2xf32> -> vector<2x2xf32>
    %333 = arith.addf %327, %332 : vector<2x2xf32>
    %c6_278 = arith.constant 6 : index
    %c0_279 = arith.constant 0 : index
    %334 = tpu.strided_load %arg22[%c6_278, %c0_279] {strides = array<i32: 72, 1>} : memref<176x128xf32, #tpu.memory_space<vmem>>, vector<2x128xf32>
    %335 = arith.truncf %334 : vector<2x128xf32> to vector<2x128xbf16>
    %c6_280 = arith.constant 6 : index
    %c0_281 = arith.constant 0 : index
    %c0_282 = arith.constant 0 : index
    %336 = vector.load %arg4[%c6_280, %c0_281, %c0_282] : memref<14x128x2xbf16, #tpu.memory_space<vmem>>, vector<1x128x2xbf16>
    %337 = vector.shape_cast %336 : vector<1x128x2xbf16> to vector<128x2xbf16>
    %cst_283 = arith.constant dense<0.000000e+00> : vector<2x2xf32>
    %338 = tpu.matmul %335, %337, %cst_283 {dimension_numbers = #tpu.dot_dimension_numbers<[1], [0], [0], [1], [0, 0, 1, 1], [], []>} : vector<2x128xbf16>, vector<128x2xbf16>, vector<2x2xf32> -> vector<2x2xf32>
    %339 = arith.addf %333, %338 : vector<2x2xf32>
    %c12_284 = arith.constant 12 : index
    %c0_285 = arith.constant 0 : index
    %340 = tpu.strided_load %arg22[%c12_284, %c0_285] {strides = array<i32: 72, 1>} : memref<176x128xf32, #tpu.memory_space<vmem>>, vector<2x128xf32>
    %341 = arith.truncf %340 : vector<2x128xf32> to vector<2x128xbf16>
    %c7_286 = arith.constant 7 : index
    %c0_287 = arith.constant 0 : index
    %c0_288 = arith.constant 0 : index
    %342 = vector.load %arg4[%c7_286, %c0_287, %c0_288] : memref<14x128x2xbf16, #tpu.memory_space<vmem>>, vector<1x128x2xbf16>
    %343 = vector.shape_cast %342 : vector<1x128x2xbf16> to vector<128x2xbf16>
    %cst_289 = arith.constant dense<0.000000e+00> : vector<2x2xf32>
    %344 = tpu.matmul %341, %343, %cst_289 {dimension_numbers = #tpu.dot_dimension_numbers<[1], [0], [0], [1], [0, 0, 1, 1], [], []>} : vector<2x128xbf16>, vector<128x2xbf16>, vector<2x2xf32> -> vector<2x2xf32>
    %345 = arith.addf %339, %344 : vector<2x2xf32>
    %c13_290 = arith.constant 13 : index
    %c0_291 = arith.constant 0 : index
    %346 = tpu.strided_load %arg22[%c13_290, %c0_291] {strides = array<i32: 72, 1>} : memref<176x128xf32, #tpu.memory_space<vmem>>, vector<2x128xf32>
    %347 = arith.truncf %346 : vector<2x128xf32> to vector<2x128xbf16>
    %c8_292 = arith.constant 8 : index
    %c0_293 = arith.constant 0 : index
    %c0_294 = arith.constant 0 : index
    %348 = vector.load %arg4[%c8_292, %c0_293, %c0_294] : memref<14x128x2xbf16, #tpu.memory_space<vmem>>, vector<1x128x2xbf16>
    %349 = vector.shape_cast %348 : vector<1x128x2xbf16> to vector<128x2xbf16>
    %cst_295 = arith.constant dense<0.000000e+00> : vector<2x2xf32>
    %350 = tpu.matmul %347, %349, %cst_295 {dimension_numbers = #tpu.dot_dimension_numbers<[1], [0], [0], [1], [0, 0, 1, 1], [], []>} : vector<2x128xbf16>, vector<128x2xbf16>, vector<2x2xf32> -> vector<2x2xf32>
    %351 = arith.addf %345, %350 : vector<2x2xf32>
    %c14_296 = arith.constant 14 : index
    %c0_297 = arith.constant 0 : index
    %352 = tpu.strided_load %arg22[%c14_296, %c0_297] {strides = array<i32: 72, 1>} : memref<176x128xf32, #tpu.memory_space<vmem>>, vector<2x128xf32>
    %353 = arith.truncf %352 : vector<2x128xf32> to vector<2x128xbf16>
    %c9 = arith.constant 9 : index
    %c0_298 = arith.constant 0 : index
    %c0_299 = arith.constant 0 : index
    %354 = vector.load %arg4[%c9, %c0_298, %c0_299] : memref<14x128x2xbf16, #tpu.memory_space<vmem>>, vector<1x128x2xbf16>
    %355 = vector.shape_cast %354 : vector<1x128x2xbf16> to vector<128x2xbf16>
    %cst_300 = arith.constant dense<0.000000e+00> : vector<2x2xf32>
    %356 = tpu.matmul %353, %355, %cst_300 {dimension_numbers = #tpu.dot_dimension_numbers<[1], [0], [0], [1], [0, 0, 1, 1], [], []>} : vector<2x128xbf16>, vector<128x2xbf16>, vector<2x2xf32> -> vector<2x2xf32>
    %357 = arith.addf %351, %356 : vector<2x2xf32>
    %c15 = arith.constant 15 : index
    %c0_301 = arith.constant 0 : index
    %358 = tpu.strided_load %arg22[%c15, %c0_301] {strides = array<i32: 72, 1>} : memref<176x128xf32, #tpu.memory_space<vmem>>, vector<2x128xf32>
    %359 = arith.truncf %358 : vector<2x128xf32> to vector<2x128xbf16>
    %c10 = arith.constant 10 : index
    %c0_302 = arith.constant 0 : index
    %c0_303 = arith.constant 0 : index
    %360 = vector.load %arg4[%c10, %c0_302, %c0_303] : memref<14x128x2xbf16, #tpu.memory_space<vmem>>, vector<1x128x2xbf16>
    %361 = vector.shape_cast %360 : vector<1x128x2xbf16> to vector<128x2xbf16>
    %cst_304 = arith.constant dense<0.000000e+00> : vector<2x2xf32>
    %362 = tpu.matmul %359, %361, %cst_304 {dimension_numbers = #tpu.dot_dimension_numbers<[1], [0], [0], [1], [0, 0, 1, 1], [], []>} : vector<2x128xbf16>, vector<128x2xbf16>, vector<2x2xf32> -> vector<2x2xf32>
    %363 = arith.addf %357, %362 : vector<2x2xf32>
    %c16 = arith.constant 16 : index
    %c0_305 = arith.constant 0 : index
    %364 = tpu.strided_load %arg22[%c16, %c0_305] {strides = array<i32: 72, 1>} : memref<176x128xf32, #tpu.memory_space<vmem>>, vector<2x128xf32>
    %365 = arith.truncf %364 : vector<2x128xf32> to vector<2x128xbf16>
    %c11 = arith.constant 11 : index
    %c0_306 = arith.constant 0 : index
    %c0_307 = arith.constant 0 : index
    %366 = vector.load %arg4[%c11, %c0_306, %c0_307] : memref<14x128x2xbf16, #tpu.memory_space<vmem>>, vector<1x128x2xbf16>
    %367 = vector.shape_cast %366 : vector<1x128x2xbf16> to vector<128x2xbf16>
    %cst_308 = arith.constant dense<0.000000e+00> : vector<2x2xf32>
    %368 = tpu.matmul %365, %367, %cst_308 {dimension_numbers = #tpu.dot_dimension_numbers<[1], [0], [0], [1], [0, 0, 1, 1], [], []>} : vector<2x128xbf16>, vector<128x2xbf16>, vector<2x2xf32> -> vector<2x2xf32>
    %369 = arith.addf %363, %368 : vector<2x2xf32>
    %c17 = arith.constant 17 : index
    %c0_309 = arith.constant 0 : index
    %370 = tpu.strided_load %arg22[%c17, %c0_309] {strides = array<i32: 72, 1>} : memref<176x128xf32, #tpu.memory_space<vmem>>, vector<2x128xf32>
    %371 = arith.truncf %370 : vector<2x128xf32> to vector<2x128xbf16>
    %c12_310 = arith.constant 12 : index
    %c0_311 = arith.constant 0 : index
    %c0_312 = arith.constant 0 : index
    %372 = vector.load %arg4[%c12_310, %c0_311, %c0_312] : memref<14x128x2xbf16, #tpu.memory_space<vmem>>, vector<1x128x2xbf16>
    %373 = vector.shape_cast %372 : vector<1x128x2xbf16> to vector<128x2xbf16>
    %cst_313 = arith.constant dense<0.000000e+00> : vector<2x2xf32>
    %374 = tpu.matmul %371, %373, %cst_313 {dimension_numbers = #tpu.dot_dimension_numbers<[1], [0], [0], [1], [0, 0, 1, 1], [], []>} : vector<2x128xbf16>, vector<128x2xbf16>, vector<2x2xf32> -> vector<2x2xf32>
    %375 = arith.addf %369, %374 : vector<2x2xf32>
    %c18 = arith.constant 18 : index
    %c0_314 = arith.constant 0 : index
    %376 = tpu.strided_load %arg22[%c18, %c0_314] {strides = array<i32: 72, 1>} : memref<176x128xf32, #tpu.memory_space<vmem>>, vector<2x128xf32>
    %377 = arith.truncf %376 : vector<2x128xf32> to vector<2x128xbf16>
    %c13_315 = arith.constant 13 : index
    %c0_316 = arith.constant 0 : index
    %c0_317 = arith.constant 0 : index
    %378 = vector.load %arg4[%c13_315, %c0_316, %c0_317] : memref<14x128x2xbf16, #tpu.memory_space<vmem>>, vector<1x128x2xbf16>
    %379 = vector.shape_cast %378 : vector<1x128x2xbf16> to vector<128x2xbf16>
    %cst_318 = arith.constant dense<0.000000e+00> : vector<2x2xf32>
    %380 = tpu.matmul %377, %379, %cst_318 {dimension_numbers = #tpu.dot_dimension_numbers<[1], [0], [0], [1], [0, 0, 1, 1], [], []>} : vector<2x128xbf16>, vector<128x2xbf16>, vector<2x2xf32> -> vector<2x2xf32>
    %381 = arith.addf %375, %380 : vector<2x2xf32>
    %c0_319 = arith.constant 0 : index
    %c0_320 = arith.constant 0 : index
    %382 = vector.load %arg5[%c0_319, %c0_320] : memref<1x2xf32, #tpu.memory_space<vmem>>, vector<1x2xf32>
    %383 = vector.broadcast %382 : vector<1x2xf32> to vector<2x2xf32>
    %384 = arith.addf %381, %383 : vector<2x2xf32>
    %c0_321 = arith.constant 0 : index
    %c0_322 = arith.constant 0 : index
    %385 = vector.load %arg19[%c0_321, %c0_322] : memref<2x2xf32, #tpu.memory_space<vmem>>, vector<2x2xf32>
    tpu.vector_store %arg19[%c0_321, %c0_322], %384 {strides = array<i32>} : memref<2x2xf32, #tpu.memory_space<vmem>>, vector<2x2xf32>,
    return
  }
}

</mosaic_0001>

<llo_original>
// kernel: forward.1
$region0: #{forward.1}
  #allocation0 [shape = 'u32[]', space=smem, size = 0x4, offset = 0x4, fixed_abs, tag = 'smem constant byte address 0x4 - core index']
  #allocation1 [shape = 'u32[72,128]{1,0:T(1,128)}', space=vmem, size = 0x9000, scoped, tag = 'internal scratch']
  #allocation2 [shape = 'f32[176,256]{1,0:T(8,128)}', space=vmem, size = 0x2c000, scoped, tag = 'scratch operand']
  #allocation3 [shape = 'f32[176,128]{1,0:T(8,128)}', space=vmem, size = 0x16000, scoped, tag = 'scratch operand']
  #allocation4 [shape = 'f32[176,128]{1,0:T(8,128)}', space=vmem, size = 0x16000, scoped, tag = 'scratch operand']
  %s0 = inlined_call_operand.vmem [shape: f32[176,192], index: 0, kind: input, shape index: {}]
  %s1 = inlined_call_operand.vmem [shape: bf16[4,192,256], index: 1, kind: input, shape index: {}]
  %s2 = inlined_call_operand.vmem [shape: bf16[4,256,128], index: 2, kind: input, shape index: {}]
  %s3 = inlined_call_operand.vmem [shape: bf16[9,128,128], index: 3, kind: input, shape index: {}]
  %s4 = inlined_call_operand.vmem [shape: bf16[14,128,2], index: 4, kind: input, shape index: {}]
  %s5 = inlined_call_operand.vmem [shape: f32[1,2], index: 5, kind: input, shape index: {}]
  %s6 = inlined_call_operand.vmem [shape: f32[72,256], index: 6, kind: input, shape index: {}]
  %s7 = inlined_call_operand.vmem [shape: f32[72,128], index: 7, kind: input, shape index: {}]
  %s8 = inlined_call_operand.vmem [shape: f32[72,1], index: 8, kind: input, shape index: {}]
  %s9 = inlined_call_operand.vmem [shape: f32[256,16], index: 9, kind: input, shape index: {}]
  %s10 = inlined_call_operand.vmem [shape: f32[16,256], index: 10, kind: input, shape index: {}]
  %s11 = inlined_call_operand.vmem [shape: f32[128,32], index: 11, kind: input, shape index: {}]
  %s12 = inlined_call_operand.vmem [shape: f32[32,128], index: 12, kind: input, shape index: {}]
  %s13 = inlined_call_operand.vmem [shape: f32[1,256], index: 13, kind: input, shape index: {}]
  %s14 = inlined_call_operand.vmem [shape: f32[1,256], index: 14, kind: input, shape index: {}]
  %s15 = inlined_call_operand.vmem [shape: f32[1,128], index: 15, kind: input, shape index: {}]
  %s16 = inlined_call_operand.vmem [shape: f32[1,128], index: 16, kind: input, shape index: {}]
  %s17 = inlined_call_operand.vmem [shape: f32[1,128], index: 17, kind: input, shape index: {}]
  %s18 = inlined_call_operand.vmem [shape: f32[1,128], index: 18, kind: input, shape index: {}]
  %s19 = inlined_call_operand.hbm [shape: f32[2,2], index: 19, kind: output, shape index: {}]
  %s20 = sld [smem:[#allocation0]]
  $region86: #{forward.1} parent=0
    _
  %s22 = ssub.s32 1, %s20
  %s23 = scalar_select 0, %s22, %s20
  $region1: #{forward.1} parent=0
    #allocation5 [shape = 'u8[1024]{0}', space=vmem, size = 0x400, scoped, tag = 'output window, operand 0, single buffered']
    #allocation6 [shape = 's32[1]{0}', space=sflag, size = 0x4, scoped, tag = 'scoped memory for forward.1']
    %24 = vsyncpa [#allocation6], 0
    // Predicated region
    $region2: #{forward.1} parent=1 // pred_check
      _
    $region3: #{forward.1} parent=1 // pred_check_branch
      %26 = sbr.rel (0) target = $region5
    $region4: #{forward.1} parent=1 // pred_region
      _
    $region5: #{forward.1} parent=1 // pred_fallthru
      _
    // Predicated region
    $region6: #{forward.1} parent=1 // pred_check
      _
    $region7: #{forward.1} parent=1 // pred_check_branch
      %28 = sbr.rel (0) target = $region9
    $region8: #{forward.1} parent=1 // pred_region
      _
    $region9: #{forward.1} parent=1 // pred_fallthru
      _
    // Predicated region
    $region10: #{forward.1} parent=1 // pred_check
      _
    $region11: #{forward.1} parent=1 // pred_check_branch
      %30 = sbr.rel (0) target = $region13
    $region12: #{forward.1} parent=1 // pred_region
      _
    $region13: #{forward.1} parent=1 // pred_fallthru
      _
    // Predicated region
    $region14: #{forward.1} parent=1 // pred_check
      _
    $region15: #{forward.1} parent=1 // pred_check_branch
      %32 = sbr.rel (0) target = $region17
    $region16: #{forward.1} parent=1 // pred_region
      _
    $region17: #{forward.1} parent=1 // pred_fallthru
      _
    // Predicated region
    $region18: #{forward.1} parent=1 // pred_check
      _
    $region19: #{forward.1} parent=1 // pred_check_branch
      %34 = sbr.rel (0) target = $region21
    $region20: #{forward.1} parent=1 // pred_region
      _
    $region21: #{forward.1} parent=1 // pred_fallthru
      _
    // Predicated region
    $region22: #{forward.1} parent=1 // pred_check
      _
    $region23: #{forward.1} parent=1 // pred_check_branch
      %36 = sbr.rel (0) target = $region25
    $region24: #{forward.1} parent=1 // pred_region
      _
    $region25: #{forward.1} parent=1 // pred_fallthru
      _
    // Predicated region
    $region26: #{forward.1} parent=1 // pred_check
      _
    $region27: #{forward.1} parent=1 // pred_check_branch
      %38 = sbr.rel (0) target = $region29
    $region28: #{forward.1} parent=1 // pred_region
      _
    $region29: #{forward.1} parent=1 // pred_fallthru
      _
    // Predicated region
    $region30: #{forward.1} parent=1 // pred_check
      _
    $region31: #{forward.1} parent=1 // pred_check_branch
      %40 = sbr.rel (0) target = $region33
    $region32: #{forward.1} parent=1 // pred_region
      _
    $region33: #{forward.1} parent=1 // pred_fallthru
      _
    // Predicated region
    $region34: #{forward.1} parent=1 // pred_check
      _
    $region35: #{forward.1} parent=1 // pred_check_branch
      %42 = sbr.rel (0) target = $region37
    $region36: #{forward.1} parent=1 // pred_region
      _
    $region37: #{forward.1} parent=1 // pred_fallthru
      _
    // Predicated region
    $region38: #{forward.1} parent=1 // pred_check
      _
    $region39: #{forward.1} parent=1 // pred_check_branch
      %44 = sbr.rel (0) target = $region41
    $region40: #{forward.1} parent=1 // pred_region
      _
    $region41: #{forward.1} parent=1 // pred_fallthru
      _
    // Predicated region
    $region42: #{forward.1} parent=1 // pred_check
      _
    $region43: #{forward.1} parent=1 // pred_check_branch
      %46 = sbr.rel (0) target = $region45
    $region44: #{forward.1} parent=1 // pred_region
      _
    $region45: #{forward.1} parent=1 // pred_fallthru
      _
    // Predicated region
    $region46: #{forward.1} parent=1 // pred_check
      _
    $region47: #{forward.1} parent=1 // pred_check_branch
      %48 = sbr.rel (0) target = $region49
    $region48: #{forward.1} parent=1 // pred_region
      _
    $region49: #{forward.1} parent=1 // pred_fallthru
      _
    // Predicated region
    $region50: #{forward.1} parent=1 // pred_check
      _
    $region51: #{forward.1} parent=1 // pred_check_branch
      %50 = sbr.rel (0) target = $region53
    $region52: #{forward.1} parent=1 // pred_region
      _
    $region53: #{forward.1} parent=1 // pred_fallthru
      _
    // Predicated region
    $region54: #{forward.1} parent=1 // pred_check
      _
    $region55: #{forward.1} parent=1 // pred_check_branch
      %52 = sbr.rel (0) target = $region57
    $region56: #{forward.1} parent=1 // pred_region
      _
    $region57: #{forward.1} parent=1 // pred_fallthru
      _
    // Predicated region
    $region58: #{forward.1} parent=1 // pred_check
      _
    $region59: #{forward.1} parent=1 // pred_check_branch
      %54 = sbr.rel (0) target = $region61
    $region60: #{forward.1} parent=1 // pred_region
      _
    $region61: #{forward.1} parent=1 // pred_fallthru
      _
    // Predicated region
    $region62: #{forward.1} parent=1 // pred_check
      _
    $region63: #{forward.1} parent=1 // pred_check_branch
      %56 = sbr.rel (0) target = $region65
    $region64: #{forward.1} parent=1 // pred_region
      _
    $region65: #{forward.1} parent=1 // pred_fallthru
      _
    // Predicated region
    $region66: #{forward.1} parent=1 // pred_check
      _
    $region67: #{forward.1} parent=1 // pred_check_branch
      %58 = sbr.rel (0) target = $region69
    $region68: #{forward.1} parent=1 // pred_region
      _
    $region69: #{forward.1} parent=1 // pred_fallthru
      _
    // Predicated region
    $region70: #{forward.1} parent=1 // pred_check
      _
    $region71: #{forward.1} parent=1 // pred_check_branch
      %60 = sbr.rel (0) target = $region73
    $region72: #{forward.1} parent=1 // pred_region
      _
    $region73: #{forward.1} parent=1 // pred_fallthru
      _
    // Predicated region
    $region74: #{forward.1} parent=1 // pred_check
      _
    $region75: #{forward.1} parent=1 // pred_check_branch
      %62 = sbr.rel (0) target = $region77
    $region76: #{forward.1} parent=1 // pred_region
      _
    $region77: #{forward.1} parent=1 // pred_fallthru
      _
    %v64 = vld [vmem:[%s0] sm:$0xff]
    %v65 = vld [vmem:[%s0 + $0x8] sm:$0xff]
    %v66 = vld [vmem:[%s0 + $0x10] sm:$0xff]
    %v67 = vld [vmem:[%s0 + $0x18] sm:$0xff]
    %v68 = vld [vmem:[%s0 + $0x20] sm:$0xff]
    %v69 = vld [vmem:[%s0 + $0x28] sm:$0xff]
    %v70 = vld [vmem:[%s0 + $0x30] sm:$0xff]
    %v71 = vld [vmem:[%s0 + $0x38] sm:$0xff]
    %v72 = vld [vmem:[%s0 + $0x40] sm:$0xff]
    %v73 = vld [vmem:[%s0 + $0x48] sm:$0xff]
    %v74 = vld [vmem:[%s0 + $0x50] sm:$0xff]
    %v75 = vld [vmem:[%s0 + $0x58] sm:$0xff]
    %v76 = vld [vmem:[%s0 + $0x60] sm:$0xff]
    %v77 = vld [vmem:[%s0 + $0x68] sm:$0xff]
    %v78 = vld [vmem:[%s0 + $0x70] sm:$0xff]
    %v79 = vld [vmem:[%s0 + $0x78] sm:$0xff]
    %v80 = vld [vmem:[%s0 + $0x80] sm:$0xff]
    %v81 = vld [vmem:[%s0 + $0x88] sm:$0xff]
    %v82 = vld [vmem:[%s0 + $0x90] sm:$0xff]
    %v83 = vld [vmem:[%s0 + $0x98] sm:$0xff]
    %v84 = vld [vmem:[%s0 + $0xa0] sm:$0xff]
    %v85 = vld [vmem:[%s0 + $0xa8] sm:$0xff]
    %v86 = vld [vmem:[%s0 + $0xb0] sm:$0xff]
    %v87 = vld [vmem:[%s0 + $0xb8] sm:$0xff]
    %v88 = vld [vmem:[%s0 + $0xc0] sm:$0xff]
    %v89 = vld [vmem:[%s0 + $0xc8] sm:$0xff]
    %v90 = vld [vmem:[%s0 + $0xd0] sm:$0xff]
    %v91 = vld [vmem:[%s0 + $0xd8] sm:$0xff]
    %v92 = vld [vmem:[%s0 + $0xe0] sm:$0xff]
    %v93 = vld [vmem:[%s0 + $0xe8] sm:$0xff]
    %v94 = vld [vmem:[%s0 + $0xf0] sm:$0xff]
    %v95 = vld [vmem:[%s0 + $0xf8] sm:$0xff]
    %v96 = vld [vmem:[%s0 + $0x100] sm:$0xff]
    %v97 = vld [vmem:[%s0 + $0x108] sm:$0xff]
    %v98 = vld [vmem:[%s0 + $0x110] sm:$0xff]
    %v99 = vld [vmem:[%s0 + $0x118] sm:$0xff]
    %v100 = vpack.c.bf16 %v66, %v64
    %v101 = vpack.c.bf16 %v67, %v65
    %v102 = vpack.c.bf16 %v70, %v68
    %v103 = vpack.c.bf16 %v71, %v69
    %v104 = vpack.c.bf16 %v74, %v72
    %v105 = vpack.c.bf16 %v75, %v73
    %v106 = vpack.c.bf16 %v78, %v76
    %v107 = vpack.c.bf16 %v79, %v77
    %v108 = vpack.c.bf16 %v82, %v80
    %v109 = vpack.c.bf16 %v83, %v81
    %v110 = vpack.c.bf16 %v86, %v84
    %v111 = vpack.c.bf16 %v87, %v85
    %v112 = vpack.c.bf16 %v90, %v88
    %v113 = vpack.c.bf16 %v91, %v89
    %v114 = vpack.c.bf16 %v94, %v92
    %v115 = vpack.c.bf16 %v95, %v93
    %v116 = vpack.c.bf16 %v98, %v96
    %v117 = vpack.c.bf16 %v99, %v97
    %v118 = vld [vmem:[%s1] sm:$0xff]
    %v119 = vld [vmem:[%s1 + $0x8] sm:$0xff]
    %v120 = vld [vmem:[%s1 + $0x10] sm:$0xff]
    %v121 = vld [vmem:[%s1 + $0x18] sm:$0xff]
    %v122 = vld [vmem:[%s1 + $0x20] sm:$0xff]
    %v123 = vld [vmem:[%s1 + $0x28] sm:$0xff]
    %v124 = vld [vmem:[%s1 + $0x30] sm:$0xff]
    %v125 = vld [vmem:[%s1 + $0x38] sm:$0xff]
    %v126 = vld [vmem:[%s1 + $0x40] sm:$0xff]
    %v127 = vld [vmem:[%s1 + $0x48] sm:$0xff]
    %v128 = vld [vmem:[%s1 + $0x50] sm:$0xff]
    %v129 = vld [vmem:[%s1 + $0x58] sm:$0xff]
    %v130 = vld [vmem:[%s1 + $0x60] sm:$0xff]
    %v131 = vld [vmem:[%s1 + $0x68] sm:$0xff]
    %v132 = vld [vmem:[%s1 + $0x70] sm:$0xff]
    %v133 = vld [vmem:[%s1 + $0x78] sm:$0xff]
    %v134 = vld [vmem:[%s1 + $0x80] sm:$0xff]
    %v135 = vld [vmem:[%s1 + $0x88] sm:$0xff]
    %v136 = vld [vmem:[%s1 + $0x90] sm:$0xff]
    %v137 = vld [vmem:[%s1 + $0x98] sm:$0xff]
    %v138 = vld [vmem:[%s1 + $0xa0] sm:$0xff]
    %v139 = vld [vmem:[%s1 + $0xa8] sm:$0xff]
    %v140 = vld [vmem:[%s1 + $0xb0] sm:$0xff]
    %v141 = vld [vmem:[%s1 + $0xb8] sm:$0xff]
    %v166 = vunpack.c.l.b16 %v118
    %v167 = vunpack.c.h.b16 %v118
    %v168 = vunpack.c.l.b16 %v119
    %v169 = vunpack.c.h.b16 %v119
    %v170 = vunpack.c.l.b16 %v120
    %v171 = vunpack.c.h.b16 %v120
    %v172 = vunpack.c.l.b16 %v121
    %v173 = vunpack.c.h.b16 %v121
    %v174 = vunpack.c.l.b16 %v122
    %v175 = vunpack.c.h.b16 %v122
    %v176 = vunpack.c.l.b16 %v123
    %v177 = vunpack.c.h.b16 %v123
    %v178 = vunpack.c.l.b16 %v124
    %v179 = vunpack.c.h.b16 %v124
    %v180 = vunpack.c.l.b16 %v125
    %v181 = vunpack.c.h.b16 %v125
    %v182 = vunpack.c.l.b16 %v126
    %v183 = vunpack.c.h.b16 %v126
    %v184 = vunpack.c.l.b16 %v127
    %v185 = vunpack.c.h.b16 %v127
    %v186 = vunpack.c.l.b16 %v128
    %v187 = vunpack.c.h.b16 %v128
    %v188 = vunpack.c.l.b16 %v129
    %v189 = vunpack.c.h.b16 %v129
    %v190 = vunpack.c.l.b16 %v130
    %v191 = vunpack.c.h.b16 %v130
    %v192 = vunpack.c.l.b16 %v131
    %v193 = vunpack.c.h.b16 %v131
    %v194 = vunpack.c.l.b16 %v132
    %v195 = vunpack.c.h.b16 %v132
    %v196 = vunpack.c.l.b16 %v133
    %v197 = vunpack.c.h.b16 %v133
    %v198 = vunpack.c.l.b16 %v134
    %v199 = vunpack.c.h.b16 %v134
    %v200 = vunpack.c.l.b16 %v135
    %v201 = vunpack.c.h.b16 %v135
    %v202 = vunpack.c.l.b16 %v136
    %v203 = vunpack.c.h.b16 %v136
    %v204 = vunpack.c.l.b16 %v137
    %v205 = vunpack.c.h.b16 %v137
    %v206 = vunpack.c.l.b16 %v138
    %v207 = vunpack.c.h.b16 %v138
    %v208 = vunpack.c.l.b16 %v139
    %v209 = vunpack.c.h.b16 %v139
    %v210 = vunpack.c.l.b16 %v140
    %v211 = vunpack.c.h.b16 %v140
    %v212 = vunpack.c.l.b16 %v141
    %v213 = vunpack.c.h.b16 %v141
    %v214 = vpack.c.b16 %v168, %v166
    %v215 = vpack.c.b16 %v169, %v167
    %v216 = vpack.c.b16 %v172, %v170
    %v217 = vpack.c.b16 %v173, %v171
    %v218 = vpack.c.b16 %v176, %v174
    %v219 = vpack.c.b16 %v177, %v175
    %v220 = vpack.c.b16 %v180, %v178
    %v221 = vpack.c.b16 %v181, %v179
    %v222 = vpack.c.b16 %v184, %v182
    %v223 = vpack.c.b16 %v185, %v183
    %v224 = vpack.c.b16 %v188, %v186
    %v225 = vpack.c.b16 %v189, %v187
    %v226 = vpack.c.b16 %v192, %v190
    %v227 = vpack.c.b16 %v193, %v191
    %v228 = vpack.c.b16 %v196, %v194
    %v229 = vpack.c.b16 %v197, %v195
    %v230 = vpack.c.b16 %v200, %v198
    %v231 = vpack.c.b16 %v201, %v199
    %v232 = vpack.c.b16 %v204, %v202
    %v233 = vpack.c.b16 %v205, %v203
    %v234 = vpack.c.b16 %v208, %v206
    %v235 = vpack.c.b16 %v209, %v207
    %v236 = vpack.c.b16 %v212, %v210
    %v237 = vpack.c.b16 %v213, %v211
    %vm262 = vcmask 523264
    %v264 = vsel %vm262, %v101, 0
    %v267 = vsel %vm262, %v103, 0
    %v270 = vsel %vm262, %v105, 0
    %v273 = vsel %vm262, %v107, 0
    %v276 = vsel %vm262, %v109, 0
    %v279 = vsel %vm262, %v111, 0
    %v282 = vsel %vm262, %v113, 0
    %v285 = vsel %vm262, %v115, 0
    %v288 = vsel %vm262, %v117, 0
    %290 = vmatpush.bf16.msra.mxu0 %v228
    %291 = vmatpush.bf16.msra.mxu0 %v226
    %292 = vmatpush.bf16.msra.mxu0 %v224
    %293 = vmatpush.bf16.msra.mxu0 %v222
    %294 = vmatpush.bf16.msra.mxu0 %v220
    %295 = vmatpush.bf16.msra.mxu0 %v218
    %296 = vmatpush.bf16.msra.mxu0 %v216
    %297 = vmatpush.bf16.msra.mxu0 %v214
    %298 = vmatmul.bf16.gmra.mxu0 %v100
    %v299 = vpop.f32.mrf.mxu0
    %v300 = vadd.f32 0.0, %v299
    %v301 = vpop.f32.mrf.mxu0
    %v302 = vadd.f32 0.0, %v301
    %303 = vmatmul.bf16.gmra.mxu0 %v102
    %v304 = vpop.f32.mrf.mxu0
    %v305 = vadd.f32 0.0, %v304
    %v306 = vpop.f32.mrf.mxu0
    %v307 = vadd.f32 0.0, %v306
    %308 = vmatmul.bf16.gmra.mxu0 %v104
    %v309 = vpop.f32.mrf.mxu0
    %v310 = vadd.f32 0.0, %v309
    %v311 = vpop.f32.mrf.mxu0
    %v312 = vadd.f32 0.0, %v311
    %313 = vmatmul.bf16.gmra.mxu0 %v106
    %v314 = vpop.f32.mrf.mxu0
    %v315 = vadd.f32 0.0, %v314
    %v316 = vpop.f32.mrf.mxu0
    %v317 = vadd.f32 0.0, %v316
    %318 = vmatmul.bf16.gmra.mxu0 %v108
    %v319 = vpop.f32.mrf.mxu0
    %v320 = vadd.f32 0.0, %v319
    %v321 = vpop.f32.mrf.mxu0
    %v322 = vadd.f32 0.0, %v321
    %323 = vmatmul.bf16.gmra.mxu0 %v110
    %v324 = vpop.f32.mrf.mxu0
    %v325 = vadd.f32 0.0, %v324
    %v326 = vpop.f32.mrf.mxu0
    %v327 = vadd.f32 0.0, %v326
    %328 = vmatmul.bf16.gmra.mxu0 %v112
    %v329 = vpop.f32.mrf.mxu0
    %v330 = vadd.f32 0.0, %v329
    %v331 = vpop.f32.mrf.mxu0
    %v332 = vadd.f32 0.0, %v331
    %333 = vmatmul.bf16.gmra.mxu0 %v114
    %v334 = vpop.f32.mrf.mxu0
    %v335 = vadd.f32 0.0, %v334
    %v336 = vpop.f32.mrf.mxu0
    %v337 = vadd.f32 0.0, %v336
    %338 = vmatmul.bf16.gmra.mxu0 %v116
    %v339 = vpop.f32.mrf.mxu0
    %v340 = vadd.f32 0.0, %v339
    %v341 = vpop.f32.mrf.mxu0
    %v342 = vadd.f32 0.0, %v341
    %343 = vdwg.mxu0
    %344 = vmatpush.bf16.msra.mxu0 0
    %345 = vmatpush.bf16.msra.mxu0 0
    %346 = vmatpush.bf16.msra.mxu0 0
    %347 = vmatpush.bf16.msra.mxu0 0
    %348 = vmatpush.bf16.msra.mxu0 %v236
    %349 = vmatpush.bf16.msra.mxu0 %v234
    %350 = vmatpush.bf16.msra.mxu0 %v232
    %351 = vmatpush.bf16.msra.mxu0 %v230
    %352 = vmatmul.bf16.gmra.mxu0 %v264
    %v353 = vpop.f32.mrf.mxu0
    %v354 = vadd.f32 %v300, %v353
    %v355 = vpop.f32.mrf.mxu0
    %v356 = vadd.f32 %v302, %v355
    %357 = vmatmul.bf16.gmra.mxu0 %v267
    %v358 = vpop.f32.mrf.mxu0
    %v359 = vadd.f32 %v305, %v358
    %v360 = vpop.f32.mrf.mxu0
    %v361 = vadd.f32 %v307, %v360
    %362 = vmatmul.bf16.gmra.mxu0 %v270
    %v363 = vpop.f32.mrf.mxu0
    %v364 = vadd.f32 %v310, %v363
    %v365 = vpop.f32.mrf.mxu0
    %v366 = vadd.f32 %v312, %v365
    %367 = vmatmul.bf16.gmra.mxu0 %v273
    %v368 = vpop.f32.mrf.mxu0
    %v369 = vadd.f32 %v315, %v368
    %v370 = vpop.f32.mrf.mxu0
    %v371 = vadd.f32 %v317, %v370
    %372 = vmatmul.bf16.gmra.mxu0 %v276
    %v373 = vpop.f32.mrf.mxu0
    %v374 = vadd.f32 %v320, %v373
    %v375 = vpop.f32.mrf.mxu0
    %v376 = vadd.f32 %v322, %v375
    %377 = vmatmul.bf16.gmra.mxu0 %v279
    %v378 = vpop.f32.mrf.mxu0
    %v379 = vadd.f32 %v325, %v378
    %v380 = vpop.f32.mrf.mxu0
    %v381 = vadd.f32 %v327, %v380
    %382 = vmatmul.bf16.gmra.mxu0 %v282
    %v383 = vpop.f32.mrf.mxu0
    %v384 = vadd.f32 %v330, %v383
    %v385 = vpop.f32.mrf.mxu0
    %v386 = vadd.f32 %v332, %v385
    %387 = vmatmul.bf16.gmra.mxu0 %v285
    %v388 = vpop.f32.mrf.mxu0
    %v389 = vadd.f32 %v335, %v388
    %v390 = vpop.f32.mrf.mxu0
    %v391 = vadd.f32 %v337, %v390
    %392 = vmatmul.bf16.gmra.mxu0 %v288
    %v393 = vpop.f32.mrf.mxu0
    %v394 = vadd.f32 %v340, %v393
    %v395 = vpop.f32.mrf.mxu0
    %v396 = vadd.f32 %v342, %v395
    %397 = vdwg.mxu0
    %398 = vmatpush.bf16.msra.mxu0 %v229
    %399 = vmatpush.bf16.msra.mxu0 %v227
    %400 = vmatpush.bf16.msra.mxu0 %v225
    %401 = vmatpush.bf16.msra.mxu0 %v223
    %402 = vmatpush.bf16.msra.mxu0 %v221
    %403 = vmatpush.bf16.msra.mxu0 %v219
    %404 = vmatpush.bf16.msra.mxu0 %v217
    %405 = vmatpush.bf16.msra.mxu0 %v215
    %406 = vmatmul.bf16.gmra.mxu0 %v100
    %v407 = vpop.f32.mrf.mxu0
    %v408 = vadd.f32 0.0, %v407
    %v409 = vpop.f32.mrf.mxu0
    %v410 = vadd.f32 0.0, %v409
    %411 = vmatmul.bf16.gmra.mxu0 %v102
    %v412 = vpop.f32.mrf.mxu0
    %v413 = vadd.f32 0.0, %v412
    %v414 = vpop.f32.mrf.mxu0
    %v415 = vadd.f32 0.0, %v414
    %416 = vmatmul.bf16.gmra.mxu0 %v104
    %v417 = vpop.f32.mrf.mxu0
    %v418 = vadd.f32 0.0, %v417
    %v419 = vpop.f32.mrf.mxu0
    %v420 = vadd.f32 0.0, %v419
    %421 = vmatmul.bf16.gmra.mxu0 %v106
    %v422 = vpop.f32.mrf.mxu0
    %v423 = vadd.f32 0.0, %v422
    %v424 = vpop.f32.mrf.mxu0
    %v425 = vadd.f32 0.0, %v424
    %426 = vmatmul.bf16.gmra.mxu0 %v108
    %v427 = vpop.f32.mrf.mxu0
    %v428 = vadd.f32 0.0, %v427
    %v429 = vpop.f32.mrf.mxu0
    %v430 = vadd.f32 0.0, %v429
    %431 = vmatmul.bf16.gmra.mxu0 %v110
    %v432 = vpop.f32.mrf.mxu0
    %v433 = vadd.f32 0.0, %v432
    %v434 = vpop.f32.mrf.mxu0
    %v435 = vadd.f32 0.0, %v434
    %436 = vmatmul.bf16.gmra.mxu0 %v112
    %v437 = vpop.f32.mrf.mxu0
    %v438 = vadd.f32 0.0, %v437
    %v439 = vpop.f32.mrf.mxu0
    %v440 = vadd.f32 0.0, %v439
    %441 = vmatmul.bf16.gmra.mxu0 %v114
    %v442 = vpop.f32.mrf.mxu0
    %v443 = vadd.f32 0.0, %v442
    %v444 = vpop.f32.mrf.mxu0
    %v445 = vadd.f32 0.0, %v444
    %446 = vmatmul.bf16.gmra.mxu0 %v116
    %v447 = vpop.f32.mrf.mxu0
    %v448 = vadd.f32 0.0, %v447
    %v449 = vpop.f32.mrf.mxu0
    %v450 = vadd.f32 0.0, %v449
    %451 = vdwg.mxu0
    %452 = vmatpush.bf16.msra.mxu0 0
    %453 = vmatpush.bf16.msra.mxu0 0
    %454 = vmatpush.bf16.msra.mxu0 0
    %455 = vmatpush.bf16.msra.mxu0 0
    %456 = vmatpush.bf16.msra.mxu0 %v237
    %457 = vmatpush.bf16.msra.mxu0 %v235
    %458 = vmatpush.bf16.msra.mxu0 %v233
    %459 = vmatpush.bf16.msra.mxu0 %v231
    %460 = vmatmul.bf16.gmra.mxu0 %v264
    %v461 = vpop.f32.mrf.mxu0
    %v462 = vadd.f32 %v408, %v461
    %v463 = vpop.f32.mrf.mxu0
    %v464 = vadd.f32 %v410, %v463
    %465 = vmatmul.bf16.gmra.mxu0 %v267
    %v466 = vpop.f32.mrf.mxu0
    %v467 = vadd.f32 %v413, %v466
    %v468 = vpop.f32.mrf.mxu0
    %v469 = vadd.f32 %v415, %v468
    %470 = vmatmul.bf16.gmra.mxu0 %v270
    %v471 = vpop.f32.mrf.mxu0
    %v472 = vadd.f32 %v418, %v471
    %v473 = vpop.f32.mrf.mxu0
    %v474 = vadd.f32 %v420, %v473
    %475 = vmatmul.bf16.gmra.mxu0 %v273
    %v476 = vpop.f32.mrf.mxu0
    %v477 = vadd.f32 %v423, %v476
    %v478 = vpop.f32.mrf.mxu0
    %v479 = vadd.f32 %v425, %v478
    %480 = vmatmul.bf16.gmra.mxu0 %v276
    %v481 = vpop.f32.mrf.mxu0
    %v482 = vadd.f32 %v428, %v481
    %v483 = vpop.f32.mrf.mxu0
    %v484 = vadd.f32 %v430, %v483
    %485 = vmatmul.bf16.gmra.mxu0 %v279
    %v486 = vpop.f32.mrf.mxu0
    %v487 = vadd.f32 %v433, %v486
    %v488 = vpop.f32.mrf.mxu0
    %v489 = vadd.f32 %v435, %v488
    %490 = vmatmul.bf16.gmra.mxu0 %v282
    %v491 = vpop.f32.mrf.mxu0
    %v492 = vadd.f32 %v438, %v491
    %v493 = vpop.f32.mrf.mxu0
    %v494 = vadd.f32 %v440, %v493
    %495 = vmatmul.bf16.gmra.mxu0 %v285
    %v496 = vpop.f32.mrf.mxu0
    %v497 = vadd.f32 %v443, %v496
    %v498 = vpop.f32.mrf.mxu0
    %v499 = vadd.f32 %v445, %v498
    %500 = vmatmul.bf16.gmra.mxu0 %v288
    %v501 = vpop.f32.mrf.mxu0
    %v502 = vadd.f32 %v448, %v501
    %v503 = vpop.f32.mrf.mxu0
    %v504 = vadd.f32 %v450, %v503
    %505 = vdwg.mxu0
    %506 = vst [vmem:[#allocation2] sm:$0xff] %v354
    %507 = vst [vmem:[#allocation2 + $0x8] sm:$0xff] %v462
    %508 = vst [vmem:[#allocation2 + $0x10] sm:$0xff] %v356
    %509 = vst [vmem:[#allocation2 + $0x18] sm:$0xff] %v464
    %510 = vst [vmem:[#allocation2 + $0x20] sm:$0xff] %v359
    %511 = vst [vmem:[#allocation2 + $0x28] sm:$0xff] %v467
    %512 = vst [vmem:[#allocation2 + $0x30] sm:$0xff] %v361
    %513 = vst [vmem:[#allocation2 + $0x38] sm:$0xff] %v469
    %514 = vst [vmem:[#allocation2 + $0x40] sm:$0xff] %v364
    %515 = vst [vmem:[#allocation2 + $0x48] sm:$0xff] %v472
    %516 = vst [vmem:[#allocation2 + $0x50] sm:$0xff] %v366
    %517 = vst [vmem:[#allocation2 + $0x58] sm:$0xff] %v474
    %518 = vst [vmem:[#allocation2 + $0x60] sm:$0xff] %v369
    %519 = vst [vmem:[#allocation2 + $0x68] sm:$0xff] %v477
    %520 = vst [vmem:[#allocation2 + $0x70] sm:$0xff] %v371
    %521 = vst [vmem:[#allocation2 + $0x78] sm:$0xff] %v479
    %522 = vst [vmem:[#allocation2 + $0x80] sm:$0xff] %v374
    %523 = vst [vmem:[#allocation2 + $0x88] sm:$0xff] %v482
    %524 = vst [vmem:[#allocation2 + $0x90] sm:$0xff] %v376
    %525 = vst [vmem:[#allocation2 + $0x98] sm:$0xff] %v484
    %526 = vst [vmem:[#allocation2 + $0xa0] sm:$0xff] %v379
    %527 = vst [vmem:[#allocation2 + $0xa8] sm:$0xff] %v487
    %528 = vst [vmem:[#allocation2 + $0xb0] sm:$0xff] %v381
    %529 = vst [vmem:[#allocation2 + $0xb8] sm:$0xff] %v489
    %530 = vst [vmem:[#allocation2 + $0xc0] sm:$0xff] %v384
    %531 = vst [vmem:[#allocation2 + $0xc8] sm:$0xff] %v492
    %532 = vst [vmem:[#allocation2 + $0xd0] sm:$0xff] %v386
    %533 = vst [vmem:[#allocation2 + $0xd8] sm:$0xff] %v494
    %534 = vst [vmem:[#allocation2 + $0xe0] sm:$0xff] %v389
    %535 = vst [vmem:[#allocation2 + $0xe8] sm:$0xff] %v497
    %536 = vst [vmem:[#allocation2 + $0xf0] sm:$0xff] %v391
    %537 = vst [vmem:[#allocation2 + $0xf8] sm:$0xff] %v499
    %538 = vst [vmem:[#allocation2 + $0x100] sm:$0xff] %v394
    %539 = vst [vmem:[#allocation2 + $0x108] sm:$0xff] %v502
    %540 = vst [vmem:[#allocation2 + $0x110] sm:$0xff] %v396
    %541 = vst [vmem:[#allocation2 + $0x118] sm:$0xff] %v504
    %v542 = vld [vmem:[%s0] sm:$0xfe]
    %v543 = vld [vmem:[%s0 + $0x8] sm:$0xfe]
    %v544 = vld [vmem:[%s0 + $0x10] sm:$0xff]
    %v545 = vld [vmem:[%s0 + $0x18] sm:$0xff]
    %v546 = vld [vmem:[%s0 + $0x20] sm:$0xff]
    %v547 = vld [vmem:[%s0 + $0x28] sm:$0xff]
    %v548 = vld [vmem:[%s0 + $0x30] sm:$0xff]
    %v549 = vld [vmem:[%s0 + $0x38] sm:$0xff]
    %v550 = vld [vmem:[%s0 + $0x40] sm:$0xff]
    %v551 = vld [vmem:[%s0 + $0x48] sm:$0xff]
    %v552 = vld [vmem:[%s0 + $0x50] sm:$0xff]
    %v553 = vld [vmem:[%s0 + $0x58] sm:$0xff]
    %v554 = vld [vmem:[%s0 + $0x60] sm:$0xff]
    %v555 = vld [vmem:[%s0 + $0x68] sm:$0xff]
    %v556 = vld [vmem:[%s0 + $0x70] sm:$0xff]
    %v557 = vld [vmem:[%s0 + $0x78] sm:$0xff]
    %v558 = vld [vmem:[%s0 + $0x80] sm:$0xff]
    %v559 = vld [vmem:[%s0 + $0x88] sm:$0xff]
    %v560 = vld [vmem:[%s0 + $0x90] sm:$0xff]
    %v561 = vld [vmem:[%s0 + $0x98] sm:$0xff]
    %v562 = vld [vmem:[%s0 + $0xa0] sm:$0xff]
    %v563 = vld [vmem:[%s0 + $0xa8] sm:$0xff]
    %v564 = vld [vmem:[%s0 + $0xb0] sm:$0xff]
    %v565 = vld [vmem:[%s0 + $0xb8] sm:$0xff]
    %v566 = vld [vmem:[%s0 + $0xc0] sm:$0xff]
    %v567 = vld [vmem:[%s0 + $0xc8] sm:$0xff]
    %v568 = vld [vmem:[%s0 + $0xd0] sm:$0xff]
    %v569 = vld [vmem:[%s0 + $0xd8] sm:$0xff]
    %v570 = vld [vmem:[%s0 + $0xe0] sm:$0xff]
    %v571 = vld [vmem:[%s0 + $0xe8] sm:$0xff]
    %v572 = vld [vmem:[%s0 + $0xf0] sm:$0xff]
    %v573 = vld [vmem:[%s0 + $0xf8] sm:$0xff]
    %v574 = vld [vmem:[%s0 + $0x100] sm:$0xff]
    %v575 = vld [vmem:[%s0 + $0x108] sm:$0xff]
    %v576 = vld [vmem:[%s0 + $0x110] sm:$0xff]
    %v577 = vld [vmem:[%s0 + $0x118] sm:$0xff]
    %v578 = vld [vmem:[%s0 + $0x120] sm:$0x1]
    %v579 = vld [vmem:[%s0 + $0x128] sm:$0x1]
    %v580 = vpack.c.bf16 %v544, %v542
    %v581 = vpack.c.bf16 %v545, %v543
    %v582 = vpack.c.bf16 %v548, %v546
    %v583 = vpack.c.bf16 %v549, %v547
    %v584 = vpack.c.bf16 %v552, %v550
    %v585 = vpack.c.bf16 %v553, %v551
    %v586 = vpack.c.bf16 %v556, %v554
    %v587 = vpack.c.bf16 %v557, %v555
    %v588 = vpack.c.bf16 %v560, %v558
    %v589 = vpack.c.bf16 %v561, %v559
    %v590 = vpack.c.bf16 %v564, %v562
    %v591 = vpack.c.bf16 %v565, %v563
    %v592 = vpack.c.bf16 %v568, %v566
    %v593 = vpack.c.bf16 %v569, %v567
    %v594 = vpack.c.bf16 %v572, %v570
    %v595 = vpack.c.bf16 %v573, %v571
    %v596 = vpack.c.bf16 %v576, %v574
    %v597 = vpack.c.bf16 %v577, %v575
    %v598 = vpack.c.bf16 %v578, %v578
    %v599 = vpack.c.bf16 %v579, %v579
    %s600 = scalar_lea.vmem %s1, 192
    %v601 = vld [vmem:[%s600] sm:$0xff]
    %v602 = vld [vmem:[%s600 + $0x8] sm:$0xff]
    %v603 = vld [vmem:[%s600 + $0x10] sm:$0xff]
    %v604 = vld [vmem:[%s600 + $0x18] sm:$0xff]
    %v605 = vld [vmem:[%s600 + $0x20] sm:$0xff]
    %v606 = vld [vmem:[%s600 + $0x28] sm:$0xff]
    %v607 = vld [vmem:[%s600 + $0x30] sm:$0xff]
    %v608 = vld [vmem:[%s600 + $0x38] sm:$0xff]
    %v609 = vld [vmem:[%s600 + $0x40] sm:$0xff]
    %v610 = vld [vmem:[%s600 + $0x48] sm:$0xff]
    %v611 = vld [vmem:[%s600 + $0x50] sm:$0xff]
    %v612 = vld [vmem:[%s600 + $0x58] sm:$0xff]
    %v613 = vld [vmem:[%s600 + $0x60] sm:$0xff]
    %v614 = vld [vmem:[%s600 + $0x68] sm:$0xff]
    %v615 = vld [vmem:[%s600 + $0x70] sm:$0xff]
    %v616 = vld [vmem:[%s600 + $0x78] sm:$0xff]
    %v617 = vld [vmem:[%s600 + $0x80] sm:$0xff]
    %v618 = vld [vmem:[%s600 + $0x88] sm:$0xff]
    %v619 = vld [vmem:[%s600 + $0x90] sm:$0xff]
    %v620 = vld [vmem:[%s600 + $0x98] sm:$0xff]
    %v621 = vld [vmem:[%s600 + $0xa0] sm:$0xff]
    %v622 = vld [vmem:[%s600 + $0xa8] sm:$0xff]
    %v623 = vld [vmem:[%s600 + $0xb0] sm:$0xff]
    %v624 = vld [vmem:[%s600 + $0xb8] sm:$0xff]
    %vm625 = vsmask.f32 7424
    %v627 = vshrl.u32 %v580, 16
    %v629 = vshll.u32 %v580, 16
    %v631 = vrot.slane %v629, 1
    %v632 = vor.u32 %v627, %v631
    %v634 = vshll.u32 %v582, 16
    %v636 = vrot.slane %v634, 1
    %v637 = vsel %vm625, %v632, %v636
    %v639 = vshrl.u32 %v581, 16
    %v641 = vshll.u32 %v581, 16
    %v643 = vrot.slane %v641, 1
    %v644 = vor.u32 %v639, %v643
    %v646 = vshll.u32 %v583, 16
    %v648 = vrot.slane %v646, 1
    %v649 = vsel %vm625, %v644, %v648
    %v650 = vshrl.u32 %v582, 16
    %v652 = vor.u32 %v650, %v636
    %v654 = vshll.u32 %v584, 16
    %v656 = vrot.slane %v654, 1
    %v657 = vsel %vm625, %v652, %v656
    %v658 = vshrl.u32 %v583, 16
    %v660 = vor.u32 %v658, %v648
    %v662 = vshll.u32 %v585, 16
    %v664 = vrot.slane %v662, 1
    %v665 = vsel %vm625, %v660, %v664
    %v666 = vshrl.u32 %v584, 16
    %v668 = vor.u32 %v666, %v656
    %v670 = vshll.u32 %v586, 16
    %v672 = vrot.slane %v670, 1
    %v673 = vsel %vm625, %v668, %v672
    %v674 = vshrl.u32 %v585, 16
    %v676 = vor.u32 %v674, %v664
    %v678 = vshll.u32 %v587, 16
    %v680 = vrot.slane %v678, 1
    %v681 = vsel %vm625, %v676, %v680
    %v682 = vshrl.u32 %v586, 16
    %v684 = vor.u32 %v682, %v672
    %v686 = vshll.u32 %v588, 16
    %v688 = vrot.slane %v686, 1
    %v689 = vsel %vm625, %v684, %v688
    %v690 = vshrl.u32 %v587, 16
    %v692 = vor.u32 %v690, %v680
    %v694 = vshll.u32 %v589, 16
    %v696 = vrot.slane %v694, 1
    %v697 = vsel %vm625, %v692, %v696
    %v698 = vshrl.u32 %v588, 16
    %v700 = vor.u32 %v698, %v688
    %v702 = vshll.u32 %v590, 16
    %v704 = vrot.slane %v702, 1
    %v705 = vsel %vm625, %v700, %v704
    %v706 = vshrl.u32 %v589, 16
    %v708 = vor.u32 %v706, %v696
    %v710 = vshll.u32 %v591, 16
    %v712 = vrot.slane %v710, 1
    %v713 = vsel %vm625, %v708, %v712
    %v714 = vshrl.u32 %v590, 16
    %v716 = vor.u32 %v714, %v704
    %v718 = vshll.u32 %v592, 16
    %v720 = vrot.slane %v718, 1
    %v721 = vsel %vm625, %v716, %v720
    %v722 = vshrl.u32 %v591, 16
    %v724 = vor.u32 %v722, %v712
    %v726 = vshll.u32 %v593, 16
    %v728 = vrot.slane %v726, 1
    %v729 = vsel %vm625, %v724, %v728
    %v730 = vshrl.u32 %v592, 16
    %v732 = vor.u32 %v730, %v720
    %v734 = vshll.u32 %v594, 16
    %v736 = vrot.slane %v734, 1
    %v737 = vsel %vm625, %v732, %v736
    %v738 = vshrl.u32 %v593, 16
    %v740 = vor.u32 %v738, %v728
    %v742 = vshll.u32 %v595, 16
    %v744 = vrot.slane %v742, 1
    %v745 = vsel %vm625, %v740, %v744
    %v746 = vshrl.u32 %v594, 16
    %v748 = vor.u32 %v746, %v736
    %v750 = vshll.u32 %v596, 16
    %v752 = vrot.slane %v750, 1
    %v753 = vsel %vm625, %v748, %v752
    %v754 = vshrl.u32 %v595, 16
    %v756 = vor.u32 %v754, %v744
    %v758 = vshll.u32 %v597, 16
    %v760 = vrot.slane %v758, 1
    %v761 = vsel %vm625, %v756, %v760
    %v762 = vshrl.u32 %v596, 16
    %v764 = vor.u32 %v762, %v752
    %v766 = vshll.u32 %v598, 16
    %v768 = vrot.slane %v766, 1
    %v769 = vsel %vm625, %v764, %v768
    %v770 = vshrl.u32 %v597, 16
    %v772 = vor.u32 %v770, %v760
    %v774 = vshll.u32 %v599, 16
    %v776 = vrot.slane %v774, 1
    %v777 = vsel %vm625, %v772, %v776
    %v811 = vunpack.c.l.b16 %v601
    %v812 = vunpack.c.h.b16 %v601
    %v813 = vunpack.c.l.b16 %v602
    %v814 = vunpack.c.h.b16 %v602
    %v815 = vunpack.c.l.b16 %v603
    %v816 = vunpack.c.h.b16 %v603
    %v817 = vunpack.c.l.b16 %v604
    %v818 = vunpack.c.h.b16 %v604
    %v819 = vunpack.c.l.b16 %v605
    %v820 = vunpack.c.h.b16 %v605
    %v821 = vunpack.c.l.b16 %v606
    %v822 = vunpack.c.h.b16 %v606
    %v823 = vunpack.c.l.b16 %v607
    %v824 = vunpack.c.h.b16 %v607
    %v825 = vunpack.c.l.b16 %v608
    %v826 = vunpack.c.h.b16 %v608
    %v827 = vunpack.c.l.b16 %v609
    %v828 = vunpack.c.h.b16 %v609
    %v829 = vunpack.c.l.b16 %v610
    %v830 = vunpack.c.h.b16 %v610
    %v831 = vunpack.c.l.b16 %v611
    %v832 = vunpack.c.h.b16 %v611
    %v833 = vunpack.c.l.b16 %v612
    %v834 = vunpack.c.h.b16 %v612
    %v835 = vunpack.c.l.b16 %v613
    %v836 = vunpack.c.h.b16 %v613
    %v837 = vunpack.c.l.b16 %v614
    %v838 = vunpack.c.h.b16 %v614
    %v839 = vunpack.c.l.b16 %v615
    %v840 = vunpack.c.h.b16 %v615
    %v841 = vunpack.c.l.b16 %v616
    %v842 = vunpack.c.h.b16 %v616
    %v843 = vunpack.c.l.b16 %v617
    %v844 = vunpack.c.h.b16 %v617
    %v845 = vunpack.c.l.b16 %v618
    %v846 = vunpack.c.h.b16 %v618
    %v847 = vunpack.c.l.b16 %v619
    %v848 = vunpack.c.h.b16 %v619
    %v849 = vunpack.c.l.b16 %v620
    %v850 = vunpack.c.h.b16 %v620
    %v851 = vunpack.c.l.b16 %v621
    %v852 = vunpack.c.h.b16 %v621
    %v853 = vunpack.c.l.b16 %v622
    %v854 = vunpack.c.h.b16 %v622
    %v855 = vunpack.c.l.b16 %v623
    %v856 = vunpack.c.h.b16 %v623
    %v857 = vunpack.c.l.b16 %v624
    %v858 = vunpack.c.h.b16 %v624
    %v859 = vpack.c.b16 %v813, %v811
    %v860 = vpack.c.b16 %v814, %v812
    %v861 = vpack.c.b16 %v817, %v815
    %v862 = vpack.c.b16 %v818, %v816
    %v863 = vpack.c.b16 %v821, %v819
    %v864 = vpack.c.b16 %v822, %v820
    %v865 = vpack.c.b16 %v825, %v823
    %v866 = vpack.c.b16 %v826, %v824
    %v867 = vpack.c.b16 %v829, %v827
    %v868 = vpack.c.b16 %v830, %v828
    %v869 = vpack.c.b16 %v833, %v831
    %v870 = vpack.c.b16 %v834, %v832
    %v871 = vpack.c.b16 %v837, %v835
    %v872 = vpack.c.b16 %v838, %v836
    %v873 = vpack.c.b16 %v841, %v839
    %v874 = vpack.c.b16 %v842, %v840
    %v875 = vpack.c.b16 %v845, %v843
    %v876 = vpack.c.b16 %v846, %v844
    %v877 = vpack.c.b16 %v849, %v847
    %v878 = vpack.c.b16 %v850, %v848
    %v879 = vpack.c.b16 %v853, %v851
    %v880 = vpack.c.b16 %v854, %v852
    %v881 = vpack.c.b16 %v857, %v855
    %v882 = vpack.c.b16 %v858, %v856
    %v908 = vsel %vm262, %v649, 0
    %v911 = vsel %vm262, %v665, 0
    %v914 = vsel %vm262, %v681, 0
    %v917 = vsel %vm262, %v697, 0
    %v920 = vsel %vm262, %v713, 0
    %v923 = vsel %vm262, %v729, 0
    %v926 = vsel %vm262, %v745, 0
    %v929 = vsel %vm262, %v761, 0
    %v932 = vsel %vm262, %v777, 0
    %934 = vmatpush.bf16.msra.mxu0 %v873
    %935 = vmatpush.bf16.msra.mxu0 %v871
    %936 = vmatpush.bf16.msra.mxu0 %v869
    %937 = vmatpush.bf16.msra.mxu0 %v867
    %938 = vmatpush.bf16.msra.mxu0 %v865
    %939 = vmatpush.bf16.msra.mxu0 %v863
    %940 = vmatpush.bf16.msra.mxu0 %v861
    %941 = vmatpush.bf16.msra.mxu0 %v859
    %942 = vmatmul.bf16.gmra.mxu0 %v637
    %v943 = vpop.f32.mrf.mxu0
    %v944 = vadd.f32 0.0, %v943
    %v945 = vpop.f32.mrf.mxu0
    %v946 = vadd.f32 0.0, %v945
    %947 = vmatmul.bf16.gmra.mxu0 %v657
    %v948 = vpop.f32.mrf.mxu0
    %v949 = vadd.f32 0.0, %v948
    %v950 = vpop.f32.mrf.mxu0
    %v951 = vadd.f32 0.0, %v950
    %952 = vmatmul.bf16.gmra.mxu0 %v673
    %v953 = vpop.f32.mrf.mxu0
    %v954 = vadd.f32 0.0, %v953
    %v955 = vpop.f32.mrf.mxu0
    %v956 = vadd.f32 0.0, %v955
    %957 = vmatmul.bf16.gmra.mxu0 %v689
    %v958 = vpop.f32.mrf.mxu0
    %v959 = vadd.f32 0.0, %v958
    %v960 = vpop.f32.mrf.mxu0
    %v961 = vadd.f32 0.0, %v960
    %962 = vmatmul.bf16.gmra.mxu0 %v705
    %v963 = vpop.f32.mrf.mxu0
    %v964 = vadd.f32 0.0, %v963
    %v965 = vpop.f32.mrf.mxu0
    %v966 = vadd.f32 0.0, %v965
    %967 = vmatmul.bf16.gmra.mxu0 %v721
    %v968 = vpop.f32.mrf.mxu0
    %v969 = vadd.f32 0.0, %v968
    %v970 = vpop.f32.mrf.mxu0
    %v971 = vadd.f32 0.0, %v970
    %972 = vmatmul.bf16.gmra.mxu0 %v737
    %v973 = vpop.f32.mrf.mxu0
    %v974 = vadd.f32 0.0, %v973
    %v975 = vpop.f32.mrf.mxu0
    %v976 = vadd.f32 0.0, %v975
    %977 = vmatmul.bf16.gmra.mxu0 %v753
    %v978 = vpop.f32.mrf.mxu0
    %v979 = vadd.f32 0.0, %v978
    %v980 = vpop.f32.mrf.mxu0
    %v981 = vadd.f32 0.0, %v980
    %982 = vmatmul.bf16.gmra.mxu0 %v769
    %v983 = vpop.f32.mrf.mxu0
    %v984 = vadd.f32 0.0, %v983
    %v985 = vpop.f32.mrf.mxu0
    %v986 = vadd.f32 0.0, %v985
    %987 = vdwg.mxu0
    %988 = vmatpush.bf16.msra.mxu0 0
    %989 = vmatpush.bf16.msra.mxu0 0
    %990 = vmatpush.bf16.msra.mxu0 0
    %991 = vmatpush.bf16.msra.mxu0 0
    %992 = vmatpush.bf16.msra.mxu0 %v881
    %993 = vmatpush.bf16.msra.mxu0 %v879
    %994 = vmatpush.bf16.msra.mxu0 %v877
    %995 = vmatpush.bf16.msra.mxu0 %v875
    %996 = vmatmul.bf16.gmra.mxu0 %v908
    %v997 = vpop.f32.mrf.mxu0
    %v998 = vadd.f32 %v944, %v997
    %v999 = vpop.f32.mrf.mxu0
    %v1000 = vadd.f32 %v946, %v999
    %1001 = vmatmul.bf16.gmra.mxu0 %v911
    %v1002 = vpop.f32.mrf.mxu0
    %v1003 = vadd.f32 %v949, %v1002
    %v1004 = vpop.f32.mrf.mxu0
    %v1005 = vadd.f32 %v951, %v1004
    %1006 = vmatmul.bf16.gmra.mxu0 %v914
    %v1007 = vpop.f32.mrf.mxu0
    %v1008 = vadd.f32 %v954, %v1007
    %v1009 = vpop.f32.mrf.mxu0
    %v1010 = vadd.f32 %v956, %v1009
    %1011 = vmatmul.bf16.gmra.mxu0 %v917
    %v1012 = vpop.f32.mrf.mxu0
    %v1013 = vadd.f32 %v959, %v1012
    %v1014 = vpop.f32.mrf.mxu0
    %v1015 = vadd.f32 %v961, %v1014
    %1016 = vmatmul.bf16.gmra.mxu0 %v920
    %v1017 = vpop.f32.mrf.mxu0
    %v1018 = vadd.f32 %v964, %v1017
    %v1019 = vpop.f32.mrf.mxu0
    %v1020 = vadd.f32 %v966, %v1019
    %1021 = vmatmul.bf16.gmra.mxu0 %v923
    %v1022 = vpop.f32.mrf.mxu0
    %v1023 = vadd.f32 %v969, %v1022
    %v1024 = vpop.f32.mrf.mxu0
    %v1025 = vadd.f32 %v971, %v1024
    %1026 = vmatmul.bf16.gmra.mxu0 %v926
    %v1027 = vpop.f32.mrf.mxu0
    %v1028 = vadd.f32 %v974, %v1027
    %v1029 = vpop.f32.mrf.mxu0
    %v1030 = vadd.f32 %v976, %v1029
    %1031 = vmatmul.bf16.gmra.mxu0 %v929
    %v1032 = vpop.f32.mrf.mxu0
    %v1033 = vadd.f32 %v979, %v1032
    %v1034 = vpop.f32.mrf.mxu0
    %v1035 = vadd.f32 %v981, %v1034
    %1036 = vmatmul.bf16.gmra.mxu0 %v932
    %v1037 = vpop.f32.mrf.mxu0
    %v1038 = vadd.f32 %v984, %v1037
    %v1039 = vpop.f32.mrf.mxu0
    %v1040 = vadd.f32 %v986, %v1039
    %1041 = vdwg.mxu0
    %1042 = vmatpush.bf16.msra.mxu0 %v874
    %1043 = vmatpush.bf16.msra.mxu0 %v872
    %1044 = vmatpush.bf16.msra.mxu0 %v870
    %1045 = vmatpush.bf16.msra.mxu0 %v868
    %1046 = vmatpush.bf16.msra.mxu0 %v866
    %1047 = vmatpush.bf16.msra.mxu0 %v864
    %1048 = vmatpush.bf16.msra.mxu0 %v862
    %1049 = vmatpush.bf16.msra.mxu0 %v860
    %1050 = vmatmul.bf16.gmra.mxu0 %v637
    %v1051 = vpop.f32.mrf.mxu0
    %v1052 = vadd.f32 0.0, %v1051
    %v1053 = vpop.f32.mrf.mxu0
    %v1054 = vadd.f32 0.0, %v1053
    %1055 = vmatmul.bf16.gmra.mxu0 %v657
    %v1056 = vpop.f32.mrf.mxu0
    %v1057 = vadd.f32 0.0, %v1056
    %v1058 = vpop.f32.mrf.mxu0
    %v1059 = vadd.f32 0.0, %v1058
    %1060 = vmatmul.bf16.gmra.mxu0 %v673
    %v1061 = vpop.f32.mrf.mxu0
    %v1062 = vadd.f32 0.0, %v1061
    %v1063 = vpop.f32.mrf.mxu0
    %v1064 = vadd.f32 0.0, %v1063
    %1065 = vmatmul.bf16.gmra.mxu0 %v689
    %v1066 = vpop.f32.mrf.mxu0
    %v1067 = vadd.f32 0.0, %v1066
    %v1068 = vpop.f32.mrf.mxu0
    %v1069 = vadd.f32 0.0, %v1068
    %1070 = vmatmul.bf16.gmra.mxu0 %v705
    %v1071 = vpop.f32.mrf.mxu0
    %v1072 = vadd.f32 0.0, %v1071
    %v1073 = vpop.f32.mrf.mxu0
    %v1074 = vadd.f32 0.0, %v1073
    %1075 = vmatmul.bf16.gmra.mxu0 %v721
    %v1076 = vpop.f32.mrf.mxu0
    %v1077 = vadd.f32 0.0, %v1076
    %v1078 = vpop.f32.mrf.mxu0
    %v1079 = vadd.f32 0.0, %v1078
    %1080 = vmatmul.bf16.gmra.mxu0 %v737
    %v1081 = vpop.f32.mrf.mxu0
    %v1082 = vadd.f32 0.0, %v1081
    %v1083 = vpop.f32.mrf.mxu0
    %v1084 = vadd.f32 0.0, %v1083
    %1085 = vmatmul.bf16.gmra.mxu0 %v753
    %v1086 = vpop.f32.mrf.mxu0
    %v1087 = vadd.f32 0.0, %v1086
    %v1088 = vpop.f32.mrf.mxu0
    %v1089 = vadd.f32 0.0, %v1088
    %1090 = vmatmul.bf16.gmra.mxu0 %v769
    %v1091 = vpop.f32.mrf.mxu0
    %v1092 = vadd.f32 0.0, %v1091
    %v1093 = vpop.f32.mrf.mxu0
    %v1094 = vadd.f32 0.0, %v1093
    %1095 = vdwg.mxu0
    %1096 = vmatpush.bf16.msra.mxu0 0
    %1097 = vmatpush.bf16.msra.mxu0 0
    %1098 = vmatpush.bf16.msra.mxu0 0
    %1099 = vmatpush.bf16.msra.mxu0 0
    %1100 = vmatpush.bf16.msra.mxu0 %v882
    %1101 = vmatpush.bf16.msra.mxu0 %v880
    %1102 = vmatpush.bf16.msra.mxu0 %v878
    %1103 = vmatpush.bf16.msra.mxu0 %v876
    %1104 = vmatmul.bf16.gmra.mxu0 %v908
    %v1105 = vpop.f32.mrf.mxu0
    %v1106 = vadd.f32 %v1052, %v1105
    %v1107 = vpop.f32.mrf.mxu0
    %v1108 = vadd.f32 %v1054, %v1107
    %1109 = vmatmul.bf16.gmra.mxu0 %v911
    %v1110 = vpop.f32.mrf.mxu0
    %v1111 = vadd.f32 %v1057, %v1110
    %v1112 = vpop.f32.mrf.mxu0
    %v1113 = vadd.f32 %v1059, %v1112
    %1114 = vmatmul.bf16.gmra.mxu0 %v914
    %v1115 = vpop.f32.mrf.mxu0
    %v1116 = vadd.f32 %v1062, %v1115
    %v1117 = vpop.f32.mrf.mxu0
    %v1118 = vadd.f32 %v1064, %v1117
    %1119 = vmatmul.bf16.gmra.mxu0 %v917
    %v1120 = vpop.f32.mrf.mxu0
    %v1121 = vadd.f32 %v1067, %v1120
    %v1122 = vpop.f32.mrf.mxu0
    %v1123 = vadd.f32 %v1069, %v1122
    %1124 = vmatmul.bf16.gmra.mxu0 %v920
    %v1125 = vpop.f32.mrf.mxu0
    %v1126 = vadd.f32 %v1072, %v1125
    %v1127 = vpop.f32.mrf.mxu0
    %v1128 = vadd.f32 %v1074, %v1127
    %1129 = vmatmul.bf16.gmra.mxu0 %v923
    %v1130 = vpop.f32.mrf.mxu0
    %v1131 = vadd.f32 %v1077, %v1130
    %v1132 = vpop.f32.mrf.mxu0
    %v1133 = vadd.f32 %v1079, %v1132
    %1134 = vmatmul.bf16.gmra.mxu0 %v926
    %v1135 = vpop.f32.mrf.mxu0
    %v1136 = vadd.f32 %v1082, %v1135
    %v1137 = vpop.f32.mrf.mxu0
    %v1138 = vadd.f32 %v1084, %v1137
    %1139 = vmatmul.bf16.gmra.mxu0 %v929
    %v1140 = vpop.f32.mrf.mxu0
    %v1141 = vadd.f32 %v1087, %v1140
    %v1142 = vpop.f32.mrf.mxu0
    %v1143 = vadd.f32 %v1089, %v1142
    %1144 = vmatmul.bf16.gmra.mxu0 %v932
    %v1145 = vpop.f32.mrf.mxu0
    %v1146 = vadd.f32 %v1092, %v1145
    %v1147 = vpop.f32.mrf.mxu0
    %v1148 = vadd.f32 %v1094, %v1147
    %1149 = vdwg.mxu0
    %v1150 = vld [vmem:[#allocation2] sm:$0xff]
    %v1151 = vld [vmem:[#allocation2 + $0x8] sm:$0xff]
    %v1152 = vld [vmem:[#allocation2 + $0x10] sm:$0xff]
    %v1153 = vld [vmem:[#allocation2 + $0x18] sm:$0xff]
    %v1154 = vld [vmem:[#allocation2 + $0x20] sm:$0xff]
    %v1155 = vld [vmem:[#allocation2 + $0x28] sm:$0xff]
    %v1156 = vld [vmem:[#allocation2 + $0x30] sm:$0xff]
    %v1157 = vld [vmem:[#allocation2 + $0x38] sm:$0xff]
    %v1158 = vld [vmem:[#allocation2 + $0x40] sm:$0xff]
    %v1159 = vld [vmem:[#allocation2 + $0x48] sm:$0xff]
    %v1160 = vld [vmem:[#allocation2 + $0x50] sm:$0xff]
    %v1161 = vld [vmem:[#allocation2 + $0x58] sm:$0xff]
    %v1162 = vld [vmem:[#allocation2 + $0x60] sm:$0xff]
    %v1163 = vld [vmem:[#allocation2 + $0x68] sm:$0xff]
    %v1164 = vld [vmem:[#allocation2 + $0x70] sm:$0xff]
    %v1165 = vld [vmem:[#allocation2 + $0x78] sm:$0xff]
    %v1166 = vld [vmem:[#allocation2 + $0x80] sm:$0xff]
    %v1167 = vld [vmem:[#allocation2 + $0x88] sm:$0xff]
    %v1168 = vld [vmem:[#allocation2 + $0x90] sm:$0xff]
    %v1169 = vld [vmem:[#allocation2 + $0x98] sm:$0xff]
    %v1170 = vld [vmem:[#allocation2 + $0xa0] sm:$0xff]
    %v1171 = vld [vmem:[#allocation2 + $0xa8] sm:$0xff]
    %v1172 = vld [vmem:[#allocation2 + $0xb0] sm:$0xff]
    %v1173 = vld [vmem:[#allocation2 + $0xb8] sm:$0xff]
    %v1174 = vld [vmem:[#allocation2 + $0xc0] sm:$0xff]
    %v1175 = vld [vmem:[#allocation2 + $0xc8] sm:$0xff]
    %v1176 = vld [vmem:[#allocation2 + $0xd0] sm:$0xff]
    %v1177 = vld [vmem:[#allocation2 + $0xd8] sm:$0xff]
    %v1178 = vld [vmem:[#allocation2 + $0xe0] sm:$0xff]
    %v1179 = vld [vmem:[#allocation2 + $0xe8] sm:$0xff]
    %v1180 = vld [vmem:[#allocation2 + $0xf0] sm:$0xff]
    %v1181 = vld [vmem:[#allocation2 + $0xf8] sm:$0xff]
    %v1182 = vld [vmem:[#allocation2 + $0x100] sm:$0xff]
    %v1183 = vld [vmem:[#allocation2 + $0x108] sm:$0xff]
    %v1184 = vld [vmem:[#allocation2 + $0x110] sm:$0xff]
    %v1185 = vld [vmem:[#allocation2 + $0x118] sm:$0xff]
    %v1186 = vadd.f32 %v1150, %v998
    %v1187 = vadd.f32 %v1151, %v1106
    %v1188 = vadd.f32 %v1152, %v1000
    %v1189 = vadd.f32 %v1153, %v1108
    %v1190 = vadd.f32 %v1154, %v1003
    %v1191 = vadd.f32 %v1155, %v1111
    %v1192 = vadd.f32 %v1156, %v1005
    %v1193 = vadd.f32 %v1157, %v1113
    %v1194 = vadd.f32 %v1158, %v1008
    %v1195 = vadd.f32 %v1159, %v1116
    %v1196 = vadd.f32 %v1160, %v1010
    %v1197 = vadd.f32 %v1161, %v1118
    %v1198 = vadd.f32 %v1162, %v1013
    %v1199 = vadd.f32 %v1163, %v1121
    %v1200 = vadd.f32 %v1164, %v1015
    %v1201 = vadd.f32 %v1165, %v1123
    %v1202 = vadd.f32 %v1166, %v1018
    %v1203 = vadd.f32 %v1167, %v1126
    %v1204 = vadd.f32 %v1168, %v1020
    %v1205 = vadd.f32 %v1169, %v1128
    %v1206 = vadd.f32 %v1170, %v1023
    %v1207 = vadd.f32 %v1171, %v1131
    %v1208 = vadd.f32 %v1172, %v1025
    %v1209 = vadd.f32 %v1173, %v1133
    %v1210 = vadd.f32 %v1174, %v1028
    %v1211 = vadd.f32 %v1175, %v1136
    %v1212 = vadd.f32 %v1176, %v1030
    %v1213 = vadd.f32 %v1177, %v1138
    %v1214 = vadd.f32 %v1178, %v1033
    %v1215 = vadd.f32 %v1179, %v1141
    %v1216 = vadd.f32 %v1180, %v1035
    %v1217 = vadd.f32 %v1181, %v1143
    %v1218 = vadd.f32 %v1182, %v1038
    %v1219 = vadd.f32 %v1183, %v1146
    %v1220 = vadd.f32 %v1184, %v1040
    %v1221 = vadd.f32 %v1185, %v1148
    %1222 = vst [vmem:[#allocation2] sm:$0xff] %v1186
    %1223 = vst [vmem:[#allocation2 + $0x8] sm:$0xff] %v1187
    %1224 = vst [vmem:[#allocation2 + $0x10] sm:$0xff] %v1188
    %1225 = vst [vmem:[#allocation2 + $0x18] sm:$0xff] %v1189
    %1226 = vst [vmem:[#allocation2 + $0x20] sm:$0xff] %v1190
    %1227 = vst [vmem:[#allocation2 + $0x28] sm:$0xff] %v1191
    %1228 = vst [vmem:[#allocation2 + $0x30] sm:$0xff] %v1192
    %1229 = vst [vmem:[#allocation2 + $0x38] sm:$0xff] %v1193
    %1230 = vst [vmem:[#allocation2 + $0x40] sm:$0xff] %v1194
    %1231 = vst [vmem:[#allocation2 + $0x48] sm:$0xff] %v1195
    %1232 = vst [vmem:[#allocation2 + $0x50] sm:$0xff] %v1196
    %1233 = vst [vmem:[#allocation2 + $0x58] sm:$0xff] %v1197
    %1234 = vst [vmem:[#allocation2 + $0x60] sm:$0xff] %v1198
    %1235 = vst [vmem:[#allocation2 + $0x68] sm:$0xff] %v1199
    %1236 = vst [vmem:[#allocation2 + $0x70] sm:$0xff] %v1200
    %1237 = vst [vmem:[#allocation2 + $0x78] sm:$0xff] %v1201
    %1238 = vst [vmem:[#allocation2 + $0x80] sm:$0xff] %v1202
    %1239 = vst [vmem:[#allocation2 + $0x88] sm:$0xff] %v1203
    %1240 = vst [vmem:[#allocation2 + $0x90] sm:$0xff] %v1204
    %1241 = vst [vmem:[#allocation2 + $0x98] sm:$0xff] %v1205
    %1242 = vst [vmem:[#allocation2 + $0xa0] sm:$0xff] %v1206
    %1243 = vst [vmem:[#allocation2 + $0xa8] sm:$0xff] %v1207
    %1244 = vst [vmem:[#allocation2 + $0xb0] sm:$0xff] %v1208
    %1245 = vst [vmem:[#allocation2 + $0xb8] sm:$0xff] %v1209
    %1246 = vst [vmem:[#allocation2 + $0xc0] sm:$0xff] %v1210
    %1247 = vst [vmem:[#allocation2 + $0xc8] sm:$0xff] %v1211
    %1248 = vst [vmem:[#allocation2 + $0xd0] sm:$0xff] %v1212
    %1249 = vst [vmem:[#allocation2 + $0xd8] sm:$0xff] %v1213
    %1250 = vst [vmem:[#allocation2 + $0xe0] sm:$0xff] %v1214
    %1251 = vst [vmem:[#allocation2 + $0xe8] sm:$0xff] %v1215
    %1252 = vst [vmem:[#allocation2 + $0xf0] sm:$0xff] %v1216
    %1253 = vst [vmem:[#allocation2 + $0xf8] sm:$0xff] %v1217
    %1254 = vst [vmem:[#allocation2 + $0x100] sm:$0xff] %v1218
    %1255 = vst [vmem:[#allocation2 + $0x108] sm:$0xff] %v1219
    %1256 = vst [vmem:[#allocation2 + $0x110] sm:$0xff] %v1220
    %1257 = vst [vmem:[#allocation2 + $0x118] sm:$0xff] %v1221
    %v1258 = vld [vmem:[%s0 + $0x10] sm:$0xf0]
    %v1259 = vld [vmem:[%s0 + $0x18] sm:$0xf0]
    %v1260 = vld [vmem:[%s0 + $0x20] sm:$0xff]
    %v1261 = vld [vmem:[%s0 + $0x28] sm:$0xff]
    %v1262 = vld [vmem:[%s0 + $0x30] sm:$0xff]
    %v1263 = vld [vmem:[%s0 + $0x38] sm:$0xff]
    %v1264 = vld [vmem:[%s0 + $0x40] sm:$0xff]
    %v1265 = vld [vmem:[%s0 + $0x48] sm:$0xff]
    %v1266 = vld [vmem:[%s0 + $0x50] sm:$0xff]
    %v1267 = vld [vmem:[%s0 + $0x58] sm:$0xff]
    %v1268 = vld [vmem:[%s0 + $0x60] sm:$0xff]
    %v1269 = vld [vmem:[%s0 + $0x68] sm:$0xff]
    %v1270 = vld [vmem:[%s0 + $0x70] sm:$0xff]
    %v1271 = vld [vmem:[%s0 + $0x78] sm:$0xff]
    %v1272 = vld [vmem:[%s0 + $0x80] sm:$0xff]
    %v1273 = vld [vmem:[%s0 + $0x88] sm:$0xff]
    %v1274 = vld [vmem:[%s0 + $0x90] sm:$0xff]
    %v1275 = vld [vmem:[%s0 + $0x98] sm:$0xff]
    %v1276 = vld [vmem:[%s0 + $0xa0] sm:$0xff]
    %v1277 = vld [vmem:[%s0 + $0xa8] sm:$0xff]
    %v1278 = vld [vmem:[%s0 + $0xb0] sm:$0xff]
    %v1279 = vld [vmem:[%s0 + $0xb8] sm:$0xff]
    %v1280 = vld [vmem:[%s0 + $0xc0] sm:$0xff]
    %v1281 = vld [vmem:[%s0 + $0xc8] sm:$0xff]
    %v1282 = vld [vmem:[%s0 + $0xd0] sm:$0xff]
    %v1283 = vld [vmem:[%s0 + $0xd8] sm:$0xff]
    %v1284 = vld [vmem:[%s0 + $0xe0] sm:$0xff]
    %v1285 = vld [vmem:[%s0 + $0xe8] sm:$0xff]
    %v1286 = vld [vmem:[%s0 + $0xf0] sm:$0xff]
    %v1287 = vld [vmem:[%s0 + $0xf8] sm:$0xff]
    %v1288 = vld [vmem:[%s0 + $0x100] sm:$0xff]
    %v1289 = vld [vmem:[%s0 + $0x108] sm:$0xff]
    %v1290 = vld [vmem:[%s0 + $0x110] sm:$0xff]
    %v1291 = vld [vmem:[%s0 + $0x118] sm:$0xff]
    %v1292 = vld [vmem:[%s0 + $0x120] sm:$0xff]
    %v1293 = vld [vmem:[%s0 + $0x128] sm:$0xff]
    %v1294 = vld [vmem:[%s0 + $0x130] sm:$0xf]
    %v1295 = vld [vmem:[%s0 + $0x138] sm:$0xf]
    %v1296 = vpack.c.bf16 %v1260, %v1258
    %v1297 = vpack.c.bf16 %v1261, %v1259
    %v1298 = vpack.c.bf16 %v1264, %v1262
    %v1299 = vpack.c.bf16 %v1265, %v1263
    %v1300 = vpack.c.bf16 %v1268, %v1266
    %v1301 = vpack.c.bf16 %v1269, %v1267
    %v1302 = vpack.c.bf16 %v1272, %v1270
    %v1303 = vpack.c.bf16 %v1273, %v1271
    %v1304 = vpack.c.bf16 %v1276, %v1274
    %v1305 = vpack.c.bf16 %v1277, %v1275
    %v1306 = vpack.c.bf16 %v1280, %v1278
    %v1307 = vpack.c.bf16 %v1281, %v1279
    %v1308 = vpack.c.bf16 %v1284, %v1282
    %v1309 = vpack.c.bf16 %v1285, %v1283
    %v1310 = vpack.c.bf16 %v1288, %v1286
    %v1311 = vpack.c.bf16 %v1289, %v1287
    %v1312 = vpack.c.bf16 %v1292, %v1290
    %v1313 = vpack.c.bf16 %v1293, %v1291
    %v1314 = vpack.c.bf16 %v1294, %v1294
    %v1315 = vpack.c.bf16 %v1295, %v1295
    %s1316 = scalar_lea.vmem %s1, 384
    %v1317 = vld [vmem:[%s1316] sm:$0xff]
    %v1318 = vld [vmem:[%s1316 + $0x8] sm:$0xff]
    %v1319 = vld [vmem:[%s1316 + $0x10] sm:$0xff]
    %v1320 = vld [vmem:[%s1316 + $0x18] sm:$0xff]
    %v1321 = vld [vmem:[%s1316 + $0x20] sm:$0xff]
    %v1322 = vld [vmem:[%s1316 + $0x28] sm:$0xff]
    %v1323 = vld [vmem:[%s1316 + $0x30] sm:$0xff]
    %v1324 = vld [vmem:[%s1316 + $0x38] sm:$0xff]
    %v1325 = vld [vmem:[%s1316 + $0x40] sm:$0xff]
    %v1326 = vld [vmem:[%s1316 + $0x48] sm:$0xff]
    %v1327 = vld [vmem:[%s1316 + $0x50] sm:$0xff]
    %v1328 = vld [vmem:[%s1316 + $0x58] sm:$0xff]
    %v1329 = vld [vmem:[%s1316 + $0x60] sm:$0xff]
    %v1330 = vld [vmem:[%s1316 + $0x68] sm:$0xff]
    %v1331 = vld [vmem:[%s1316 + $0x70] sm:$0xff]
    %v1332 = vld [vmem:[%s1316 + $0x78] sm:$0xff]
    %v1333 = vld [vmem:[%s1316 + $0x80] sm:$0xff]
    %v1334 = vld [vmem:[%s1316 + $0x88] sm:$0xff]
    %v1335 = vld [vmem:[%s1316 + $0x90] sm:$0xff]
    %v1336 = vld [vmem:[%s1316 + $0x98] sm:$0xff]
    %v1337 = vld [vmem:[%s1316 + $0xa0] sm:$0xff]
    %v1338 = vld [vmem:[%s1316 + $0xa8] sm:$0xff]
    %v1339 = vld [vmem:[%s1316 + $0xb0] sm:$0xff]
    %v1340 = vld [vmem:[%s1316 + $0xb8] sm:$0xff]
    %vm1361 = vcmask 1045504
    %v1362 = vrot.slane %v1296, 2
    %v1363 = vrot.slane %v1298, 2
    %v1364 = vsel %vm1361, %v1362, %v1363
    %v1365 = vrot.slane %v1297, 2
    %v1366 = vrot.slane %v1299, 2
    %v1367 = vsel %vm1361, %v1365, %v1366
    %v1368 = vrot.slane %v1300, 2
    %v1369 = vsel %vm1361, %v1363, %v1368
    %v1370 = vrot.slane %v1301, 2
    %v1371 = vsel %vm1361, %v1366, %v1370
    %v1372 = vrot.slane %v1302, 2
    %v1373 = vsel %vm1361, %v1368, %v1372
    %v1374 = vrot.slane %v1303, 2
    %v1375 = vsel %vm1361, %v1370, %v1374
    %v1376 = vrot.slane %v1304, 2
    %v1377 = vsel %vm1361, %v1372, %v1376
    %v1378 = vrot.slane %v1305, 2
    %v1379 = vsel %vm1361, %v1374, %v1378
    %v1380 = vrot.slane %v1306, 2
    %v1381 = vsel %vm1361, %v1376, %v1380
    %v1382 = vrot.slane %v1307, 2
    %v1383 = vsel %vm1361, %v1378, %v1382
    %v1384 = vrot.slane %v1308, 2
    %v1385 = vsel %vm1361, %v1380, %v1384
    %v1386 = vrot.slane %v1309, 2
    %v1387 = vsel %vm1361, %v1382, %v1386
    %v1388 = vrot.slane %v1310, 2
    %v1389 = vsel %vm1361, %v1384, %v1388
    %v1390 = vrot.slane %v1311, 2
    %v1391 = vsel %vm1361, %v1386, %v1390
    %v1392 = vrot.slane %v1312, 2
    %v1393 = vsel %vm1361, %v1388, %v1392
    %v1394 = vrot.slane %v1313, 2
    %v1395 = vsel %vm1361, %v1390, %v1394
    %v1396 = vrot.slane %v1314, 2
    %v1397 = vsel %vm1361, %v1392, %v1396
    %v1398 = vrot.slane %v1315, 2
    %v1399 = vsel %vm1361, %v1394, %v1398
    %v1433 = vunpack.c.l.b16 %v1317
    %v1434 = vunpack.c.h.b16 %v1317
    %v1435 = vunpack.c.l.b16 %v1318
    %v1436 = vunpack.c.h.b16 %v1318
    %v1437 = vunpack.c.l.b16 %v1319
    %v1438 = vunpack.c.h.b16 %v1319
    %v1439 = vunpack.c.l.b16 %v1320
    %v1440 = vunpack.c.h.b16 %v1320
    %v1441 = vunpack.c.l.b16 %v1321
    %v1442 = vunpack.c.h.b16 %v1321
    %v1443 = vunpack.c.l.b16 %v1322
    %v1444 = vunpack.c.h.b16 %v1322
    %v1445 = vunpack.c.l.b16 %v1323
    %v1446 = vunpack.c.h.b16 %v1323
    %v1447 = vunpack.c.l.b16 %v1324
    %v1448 = vunpack.c.h.b16 %v1324
    %v1449 = vunpack.c.l.b16 %v1325
    %v1450 = vunpack.c.h.b16 %v1325
    %v1451 = vunpack.c.l.b16 %v1326
    %v1452 = vunpack.c.h.b16 %v1326
    %v1453 = vunpack.c.l.b16 %v1327
    %v1454 = vunpack.c.h.b16 %v1327
    %v1455 = vunpack.c.l.b16 %v1328
    %v1456 = vunpack.c.h.b16 %v1328
    %v1457 = vunpack.c.l.b16 %v1329
    %v1458 = vunpack.c.h.b16 %v1329
    %v1459 = vunpack.c.l.b16 %v1330
    %v1460 = vunpack.c.h.b16 %v1330
    %v1461 = vunpack.c.l.b16 %v1331
    %v1462 = vunpack.c.h.b16 %v1331
    %v1463 = vunpack.c.l.b16 %v1332
    %v1464 = vunpack.c.h.b16 %v1332
    %v1465 = vunpack.c.l.b16 %v1333
    %v1466 = vunpack.c.h.b16 %v1333
    %v1467 = vunpack.c.l.b16 %v1334
    %v1468 = vunpack.c.h.b16 %v1334
    %v1469 = vunpack.c.l.b16 %v1335
    %v1470 = vunpack.c.h.b16 %v1335
    %v1471 = vunpack.c.l.b16 %v1336
    %v1472 = vunpack.c.h.b16 %v1336
    %v1473 = vunpack.c.l.b16 %v1337
    %v1474 = vunpack.c.h.b16 %v1337
    %v1475 = vunpack.c.l.b16 %v1338
    %v1476 = vunpack.c.h.b16 %v1338
    %v1477 = vunpack.c.l.b16 %v1339
    %v1478 = vunpack.c.h.b16 %v1339
    %v1479 = vunpack.c.l.b16 %v1340
    %v1480 = vunpack.c.h.b16 %v1340
    %v1481 = vpack.c.b16 %v1435, %v1433
    %v1482 = vpack.c.b16 %v1436, %v1434
    %v1483 = vpack.c.b16 %v1439, %v1437
    %v1484 = vpack.c.b16 %v1440, %v1438
    %v1485 = vpack.c.b16 %v1443, %v1441
    %v1486 = vpack.c.b16 %v1444, %v1442
    %v1487 = vpack.c.b16 %v1447, %v1445
    %v1488 = vpack.c.b16 %v1448, %v1446
    %v1489 = vpack.c.b16 %v1451, %v1449
    %v1490 = vpack.c.b16 %v1452, %v1450
    %v1491 = vpack.c.b16 %v1455, %v1453
    %v1492 = vpack.c.b16 %v1456, %v1454
    %v1493 = vpack.c.b16 %v1459, %v1457
    %v1494 = vpack.c.b16 %v1460, %v1458
    %v1495 = vpack.c.b16 %v1463, %v1461
    %v1496 = vpack.c.b16 %v1464, %v1462
    %v1497 = vpack.c.b16 %v1467, %v1465
    %v1498 = vpack.c.b16 %v1468, %v1466
    %v1499 = vpack.c.b16 %v1471, %v1469
    %v1500 = vpack.c.b16 %v1472, %v1470
    %v1501 = vpack.c.b16 %v1475, %v1473
    %v1502 = vpack.c.b16 %v1476, %v1474
    %v1503 = vpack.c.b16 %v1479, %v1477
    %v1504 = vpack.c.b16 %v1480, %v1478
    %v1530 = vsel %vm262, %v1367, 0
    %v1533 = vsel %vm262, %v1371, 0
    %v1536 = vsel %vm262, %v1375, 0
    %v1539 = vsel %vm262, %v1379, 0
    %v1542 = vsel %vm262, %v1383, 0
    %v1545 = vsel %vm262, %v1387, 0
    %v1548 = vsel %vm262, %v1391, 0
    %v1551 = vsel %vm262, %v1395, 0
    %v1554 = vsel %vm262, %v1399, 0
    %1556 = vmatpush.bf16.msra.mxu0 %v1495
    %1557 = vmatpush.bf16.msra.mxu0 %v1493
    %1558 = vmatpush.bf16.msra.mxu0 %v1491
    %1559 = vmatpush.bf16.msra.mxu0 %v1489
    %1560 = vmatpush.bf16.msra.mxu0 %v1487
    %1561 = vmatpush.bf16.msra.mxu0 %v1485
    %1562 = vmatpush.bf16.msra.mxu0 %v1483
    %1563 = vmatpush.bf16.msra.mxu0 %v1481
    %1564 = vmatmul.bf16.gmra.mxu0 %v1364
    %v1565 = vpop.f32.mrf.mxu0
    %v1566 = vadd.f32 0.0, %v1565
    %v1567 = vpop.f32.mrf.mxu0
    %v1568 = vadd.f32 0.0, %v1567
    %1569 = vmatmul.bf16.gmra.mxu0 %v1369
    %v1570 = vpop.f32.mrf.mxu0
    %v1571 = vadd.f32 0.0, %v1570
    %v1572 = vpop.f32.mrf.mxu0
    %v1573 = vadd.f32 0.0, %v1572
    %1574 = vmatmul.bf16.gmra.mxu0 %v1373
    %v1575 = vpop.f32.mrf.mxu0
    %v1576 = vadd.f32 0.0, %v1575
    %v1577 = vpop.f32.mrf.mxu0
    %v1578 = vadd.f32 0.0, %v1577
    %1579 = vmatmul.bf16.gmra.mxu0 %v1377
    %v1580 = vpop.f32.mrf.mxu0
    %v1581 = vadd.f32 0.0, %v1580
    %v1582 = vpop.f32.mrf.mxu0
    %v1583 = vadd.f32 0.0, %v1582
    %1584 = vmatmul.bf16.gmra.mxu0 %v1381
    %v1585 = vpop.f32.mrf.mxu0
    %v1586 = vadd.f32 0.0, %v1585
    %v1587 = vpop.f32.mrf.mxu0
    %v1588 = vadd.f32 0.0, %v1587
    %1589 = vmatmul.bf16.gmra.mxu0 %v1385
    %v1590 = vpop.f32.mrf.mxu0
    %v1591 = vadd.f32 0.0, %v1590
    %v1592 = vpop.f32.mrf.mxu0
    %v1593 = vadd.f32 0.0, %v1592
    %1594 = vmatmul.bf16.gmra.mxu0 %v1389
    %v1595 = vpop.f32.mrf.mxu0
    %v1596 = vadd.f32 0.0, %v1595
    %v1597 = vpop.f32.mrf.mxu0
    %v1598 = vadd.f32 0.0, %v1597
    %1599 = vmatmul.bf16.gmra.mxu0 %v1393
    %v1600 = vpop.f32.mrf.mxu0
    %v1601 = vadd.f32 0.0, %v1600
    %v1602 = vpop.f32.mrf.mxu0
    %v1603 = vadd.f32 0.0, %v1602
    %1604 = vmatmul.bf16.gmra.mxu0 %v1397
    %v1605 = vpop.f32.mrf.mxu0
    %v1606 = vadd.f32 0.0, %v1605
    %v1607 = vpop.f32.mrf.mxu0
    %v1608 = vadd.f32 0.0, %v1607
    %1609 = vdwg.mxu0
    %1610 = vmatpush.bf16.msra.mxu0 0
    %1611 = vmatpush.bf16.msra.mxu0 0
    %1612 = vmatpush.bf16.msra.mxu0 0
    %1613 = vmatpush.bf16.msra.mxu0 0
    %1614 = vmatpush.bf16.msra.mxu0 %v1503
    %1615 = vmatpush.bf16.msra.mxu0 %v1501
    %1616 = vmatpush.bf16.msra.mxu0 %v1499
    %1617 = vmatpush.bf16.msra.mxu0 %v1497
    %1618 = vmatmul.bf16.gmra.mxu0 %v1530
    %v1619 = vpop.f32.mrf.mxu0
    %v1620 = vadd.f32 %v1566, %v1619
    %v1621 = vpop.f32.mrf.mxu0
    %v1622 = vadd.f32 %v1568, %v1621
    %1623 = vmatmul.bf16.gmra.mxu0 %v1533
    %v1624 = vpop.f32.mrf.mxu0
    %v1625 = vadd.f32 %v1571, %v1624
    %v1626 = vpop.f32.mrf.mxu0
    %v1627 = vadd.f32 %v1573, %v1626
    %1628 = vmatmul.bf16.gmra.mxu0 %v1536
    %v1629 = vpop.f32.mrf.mxu0
    %v1630 = vadd.f32 %v1576, %v1629
    %v1631 = vpop.f32.mrf.mxu0
    %v1632 = vadd.f32 %v1578, %v1631
    %1633 = vmatmul.bf16.gmra.mxu0 %v1539
    %v1634 = vpop.f32.mrf.mxu0
    %v1635 = vadd.f32 %v1581, %v1634
    %v1636 = vpop.f32.mrf.mxu0
    %v1637 = vadd.f32 %v1583, %v1636
    %1638 = vmatmul.bf16.gmra.mxu0 %v1542
    %v1639 = vpop.f32.mrf.mxu0
    %v1640 = vadd.f32 %v1586, %v1639
    %v1641 = vpop.f32.mrf.mxu0
    %v1642 = vadd.f32 %v1588, %v1641
    %1643 = vmatmul.bf16.gmra.mxu0 %v1545
    %v1644 = vpop.f32.mrf.mxu0
    %v1645 = vadd.f32 %v1591, %v1644
    %v1646 = vpop.f32.mrf.mxu0
    %v1647 = vadd.f32 %v1593, %v1646
    %1648 = vmatmul.bf16.gmra.mxu0 %v1548
    %v1649 = vpop.f32.mrf.mxu0
    %v1650 = vadd.f32 %v1596, %v1649
    %v1651 = vpop.f32.mrf.mxu0
    %v1652 = vadd.f32 %v1598, %v1651
    %1653 = vmatmul.bf16.gmra.mxu0 %v1551
    %v1654 = vpop.f32.mrf.mxu0
    %v1655 = vadd.f32 %v1601, %v1654
    %v1656 = vpop.f32.mrf.mxu0
    %v1657 = vadd.f32 %v1603, %v1656
    %1658 = vmatmul.bf16.gmra.mxu0 %v1554
    %v1659 = vpop.f32.mrf.mxu0
    %v1660 = vadd.f32 %v1606, %v1659
    %v1661 = vpop.f32.mrf.mxu0
    %v1662 = vadd.f32 %v1608, %v1661
    %1663 = vdwg.mxu0
    %1664 = vmatpush.bf16.msra.mxu0 %v1496
    %1665 = vmatpush.bf16.msra.mxu0 %v1494
    %1666 = vmatpush.bf16.msra.mxu0 %v1492
    %1667 = vmatpush.bf16.msra.mxu0 %v1490
    %1668 = vmatpush.bf16.msra.mxu0 %v1488
    %1669 = vmatpush.bf16.msra.mxu0 %v1486
    %1670 = vmatpush.bf16.msra.mxu0 %v1484
    %1671 = vmatpush.bf16.msra.mxu0 %v1482
    %1672 = vmatmul.bf16.gmra.mxu0 %v1364
    %v1673 = vpop.f32.mrf.mxu0
    %v1674 = vadd.f32 0.0, %v1673
    %v1675 = vpop.f32.mrf.mxu0
    %v1676 = vadd.f32 0.0, %v1675
    %1677 = vmatmul.bf16.gmra.mxu0 %v1369
    %v1678 = vpop.f32.mrf.mxu0
    %v1679 = vadd.f32 0.0, %v1678
    %v1680 = vpop.f32.mrf.mxu0
    %v1681 = vadd.f32 0.0, %v1680
    %1682 = vmatmul.bf16.gmra.mxu0 %v1373
    %v1683 = vpop.f32.mrf.mxu0
    %v1684 = vadd.f32 0.0, %v1683
    %v1685 = vpop.f32.mrf.mxu0
    %v1686 = vadd.f32 0.0, %v1685
    %1687 = vmatmul.bf16.gmra.mxu0 %v1377
    %v1688 = vpop.f32.mrf.mxu0
    %v1689 = vadd.f32 0.0, %v1688
    %v1690 = vpop.f32.mrf.mxu0
    %v1691 = vadd.f32 0.0, %v1690
    %1692 = vmatmul.bf16.gmra.mxu0 %v1381
    %v1693 = vpop.f32.mrf.mxu0
    %v1694 = vadd.f32 0.0, %v1693
    %v1695 = vpop.f32.mrf.mxu0
    %v1696 = vadd.f32 0.0, %v1695
    %1697 = vmatmul.bf16.gmra.mxu0 %v1385
    %v1698 = vpop.f32.mrf.mxu0
    %v1699 = vadd.f32 0.0, %v1698
    %v1700 = vpop.f32.mrf.mxu0
    %v1701 = vadd.f32 0.0, %v1700
    %1702 = vmatmul.bf16.gmra.mxu0 %v1389
    %v1703 = vpop.f32.mrf.mxu0
    %v1704 = vadd.f32 0.0, %v1703
    %v1705 = vpop.f32.mrf.mxu0
    %v1706 = vadd.f32 0.0, %v1705
    %1707 = vmatmul.bf16.gmra.mxu0 %v1393
    %v1708 = vpop.f32.mrf.mxu0
    %v1709 = vadd.f32 0.0, %v1708
    %v1710 = vpop.f32.mrf.mxu0
    %v1711 = vadd.f32 0.0, %v1710
    %1712 = vmatmul.bf16.gmra.mxu0 %v1397
    %v1713 = vpop.f32.mrf.mxu0
    %v1714 = vadd.f32 0.0, %v1713
    %v1715 = vpop.f32.mrf.mxu0
    %v1716 = vadd.f32 0.0, %v1715
    %1717 = vdwg.mxu0
    %1718 = vmatpush.bf16.msra.mxu0 0
    %1719 = vmatpush.bf16.msra.mxu0 0
    %1720 = vmatpush.bf16.msra.mxu0 0
    %1721 = vmatpush.bf16.msra.mxu0 0
    %1722 = vmatpush.bf16.msra.mxu0 %v1504
    %1723 = vmatpush.bf16.msra.mxu0 %v1502
    %1724 = vmatpush.bf16.msra.mxu0 %v1500
    %1725 = vmatpush.bf16.msra.mxu0 %v1498
    %1726 = vmatmul.bf16.gmra.mxu0 %v1530
    %v1727 = vpop.f32.mrf.mxu0
    %v1728 = vadd.f32 %v1674, %v1727
    %v1729 = vpop.f32.mrf.mxu0
    %v1730 = vadd.f32 %v1676, %v1729
    %1731 = vmatmul.bf16.gmra.mxu0 %v1533
    %v1732 = vpop.f32.mrf.mxu0
    %v1733 = vadd.f32 %v1679, %v1732
    %v1734 = vpop.f32.mrf.mxu0
    %v1735 = vadd.f32 %v1681, %v1734
    %1736 = vmatmul.bf16.gmra.mxu0 %v1536
    %v1737 = vpop.f32.mrf.mxu0
    %v1738 = vadd.f32 %v1684, %v1737
    %v1739 = vpop.f32.mrf.mxu0
    %v1740 = vadd.f32 %v1686, %v1739
    %1741 = vmatmul.bf16.gmra.mxu0 %v1539
    %v1742 = vpop.f32.mrf.mxu0
    %v1743 = vadd.f32 %v1689, %v1742
    %v1744 = vpop.f32.mrf.mxu0
    %v1745 = vadd.f32 %v1691, %v1744
    %1746 = vmatmul.bf16.gmra.mxu0 %v1542
    %v1747 = vpop.f32.mrf.mxu0
    %v1748 = vadd.f32 %v1694, %v1747
    %v1749 = vpop.f32.mrf.mxu0
    %v1750 = vadd.f32 %v1696, %v1749
    %1751 = vmatmul.bf16.gmra.mxu0 %v1545
    %v1752 = vpop.f32.mrf.mxu0
    %v1753 = vadd.f32 %v1699, %v1752
    %v1754 = vpop.f32.mrf.mxu0
    %v1755 = vadd.f32 %v1701, %v1754
    %1756 = vmatmul.bf16.gmra.mxu0 %v1548
    %v1757 = vpop.f32.mrf.mxu0
    %v1758 = vadd.f32 %v1704, %v1757
    %v1759 = vpop.f32.mrf.mxu0
    %v1760 = vadd.f32 %v1706, %v1759
    %1761 = vmatmul.bf16.gmra.mxu0 %v1551
    %v1762 = vpop.f32.mrf.mxu0
    %v1763 = vadd.f32 %v1709, %v1762
    %v1764 = vpop.f32.mrf.mxu0
    %v1765 = vadd.f32 %v1711, %v1764
    %1766 = vmatmul.bf16.gmra.mxu0 %v1554
    %v1767 = vpop.f32.mrf.mxu0
    %v1768 = vadd.f32 %v1714, %v1767
    %v1769 = vpop.f32.mrf.mxu0
    %v1770 = vadd.f32 %v1716, %v1769
    %1771 = vdwg.mxu0
    %v1772 = vld [vmem:[#allocation2] sm:$0xff]
    %v1773 = vld [vmem:[#allocation2 + $0x8] sm:$0xff]
    %v1774 = vld [vmem:[#allocation2 + $0x10] sm:$0xff]
    %v1775 = vld [vmem:[#allocation2 + $0x18] sm:$0xff]
    %v1776 = vld [vmem:[#allocation2 + $0x20] sm:$0xff]
    %v1777 = vld [vmem:[#allocation2 + $0x28] sm:$0xff]
    %v1778 = vld [vmem:[#allocation2 + $0x30] sm:$0xff]
    %v1779 = vld [vmem:[#allocation2 + $0x38] sm:$0xff]
    %v1780 = vld [vmem:[#allocation2 + $0x40] sm:$0xff]
    %v1781 = vld [vmem:[#allocation2 + $0x48] sm:$0xff]
    %v1782 = vld [vmem:[#allocation2 + $0x50] sm:$0xff]
    %v1783 = vld [vmem:[#allocation2 + $0x58] sm:$0xff]
    %v1784 = vld [vmem:[#allocation2 + $0x60] sm:$0xff]
    %v1785 = vld [vmem:[#allocation2 + $0x68] sm:$0xff]
    %v1786 = vld [vmem:[#allocation2 + $0x70] sm:$0xff]
    %v1787 = vld [vmem:[#allocation2 + $0x78] sm:$0xff]
    %v1788 = vld [vmem:[#allocation2 + $0x80] sm:$0xff]
    %v1789 = vld [vmem:[#allocation2 + $0x88] sm:$0xff]
    %v1790 = vld [vmem:[#allocation2 + $0x90] sm:$0xff]
    %v1791 = vld [vmem:[#allocation2 + $0x98] sm:$0xff]
    %v1792 = vld [vmem:[#allocation2 + $0xa0] sm:$0xff]
    %v1793 = vld [vmem:[#allocation2 + $0xa8] sm:$0xff]
    %v1794 = vld [vmem:[#allocation2 + $0xb0] sm:$0xff]
    %v1795 = vld [vmem:[#allocation2 + $0xb8] sm:$0xff]
    %v1796 = vld [vmem:[#allocation2 + $0xc0] sm:$0xff]
    %v1797 = vld [vmem:[#allocation2 + $0xc8] sm:$0xff]
    %v1798 = vld [vmem:[#allocation2 + $0xd0] sm:$0xff]
    %v1799 = vld [vmem:[#allocation2 + $0xd8] sm:$0xff]
    %v1800 = vld [vmem:[#allocation2 + $0xe0] sm:$0xff]
    %v1801 = vld [vmem:[#allocation2 + $0xe8] sm:$0xff]
    %v1802 = vld [vmem:[#allocation2 + $0xf0] sm:$0xff]
    %v1803 = vld [vmem:[#allocation2 + $0xf8] sm:$0xff]
    %v1804 = vld [vmem:[#allocation2 + $0x100] sm:$0xff]
    %v1805 = vld [vmem:[#allocation2 + $0x108] sm:$0xff]
    %v1806 = vld [vmem:[#allocation2 + $0x110] sm:$0xff]
    %v1807 = vld [vmem:[#allocation2 + $0x118] sm:$0xff]
    %v1808 = vadd.f32 %v1772, %v1620
    %v1809 = vadd.f32 %v1773, %v1728
    %v1810 = vadd.f32 %v1774, %v1622
    %v1811 = vadd.f32 %v1775, %v1730
    %v1812 = vadd.f32 %v1776, %v1625
    %v1813 = vadd.f32 %v1777, %v1733
    %v1814 = vadd.f32 %v1778, %v1627
    %v1815 = vadd.f32 %v1779, %v1735
    %v1816 = vadd.f32 %v1780, %v1630
    %v1817 = vadd.f32 %v1781, %v1738
    %v1818 = vadd.f32 %v1782, %v1632
    %v1819 = vadd.f32 %v1783, %v1740
    %v1820 = vadd.f32 %v1784, %v1635
    %v1821 = vadd.f32 %v1785, %v1743
    %v1822 = vadd.f32 %v1786, %v1637
    %v1823 = vadd.f32 %v1787, %v1745
    %v1824 = vadd.f32 %v1788, %v1640
    %v1825 = vadd.f32 %v1789, %v1748
    %v1826 = vadd.f32 %v1790, %v1642
    %v1827 = vadd.f32 %v1791, %v1750
    %v1828 = vadd.f32 %v1792, %v1645
    %v1829 = vadd.f32 %v1793, %v1753
    %v1830 = vadd.f32 %v1794, %v1647
    %v1831 = vadd.f32 %v1795, %v1755
    %v1832 = vadd.f32 %v1796, %v1650
    %v1833 = vadd.f32 %v1797, %v1758
    %v1834 = vadd.f32 %v1798, %v1652
    %v1835 = vadd.f32 %v1799, %v1760
    %v1836 = vadd.f32 %v1800, %v1655
    %v1837 = vadd.f32 %v1801, %v1763
    %v1838 = vadd.f32 %v1802, %v1657
    %v1839 = vadd.f32 %v1803, %v1765
    %v1840 = vadd.f32 %v1804, %v1660
    %v1841 = vadd.f32 %v1805, %v1768
    %v1842 = vadd.f32 %v1806, %v1662
    %v1843 = vadd.f32 %v1807, %v1770
    %1844 = vst [vmem:[#allocation2] sm:$0xff] %v1808
    %1845 = vst [vmem:[#allocation2 + $0x8] sm:$0xff] %v1809
    %1846 = vst [vmem:[#allocation2 + $0x10] sm:$0xff] %v1810
    %1847 = vst [vmem:[#allocation2 + $0x18] sm:$0xff] %v1811
    %1848 = vst [vmem:[#allocation2 + $0x20] sm:$0xff] %v1812
    %1849 = vst [vmem:[#allocation2 + $0x28] sm:$0xff] %v1813
    %1850 = vst [vmem:[#allocation2 + $0x30] sm:$0xff] %v1814
    %1851 = vst [vmem:[#allocation2 + $0x38] sm:$0xff] %v1815
    %1852 = vst [vmem:[#allocation2 + $0x40] sm:$0xff] %v1816
    %1853 = vst [vmem:[#allocation2 + $0x48] sm:$0xff] %v1817
    %1854 = vst [vmem:[#allocation2 + $0x50] sm:$0xff] %v1818
    %1855 = vst [vmem:[#allocation2 + $0x58] sm:$0xff] %v1819
    %1856 = vst [vmem:[#allocation2 + $0x60] sm:$0xff] %v1820
    %1857 = vst [vmem:[#allocation2 + $0x68] sm:$0xff] %v1821
    %1858 = vst [vmem:[#allocation2 + $0x70] sm:$0xff] %v1822
    %1859 = vst [vmem:[#allocation2 + $0x78] sm:$0xff] %v1823
    %1860 = vst [vmem:[#allocation2 + $0x80] sm:$0xff] %v1824
    %1861 = vst [vmem:[#allocation2 + $0x88] sm:$0xff] %v1825
    %1862 = vst [vmem:[#allocation2 + $0x90] sm:$0xff] %v1826
    %1863 = vst [vmem:[#allocation2 + $0x98] sm:$0xff] %v1827
    %1864 = vst [vmem:[#allocation2 + $0xa0] sm:$0xff] %v1828
    %1865 = vst [vmem:[#allocation2 + $0xa8] sm:$0xff] %v1829
    %1866 = vst [vmem:[#allocation2 + $0xb0] sm:$0xff] %v1830
    %1867 = vst [vmem:[#allocation2 + $0xb8] sm:$0xff] %v1831
    %1868 = vst [vmem:[#allocation2 + $0xc0] sm:$0xff] %v1832
    %1869 = vst [vmem:[#allocation2 + $0xc8] sm:$0xff] %v1833
    %1870 = vst [vmem:[#allocation2 + $0xd0] sm:$0xff] %v1834
    %1871 = vst [vmem:[#allocation2 + $0xd8] sm:$0xff] %v1835
    %1872 = vst [vmem:[#allocation2 + $0xe0] sm:$0xff] %v1836
    %1873 = vst [vmem:[#allocation2 + $0xe8] sm:$0xff] %v1837
    %1874 = vst [vmem:[#allocation2 + $0xf0] sm:$0xff] %v1838
    %1875 = vst [vmem:[#allocation2 + $0xf8] sm:$0xff] %v1839
    %1876 = vst [vmem:[#allocation2 + $0x100] sm:$0xff] %v1840
    %1877 = vst [vmem:[#allocation2 + $0x108] sm:$0xff] %v1841
    %1878 = vst [vmem:[#allocation2 + $0x110] sm:$0xff] %v1842
    %1879 = vst [vmem:[#allocation2 + $0x118] sm:$0xff] %v1843
    %v1880 = vld [vmem:[%s0 + $0x10] sm:$0xe0]
    %v1881 = vld [vmem:[%s0 + $0x18] sm:$0xe0]
    %v1882 = vld [vmem:[%s0 + $0x20] sm:$0xff]
    %v1883 = vld [vmem:[%s0 + $0x28] sm:$0xff]
    %v1884 = vld [vmem:[%s0 + $0x30] sm:$0xff]
    %v1885 = vld [vmem:[%s0 + $0x38] sm:$0xff]
    %v1886 = vld [vmem:[%s0 + $0x40] sm:$0xff]
    %v1887 = vld [vmem:[%s0 + $0x48] sm:$0xff]
    %v1888 = vld [vmem:[%s0 + $0x50] sm:$0xff]
    %v1889 = vld [vmem:[%s0 + $0x58] sm:$0xff]
    %v1890 = vld [vmem:[%s0 + $0x60] sm:$0xff]
    %v1891 = vld [vmem:[%s0 + $0x68] sm:$0xff]
    %v1892 = vld [vmem:[%s0 + $0x70] sm:$0xff]
    %v1893 = vld [vmem:[%s0 + $0x78] sm:$0xff]
    %v1894 = vld [vmem:[%s0 + $0x80] sm:$0xff]
    %v1895 = vld [vmem:[%s0 + $0x88] sm:$0xff]
    %v1896 = vld [vmem:[%s0 + $0x90] sm:$0xff]
    %v1897 = vld [vmem:[%s0 + $0x98] sm:$0xff]
    %v1898 = vld [vmem:[%s0 + $0xa0] sm:$0xff]
    %v1899 = vld [vmem:[%s0 + $0xa8] sm:$0xff]
    %v1900 = vld [vmem:[%s0 + $0xb0] sm:$0xff]
    %v1901 = vld [vmem:[%s0 + $0xb8] sm:$0xff]
    %v1902 = vld [vmem:[%s0 + $0xc0] sm:$0xff]
    %v1903 = vld [vmem:[%s0 + $0xc8] sm:$0xff]
    %v1904 = vld [vmem:[%s0 + $0xd0] sm:$0xff]
    %v1905 = vld [vmem:[%s0 + $0xd8] sm:$0xff]
    %v1906 = vld [vmem:[%s0 + $0xe0] sm:$0xff]
    %v1907 = vld [vmem:[%s0 + $0xe8] sm:$0xff]
    %v1908 = vld [vmem:[%s0 + $0xf0] sm:$0xff]
    %v1909 = vld [vmem:[%s0 + $0xf8] sm:$0xff]
    %v1910 = vld [vmem:[%s0 + $0x100] sm:$0xff]
    %v1911 = vld [vmem:[%s0 + $0x108] sm:$0xff]
    %v1912 = vld [vmem:[%s0 + $0x110] sm:$0xff]
    %v1913 = vld [vmem:[%s0 + $0x118] sm:$0xff]
    %v1914 = vld [vmem:[%s0 + $0x120] sm:$0xff]
    %v1915 = vld [vmem:[%s0 + $0x128] sm:$0xff]
    %v1916 = vld [vmem:[%s0 + $0x130] sm:$0x1f]
    %v1917 = vld [vmem:[%s0 + $0x138] sm:$0x1f]
    %v1918 = vpack.c.bf16 %v1882, %v1880
    %v1919 = vpack.c.bf16 %v1883, %v1881
    %v1920 = vpack.c.bf16 %v1886, %v1884
    %v1921 = vpack.c.bf16 %v1887, %v1885
    %v1922 = vpack.c.bf16 %v1890, %v1888
    %v1923 = vpack.c.bf16 %v1891, %v1889
    %v1924 = vpack.c.bf16 %v1894, %v1892
    %v1925 = vpack.c.bf16 %v1895, %v1893
    %v1926 = vpack.c.bf16 %v1898, %v1896
    %v1927 = vpack.c.bf16 %v1899, %v1897
    %v1928 = vpack.c.bf16 %v1902, %v1900
    %v1929 = vpack.c.bf16 %v1903, %v1901
    %v1930 = vpack.c.bf16 %v1906, %v1904
    %v1931 = vpack.c.bf16 %v1907, %v1905
    %v1932 = vpack.c.bf16 %v1910, %v1908
    %v1933 = vpack.c.bf16 %v1911, %v1909
    %v1934 = vpack.c.bf16 %v1914, %v1912
    %v1935 = vpack.c.bf16 %v1915, %v1913
    %v1936 = vpack.c.bf16 %v1916, %v1916
    %v1937 = vpack.c.bf16 %v1917, %v1917
    %s1938 = scalar_lea.vmem %s1, 576
    %v1939 = vld [vmem:[%s1938] sm:$0xff]
    %v1940 = vld [vmem:[%s1938 + $0x8] sm:$0xff]
    %v1941 = vld [vmem:[%s1938 + $0x10] sm:$0xff]
    %v1942 = vld [vmem:[%s1938 + $0x18] sm:$0xff]
    %v1943 = vld [vmem:[%s1938 + $0x20] sm:$0xff]
    %v1944 = vld [vmem:[%s1938 + $0x28] sm:$0xff]
    %v1945 = vld [vmem:[%s1938 + $0x30] sm:$0xff]
    %v1946 = vld [vmem:[%s1938 + $0x38] sm:$0xff]
    %v1947 = vld [vmem:[%s1938 + $0x40] sm:$0xff]
    %v1948 = vld [vmem:[%s1938 + $0x48] sm:$0xff]
    %v1949 = vld [vmem:[%s1938 + $0x50] sm:$0xff]
    %v1950 = vld [vmem:[%s1938 + $0x58] sm:$0xff]
    %v1951 = vld [vmem:[%s1938 + $0x60] sm:$0xff]
    %v1952 = vld [vmem:[%s1938 + $0x68] sm:$0xff]
    %v1953 = vld [vmem:[%s1938 + $0x70] sm:$0xff]
    %v1954 = vld [vmem:[%s1938 + $0x78] sm:$0xff]
    %v1955 = vld [vmem:[%s1938 + $0x80] sm:$0xff]
    %v1956 = vld [vmem:[%s1938 + $0x88] sm:$0xff]
    %v1957 = vld [vmem:[%s1938 + $0x90] sm:$0xff]
    %v1958 = vld [vmem:[%s1938 + $0x98] sm:$0xff]
    %v1959 = vld [vmem:[%s1938 + $0xa0] sm:$0xff]
    %v1960 = vld [vmem:[%s1938 + $0xa8] sm:$0xff]
    %v1961 = vld [vmem:[%s1938 + $0xb0] sm:$0xff]
    %v1962 = vld [vmem:[%s1938 + $0xb8] sm:$0xff]
    %vm1963 = vsmask.f32 5376
    %v1965 = vshrl.u32 %v1918, 16
    %v1967 = vrot.slane %v1965, 2
    %v1968 = vshll.u32 %v1918, 16
    %v1970 = vrot.slane %v1968, 3
    %v1971 = vor.u32 %v1967, %v1970
    %v1973 = vshrl.u32 %v1920, 16
    %v1975 = vrot.slane %v1973, 2
    %v1976 = vshll.u32 %v1920, 16
    %v1978 = vrot.slane %v1976, 3
    %v1979 = vor.u32 %v1975, %v1978
    %v1980 = vsel %vm1963, %v1971, %v1979
    %v1982 = vshrl.u32 %v1919, 16
    %v1984 = vrot.slane %v1982, 2
    %v1985 = vshll.u32 %v1919, 16
    %v1987 = vrot.slane %v1985, 3
    %v1988 = vor.u32 %v1984, %v1987
    %v1990 = vshrl.u32 %v1921, 16
    %v1992 = vrot.slane %v1990, 2
    %v1993 = vshll.u32 %v1921, 16
    %v1995 = vrot.slane %v1993, 3
    %v1996 = vor.u32 %v1992, %v1995
    %v1997 = vsel %vm1963, %v1988, %v1996
    %v1999 = vshrl.u32 %v1922, 16
    %v2001 = vrot.slane %v1999, 2
    %v2002 = vshll.u32 %v1922, 16
    %v2004 = vrot.slane %v2002, 3
    %v2005 = vor.u32 %v2001, %v2004
    %v2006 = vsel %vm1963, %v1979, %v2005
    %v2008 = vshrl.u32 %v1923, 16
    %v2010 = vrot.slane %v2008, 2
    %v2011 = vshll.u32 %v1923, 16
    %v2013 = vrot.slane %v2011, 3
    %v2014 = vor.u32 %v2010, %v2013
    %v2015 = vsel %vm1963, %v1996, %v2014
    %v2017 = vshrl.u32 %v1924, 16
    %v2019 = vrot.slane %v2017, 2
    %v2020 = vshll.u32 %v1924, 16
    %v2022 = vrot.slane %v2020, 3
    %v2023 = vor.u32 %v2019, %v2022
    %v2024 = vsel %vm1963, %v2005, %v2023
    %v2026 = vshrl.u32 %v1925, 16
    %v2028 = vrot.slane %v2026, 2
    %v2029 = vshll.u32 %v1925, 16
    %v2031 = vrot.slane %v2029, 3
    %v2032 = vor.u32 %v2028, %v2031
    %v2033 = vsel %vm1963, %v2014, %v2032
    %v2035 = vshrl.u32 %v1926, 16
    %v2037 = vrot.slane %v2035, 2
    %v2038 = vshll.u32 %v1926, 16
    %v2040 = vrot.slane %v2038, 3
    %v2041 = vor.u32 %v2037, %v2040
    %v2042 = vsel %vm1963, %v2023, %v2041
    %v2044 = vshrl.u32 %v1927, 16
    %v2046 = vrot.slane %v2044, 2
    %v2047 = vshll.u32 %v1927, 16
    %v2049 = vrot.slane %v2047, 3
    %v2050 = vor.u32 %v2046, %v2049
    %v2051 = vsel %vm1963, %v2032, %v2050
    %v2053 = vshrl.u32 %v1928, 16
    %v2055 = vrot.slane %v2053, 2
    %v2056 = vshll.u32 %v1928, 16
    %v2058 = vrot.slane %v2056, 3
    %v2059 = vor.u32 %v2055, %v2058
    %v2060 = vsel %vm1963, %v2041, %v2059
    %v2062 = vshrl.u32 %v1929, 16
    %v2064 = vrot.slane %v2062, 2
    %v2065 = vshll.u32 %v1929, 16
    %v2067 = vrot.slane %v2065, 3
    %v2068 = vor.u32 %v2064, %v2067
    %v2069 = vsel %vm1963, %v2050, %v2068
    %v2071 = vshrl.u32 %v1930, 16
    %v2073 = vrot.slane %v2071, 2
    %v2074 = vshll.u32 %v1930, 16
    %v2076 = vrot.slane %v2074, 3
    %v2077 = vor.u32 %v2073, %v2076
    %v2078 = vsel %vm1963, %v2059, %v2077
    %v2080 = vshrl.u32 %v1931, 16
    %v2082 = vrot.slane %v2080, 2
    %v2083 = vshll.u32 %v1931, 16
    %v2085 = vrot.slane %v2083, 3
    %v2086 = vor.u32 %v2082, %v2085
    %v2087 = vsel %vm1963, %v2068, %v2086
    %v2089 = vshrl.u32 %v1932, 16
    %v2091 = vrot.slane %v2089, 2
    %v2092 = vshll.u32 %v1932, 16
    %v2094 = vrot.slane %v2092, 3
    %v2095 = vor.u32 %v2091, %v2094
    %v2096 = vsel %vm1963, %v2077, %v2095
    %v2098 = vshrl.u32 %v1933, 16
    %v2100 = vrot.slane %v2098, 2
    %v2101 = vshll.u32 %v1933, 16
    %v2103 = vrot.slane %v2101, 3
    %v2104 = vor.u32 %v2100, %v2103
    %v2105 = vsel %vm1963, %v2086, %v2104
    %v2107 = vshrl.u32 %v1934, 16
    %v2109 = vrot.slane %v2107, 2
    %v2110 = vshll.u32 %v1934, 16
    %v2112 = vrot.slane %v2110, 3
    %v2113 = vor.u32 %v2109, %v2112
    %v2114 = vsel %vm1963, %v2095, %v2113
    %v2116 = vshrl.u32 %v1935, 16
    %v2118 = vrot.slane %v2116, 2
    %v2119 = vshll.u32 %v1935, 16
    %v2121 = vrot.slane %v2119, 3
    %v2122 = vor.u32 %v2118, %v2121
    %v2123 = vsel %vm1963, %v2104, %v2122
    %v2125 = vshrl.u32 %v1936, 16
    %v2127 = vrot.slane %v2125, 2
    %v2128 = vshll.u32 %v1936, 16
    %v2130 = vrot.slane %v2128, 3
    %v2131 = vor.u32 %v2127, %v2130
    %v2132 = vsel %vm1963, %v2113, %v2131
    %v2134 = vshrl.u32 %v1937, 16
    %v2136 = vrot.slane %v2134, 2
    %v2137 = vshll.u32 %v1937, 16
    %v2139 = vrot.slane %v2137, 3
    %v2140 = vor.u32 %v2136, %v2139
    %v2141 = vsel %vm1963, %v2122, %v2140
    %v2175 = vunpack.c.l.b16 %v1939
    %v2176 = vunpack.c.h.b16 %v1939
    %v2177 = vunpack.c.l.b16 %v1940
    %v2178 = vunpack.c.h.b16 %v1940
    %v2179 = vunpack.c.l.b16 %v1941
    %v2180 = vunpack.c.h.b16 %v1941
    %v2181 = vunpack.c.l.b16 %v1942
    %v2182 = vunpack.c.h.b16 %v1942
    %v2183 = vunpack.c.l.b16 %v1943
    %v2184 = vunpack.c.h.b16 %v1943
    %v2185 = vunpack.c.l.b16 %v1944
    %v2186 = vunpack.c.h.b16 %v1944
    %v2187 = vunpack.c.l.b16 %v1945
    %v2188 = vunpack.c.h.b16 %v1945
    %v2189 = vunpack.c.l.b16 %v1946
    %v2190 = vunpack.c.h.b16 %v1946
    %v2191 = vunpack.c.l.b16 %v1947
    %v2192 = vunpack.c.h.b16 %v1947
    %v2193 = vunpack.c.l.b16 %v1948
    %v2194 = vunpack.c.h.b16 %v1948
    %v2195 = vunpack.c.l.b16 %v1949
    %v2196 = vunpack.c.h.b16 %v1949
    %v2197 = vunpack.c.l.b16 %v1950
    %v2198 = vunpack.c.h.b16 %v1950
    %v2199 = vunpack.c.l.b16 %v1951
    %v2200 = vunpack.c.h.b16 %v1951
    %v2201 = vunpack.c.l.b16 %v1952
    %v2202 = vunpack.c.h.b16 %v1952
    %v2203 = vunpack.c.l.b16 %v1953
    %v2204 = vunpack.c.h.b16 %v1953
    %v2205 = vunpack.c.l.b16 %v1954
    %v2206 = vunpack.c.h.b16 %v1954
    %v2207 = vunpack.c.l.b16 %v1955
    %v2208 = vunpack.c.h.b16 %v1955
    %v2209 = vunpack.c.l.b16 %v1956
    %v2210 = vunpack.c.h.b16 %v1956
    %v2211 = vunpack.c.l.b16 %v1957
    %v2212 = vunpack.c.h.b16 %v1957
    %v2213 = vunpack.c.l.b16 %v1958
    %v2214 = vunpack.c.h.b16 %v1958
    %v2215 = vunpack.c.l.b16 %v1959
    %v2216 = vunpack.c.h.b16 %v1959
    %v2217 = vunpack.c.l.b16 %v1960
    %v2218 = vunpack.c.h.b16 %v1960
    %v2219 = vunpack.c.l.b16 %v1961
    %v2220 = vunpack.c.h.b16 %v1961
    %v2221 = vunpack.c.l.b16 %v1962
    %v2222 = vunpack.c.h.b16 %v1962
    %v2223 = vpack.c.b16 %v2177, %v2175
    %v2224 = vpack.c.b16 %v2178, %v2176
    %v2225 = vpack.c.b16 %v2181, %v2179
    %v2226 = vpack.c.b16 %v2182, %v2180
    %v2227 = vpack.c.b16 %v2185, %v2183
    %v2228 = vpack.c.b16 %v2186, %v2184
    %v2229 = vpack.c.b16 %v2189, %v2187
    %v2230 = vpack.c.b16 %v2190, %v2188
    %v2231 = vpack.c.b16 %v2193, %v2191
    %v2232 = vpack.c.b16 %v2194, %v2192
    %v2233 = vpack.c.b16 %v2197, %v2195
    %v2234 = vpack.c.b16 %v2198, %v2196
    %v2235 = vpack.c.b16 %v2201, %v2199
    %v2236 = vpack.c.b16 %v2202, %v2200
    %v2237 = vpack.c.b16 %v2205, %v2203
    %v2238 = vpack.c.b16 %v2206, %v2204
    %v2239 = vpack.c.b16 %v2209, %v2207
    %v2240 = vpack.c.b16 %v2210, %v2208
    %v2241 = vpack.c.b16 %v2213, %v2211
    %v2242 = vpack.c.b16 %v2214, %v2212
    %v2243 = vpack.c.b16 %v2217, %v2215
    %v2244 = vpack.c.b16 %v2218, %v2216
    %v2245 = vpack.c.b16 %v2221, %v2219
    %v2246 = vpack.c.b16 %v2222, %v2220
    %v2272 = vsel %vm262, %v1997, 0
    %v2275 = vsel %vm262, %v2015, 0
    %v2278 = vsel %vm262, %v2033, 0
    %v2281 = vsel %vm262, %v2051, 0
    %v2284 = vsel %vm262, %v2069, 0
    %v2287 = vsel %vm262, %v2087, 0
    %v2290 = vsel %vm262, %v2105, 0
    %v2293 = vsel %vm262, %v2123, 0
    %v2296 = vsel %vm262, %v2141, 0
    %2298 = vmatpush.bf16.msra.mxu0 %v2237
    %2299 = vmatpush.bf16.msra.mxu0 %v2235
    %2300 = vmatpush.bf16.msra.mxu0 %v2233
    %2301 = vmatpush.bf16.msra.mxu0 %v2231
    %2302 = vmatpush.bf16.msra.mxu0 %v2229
    %2303 = vmatpush.bf16.msra.mxu0 %v2227
    %2304 = vmatpush.bf16.msra.mxu0 %v2225
    %2305 = vmatpush.bf16.msra.mxu0 %v2223
    %2306 = vmatmul.bf16.gmra.mxu0 %v1980
    %v2307 = vpop.f32.mrf.mxu0
    %v2308 = vadd.f32 0.0, %v2307
    %v2309 = vpop.f32.mrf.mxu0
    %v2310 = vadd.f32 0.0, %v2309
    %2311 = vmatmul.bf16.gmra.mxu0 %v2006
    %v2312 = vpop.f32.mrf.mxu0
    %v2313 = vadd.f32 0.0, %v2312
    %v2314 = vpop.f32.mrf.mxu0
    %v2315 = vadd.f32 0.0, %v2314
    %2316 = vmatmul.bf16.gmra.mxu0 %v2024
    %v2317 = vpop.f32.mrf.mxu0
    %v2318 = vadd.f32 0.0, %v2317
    %v2319 = vpop.f32.mrf.mxu0
    %v2320 = vadd.f32 0.0, %v2319
    %2321 = vmatmul.bf16.gmra.mxu0 %v2042
    %v2322 = vpop.f32.mrf.mxu0
    %v2323 = vadd.f32 0.0, %v2322
    %v2324 = vpop.f32.mrf.mxu0
    %v2325 = vadd.f32 0.0, %v2324
    %2326 = vmatmul.bf16.gmra.mxu0 %v2060
    %v2327 = vpop.f32.mrf.mxu0
    %v2328 = vadd.f32 0.0, %v2327
    %v2329 = vpop.f32.mrf.mxu0
    %v2330 = vadd.f32 0.0, %v2329
    %2331 = vmatmul.bf16.gmra.mxu0 %v2078
    %v2332 = vpop.f32.mrf.mxu0
    %v2333 = vadd.f32 0.0, %v2332
    %v2334 = vpop.f32.mrf.mxu0
    %v2335 = vadd.f32 0.0, %v2334
    %2336 = vmatmul.bf16.gmra.mxu0 %v2096
    %v2337 = vpop.f32.mrf.mxu0
    %v2338 = vadd.f32 0.0, %v2337
    %v2339 = vpop.f32.mrf.mxu0
    %v2340 = vadd.f32 0.0, %v2339
    %2341 = vmatmul.bf16.gmra.mxu0 %v2114
    %v2342 = vpop.f32.mrf.mxu0
    %v2343 = vadd.f32 0.0, %v2342
    %v2344 = vpop.f32.mrf.mxu0
    %v2345 = vadd.f32 0.0, %v2344
    %2346 = vmatmul.bf16.gmra.mxu0 %v2132
    %v2347 = vpop.f32.mrf.mxu0
    %v2348 = vadd.f32 0.0, %v2347
    %v2349 = vpop.f32.mrf.mxu0
    %v2350 = vadd.f32 0.0, %v2349
    %2351 = vdwg.mxu0
    %2352 = vmatpush.bf16.msra.mxu0 0
    %2353 = vmatpush.bf16.msra.mxu0 0
    %2354 = vmatpush.bf16.msra.mxu0 0
    %2355 = vmatpush.bf16.msra.mxu0 0
    %2356 = vmatpush.bf16.msra.mxu0 %v2245
    %2357 = vmatpush.bf16.msra.mxu0 %v2243
    %2358 = vmatpush.bf16.msra.mxu0 %v2241
    %2359 = vmatpush.bf16.msra.mxu0 %v2239
    %2360 = vmatmul.bf16.gmra.mxu0 %v2272
    %v2361 = vpop.f32.mrf.mxu0
    %v2362 = vadd.f32 %v2308, %v2361
    %v2363 = vpop.f32.mrf.mxu0
    %v2364 = vadd.f32 %v2310, %v2363
    %2365 = vmatmul.bf16.gmra.mxu0 %v2275
    %v2366 = vpop.f32.mrf.mxu0
    %v2367 = vadd.f32 %v2313, %v2366
    %v2368 = vpop.f32.mrf.mxu0
    %v2369 = vadd.f32 %v2315, %v2368
    %2370 = vmatmul.bf16.gmra.mxu0 %v2278
    %v2371 = vpop.f32.mrf.mxu0
    %v2372 = vadd.f32 %v2318, %v2371
    %v2373 = vpop.f32.mrf.mxu0
    %v2374 = vadd.f32 %v2320, %v2373
    %2375 = vmatmul.bf16.gmra.mxu0 %v2281
    %v2376 = vpop.f32.mrf.mxu0
    %v2377 = vadd.f32 %v2323, %v2376
    %v2378 = vpop.f32.mrf.mxu0
    %v2379 = vadd.f32 %v2325, %v2378
    %2380 = vmatmul.bf16.gmra.mxu0 %v2284
    %v2381 = vpop.f32.mrf.mxu0
    %v2382 = vadd.f32 %v2328, %v2381
    %v2383 = vpop.f32.mrf.mxu0
    %v2384 = vadd.f32 %v2330, %v2383
    %2385 = vmatmul.bf16.gmra.mxu0 %v2287
    %v2386 = vpop.f32.mrf.mxu0
    %v2387 = vadd.f32 %v2333, %v2386
    %v2388 = vpop.f32.mrf.mxu0
    %v2389 = vadd.f32 %v2335, %v2388
    %2390 = vmatmul.bf16.gmra.mxu0 %v2290
    %v2391 = vpop.f32.mrf.mxu0
    %v2392 = vadd.f32 %v2338, %v2391
    %v2393 = vpop.f32.mrf.mxu0
    %v2394 = vadd.f32 %v2340, %v2393
    %2395 = vmatmul.bf16.gmra.mxu0 %v2293
    %v2396 = vpop.f32.mrf.mxu0
    %v2397 = vadd.f32 %v2343, %v2396
    %v2398 = vpop.f32.mrf.mxu0
    %v2399 = vadd.f32 %v2345, %v2398
    %2400 = vmatmul.bf16.gmra.mxu0 %v2296
    %v2401 = vpop.f32.mrf.mxu0
    %v2402 = vadd.f32 %v2348, %v2401
    %v2403 = vpop.f32.mrf.mxu0
    %v2404 = vadd.f32 %v2350, %v2403
    %2405 = vdwg.mxu0
    %2406 = vmatpush.bf16.msra.mxu0 %v2238
    %2407 = vmatpush.bf16.msra.mxu0 %v2236
    %2408 = vmatpush.bf16.msra.mxu0 %v2234
    %2409 = vmatpush.bf16.msra.mxu0 %v2232
    %2410 = vmatpush.bf16.msra.mxu0 %v2230
    %2411 = vmatpush.bf16.msra.mxu0 %v2228
    %2412 = vmatpush.bf16.msra.mxu0 %v2226
    %2413 = vmatpush.bf16.msra.mxu0 %v2224
    %2414 = vmatmul.bf16.gmra.mxu0 %v1980
    %v2415 = vpop.f32.mrf.mxu0
    %v2416 = vadd.f32 0.0, %v2415
    %v2417 = vpop.f32.mrf.mxu0
    %v2418 = vadd.f32 0.0, %v2417
    %2419 = vmatmul.bf16.gmra.mxu0 %v2006
    %v2420 = vpop.f32.mrf.mxu0
    %v2421 = vadd.f32 0.0, %v2420
    %v2422 = vpop.f32.mrf.mxu0
    %v2423 = vadd.f32 0.0, %v2422
    %2424 = vmatmul.bf16.gmra.mxu0 %v2024
    %v2425 = vpop.f32.mrf.mxu0
    %v2426 = vadd.f32 0.0, %v2425
    %v2427 = vpop.f32.mrf.mxu0
    %v2428 = vadd.f32 0.0, %v2427
    %2429 = vmatmul.bf16.gmra.mxu0 %v2042
    %v2430 = vpop.f32.mrf.mxu0
    %v2431 = vadd.f32 0.0, %v2430
    %v2432 = vpop.f32.mrf.mxu0
    %v2433 = vadd.f32 0.0, %v2432
    %2434 = vmatmul.bf16.gmra.mxu0 %v2060
    %v2435 = vpop.f32.mrf.mxu0
    %v2436 = vadd.f32 0.0, %v2435
    %v2437 = vpop.f32.mrf.mxu0
    %v2438 = vadd.f32 0.0, %v2437
    %2439 = vmatmul.bf16.gmra.mxu0 %v2078
    %v2440 = vpop.f32.mrf.mxu0
    %v2441 = vadd.f32 0.0, %v2440
    %v2442 = vpop.f32.mrf.mxu0
    %v2443 = vadd.f32 0.0, %v2442
    %2444 = vmatmul.bf16.gmra.mxu0 %v2096
    %v2445 = vpop.f32.mrf.mxu0
    %v2446 = vadd.f32 0.0, %v2445
    %v2447 = vpop.f32.mrf.mxu0
    %v2448 = vadd.f32 0.0, %v2447
    %2449 = vmatmul.bf16.gmra.mxu0 %v2114
    %v2450 = vpop.f32.mrf.mxu0
    %v2451 = vadd.f32 0.0, %v2450
    %v2452 = vpop.f32.mrf.mxu0
    %v2453 = vadd.f32 0.0, %v2452
    %2454 = vmatmul.bf16.gmra.mxu0 %v2132
    %v2455 = vpop.f32.mrf.mxu0
    %v2456 = vadd.f32 0.0, %v2455
    %v2457 = vpop.f32.mrf.mxu0
    %v2458 = vadd.f32 0.0, %v2457
    %2459 = vdwg.mxu0
    %2460 = vmatpush.bf16.msra.mxu0 0
    %2461 = vmatpush.bf16.msra.mxu0 0
    %2462 = vmatpush.bf16.msra.mxu0 0
    %2463 = vmatpush.bf16.msra.mxu0 0
    %2464 = vmatpush.bf16.msra.mxu0 %v2246
    %2465 = vmatpush.bf16.msra.mxu0 %v2244
    %2466 = vmatpush.bf16.msra.mxu0 %v2242
    %2467 = vmatpush.bf16.msra.mxu0 %v2240
    %2468 = vmatmul.bf16.gmra.mxu0 %v2272
    %v2469 = vpop.f32.mrf.mxu0
    %v2470 = vadd.f32 %v2416, %v2469
    %v2471 = vpop.f32.mrf.mxu0
    %v2472 = vadd.f32 %v2418, %v2471
    %2473 = vmatmul.bf16.gmra.mxu0 %v2275
    %v2474 = vpop.f32.mrf.mxu0
    %v2475 = vadd.f32 %v2421, %v2474
    %v2476 = vpop.f32.mrf.mxu0
    %v2477 = vadd.f32 %v2423, %v2476
    %2478 = vmatmul.bf16.gmra.mxu0 %v2278
    %v2479 = vpop.f32.mrf.mxu0
    %v2480 = vadd.f32 %v2426, %v2479
    %v2481 = vpop.f32.mrf.mxu0
    %v2482 = vadd.f32 %v2428, %v2481
    %2483 = vmatmul.bf16.gmra.mxu0 %v2281
    %v2484 = vpop.f32.mrf.mxu0
    %v2485 = vadd.f32 %v2431, %v2484
    %v2486 = vpop.f32.mrf.mxu0
    %v2487 = vadd.f32 %v2433, %v2486
    %2488 = vmatmul.bf16.gmra.mxu0 %v2284
    %v2489 = vpop.f32.mrf.mxu0
    %v2490 = vadd.f32 %v2436, %v2489
    %v2491 = vpop.f32.mrf.mxu0
    %v2492 = vadd.f32 %v2438, %v2491
    %2493 = vmatmul.bf16.gmra.mxu0 %v2287
    %v2494 = vpop.f32.mrf.mxu0
    %v2495 = vadd.f32 %v2441, %v2494
    %v2496 = vpop.f32.mrf.mxu0
    %v2497 = vadd.f32 %v2443, %v2496
    %2498 = vmatmul.bf16.gmra.mxu0 %v2290
    %v2499 = vpop.f32.mrf.mxu0
    %v2500 = vadd.f32 %v2446, %v2499
    %v2501 = vpop.f32.mrf.mxu0
    %v2502 = vadd.f32 %v2448, %v2501
    %2503 = vmatmul.bf16.gmra.mxu0 %v2293
    %v2504 = vpop.f32.mrf.mxu0
    %v2505 = vadd.f32 %v2451, %v2504
    %v2506 = vpop.f32.mrf.mxu0
    %v2507 = vadd.f32 %v2453, %v2506
    %2508 = vmatmul.bf16.gmra.mxu0 %v2296
    %v2509 = vpop.f32.mrf.mxu0
    %v2510 = vadd.f32 %v2456, %v2509
    %v2511 = vpop.f32.mrf.mxu0
    %v2512 = vadd.f32 %v2458, %v2511
    %2513 = vdwg.mxu0
    %v2514 = vld [vmem:[#allocation2] sm:$0xff]
    %v2515 = vld [vmem:[#allocation2 + $0x8] sm:$0xff]
    %v2516 = vld [vmem:[#allocation2 + $0x10] sm:$0xff]
    %v2517 = vld [vmem:[#allocation2 + $0x18] sm:$0xff]
    %v2518 = vld [vmem:[#allocation2 + $0x20] sm:$0xff]
    %v2519 = vld [vmem:[#allocation2 + $0x28] sm:$0xff]
    %v2520 = vld [vmem:[#allocation2 + $0x30] sm:$0xff]
    %v2521 = vld [vmem:[#allocation2 + $0x38] sm:$0xff]
    %v2522 = vld [vmem:[#allocation2 + $0x40] sm:$0xff]
    %v2523 = vld [vmem:[#allocation2 + $0x48] sm:$0xff]
    %v2524 = vld [vmem:[#allocation2 + $0x50] sm:$0xff]
    %v2525 = vld [vmem:[#allocation2 + $0x58] sm:$0xff]
    %v2526 = vld [vmem:[#allocation2 + $0x60] sm:$0xff]
    %v2527 = vld [vmem:[#allocation2 + $0x68] sm:$0xff]
    %v2528 = vld [vmem:[#allocation2 + $0x70] sm:$0xff]
    %v2529 = vld [vmem:[#allocation2 + $0x78] sm:$0xff]
    %v2530 = vld [vmem:[#allocation2 + $0x80] sm:$0xff]
    %v2531 = vld [vmem:[#allocation2 + $0x88] sm:$0xff]
    %v2532 = vld [vmem:[#allocation2 + $0x90] sm:$0xff]
    %v2533 = vld [vmem:[#allocation2 + $0x98] sm:$0xff]
    %v2534 = vld [vmem:[#allocation2 + $0xa0] sm:$0xff]
    %v2535 = vld [vmem:[#allocation2 + $0xa8] sm:$0xff]
    %v2536 = vld [vmem:[#allocation2 + $0xb0] sm:$0xff]
    %v2537 = vld [vmem:[#allocation2 + $0xb8] sm:$0xff]
    %v2538 = vld [vmem:[#allocation2 + $0xc0] sm:$0xff]
    %v2539 = vld [vmem:[#allocation2 + $0xc8] sm:$0xff]
    %v2540 = vld [vmem:[#allocation2 + $0xd0] sm:$0xff]
    %v2541 = vld [vmem:[#allocation2 + $0xd8] sm:$0xff]
    %v2542 = vld [vmem:[#allocation2 + $0xe0] sm:$0xff]
    %v2543 = vld [vmem:[#allocation2 + $0xe8] sm:$0xff]
    %v2544 = vld [vmem:[#allocation2 + $0xf0] sm:$0xff]
    %v2545 = vld [vmem:[#allocation2 + $0xf8] sm:$0xff]
    %v2546 = vld [vmem:[#allocation2 + $0x100] sm:$0xff]
    %v2547 = vld [vmem:[#allocation2 + $0x108] sm:$0xff]
    %v2548 = vld [vmem:[#allocation2 + $0x110] sm:$0xff]
    %v2549 = vld [vmem:[#allocation2 + $0x118] sm:$0xff]
    %v2550 = vadd.f32 %v2514, %v2362
    %v2551 = vadd.f32 %v2515, %v2470
    %v2552 = vadd.f32 %v2516, %v2364
    %v2553 = vadd.f32 %v2517, %v2472
    %v2554 = vadd.f32 %v2518, %v2367
    %v2555 = vadd.f32 %v2519, %v2475
    %v2556 = vadd.f32 %v2520, %v2369
    %v2557 = vadd.f32 %v2521, %v2477
    %v2558 = vadd.f32 %v2522, %v2372
    %v2559 = vadd.f32 %v2523, %v2480
    %v2560 = vadd.f32 %v2524, %v2374
    %v2561 = vadd.f32 %v2525, %v2482
    %v2562 = vadd.f32 %v2526, %v2377
    %v2563 = vadd.f32 %v2527, %v2485
    %v2564 = vadd.f32 %v2528, %v2379
    %v2565 = vadd.f32 %v2529, %v2487
    %v2566 = vadd.f32 %v2530, %v2382
    %v2567 = vadd.f32 %v2531, %v2490
    %v2568 = vadd.f32 %v2532, %v2384
    %v2569 = vadd.f32 %v2533, %v2492
    %v2570 = vadd.f32 %v2534, %v2387
    %v2571 = vadd.f32 %v2535, %v2495
    %v2572 = vadd.f32 %v2536, %v2389
    %v2573 = vadd.f32 %v2537, %v2497
    %v2574 = vadd.f32 %v2538, %v2392
    %v2575 = vadd.f32 %v2539, %v2500
    %v2576 = vadd.f32 %v2540, %v2394
    %v2577 = vadd.f32 %v2541, %v2502
    %v2578 = vadd.f32 %v2542, %v2397
    %v2579 = vadd.f32 %v2543, %v2505
    %v2580 = vadd.f32 %v2544, %v2399
    %v2581 = vadd.f32 %v2545, %v2507
    %v2582 = vadd.f32 %v2546, %v2402
    %v2583 = vadd.f32 %v2547, %v2510
    %v2584 = vadd.f32 %v2548, %v2404
    %v2585 = vadd.f32 %v2549, %v2512
    %2586 = vst [vmem:[#allocation2] sm:$0xff] %v2550
    %2587 = vst [vmem:[#allocation2 + $0x8] sm:$0xff] %v2551
    %2588 = vst [vmem:[#allocation2 + $0x10] sm:$0xff] %v2552
    %2589 = vst [vmem:[#allocation2 + $0x18] sm:$0xff] %v2553
    %2590 = vst [vmem:[#allocation2 + $0x20] sm:$0xff] %v2554
    %2591 = vst [vmem:[#allocation2 + $0x28] sm:$0xff] %v2555
    %2592 = vst [vmem:[#allocation2 + $0x30] sm:$0xff] %v2556
    %2593 = vst [vmem:[#allocation2 + $0x38] sm:$0xff] %v2557
    %2594 = vst [vmem:[#allocation2 + $0x40] sm:$0xff] %v2558
    %2595 = vst [vmem:[#allocation2 + $0x48] sm:$0xff] %v2559
    %2596 = vst [vmem:[#allocation2 + $0x50] sm:$0xff] %v2560
    %2597 = vst [vmem:[#allocation2 + $0x58] sm:$0xff] %v2561
    %2598 = vst [vmem:[#allocation2 + $0x60] sm:$0xff] %v2562
    %2599 = vst [vmem:[#allocation2 + $0x68] sm:$0xff] %v2563
    %2600 = vst [vmem:[#allocation2 + $0x70] sm:$0xff] %v2564
    %2601 = vst [vmem:[#allocation2 + $0x78] sm:$0xff] %v2565
    %2602 = vst [vmem:[#allocation2 + $0x80] sm:$0xff] %v2566
    %2603 = vst [vmem:[#allocation2 + $0x88] sm:$0xff] %v2567
    %2604 = vst [vmem:[#allocation2 + $0x90] sm:$0xff] %v2568
    %2605 = vst [vmem:[#allocation2 + $0x98] sm:$0xff] %v2569
    %2606 = vst [vmem:[#allocation2 + $0xa0] sm:$0xff] %v2570
    %2607 = vst [vmem:[#allocation2 + $0xa8] sm:$0xff] %v2571
    %2608 = vst [vmem:[#allocation2 + $0xb0] sm:$0xff] %v2572
    %2609 = vst [vmem:[#allocation2 + $0xb8] sm:$0xff] %v2573
    %2610 = vst [vmem:[#allocation2 + $0xc0] sm:$0xff] %v2574
    %2611 = vst [vmem:[#allocation2 + $0xc8] sm:$0xff] %v2575
    %2612 = vst [vmem:[#allocation2 + $0xd0] sm:$0xff] %v2576
    %2613 = vst [vmem:[#allocation2 + $0xd8] sm:$0xff] %v2577
    %2614 = vst [vmem:[#allocation2 + $0xe0] sm:$0xff] %v2578
    %2615 = vst [vmem:[#allocation2 + $0xe8] sm:$0xff] %v2579
    %2616 = vst [vmem:[#allocation2 + $0xf0] sm:$0xff] %v2580
    %2617 = vst [vmem:[#allocation2 + $0xf8] sm:$0xff] %v2581
    %2618 = vst [vmem:[#allocation2 + $0x100] sm:$0xff] %v2582
    %2619 = vst [vmem:[#allocation2 + $0x108] sm:$0xff] %v2583
    %2620 = vst [vmem:[#allocation2 + $0x110] sm:$0xff] %v2584
    %2621 = vst [vmem:[#allocation2 + $0x118] sm:$0xff] %v2585
    %v2622 = vld [vmem:[%s6] sm:$0xff]
    %v2623 = vld [vmem:[%s6 + $0x8] sm:$0xff]
    %v2624 = vld [vmem:[%s6 + $0x10] sm:$0xff]
    %v2625 = vld [vmem:[%s6 + $0x18] sm:$0xff]
    %v2626 = vld [vmem:[%s6 + $0x20] sm:$0xff]
    %v2627 = vld [vmem:[%s6 + $0x28] sm:$0xff]
    %v2628 = vld [vmem:[%s6 + $0x30] sm:$0xff]
    %v2629 = vld [vmem:[%s6 + $0x38] sm:$0xff]
    %v2630 = vld [vmem:[%s6 + $0x40] sm:$0xff]
    %v2631 = vld [vmem:[%s6 + $0x48] sm:$0xff]
    %v2632 = vld [vmem:[%s6 + $0x50] sm:$0xff]
    %v2633 = vld [vmem:[%s6 + $0x58] sm:$0xff]
    %v2634 = vld [vmem:[%s6 + $0x60] sm:$0xff]
    %v2635 = vld [vmem:[%s6 + $0x68] sm:$0xff]
    %v2636 = vld [vmem:[%s6 + $0x70] sm:$0xff]
    %v2637 = vld [vmem:[%s6 + $0x78] sm:$0xff]
    %v2638 = vld [vmem:[%s6 + $0x80] sm:$0xff]
    %v2639 = vld [vmem:[%s6 + $0x88] sm:$0xff]
    %v2640 = vld [vmem:[#allocation2] sm:$0xff]
    %v2641 = vld [vmem:[#allocation2 + $0x8] sm:$0xff]
    %v2642 = vld [vmem:[#allocation2 + $0x10] sm:$0xff]
    %v2643 = vld [vmem:[#allocation2 + $0x18] sm:$0xff]
    %v2644 = vld [vmem:[#allocation2 + $0x20] sm:$0xff]
    %v2645 = vld [vmem:[#allocation2 + $0x28] sm:$0xff]
    %v2646 = vld [vmem:[#allocation2 + $0x30] sm:$0xff]
    %v2647 = vld [vmem:[#allocation2 + $0x38] sm:$0xff]
    %v2648 = vld [vmem:[#allocation2 + $0x40] sm:$0xff]
    %v2649 = vld [vmem:[#allocation2 + $0x48] sm:$0xff]
    %v2650 = vld [vmem:[#allocation2 + $0x50] sm:$0xff]
    %v2651 = vld [vmem:[#allocation2 + $0x58] sm:$0xff]
    %v2652 = vld [vmem:[#allocation2 + $0x60] sm:$0xff]
    %v2653 = vld [vmem:[#allocation2 + $0x68] sm:$0xff]
    %v2654 = vld [vmem:[#allocation2 + $0x70] sm:$0xff]
    %v2655 = vld [vmem:[#allocation2 + $0x78] sm:$0xff]
    %v2656 = vld [vmem:[#allocation2 + $0x80] sm:$0xff]
    %v2657 = vld [vmem:[#allocation2 + $0x88] sm:$0xff]
    %v2658 = vmul.f32 %v2640, %v2622
    %v2659 = vmul.f32 %v2641, %v2623
    %v2660 = vmul.f32 %v2642, %v2624
    %v2661 = vmul.f32 %v2643, %v2625
    %v2662 = vmul.f32 %v2644, %v2626
    %v2663 = vmul.f32 %v2645, %v2627
    %v2664 = vmul.f32 %v2646, %v2628
    %v2665 = vmul.f32 %v2647, %v2629
    %v2666 = vmul.f32 %v2648, %v2630
    %v2667 = vmul.f32 %v2649, %v2631
    %v2668 = vmul.f32 %v2650, %v2632
    %v2669 = vmul.f32 %v2651, %v2633
    %v2670 = vmul.f32 %v2652, %v2634
    %v2671 = vmul.f32 %v2653, %v2635
    %v2672 = vmul.f32 %v2654, %v2636
    %v2673 = vmul.f32 %v2655, %v2637
    %v2674 = vmul.f32 %v2656, %v2638
    %v2675 = vmul.f32 %v2657, %v2639
    %v2676 = vadd.f32 %v2658, %v2660
    %v2677 = vadd.f32 %v2676, %v2662
    %v2678 = vadd.f32 %v2677, %v2664
    %v2679 = vadd.f32 %v2678, %v2666
    %v2680 = vadd.f32 %v2679, %v2668
    %v2681 = vadd.f32 %v2680, %v2670
    %v2682 = vadd.f32 %v2681, %v2672
    %v2683 = vadd.f32 %v2682, %v2674
    %v2684 = vrot.slane %v2683, 4
    %v2685 = vadd.f32 %v2683, %v2684
    %v2686 = vrot.slane %v2685, 2
    %v2687 = vadd.f32 %v2685, %v2686
    %v2688 = vrot.slane %v2687, 1
    %v2689 = vadd.f32 %v2687, %v2688
    %v2690 = vadd.f32 %v2659, %v2661
    %v2691 = vadd.f32 %v2690, %v2663
    %v2692 = vadd.f32 %v2691, %v2665
    %v2693 = vadd.f32 %v2692, %v2667
    %v2694 = vadd.f32 %v2693, %v2669
    %v2695 = vadd.f32 %v2694, %v2671
    %v2696 = vadd.f32 %v2695, %v2673
    %v2697 = vadd.f32 %v2696, %v2675
    %v2698 = vrot.slane %v2697, 4
    %v2699 = vadd.f32 %v2697, %v2698
    %v2700 = vrot.slane %v2699, 2
    %v2701 = vadd.f32 %v2699, %v2700
    %v2702 = vrot.slane %v2701, 1
    %v2703 = vadd.f32 %v2701, %v2702
    %v2704 = vadd.f32 %v2689, 0.0
    %v2705 = vadd.f32 %v2703, 0.0
    %v2706 = vmul.f32 %v2658, %v2658
    %v2707 = vmul.f32 %v2659, %v2659
    %v2708 = vmul.f32 %v2660, %v2660
    %v2709 = vmul.f32 %v2661, %v2661
    %v2710 = vmul.f32 %v2662, %v2662
    %v2711 = vmul.f32 %v2663, %v2663
    %v2712 = vmul.f32 %v2664, %v2664
    %v2713 = vmul.f32 %v2665, %v2665
    %v2714 = vmul.f32 %v2666, %v2666
    %v2715 = vmul.f32 %v2667, %v2667
    %v2716 = vmul.f32 %v2668, %v2668
    %v2717 = vmul.f32 %v2669, %v2669
    %v2718 = vmul.f32 %v2670, %v2670
    %v2719 = vmul.f32 %v2671, %v2671
    %v2720 = vmul.f32 %v2672, %v2672
    %v2721 = vmul.f32 %v2673, %v2673
    %v2722 = vmul.f32 %v2674, %v2674
    %v2723 = vmul.f32 %v2675, %v2675
    %v2724 = vadd.f32 %v2706, %v2708
    %v2725 = vadd.f32 %v2724, %v2710
    %v2726 = vadd.f32 %v2725, %v2712
    %v2727 = vadd.f32 %v2726, %v2714
    %v2728 = vadd.f32 %v2727, %v2716
    %v2729 = vadd.f32 %v2728, %v2718
    %v2730 = vadd.f32 %v2729, %v2720
    %v2731 = vadd.f32 %v2730, %v2722
    %v2732 = vrot.slane %v2731, 4
    %v2733 = vadd.f32 %v2731, %v2732
    %v2734 = vrot.slane %v2733, 2
    %v2735 = vadd.f32 %v2733, %v2734
    %v2736 = vrot.slane %v2735, 1
    %v2737 = vadd.f32 %v2735, %v2736
    %v2738 = vadd.f32 %v2707, %v2709
    %v2739 = vadd.f32 %v2738, %v2711
    %v2740 = vadd.f32 %v2739, %v2713
    %v2741 = vadd.f32 %v2740, %v2715
    %v2742 = vadd.f32 %v2741, %v2717
    %v2743 = vadd.f32 %v2742, %v2719
    %v2744 = vadd.f32 %v2743, %v2721
    %v2745 = vadd.f32 %v2744, %v2723
    %v2746 = vrot.slane %v2745, 4
    %v2747 = vadd.f32 %v2745, %v2746
    %v2748 = vrot.slane %v2747, 2
    %v2749 = vadd.f32 %v2747, %v2748
    %v2750 = vrot.slane %v2749, 1
    %v2751 = vadd.f32 %v2749, %v2750
    %v2752 = vadd.f32 %v2737, 0.0
    %v2753 = vadd.f32 %v2751, 0.0
    %v2754 = vld [vmem:[#allocation2 + $0x90] sm:$0xff]
    %v2755 = vld [vmem:[#allocation2 + $0x98] sm:$0xff]
    %v2756 = vld [vmem:[#allocation2 + $0xa0] sm:$0xff]
    %v2757 = vld [vmem:[#allocation2 + $0xa8] sm:$0xff]
    %v2758 = vld [vmem:[#allocation2 + $0xb0] sm:$0xff]
    %v2759 = vld [vmem:[#allocation2 + $0xb8] sm:$0xff]
    %v2760 = vld [vmem:[#allocation2 + $0xc0] sm:$0xff]
    %v2761 = vld [vmem:[#allocation2 + $0xc8] sm:$0xff]
    %v2762 = vld [vmem:[#allocation2 + $0xd0] sm:$0xff]
    %v2763 = vld [vmem:[#allocation2 + $0xd8] sm:$0xff]
    %v2764 = vld [vmem:[#allocation2 + $0xe0] sm:$0xff]
    %v2765 = vld [vmem:[#allocation2 + $0xe8] sm:$0xff]
    %v2766 = vld [vmem:[#allocation2 + $0xf0] sm:$0xff]
    %v2767 = vld [vmem:[#allocation2 + $0xf8] sm:$0xff]
    %v2768 = vld [vmem:[#allocation2 + $0x100] sm:$0xff]
    %v2769 = vld [vmem:[#allocation2 + $0x108] sm:$0xff]
    %v2770 = vld [vmem:[#allocation2 + $0x110] sm:$0xff]
    %v2771 = vld [vmem:[#allocation2 + $0x118] sm:$0xff]
    %v2772 = vmul.f32 %v2754, %v2622
    %v2773 = vmul.f32 %v2755, %v2623
    %v2774 = vmul.f32 %v2756, %v2624
    %v2775 = vmul.f32 %v2757, %v2625
    %v2776 = vmul.f32 %v2758, %v2626
    %v2777 = vmul.f32 %v2759, %v2627
    %v2778 = vmul.f32 %v2760, %v2628
    %v2779 = vmul.f32 %v2761, %v2629
    %v2780 = vmul.f32 %v2762, %v2630
    %v2781 = vmul.f32 %v2763, %v2631
    %v2782 = vmul.f32 %v2764, %v2632
    %v2783 = vmul.f32 %v2765, %v2633
    %v2784 = vmul.f32 %v2766, %v2634
    %v2785 = vmul.f32 %v2767, %v2635
    %v2786 = vmul.f32 %v2768, %v2636
    %v2787 = vmul.f32 %v2769, %v2637
    %v2788 = vmul.f32 %v2770, %v2638
    %v2789 = vmul.f32 %v2771, %v2639
    %v2790 = vadd.f32 %v2772, %v2774
    %v2791 = vadd.f32 %v2790, %v2776
    %v2792 = vadd.f32 %v2791, %v2778
    %v2793 = vadd.f32 %v2792, %v2780
    %v2794 = vadd.f32 %v2793, %v2782
    %v2795 = vadd.f32 %v2794, %v2784
    %v2796 = vadd.f32 %v2795, %v2786
    %v2797 = vadd.f32 %v2796, %v2788
    %v2798 = vrot.slane %v2797, 4
    %v2799 = vadd.f32 %v2797, %v2798
    %v2800 = vrot.slane %v2799, 2
    %v2801 = vadd.f32 %v2799, %v2800
    %v2802 = vrot.slane %v2801, 1
    %v2803 = vadd.f32 %v2801, %v2802
    %v2804 = vadd.f32 %v2773, %v2775
    %v2805 = vadd.f32 %v2804, %v2777
    %v2806 = vadd.f32 %v2805, %v2779
    %v2807 = vadd.f32 %v2806, %v2781
    %v2808 = vadd.f32 %v2807, %v2783
    %v2809 = vadd.f32 %v2808, %v2785
    %v2810 = vadd.f32 %v2809, %v2787
    %v2811 = vadd.f32 %v2810, %v2789
    %v2812 = vrot.slane %v2811, 4
    %v2813 = vadd.f32 %v2811, %v2812
    %v2814 = vrot.slane %v2813, 2
    %v2815 = vadd.f32 %v2813, %v2814
    %v2816 = vrot.slane %v2815, 1
    %v2817 = vadd.f32 %v2815, %v2816
    %v2818 = vadd.f32 %v2704, %v2803
    %v2819 = vadd.f32 %v2705, %v2817
    %v2820 = vmul.f32 %v2772, %v2772
    %v2821 = vmul.f32 %v2773, %v2773
    %v2822 = vmul.f32 %v2774, %v2774
    %v2823 = vmul.f32 %v2775, %v2775
    %v2824 = vmul.f32 %v2776, %v2776
    %v2825 = vmul.f32 %v2777, %v2777
    %v2826 = vmul.f32 %v2778, %v2778
    %v2827 = vmul.f32 %v2779, %v2779
    %v2828 = vmul.f32 %v2780, %v2780
    %v2829 = vmul.f32 %v2781, %v2781
    %v2830 = vmul.f32 %v2782, %v2782
    %v2831 = vmul.f32 %v2783, %v2783
    %v2832 = vmul.f32 %v2784, %v2784
    %v2833 = vmul.f32 %v2785, %v2785
    %v2834 = vmul.f32 %v2786, %v2786
    %v2835 = vmul.f32 %v2787, %v2787
    %v2836 = vmul.f32 %v2788, %v2788
    %v2837 = vmul.f32 %v2789, %v2789
    %v2838 = vadd.f32 %v2820, %v2822
    %v2839 = vadd.f32 %v2838, %v2824
    %v2840 = vadd.f32 %v2839, %v2826
    %v2841 = vadd.f32 %v2840, %v2828
    %v2842 = vadd.f32 %v2841, %v2830
    %v2843 = vadd.f32 %v2842, %v2832
    %v2844 = vadd.f32 %v2843, %v2834
    %v2845 = vadd.f32 %v2844, %v2836
    %v2846 = vrot.slane %v2845, 4
    %v2847 = vadd.f32 %v2845, %v2846
    %v2848 = vrot.slane %v2847, 2
    %v2849 = vadd.f32 %v2847, %v2848
    %v2850 = vrot.slane %v2849, 1
    %v2851 = vadd.f32 %v2849, %v2850
    %v2852 = vadd.f32 %v2821, %v2823
    %v2853 = vadd.f32 %v2852, %v2825
    %v2854 = vadd.f32 %v2853, %v2827
    %v2855 = vadd.f32 %v2854, %v2829
    %v2856 = vadd.f32 %v2855, %v2831
    %v2857 = vadd.f32 %v2856, %v2833
    %v2858 = vadd.f32 %v2857, %v2835
    %v2859 = vadd.f32 %v2858, %v2837
    %v2860 = vrot.slane %v2859, 4
    %v2861 = vadd.f32 %v2859, %v2860
    %v2862 = vrot.slane %v2861, 2
    %v2863 = vadd.f32 %v2861, %v2862
    %v2864 = vrot.slane %v2863, 1
    %v2865 = vadd.f32 %v2863, %v2864
    %v2866 = vadd.f32 %v2752, %v2851
    %v2867 = vadd.f32 %v2753, %v2865
    %vm2868 = vcmask 1040384
    %v2869 = vsel %vm2868, %v2818, %v2866
    %v2870 = vsel %vm2868, %v2819, %v2867
    %v2871 = vld [vmem:[%s9] sm:$0xff]
    %v2872 = vld [vmem:[%s9 + $0x8] sm:$0xff]
    %v2873 = vld [vmem:[%s9 + $0x10] sm:$0xff]
    %v2874 = vld [vmem:[%s9 + $0x18] sm:$0xff]
    %v2875 = vld [vmem:[%s9 + $0x20] sm:$0xff]
    %v2876 = vld [vmem:[%s9 + $0x28] sm:$0xff]
    %v2877 = vld [vmem:[%s9 + $0x30] sm:$0xff]
    %v2878 = vld [vmem:[%s9 + $0x38] sm:$0xff]
    %v2879 = vld [vmem:[%s9 + $0x40] sm:$0xff]
    %v2880 = vld [vmem:[%s9 + $0x48] sm:$0xff]
    %v2881 = vld [vmem:[%s9 + $0x50] sm:$0xff]
    %v2882 = vld [vmem:[%s9 + $0x58] sm:$0xff]
    %v2883 = vld [vmem:[%s9 + $0x60] sm:$0xff]
    %v2884 = vld [vmem:[%s9 + $0x68] sm:$0xff]
    %v2885 = vld [vmem:[%s9 + $0x70] sm:$0xff]
    %v2886 = vld [vmem:[%s9 + $0x78] sm:$0xff]
    %v2887 = vld [vmem:[%s9 + $0x80] sm:$0xff]
    %v2888 = vld [vmem:[%s9 + $0x88] sm:$0xff]
    %v2889 = vld [vmem:[%s9 + $0x90] sm:$0xff]
    %v2890 = vld [vmem:[%s9 + $0x98] sm:$0xff]
    %v2891 = vld [vmem:[%s9 + $0xa0] sm:$0xff]
    %v2892 = vld [vmem:[%s9 + $0xa8] sm:$0xff]
    %v2893 = vld [vmem:[%s9 + $0xb0] sm:$0xff]
    %v2894 = vld [vmem:[%s9 + $0xb8] sm:$0xff]
    %v2895 = vld [vmem:[%s9 + $0xc0] sm:$0xff]
    %v2896 = vld [vmem:[%s9 + $0xc8] sm:$0xff]
    %v2897 = vld [vmem:[%s9 + $0xd0] sm:$0xff]
    %v2898 = vld [vmem:[%s9 + $0xd8] sm:$0xff]
    %v2899 = vld [vmem:[%s9 + $0xe0] sm:$0xff]
    %v2900 = vld [vmem:[%s9 + $0xe8] sm:$0xff]
    %v2901 = vld [vmem:[%s9 + $0xf0] sm:$0xff]
    %v2902 = vld [vmem:[%s9 + $0xf8] sm:$0xff]
    %2903 = vmatpush.msra.mxu0 %v2886
    %2904 = vmatpush.msra.mxu0 %v2885
    %2905 = vmatpush.msra.mxu0 %v2884
    %2906 = vmatpush.msra.mxu0 %v2883
    %2907 = vmatpush.msra.mxu0 %v2882
    %2908 = vmatpush.msra.mxu0 %v2881
    %2909 = vmatpush.msra.mxu0 %v2880
    %2910 = vmatpush.msra.mxu0 %v2879
    %2911 = vmatpush.msra.mxu0 %v2878
    %2912 = vmatpush.msra.mxu0 %v2877
    %2913 = vmatpush.msra.mxu0 %v2876
    %2914 = vmatpush.msra.mxu0 %v2875
    %2915 = vmatpush.msra.mxu0 %v2874
    %2916 = vmatpush.msra.mxu0 %v2873
    %2917 = vmatpush.msra.mxu0 %v2872
    %2918 = vmatpush.msra.mxu0 %v2871
    %2919 = vmatmul.f32.gmra.mxu0 %v2869
    %v2920 = vpop.f32.mrf.mxu0
    %v2921 = vadd.f32 0.0, %v2920
    %2922 = vdwg.mxu0
    %2923 = vmatpush.msra.mxu0 %v2902
    %2924 = vmatpush.msra.mxu0 %v2901
    %2925 = vmatpush.msra.mxu0 %v2900
    %2926 = vmatpush.msra.mxu0 %v2899
    %2927 = vmatpush.msra.mxu0 %v2898
    %2928 = vmatpush.msra.mxu0 %v2897
    %2929 = vmatpush.msra.mxu0 %v2896
    %2930 = vmatpush.msra.mxu0 %v2895
    %2931 = vmatpush.msra.mxu0 %v2894
    %2932 = vmatpush.msra.mxu0 %v2893
    %2933 = vmatpush.msra.mxu0 %v2892
    %2934 = vmatpush.msra.mxu0 %v2891
    %2935 = vmatpush.msra.mxu0 %v2890
    %2936 = vmatpush.msra.mxu0 %v2889
    %2937 = vmatpush.msra.mxu0 %v2888
    %2938 = vmatpush.msra.mxu0 %v2887
    %2939 = vmatmul.f32.gmra.mxu0 %v2870
    %v2940 = vpop.f32.mrf.mxu0
    %v2941 = vadd.f32 %v2921, %v2940
    %2942 = vdwg.mxu0
    %v2943 = vmul.f32 %v2941, 0.00073099416
    %v2944 = vmul.f32 %v2943, %v2943
    %v2946 = vrot.slane %v2944, 7
    %v2948 = vsub.f32 %v2943, %v2946
    %v2949 = vmax.f32 %v2948, 0.0
    %v2950 = vadd.f32 %v2949, 1e-05
    %v2951 = vrsqrt.pop %v2950
    %v2952 = vmul.f32 %v2951, %v2950
    %v2953 = vmul.f32 %v2952, %v2951
    %v2954 = vmul.f32 0.5, %v2953
    %v2955 = vsub.f32 1.5, %v2954
    %v2956 = vmul.f32 %v2951, %v2955
    %vm2957 = vweird.f32 %v2950
    %vm2958 = vweird.f32 %v2951
    %vm2959 = vmor %vm2957, %vm2958
    %v2960 = vsel %vm2959, %v2951, %v2956
    %v2961 = vsel %vm2868, %v2943, %v2960
    %v2962 = vld [vmem:[%s10] sm:$0xff]
    %v2963 = vld [vmem:[%s10 + $0x8] sm:$0xff]
    %v2964 = vld [vmem:[%s10 + $0x10] sm:$0xff]
    %v2965 = vld [vmem:[%s10 + $0x18] sm:$0xff]
    %vm2966 = vcmask 130048
    %v2968 = vsel %vm2966, %v2961, 0
    %2970 = vmatpush.msra.mxu0 0.0
    %2971 = vmatpush.msra.mxu0 0.0
    %2972 = vmatpush.msra.mxu0 0.0
    %2973 = vmatpush.msra.mxu0 0.0
    %2974 = vmatpush.msra.mxu0 0.0
    %2975 = vmatpush.msra.mxu0 0.0
    %2976 = vmatpush.msra.mxu0 0.0
    %2977 = vmatpush.msra.mxu0 0.0
    %2978 = vmatpush.msra.mxu0 0.0
    %2979 = vmatpush.msra.mxu0 0.0
    %2980 = vmatpush.msra.mxu0 0.0
    %2981 = vmatpush.msra.mxu0 0.0
    %2982 = vmatpush.msra.mxu0 0.0
    %2983 = vmatpush.msra.mxu0 0.0
    %2984 = vmatpush.msra.mxu0 %v2964
    %2985 = vmatpush.msra.mxu0 %v2962
    %2986 = vmatmul.f32.gmra.mxu0 %v2968
    %v2987 = vpop.f32.mrf.mxu0
    %v2988 = vadd.f32 0.0, %v2987
    %2989 = vdwg.mxu0
    %2990 = vmatpush.msra.mxu0 0.0
    %2991 = vmatpush.msra.mxu0 0.0
    %2992 = vmatpush.msra.mxu0 0.0
    %2993 = vmatpush.msra.mxu0 0.0
    %2994 = vmatpush.msra.mxu0 0.0
    %2995 = vmatpush.msra.mxu0 0.0
    %2996 = vmatpush.msra.mxu0 0.0
    %2997 = vmatpush.msra.mxu0 0.0
    %2998 = vmatpush.msra.mxu0 0.0
    %2999 = vmatpush.msra.mxu0 0.0
    %3000 = vmatpush.msra.mxu0 0.0
    %3001 = vmatpush.msra.mxu0 0.0
    %3002 = vmatpush.msra.mxu0 0.0
    %3003 = vmatpush.msra.mxu0 0.0
    %3004 = vmatpush.msra.mxu0 %v2965
    %3005 = vmatpush.msra.mxu0 %v2963
    %3006 = vmatmul.f32.gmra.mxu0 %v2968
    %v3007 = vpop.f32.mrf.mxu0
    %v3008 = vadd.f32 0.0, %v3007
    %3009 = vdwg.mxu0
    %v3010 = vld [vmem:[%s13] sm:$0x3]
    %v3012 = vperm.slane %v3010, 0
    %v3013 = vperm.slane %v3010, 1
    %v3016 = vmul.f32 %v2988, %v3012
    %v3017 = vmul.f32 %v3008, %v3013
    %v3018 = vld [vmem:[#allocation2] sm:$0xff]
    %v3019 = vld [vmem:[#allocation2 + $0x8] sm:$0xff]
    %v3020 = vld [vmem:[#allocation2 + $0x10] sm:$0xff]
    %v3021 = vld [vmem:[#allocation2 + $0x18] sm:$0xff]
    %v3022 = vld [vmem:[#allocation2 + $0x20] sm:$0xff]
    %v3023 = vld [vmem:[#allocation2 + $0x28] sm:$0xff]
    %v3024 = vld [vmem:[#allocation2 + $0x30] sm:$0xff]
    %v3025 = vld [vmem:[#allocation2 + $0x38] sm:$0xff]
    %v3026 = vld [vmem:[#allocation2 + $0x40] sm:$0xff]
    %v3027 = vld [vmem:[#allocation2 + $0x48] sm:$0xff]
    %v3028 = vld [vmem:[#allocation2 + $0x50] sm:$0xff]
    %v3029 = vld [vmem:[#allocation2 + $0x58] sm:$0xff]
    %v3030 = vld [vmem:[#allocation2 + $0x60] sm:$0xff]
    %v3031 = vld [vmem:[#allocation2 + $0x68] sm:$0xff]
    %v3032 = vld [vmem:[#allocation2 + $0x70] sm:$0xff]
    %v3033 = vld [vmem:[#allocation2 + $0x78] sm:$0xff]
    %v3034 = vld [vmem:[#allocation2 + $0x80] sm:$0xff]
    %v3035 = vld [vmem:[#allocation2 + $0x88] sm:$0xff]
    %v3036 = vperm.slane %v2988, 0
    %v3037 = vperm.slane %v3008, 0
    %v3038 = vsub.f32 %v3018, %v3036
    %v3039 = vsub.f32 %v3019, %v3037
    %v3040 = vsub.f32 %v3020, %v3036
    %v3041 = vsub.f32 %v3021, %v3037
    %v3042 = vsub.f32 %v3022, %v3036
    %v3043 = vsub.f32 %v3023, %v3037
    %v3044 = vsub.f32 %v3024, %v3036
    %v3045 = vsub.f32 %v3025, %v3037
    %v3046 = vsub.f32 %v3026, %v3036
    %v3047 = vsub.f32 %v3027, %v3037
    %v3048 = vsub.f32 %v3028, %v3036
    %v3049 = vsub.f32 %v3029, %v3037
    %v3050 = vsub.f32 %v3030, %v3036
    %v3051 = vsub.f32 %v3031, %v3037
    %v3052 = vsub.f32 %v3032, %v3036
    %v3053 = vsub.f32 %v3033, %v3037
    %v3054 = vsub.f32 %v3034, %v3036
    %v3055 = vsub.f32 %v3035, %v3037
    %v3056 = vsub.f32 %v2754, %v3036
    %v3057 = vsub.f32 %v2755, %v3037
    %v3058 = vsub.f32 %v2756, %v3036
    %v3059 = vsub.f32 %v2757, %v3037
    %v3060 = vsub.f32 %v2758, %v3036
    %v3061 = vsub.f32 %v2759, %v3037
    %v3062 = vsub.f32 %v2760, %v3036
    %v3063 = vsub.f32 %v2761, %v3037
    %v3064 = vsub.f32 %v2762, %v3036
    %v3065 = vsub.f32 %v2763, %v3037
    %v3066 = vsub.f32 %v2764, %v3036
    %v3067 = vsub.f32 %v2765, %v3037
    %v3068 = vsub.f32 %v2766, %v3036
    %v3069 = vsub.f32 %v2767, %v3037
    %v3070 = vsub.f32 %v2768, %v3036
    %v3071 = vsub.f32 %v2769, %v3037
    %v3072 = vsub.f32 %v2770, %v3036
    %v3073 = vsub.f32 %v2771, %v3037
    %v3074 = vperm.slane %v3016, 1
    %v3075 = vperm.slane %v3017, 1
    %v3076 = vmul.f32 %v3038, %v3074
    %v3077 = vmul.f32 %v3039, %v3075
    %v3078 = vmul.f32 %v3040, %v3074
    %v3079 = vmul.f32 %v3041, %v3075
    %v3080 = vmul.f32 %v3042, %v3074
    %v3081 = vmul.f32 %v3043, %v3075
    %v3082 = vmul.f32 %v3044, %v3074
    %v3083 = vmul.f32 %v3045, %v3075
    %v3084 = vmul.f32 %v3046, %v3074
    %v3085 = vmul.f32 %v3047, %v3075
    %v3086 = vmul.f32 %v3048, %v3074
    %v3087 = vmul.f32 %v3049, %v3075
    %v3088 = vmul.f32 %v3050, %v3074
    %v3089 = vmul.f32 %v3051, %v3075
    %v3090 = vmul.f32 %v3052, %v3074
    %v3091 = vmul.f32 %v3053, %v3075
    %v3092 = vmul.f32 %v3054, %v3074
    %v3093 = vmul.f32 %v3055, %v3075
    %v3094 = vmul.f32 %v3056, %v3074
    %v3095 = vmul.f32 %v3057, %v3075
    %v3096 = vmul.f32 %v3058, %v3074
    %v3097 = vmul.f32 %v3059, %v3075
    %v3098 = vmul.f32 %v3060, %v3074
    %v3099 = vmul.f32 %v3061, %v3075
    %v3100 = vmul.f32 %v3062, %v3074
    %v3101 = vmul.f32 %v3063, %v3075
    %v3102 = vmul.f32 %v3064, %v3074
    %v3103 = vmul.f32 %v3065, %v3075
    %v3104 = vmul.f32 %v3066, %v3074
    %v3105 = vmul.f32 %v3067, %v3075
    %v3106 = vmul.f32 %v3068, %v3074
    %v3107 = vmul.f32 %v3069, %v3075
    %v3108 = vmul.f32 %v3070, %v3074
    %v3109 = vmul.f32 %v3071, %v3075
    %v3110 = vmul.f32 %v3072, %v3074
    %v3111 = vmul.f32 %v3073, %v3075
    %v3112 = vld [vmem:[%s14] sm:$0x3]
    %v3114 = vperm.slane %v3112, 0
    %v3115 = vperm.slane %v3112, 1
    %v3118 = vadd.f32 %v3076, %v3114
    %v3119 = vadd.f32 %v3077, %v3115
    %v3120 = vadd.f32 %v3078, %v3114
    %v3121 = vadd.f32 %v3079, %v3115
    %v3122 = vadd.f32 %v3080, %v3114
    %v3123 = vadd.f32 %v3081, %v3115
    %v3124 = vadd.f32 %v3082, %v3114
    %v3125 = vadd.f32 %v3083, %v3115
    %v3126 = vadd.f32 %v3084, %v3114
    %v3127 = vadd.f32 %v3085, %v3115
    %v3128 = vadd.f32 %v3086, %v3114
    %v3129 = vadd.f32 %v3087, %v3115
    %v3130 = vadd.f32 %v3088, %v3114
    %v3131 = vadd.f32 %v3089, %v3115
    %v3132 = vadd.f32 %v3090, %v3114
    %v3133 = vadd.f32 %v3091, %v3115
    %v3134 = vadd.f32 %v3092, %v3114
    %v3135 = vadd.f32 %v3093, %v3115
    %v3136 = vadd.f32 %v3094, %v3114
    %v3137 = vadd.f32 %v3095, %v3115
    %v3138 = vadd.f32 %v3096, %v3114
    %v3139 = vadd.f32 %v3097, %v3115
    %v3140 = vadd.f32 %v3098, %v3114
    %v3141 = vadd.f32 %v3099, %v3115
    %v3142 = vadd.f32 %v3100, %v3114
    %v3143 = vadd.f32 %v3101, %v3115
    %v3144 = vadd.f32 %v3102, %v3114
    %v3145 = vadd.f32 %v3103, %v3115
    %v3146 = vadd.f32 %v3104, %v3114
    %v3147 = vadd.f32 %v3105, %v3115
    %v3148 = vadd.f32 %v3106, %v3114
    %v3149 = vadd.f32 %v3107, %v3115
    %v3150 = vadd.f32 %v3108, %v3114
    %v3151 = vadd.f32 %v3109, %v3115
    %v3152 = vadd.f32 %v3110, %v3114
    %v3153 = vadd.f32 %v3111, %v3115
    %v3154 = vmax.f32 %v3118, 0.0
    %v3155 = vmax.f32 %v3119, 0.0
    %v3156 = vmax.f32 %v3120, 0.0
    %v3157 = vmax.f32 %v3121, 0.0
    %v3158 = vmax.f32 %v3122, 0.0
    %v3159 = vmax.f32 %v3123, 0.0
    %v3160 = vmax.f32 %v3124, 0.0
    %v3161 = vmax.f32 %v3125, 0.0
    %v3162 = vmax.f32 %v3126, 0.0
    %v3163 = vmax.f32 %v3127, 0.0
    %v3164 = vmax.f32 %v3128, 0.0
    %v3165 = vmax.f32 %v3129, 0.0
    %v3166 = vmax.f32 %v3130, 0.0
    %v3167 = vmax.f32 %v3131, 0.0
    %v3168 = vmax.f32 %v3132, 0.0
    %v3169 = vmax.f32 %v3133, 0.0
    %v3170 = vmax.f32 %v3134, 0.0
    %v3171 = vmax.f32 %v3135, 0.0
    %v3172 = vmax.f32 %v3136, 0.0
    %v3173 = vmax.f32 %v3137, 0.0
    %v3174 = vmax.f32 %v3138, 0.0
    %v3175 = vmax.f32 %v3139, 0.0
    %v3176 = vmax.f32 %v3140, 0.0
    %v3177 = vmax.f32 %v3141, 0.0
    %v3178 = vmax.f32 %v3142, 0.0
    %v3179 = vmax.f32 %v3143, 0.0
    %v3180 = vmax.f32 %v3144, 0.0
    %v3181 = vmax.f32 %v3145, 0.0
    %v3182 = vmax.f32 %v3146, 0.0
    %v3183 = vmax.f32 %v3147, 0.0
    %v3184 = vmax.f32 %v3148, 0.0
    %v3185 = vmax.f32 %v3149, 0.0
    %v3186 = vmax.f32 %v3150, 0.0
    %v3187 = vmax.f32 %v3151, 0.0
    %v3188 = vmax.f32 %v3152, 0.0
    %v3189 = vmax.f32 %v3153, 0.0
    %3190 = vst [vmem:[#allocation2] sm:$0xff] %v3154
    %3191 = vst [vmem:[#allocation2 + $0x8] sm:$0xff] %v3155
    %3192 = vst [vmem:[#allocation2 + $0x10] sm:$0xff] %v3156
    %3193 = vst [vmem:[#allocation2 + $0x18] sm:$0xff] %v3157
    %3194 = vst [vmem:[#allocation2 + $0x20] sm:$0xff] %v3158
    %3195 = vst [vmem:[#allocation2 + $0x28] sm:$0xff] %v3159
    %3196 = vst [vmem:[#allocation2 + $0x30] sm:$0xff] %v3160
    %3197 = vst [vmem:[#allocation2 + $0x38] sm:$0xff] %v3161
    %3198 = vst [vmem:[#allocation2 + $0x40] sm:$0xff] %v3162
    %3199 = vst [vmem:[#allocation2 + $0x48] sm:$0xff] %v3163
    %3200 = vst [vmem:[#allocation2 + $0x50] sm:$0xff] %v3164
    %3201 = vst [vmem:[#allocation2 + $0x58] sm:$0xff] %v3165
    %3202 = vst [vmem:[#allocation2 + $0x60] sm:$0xff] %v3166
    %3203 = vst [vmem:[#allocation2 + $0x68] sm:$0xff] %v3167
    %3204 = vst [vmem:[#allocation2 + $0x70] sm:$0xff] %v3168
    %3205 = vst [vmem:[#allocation2 + $0x78] sm:$0xff] %v3169
    %3206 = vst [vmem:[#allocation2 + $0x80] sm:$0xff] %v3170
    %3207 = vst [vmem:[#allocation2 + $0x88] sm:$0xff] %v3171
    %3208 = vst [vmem:[#allocation2 + $0x90] sm:$0xff] %v3172
    %3209 = vst [vmem:[#allocation2 + $0x98] sm:$0xff] %v3173
    %3210 = vst [vmem:[#allocation2 + $0xa0] sm:$0xff] %v3174
    %3211 = vst [vmem:[#allocation2 + $0xa8] sm:$0xff] %v3175
    %3212 = vst [vmem:[#allocation2 + $0xb0] sm:$0xff] %v3176
    %3213 = vst [vmem:[#allocation2 + $0xb8] sm:$0xff] %v3177
    %3214 = vst [vmem:[#allocation2 + $0xc0] sm:$0xff] %v3178
    %3215 = vst [vmem:[#allocation2 + $0xc8] sm:$0xff] %v3179
    %3216 = vst [vmem:[#allocation2 + $0xd0] sm:$0xff] %v3180
    %3217 = vst [vmem:[#allocation2 + $0xd8] sm:$0xff] %v3181
    %3218 = vst [vmem:[#allocation2 + $0xe0] sm:$0xff] %v3182
    %3219 = vst [vmem:[#allocation2 + $0xe8] sm:$0xff] %v3183
    %3220 = vst [vmem:[#allocation2 + $0xf0] sm:$0xff] %v3184
    %3221 = vst [vmem:[#allocation2 + $0xf8] sm:$0xff] %v3185
    %3222 = vst [vmem:[#allocation2 + $0x100] sm:$0xff] %v3186
    %3223 = vst [vmem:[#allocation2 + $0x108] sm:$0xff] %v3187
    %3224 = vst [vmem:[#allocation2 + $0x110] sm:$0xff] %v3188
    %3225 = vst [vmem:[#allocation2 + $0x118] sm:$0xff] %v3189
    %3226 = vst [vmem:[#allocation2 + $0x120] sm:$0xff] 0.0
    %3227 = vst [vmem:[#allocation2 + $0x128] sm:$0xff] 0.0
    %3228 = vst [vmem:[#allocation2 + $0x130] sm:$0xff] 0.0
    %3229 = vst [vmem:[#allocation2 + $0x138] sm:$0xff] 0.0
    %3230 = vst [vmem:[#allocation2 + $0x140] sm:$0xff] 0.0
    %3231 = vst [vmem:[#allocation2 + $0x148] sm:$0xff] 0.0
    %3232 = vst [vmem:[#allocation2 + $0x150] sm:$0xff] 0.0
    %3233 = vst [vmem:[#allocation2 + $0x158] sm:$0xff] 0.0
    %v3234 = vld [vmem:[#allocation2] sm:$0xff]
    %v3235 = vld [vmem:[#allocation2 + $0x8] sm:$0xff]
    %v3236 = vld [vmem:[#allocation2 + $0x10] sm:$0xff]
    %v3237 = vld [vmem:[#allocation2 + $0x18] sm:$0xff]
    %v3238 = vld [vmem:[#allocation2 + $0x20] sm:$0xff]
    %v3239 = vld [vmem:[#allocation2 + $0x28] sm:$0xff]
    %v3240 = vld [vmem:[#allocation2 + $0x30] sm:$0xff]
    %v3241 = vld [vmem:[#allocation2 + $0x38] sm:$0xff]
    %v3242 = vld [vmem:[#allocation2 + $0x40] sm:$0xff]
    %v3243 = vld [vmem:[#allocation2 + $0x48] sm:$0xff]
    %v3244 = vld [vmem:[#allocation2 + $0x50] sm:$0xff]
    %v3245 = vld [vmem:[#allocation2 + $0x58] sm:$0xff]
    %v3246 = vld [vmem:[#allocation2 + $0x60] sm:$0xff]
    %v3247 = vld [vmem:[#allocation2 + $0x68] sm:$0xff]
    %v3248 = vld [vmem:[#allocation2 + $0x70] sm:$0xff]
    %v3249 = vld [vmem:[#allocation2 + $0x78] sm:$0xff]
    %v3250 = vld [vmem:[#allocation2 + $0x80] sm:$0xff]
    %v3251 = vld [vmem:[#allocation2 + $0x88] sm:$0xff]
    %v3252 = vld [vmem:[#allocation2 + $0x90] sm:$0xff]
    %v3253 = vld [vmem:[#allocation2 + $0x98] sm:$0xff]
    %v3254 = vld [vmem:[#allocation2 + $0xa0] sm:$0xff]
    %v3255 = vld [vmem:[#allocation2 + $0xa8] sm:$0xff]
    %v3256 = vld [vmem:[#allocation2 + $0xb0] sm:$0xff]
    %v3257 = vld [vmem:[#allocation2 + $0xb8] sm:$0xff]
    %v3258 = vld [vmem:[#allocation2 + $0xc0] sm:$0xff]
    %v3259 = vld [vmem:[#allocation2 + $0xc8] sm:$0xff]
    %v3260 = vld [vmem:[#allocation2 + $0xd0] sm:$0xff]
    %v3261 = vld [vmem:[#allocation2 + $0xd8] sm:$0xff]
    %v3262 = vld [vmem:[#allocation2 + $0xe0] sm:$0xff]
    %v3263 = vld [vmem:[#allocation2 + $0xe8] sm:$0xff]
    %v3264 = vld [vmem:[#allocation2 + $0xf0] sm:$0xff]
    %v3265 = vld [vmem:[#allocation2 + $0xf8] sm:$0xff]
    %v3266 = vld [vmem:[#allocation2 + $0x100] sm:$0xff]
    %v3267 = vld [vmem:[#allocation2 + $0x108] sm:$0xff]
    %v3268 = vld [vmem:[#allocation2 + $0x110] sm:$0xff]
    %v3269 = vld [vmem:[#allocation2 + $0x118] sm:$0xff]
    %v3270 = vpack.c.bf16 %v3236, %v3234
    %v3271 = vpack.c.bf16 %v3237, %v3235
    %v3272 = vpack.c.bf16 %v3240, %v3238
    %v3273 = vpack.c.bf16 %v3241, %v3239
    %v3274 = vpack.c.bf16 %v3244, %v3242
    %v3275 = vpack.c.bf16 %v3245, %v3243
    %v3276 = vpack.c.bf16 %v3248, %v3246
    %v3277 = vpack.c.bf16 %v3249, %v3247
    %v3278 = vpack.c.bf16 %v3252, %v3250
    %v3279 = vpack.c.bf16 %v3253, %v3251
    %v3280 = vpack.c.bf16 %v3256, %v3254
    %v3281 = vpack.c.bf16 %v3257, %v3255
    %v3282 = vpack.c.bf16 %v3260, %v3258
    %v3283 = vpack.c.bf16 %v3261, %v3259
    %v3284 = vpack.c.bf16 %v3264, %v3262
    %v3285 = vpack.c.bf16 %v3265, %v3263
    %v3286 = vpack.c.bf16 %v3268, %v3266
    %v3287 = vpack.c.bf16 %v3269, %v3267
    %v3288 = vld [vmem:[%s2] sm:$0xf]
    %v3289 = vld [vmem:[%s2 + $0x4] sm:$0xf]
    %v3290 = vld [vmem:[%s2 + $0x8] sm:$0xf]
    %v3291 = vld [vmem:[%s2 + $0xc] sm:$0xf]
    %v3292 = vld [vmem:[%s2 + $0x10] sm:$0xf]
    %v3293 = vld [vmem:[%s2 + $0x14] sm:$0xf]
    %v3294 = vld [vmem:[%s2 + $0x18] sm:$0xf]
    %v3295 = vld [vmem:[%s2 + $0x1c] sm:$0xf]
    %v3296 = vld [vmem:[%s2 + $0x20] sm:$0xf]
    %v3297 = vld [vmem:[%s2 + $0x24] sm:$0xf]
    %v3298 = vld [vmem:[%s2 + $0x28] sm:$0xf]
    %v3299 = vld [vmem:[%s2 + $0x2c] sm:$0xf]
    %v3300 = vld [vmem:[%s2 + $0x30] sm:$0xf]
    %v3301 = vld [vmem:[%s2 + $0x34] sm:$0xf]
    %v3302 = vld [vmem:[%s2 + $0x38] sm:$0xf]
    %v3303 = vld [vmem:[%s2 + $0x3c] sm:$0xf]
    %v3304 = vld [vmem:[%s2 + $0x40] sm:$0xf]
    %v3305 = vld [vmem:[%s2 + $0x44] sm:$0xf]
    %v3306 = vld [vmem:[%s2 + $0x48] sm:$0xf]
    %v3307 = vld [vmem:[%s2 + $0x4c] sm:$0xf]
    %v3308 = vld [vmem:[%s2 + $0x50] sm:$0xf]
    %v3309 = vld [vmem:[%s2 + $0x54] sm:$0xf]
    %v3310 = vld [vmem:[%s2 + $0x58] sm:$0xf]
    %v3311 = vld [vmem:[%s2 + $0x5c] sm:$0xf]
    %v3312 = vld [vmem:[%s2 + $0x60] sm:$0xf]
    %v3313 = vld [vmem:[%s2 + $0x64] sm:$0xf]
    %v3314 = vld [vmem:[%s2 + $0x68] sm:$0xf]
    %v3315 = vld [vmem:[%s2 + $0x6c] sm:$0xf]
    %v3316 = vld [vmem:[%s2 + $0x70] sm:$0xf]
    %v3317 = vld [vmem:[%s2 + $0x74] sm:$0xf]
    %v3318 = vld [vmem:[%s2 + $0x78] sm:$0xf]
    %v3319 = vld [vmem:[%s2 + $0x7c] sm:$0xf]
    %v3352 = vunpack.c.l.b16 %v3288
    %v3353 = vunpack.c.l.b16 %v3289
    %v3354 = vunpack.c.l.b16 %v3290
    %v3355 = vunpack.c.l.b16 %v3291
    %v3356 = vunpack.c.l.b16 %v3292
    %v3357 = vunpack.c.l.b16 %v3293
    %v3358 = vunpack.c.l.b16 %v3294
    %v3359 = vunpack.c.l.b16 %v3295
    %v3360 = vunpack.c.l.b16 %v3296
    %v3361 = vunpack.c.l.b16 %v3297
    %v3362 = vunpack.c.l.b16 %v3298
    %v3363 = vunpack.c.l.b16 %v3299
    %v3364 = vunpack.c.l.b16 %v3300
    %v3365 = vunpack.c.l.b16 %v3301
    %v3366 = vunpack.c.l.b16 %v3302
    %v3367 = vunpack.c.l.b16 %v3303
    %v3368 = vunpack.c.l.b16 %v3304
    %v3369 = vunpack.c.l.b16 %v3305
    %v3370 = vunpack.c.l.b16 %v3306
    %v3371 = vunpack.c.l.b16 %v3307
    %v3372 = vunpack.c.l.b16 %v3308
    %v3373 = vunpack.c.l.b16 %v3309
    %v3374 = vunpack.c.l.b16 %v3310
    %v3375 = vunpack.c.l.b16 %v3311
    %v3376 = vunpack.c.l.b16 %v3312
    %v3377 = vunpack.c.l.b16 %v3313
    %v3378 = vunpack.c.l.b16 %v3314
    %v3379 = vunpack.c.l.b16 %v3315
    %v3380 = vunpack.c.l.b16 %v3316
    %v3381 = vunpack.c.l.b16 %v3317
    %v3382 = vunpack.c.l.b16 %v3318
    %v3383 = vunpack.c.l.b16 %v3319
    %v3384 = vpack.c.b16 %v3353, %v3352
    %v3385 = vpack.c.b16 %v3355, %v3354
    %v3386 = vpack.c.b16 %v3357, %v3356
    %v3387 = vpack.c.b16 %v3359, %v3358
    %v3388 = vpack.c.b16 %v3361, %v3360
    %v3389 = vpack.c.b16 %v3363, %v3362
    %v3390 = vpack.c.b16 %v3365, %v3364
    %v3391 = vpack.c.b16 %v3367, %v3366
    %v3392 = vpack.c.b16 %v3369, %v3368
    %v3393 = vpack.c.b16 %v3371, %v3370
    %v3394 = vpack.c.b16 %v3373, %v3372
    %v3395 = vpack.c.b16 %v3375, %v3374
    %v3396 = vpack.c.b16 %v3377, %v3376
    %v3397 = vpack.c.b16 %v3379, %v3378
    %v3398 = vpack.c.b16 %v3381, %v3380
    %v3399 = vpack.c.b16 %v3383, %v3382
    %3416 = vmatpush.bf16.msra.mxu0 %v3391
    %3417 = vmatpush.bf16.msra.mxu0 %v3390
    %3418 = vmatpush.bf16.msra.mxu0 %v3389
    %3419 = vmatpush.bf16.msra.mxu0 %v3388
    %3420 = vmatpush.bf16.msra.mxu0 %v3387
    %3421 = vmatpush.bf16.msra.mxu0 %v3386
    %3422 = vmatpush.bf16.msra.mxu0 %v3385
    %3423 = vmatpush.bf16.msra.mxu0 %v3384
    %3424 = vmatmul.bf16.gmra.mxu0 %v3270
    %v3425 = vpop.f32.mrf.mxu0
    %v3426 = vadd.f32 0.0, %v3425
    %v3427 = vpop.f32.mrf.mxu0
    %v3428 = vadd.f32 0.0, %v3427
    %3429 = vmatmul.bf16.gmra.mxu0 %v3272
    %v3430 = vpop.f32.mrf.mxu0
    %v3431 = vadd.f32 0.0, %v3430
    %v3432 = vpop.f32.mrf.mxu0
    %v3433 = vadd.f32 0.0, %v3432
    %3434 = vmatmul.bf16.gmra.mxu0 %v3274
    %v3435 = vpop.f32.mrf.mxu0
    %v3436 = vadd.f32 0.0, %v3435
    %v3437 = vpop.f32.mrf.mxu0
    %v3438 = vadd.f32 0.0, %v3437
    %3439 = vmatmul.bf16.gmra.mxu0 %v3276
    %v3440 = vpop.f32.mrf.mxu0
    %v3441 = vadd.f32 0.0, %v3440
    %v3442 = vpop.f32.mrf.mxu0
    %v3443 = vadd.f32 0.0, %v3442
    %3444 = vmatmul.bf16.gmra.mxu0 %v3278
    %v3445 = vpop.f32.mrf.mxu0
    %v3446 = vadd.f32 0.0, %v3445
    %v3447 = vpop.f32.mrf.mxu0
    %v3448 = vadd.f32 0.0, %v3447
    %3449 = vmatmul.bf16.gmra.mxu0 %v3280
    %v3450 = vpop.f32.mrf.mxu0
    %v3451 = vadd.f32 0.0, %v3450
    %v3452 = vpop.f32.mrf.mxu0
    %v3453 = vadd.f32 0.0, %v3452
    %3454 = vmatmul.bf16.gmra.mxu0 %v3282
    %v3455 = vpop.f32.mrf.mxu0
    %v3456 = vadd.f32 0.0, %v3455
    %v3457 = vpop.f32.mrf.mxu0
    %v3458 = vadd.f32 0.0, %v3457
    %3459 = vmatmul.bf16.gmra.mxu0 %v3284
    %v3460 = vpop.f32.mrf.mxu0
    %v3461 = vadd.f32 0.0, %v3460
    %v3462 = vpop.f32.mrf.mxu0
    %v3463 = vadd.f32 0.0, %v3462
    %3464 = vmatmul.bf16.gmra.mxu0 %v3286
    %v3465 = vpop.f32.mrf.mxu0
    %v3466 = vadd.f32 0.0, %v3465
    %v3467 = vpop.f32.mrf.mxu0
    %v3468 = vadd.f32 0.0, %v3467
    %3469 = vdwg.mxu0
    %3470 = vmatpush.bf16.msra.mxu0 %v3399
    %3471 = vmatpush.bf16.msra.mxu0 %v3398
    %3472 = vmatpush.bf16.msra.mxu0 %v3397
    %3473 = vmatpush.bf16.msra.mxu0 %v3396
    %3474 = vmatpush.bf16.msra.mxu0 %v3395
    %3475 = vmatpush.bf16.msra.mxu0 %v3394
    %3476 = vmatpush.bf16.msra.mxu0 %v3393
    %3477 = vmatpush.bf16.msra.mxu0 %v3392
    %3478 = vmatmul.bf16.gmra.mxu0 %v3271
    %v3479 = vpop.f32.mrf.mxu0
    %v3480 = vadd.f32 %v3426, %v3479
    %v3481 = vpop.f32.mrf.mxu0
    %v3482 = vadd.f32 %v3428, %v3481
    %3483 = vmatmul.bf16.gmra.mxu0 %v3273
    %v3484 = vpop.f32.mrf.mxu0
    %v3485 = vadd.f32 %v3431, %v3484
    %v3486 = vpop.f32.mrf.mxu0
    %v3487 = vadd.f32 %v3433, %v3486
    %3488 = vmatmul.bf16.gmra.mxu0 %v3275
    %v3489 = vpop.f32.mrf.mxu0
    %v3490 = vadd.f32 %v3436, %v3489
    %v3491 = vpop.f32.mrf.mxu0
    %v3492 = vadd.f32 %v3438, %v3491
    %3493 = vmatmul.bf16.gmra.mxu0 %v3277
    %v3494 = vpop.f32.mrf.mxu0
    %v3495 = vadd.f32 %v3441, %v3494
    %v3496 = vpop.f32.mrf.mxu0
    %v3497 = vadd.f32 %v3443, %v3496
    %3498 = vmatmul.bf16.gmra.mxu0 %v3279
    %v3499 = vpop.f32.mrf.mxu0
    %v3500 = vadd.f32 %v3446, %v3499
    %v3501 = vpop.f32.mrf.mxu0
    %v3502 = vadd.f32 %v3448, %v3501
    %3503 = vmatmul.bf16.gmra.mxu0 %v3281
    %v3504 = vpop.f32.mrf.mxu0
    %v3505 = vadd.f32 %v3451, %v3504
    %v3506 = vpop.f32.mrf.mxu0
    %v3507 = vadd.f32 %v3453, %v3506
    %3508 = vmatmul.bf16.gmra.mxu0 %v3283
    %v3509 = vpop.f32.mrf.mxu0
    %v3510 = vadd.f32 %v3456, %v3509
    %v3511 = vpop.f32.mrf.mxu0
    %v3512 = vadd.f32 %v3458, %v3511
    %3513 = vmatmul.bf16.gmra.mxu0 %v3285
    %v3514 = vpop.f32.mrf.mxu0
    %v3515 = vadd.f32 %v3461, %v3514
    %v3516 = vpop.f32.mrf.mxu0
    %v3517 = vadd.f32 %v3463, %v3516
    %3518 = vmatmul.bf16.gmra.mxu0 %v3287
    %v3519 = vpop.f32.mrf.mxu0
    %v3520 = vadd.f32 %v3466, %v3519
    %v3521 = vpop.f32.mrf.mxu0
    %v3522 = vadd.f32 %v3468, %v3521
    %3523 = vdwg.mxu0
    %3524 = vst [vmem:[#allocation3] sm:$0xff] %v3480
    %3525 = vst [vmem:[#allocation3 + $0x8] sm:$0xff] %v3482
    %3526 = vst [vmem:[#allocation3 + $0x10] sm:$0xff] %v3485
    %3527 = vst [vmem:[#allocation3 + $0x18] sm:$0xff] %v3487
    %3528 = vst [vmem:[#allocation3 + $0x20] sm:$0xff] %v3490
    %3529 = vst [vmem:[#allocation3 + $0x28] sm:$0xff] %v3492
    %3530 = vst [vmem:[#allocation3 + $0x30] sm:$0xff] %v3495
    %3531 = vst [vmem:[#allocation3 + $0x38] sm:$0xff] %v3497
    %3532 = vst [vmem:[#allocation3 + $0x40] sm:$0xff] %v3500
    %3533 = vst [vmem:[#allocation3 + $0x48] sm:$0xff] %v3502
    %3534 = vst [vmem:[#allocation3 + $0x50] sm:$0xff] %v3505
    %3535 = vst [vmem:[#allocation3 + $0x58] sm:$0xff] %v3507
    %3536 = vst [vmem:[#allocation3 + $0x60] sm:$0xff] %v3510
    %3537 = vst [vmem:[#allocation3 + $0x68] sm:$0xff] %v3512
    %3538 = vst [vmem:[#allocation3 + $0x70] sm:$0xff] %v3515
    %3539 = vst [vmem:[#allocation3 + $0x78] sm:$0xff] %v3517
    %3540 = vst [vmem:[#allocation3 + $0x80] sm:$0xff] %v3520
    %3541 = vst [vmem:[#allocation3 + $0x88] sm:$0xff] %v3522
    %v3542 = vld [vmem:[#allocation2] sm:$0xfe]
    %v3543 = vld [vmem:[#allocation2 + $0x8] sm:$0xfe]
    %v3544 = vld [vmem:[#allocation2 + $0x10] sm:$0xff]
    %v3545 = vld [vmem:[#allocation2 + $0x18] sm:$0xff]
    %v3546 = vld [vmem:[#allocation2 + $0x20] sm:$0xff]
    %v3547 = vld [vmem:[#allocation2 + $0x28] sm:$0xff]
    %v3548 = vld [vmem:[#allocation2 + $0x30] sm:$0xff]
    %v3549 = vld [vmem:[#allocation2 + $0x38] sm:$0xff]
    %v3550 = vld [vmem:[#allocation2 + $0x40] sm:$0xff]
    %v3551 = vld [vmem:[#allocation2 + $0x48] sm:$0xff]
    %v3552 = vld [vmem:[#allocation2 + $0x50] sm:$0xff]
    %v3553 = vld [vmem:[#allocation2 + $0x58] sm:$0xff]
    %v3554 = vld [vmem:[#allocation2 + $0x60] sm:$0xff]
    %v3555 = vld [vmem:[#allocation2 + $0x68] sm:$0xff]
    %v3556 = vld [vmem:[#allocation2 + $0x70] sm:$0xff]
    %v3557 = vld [vmem:[#allocation2 + $0x78] sm:$0xff]
    %v3558 = vld [vmem:[#allocation2 + $0x80] sm:$0xff]
    %v3559 = vld [vmem:[#allocation2 + $0x88] sm:$0xff]
    %v3560 = vld [vmem:[#allocation2 + $0x90] sm:$0xff]
    %v3561 = vld [vmem:[#allocation2 + $0x98] sm:$0xff]
    %v3562 = vld [vmem:[#allocation2 + $0xa0] sm:$0xff]
    %v3563 = vld [vmem:[#allocation2 + $0xa8] sm:$0xff]
    %v3564 = vld [vmem:[#allocation2 + $0xb0] sm:$0xff]
    %v3565 = vld [vmem:[#allocation2 + $0xb8] sm:$0xff]
    %v3566 = vld [vmem:[#allocation2 + $0xc0] sm:$0xff]
    %v3567 = vld [vmem:[#allocation2 + $0xc8] sm:$0xff]
    %v3568 = vld [vmem:[#allocation2 + $0xd0] sm:$0xff]
    %v3569 = vld [vmem:[#allocation2 + $0xd8] sm:$0xff]
    %v3570 = vld [vmem:[#allocation2 + $0xe0] sm:$0xff]
    %v3571 = vld [vmem:[#allocation2 + $0xe8] sm:$0xff]
    %v3572 = vld [vmem:[#allocation2 + $0xf0] sm:$0xff]
    %v3573 = vld [vmem:[#allocation2 + $0xf8] sm:$0xff]
    %v3574 = vld [vmem:[#allocation2 + $0x100] sm:$0xff]
    %v3575 = vld [vmem:[#allocation2 + $0x108] sm:$0xff]
    %v3576 = vld [vmem:[#allocation2 + $0x110] sm:$0xff]
    %v3577 = vld [vmem:[#allocation2 + $0x118] sm:$0xff]
    %v3578 = vld [vmem:[#allocation2 + $0x120] sm:$0x1]
    %v3579 = vld [vmem:[#allocation2 + $0x128] sm:$0x1]
    %v3580 = vpack.c.bf16 %v3544, %v3542
    %v3581 = vpack.c.bf16 %v3545, %v3543
    %v3582 = vpack.c.bf16 %v3548, %v3546
    %v3583 = vpack.c.bf16 %v3549, %v3547
    %v3584 = vpack.c.bf16 %v3552, %v3550
    %v3585 = vpack.c.bf16 %v3553, %v3551
    %v3586 = vpack.c.bf16 %v3556, %v3554
    %v3587 = vpack.c.bf16 %v3557, %v3555
    %v3588 = vpack.c.bf16 %v3560, %v3558
    %v3589 = vpack.c.bf16 %v3561, %v3559
    %v3590 = vpack.c.bf16 %v3564, %v3562
    %v3591 = vpack.c.bf16 %v3565, %v3563
    %v3592 = vpack.c.bf16 %v3568, %v3566
    %v3593 = vpack.c.bf16 %v3569, %v3567
    %v3594 = vpack.c.bf16 %v3572, %v3570
    %v3595 = vpack.c.bf16 %v3573, %v3571
    %v3596 = vpack.c.bf16 %v3576, %v3574
    %v3597 = vpack.c.bf16 %v3577, %v3575
    %v3598 = vpack.c.bf16 %v3578, %v3578
    %v3599 = vpack.c.bf16 %v3579, %v3579
    %s3600 = scalar_lea.vmem %s2, 128
    %v3601 = vld [vmem:[%s3600] sm:$0xf]
    %v3602 = vld [vmem:[%s3600 + $0x4] sm:$0xf]
    %v3603 = vld [vmem:[%s3600 + $0x8] sm:$0xf]
    %v3604 = vld [vmem:[%s3600 + $0xc] sm:$0xf]
    %v3605 = vld [vmem:[%s3600 + $0x10] sm:$0xf]
    %v3606 = vld [vmem:[%s3600 + $0x14] sm:$0xf]
    %v3607 = vld [vmem:[%s3600 + $0x18] sm:$0xf]
    %v3608 = vld [vmem:[%s3600 + $0x1c] sm:$0xf]
    %v3609 = vld [vmem:[%s3600 + $0x20] sm:$0xf]
    %v3610 = vld [vmem:[%s3600 + $0x24] sm:$0xf]
    %v3611 = vld [vmem:[%s3600 + $0x28] sm:$0xf]
    %v3612 = vld [vmem:[%s3600 + $0x2c] sm:$0xf]
    %v3613 = vld [vmem:[%s3600 + $0x30] sm:$0xf]
    %v3614 = vld [vmem:[%s3600 + $0x34] sm:$0xf]
    %v3615 = vld [vmem:[%s3600 + $0x38] sm:$0xf]
    %v3616 = vld [vmem:[%s3600 + $0x3c] sm:$0xf]
    %v3617 = vld [vmem:[%s3600 + $0x40] sm:$0xf]
    %v3618 = vld [vmem:[%s3600 + $0x44] sm:$0xf]
    %v3619 = vld [vmem:[%s3600 + $0x48] sm:$0xf]
    %v3620 = vld [vmem:[%s3600 + $0x4c] sm:$0xf]
    %v3621 = vld [vmem:[%s3600 + $0x50] sm:$0xf]
    %v3622 = vld [vmem:[%s3600 + $0x54] sm:$0xf]
    %v3623 = vld [vmem:[%s3600 + $0x58] sm:$0xf]
    %v3624 = vld [vmem:[%s3600 + $0x5c] sm:$0xf]
    %v3625 = vld [vmem:[%s3600 + $0x60] sm:$0xf]
    %v3626 = vld [vmem:[%s3600 + $0x64] sm:$0xf]
    %v3627 = vld [vmem:[%s3600 + $0x68] sm:$0xf]
    %v3628 = vld [vmem:[%s3600 + $0x6c] sm:$0xf]
    %v3629 = vld [vmem:[%s3600 + $0x70] sm:$0xf]
    %v3630 = vld [vmem:[%s3600 + $0x74] sm:$0xf]
    %v3631 = vld [vmem:[%s3600 + $0x78] sm:$0xf]
    %v3632 = vld [vmem:[%s3600 + $0x7c] sm:$0xf]
    %v3634 = vshrl.u32 %v3580, 16
    %v3636 = vshll.u32 %v3580, 16
    %v3638 = vrot.slane %v3636, 1
    %v3639 = vor.u32 %v3634, %v3638
    %v3641 = vshll.u32 %v3582, 16
    %v3643 = vrot.slane %v3641, 1
    %v3644 = vsel %vm625, %v3639, %v3643
    %v3646 = vshrl.u32 %v3581, 16
    %v3648 = vshll.u32 %v3581, 16
    %v3650 = vrot.slane %v3648, 1
    %v3651 = vor.u32 %v3646, %v3650
    %v3653 = vshll.u32 %v3583, 16
    %v3655 = vrot.slane %v3653, 1
    %v3656 = vsel %vm625, %v3651, %v3655
    %v3657 = vshrl.u32 %v3582, 16
    %v3659 = vor.u32 %v3657, %v3643
    %v3661 = vshll.u32 %v3584, 16
    %v3663 = vrot.slane %v3661, 1
    %v3664 = vsel %vm625, %v3659, %v3663
    %v3665 = vshrl.u32 %v3583, 16
    %v3667 = vor.u32 %v3665, %v3655
    %v3669 = vshll.u32 %v3585, 16
    %v3671 = vrot.slane %v3669, 1
    %v3672 = vsel %vm625, %v3667, %v3671
    %v3673 = vshrl.u32 %v3584, 16
    %v3675 = vor.u32 %v3673, %v3663
    %v3677 = vshll.u32 %v3586, 16
    %v3679 = vrot.slane %v3677, 1
    %v3680 = vsel %vm625, %v3675, %v3679
    %v3681 = vshrl.u32 %v3585, 16
    %v3683 = vor.u32 %v3681, %v3671
    %v3685 = vshll.u32 %v3587, 16
    %v3687 = vrot.slane %v3685, 1
    %v3688 = vsel %vm625, %v3683, %v3687
    %v3689 = vshrl.u32 %v3586, 16
    %v3691 = vor.u32 %v3689, %v3679
    %v3693 = vshll.u32 %v3588, 16
    %v3695 = vrot.slane %v3693, 1
    %v3696 = vsel %vm625, %v3691, %v3695
    %v3697 = vshrl.u32 %v3587, 16
    %v3699 = vor.u32 %v3697, %v3687
    %v3701 = vshll.u32 %v3589, 16
    %v3703 = vrot.slane %v3701, 1
    %v3704 = vsel %vm625, %v3699, %v3703
    %v3705 = vshrl.u32 %v3588, 16
    %v3707 = vor.u32 %v3705, %v3695
    %v3709 = vshll.u32 %v3590, 16
    %v3711 = vrot.slane %v3709, 1
    %v3712 = vsel %vm625, %v3707, %v3711
    %v3713 = vshrl.u32 %v3589, 16
    %v3715 = vor.u32 %v3713, %v3703
    %v3717 = vshll.u32 %v3591, 16
    %v3719 = vrot.slane %v3717, 1
    %v3720 = vsel %vm625, %v3715, %v3719
    %v3721 = vshrl.u32 %v3590, 16
    %v3723 = vor.u32 %v3721, %v3711
    %v3725 = vshll.u32 %v3592, 16
    %v3727 = vrot.slane %v3725, 1
    %v3728 = vsel %vm625, %v3723, %v3727
    %v3729 = vshrl.u32 %v3591, 16
    %v3731 = vor.u32 %v3729, %v3719
    %v3733 = vshll.u32 %v3593, 16
    %v3735 = vrot.slane %v3733, 1
    %v3736 = vsel %vm625, %v3731, %v3735
    %v3737 = vshrl.u32 %v3592, 16
    %v3739 = vor.u32 %v3737, %v3727
    %v3741 = vshll.u32 %v3594, 16
    %v3743 = vrot.slane %v3741, 1
    %v3744 = vsel %vm625, %v3739, %v3743
    %v3745 = vshrl.u32 %v3593, 16
    %v3747 = vor.u32 %v3745, %v3735
    %v3749 = vshll.u32 %v3595, 16
    %v3751 = vrot.slane %v3749, 1
    %v3752 = vsel %vm625, %v3747, %v3751
    %v3753 = vshrl.u32 %v3594, 16
    %v3755 = vor.u32 %v3753, %v3743
    %v3757 = vshll.u32 %v3596, 16
    %v3759 = vrot.slane %v3757, 1
    %v3760 = vsel %vm625, %v3755, %v3759
    %v3761 = vshrl.u32 %v3595, 16
    %v3763 = vor.u32 %v3761, %v3751
    %v3765 = vshll.u32 %v3597, 16
    %v3767 = vrot.slane %v3765, 1
    %v3768 = vsel %vm625, %v3763, %v3767
    %v3769 = vshrl.u32 %v3596, 16
    %v3771 = vor.u32 %v3769, %v3759
    %v3773 = vshll.u32 %v3598, 16
    %v3775 = vrot.slane %v3773, 1
    %v3776 = vsel %vm625, %v3771, %v3775
    %v3777 = vshrl.u32 %v3597, 16
    %v3779 = vor.u32 %v3777, %v3767
    %v3781 = vshll.u32 %v3599, 16
    %v3783 = vrot.slane %v3781, 1
    %v3784 = vsel %vm625, %v3779, %v3783
    %v3835 = vunpack.c.l.b16 %v3601
    %v3836 = vunpack.c.l.b16 %v3602
    %v3837 = vunpack.c.l.b16 %v3603
    %v3838 = vunpack.c.l.b16 %v3604
    %v3839 = vunpack.c.l.b16 %v3605
    %v3840 = vunpack.c.l.b16 %v3606
    %v3841 = vunpack.c.l.b16 %v3607
    %v3842 = vunpack.c.l.b16 %v3608
    %v3843 = vunpack.c.l.b16 %v3609
    %v3844 = vunpack.c.l.b16 %v3610
    %v3845 = vunpack.c.l.b16 %v3611
    %v3846 = vunpack.c.l.b16 %v3612
    %v3847 = vunpack.c.l.b16 %v3613
    %v3848 = vunpack.c.l.b16 %v3614
    %v3849 = vunpack.c.l.b16 %v3615
    %v3850 = vunpack.c.l.b16 %v3616
    %v3851 = vunpack.c.l.b16 %v3617
    %v3852 = vunpack.c.l.b16 %v3618
    %v3853 = vunpack.c.l.b16 %v3619
    %v3854 = vunpack.c.l.b16 %v3620
    %v3855 = vunpack.c.l.b16 %v3621
    %v3856 = vunpack.c.l.b16 %v3622
    %v3857 = vunpack.c.l.b16 %v3623
    %v3858 = vunpack.c.l.b16 %v3624
    %v3859 = vunpack.c.l.b16 %v3625
    %v3860 = vunpack.c.l.b16 %v3626
    %v3861 = vunpack.c.l.b16 %v3627
    %v3862 = vunpack.c.l.b16 %v3628
    %v3863 = vunpack.c.l.b16 %v3629
    %v3864 = vunpack.c.l.b16 %v3630
    %v3865 = vunpack.c.l.b16 %v3631
    %v3866 = vunpack.c.l.b16 %v3632
    %v3867 = vpack.c.b16 %v3836, %v3835
    %v3868 = vpack.c.b16 %v3838, %v3837
    %v3869 = vpack.c.b16 %v3840, %v3839
    %v3870 = vpack.c.b16 %v3842, %v3841
    %v3871 = vpack.c.b16 %v3844, %v3843
    %v3872 = vpack.c.b16 %v3846, %v3845
    %v3873 = vpack.c.b16 %v3848, %v3847
    %v3874 = vpack.c.b16 %v3850, %v3849
    %v3875 = vpack.c.b16 %v3852, %v3851
    %v3876 = vpack.c.b16 %v3854, %v3853
    %v3877 = vpack.c.b16 %v3856, %v3855
    %v3878 = vpack.c.b16 %v3858, %v3857
    %v3879 = vpack.c.b16 %v3860, %v3859
    %v3880 = vpack.c.b16 %v3862, %v3861
    %v3881 = vpack.c.b16 %v3864, %v3863
    %v3882 = vpack.c.b16 %v3866, %v3865
    %3899 = vmatpush.bf16.msra.mxu0 %v3874
    %3900 = vmatpush.bf16.msra.mxu0 %v3873
    %3901 = vmatpush.bf16.msra.mxu0 %v3872
    %3902 = vmatpush.bf16.msra.mxu0 %v3871
    %3903 = vmatpush.bf16.msra.mxu0 %v3870
    %3904 = vmatpush.bf16.msra.mxu0 %v3869
    %3905 = vmatpush.bf16.msra.mxu0 %v3868
    %3906 = vmatpush.bf16.msra.mxu0 %v3867
    %3907 = vmatmul.bf16.gmra.mxu0 %v3644
    %v3908 = vpop.f32.mrf.mxu0
    %v3909 = vadd.f32 0.0, %v3908
    %v3910 = vpop.f32.mrf.mxu0
    %v3911 = vadd.f32 0.0, %v3910
    %3912 = vmatmul.bf16.gmra.mxu0 %v3664
    %v3913 = vpop.f32.mrf.mxu0
    %v3914 = vadd.f32 0.0, %v3913
    %v3915 = vpop.f32.mrf.mxu0
    %v3916 = vadd.f32 0.0, %v3915
    %3917 = vmatmul.bf16.gmra.mxu0 %v3680
    %v3918 = vpop.f32.mrf.mxu0
    %v3919 = vadd.f32 0.0, %v3918
    %v3920 = vpop.f32.mrf.mxu0
    %v3921 = vadd.f32 0.0, %v3920
    %3922 = vmatmul.bf16.gmra.mxu0 %v3696
    %v3923 = vpop.f32.mrf.mxu0
    %v3924 = vadd.f32 0.0, %v3923
    %v3925 = vpop.f32.mrf.mxu0
    %v3926 = vadd.f32 0.0, %v3925
    %3927 = vmatmul.bf16.gmra.mxu0 %v3712
    %v3928 = vpop.f32.mrf.mxu0
    %v3929 = vadd.f32 0.0, %v3928
    %v3930 = vpop.f32.mrf.mxu0
    %v3931 = vadd.f32 0.0, %v3930
    %3932 = vmatmul.bf16.gmra.mxu0 %v3728
    %v3933 = vpop.f32.mrf.mxu0
    %v3934 = vadd.f32 0.0, %v3933
    %v3935 = vpop.f32.mrf.mxu0
    %v3936 = vadd.f32 0.0, %v3935
    %3937 = vmatmul.bf16.gmra.mxu0 %v3744
    %v3938 = vpop.f32.mrf.mxu0
    %v3939 = vadd.f32 0.0, %v3938
    %v3940 = vpop.f32.mrf.mxu0
    %v3941 = vadd.f32 0.0, %v3940
    %3942 = vmatmul.bf16.gmra.mxu0 %v3760
    %v3943 = vpop.f32.mrf.mxu0
    %v3944 = vadd.f32 0.0, %v3943
    %v3945 = vpop.f32.mrf.mxu0
    %v3946 = vadd.f32 0.0, %v3945
    %3947 = vmatmul.bf16.gmra.mxu0 %v3776
    %v3948 = vpop.f32.mrf.mxu0
    %v3949 = vadd.f32 0.0, %v3948
    %v3950 = vpop.f32.mrf.mxu0
    %v3951 = vadd.f32 0.0, %v3950
    %3952 = vdwg.mxu0
    %3953 = vmatpush.bf16.msra.mxu0 %v3882
    %3954 = vmatpush.bf16.msra.mxu0 %v3881
    %3955 = vmatpush.bf16.msra.mxu0 %v3880
    %3956 = vmatpush.bf16.msra.mxu0 %v3879
    %3957 = vmatpush.bf16.msra.mxu0 %v3878
    %3958 = vmatpush.bf16.msra.mxu0 %v3877
    %3959 = vmatpush.bf16.msra.mxu0 %v3876
    %3960 = vmatpush.bf16.msra.mxu0 %v3875
    %3961 = vmatmul.bf16.gmra.mxu0 %v3656
    %v3962 = vpop.f32.mrf.mxu0
    %v3963 = vadd.f32 %v3909, %v3962
    %v3964 = vpop.f32.mrf.mxu0
    %v3965 = vadd.f32 %v3911, %v3964
    %3966 = vmatmul.bf16.gmra.mxu0 %v3672
    %v3967 = vpop.f32.mrf.mxu0
    %v3968 = vadd.f32 %v3914, %v3967
    %v3969 = vpop.f32.mrf.mxu0
    %v3970 = vadd.f32 %v3916, %v3969
    %3971 = vmatmul.bf16.gmra.mxu0 %v3688
    %v3972 = vpop.f32.mrf.mxu0
    %v3973 = vadd.f32 %v3919, %v3972
    %v3974 = vpop.f32.mrf.mxu0
    %v3975 = vadd.f32 %v3921, %v3974
    %3976 = vmatmul.bf16.gmra.mxu0 %v3704
    %v3977 = vpop.f32.mrf.mxu0
    %v3978 = vadd.f32 %v3924, %v3977
    %v3979 = vpop.f32.mrf.mxu0
    %v3980 = vadd.f32 %v3926, %v3979
    %3981 = vmatmul.bf16.gmra.mxu0 %v3720
    %v3982 = vpop.f32.mrf.mxu0
    %v3983 = vadd.f32 %v3929, %v3982
    %v3984 = vpop.f32.mrf.mxu0
    %v3985 = vadd.f32 %v3931, %v3984
    %3986 = vmatmul.bf16.gmra.mxu0 %v3736
    %v3987 = vpop.f32.mrf.mxu0
    %v3988 = vadd.f32 %v3934, %v3987
    %v3989 = vpop.f32.mrf.mxu0
    %v3990 = vadd.f32 %v3936, %v3989
    %3991 = vmatmul.bf16.gmra.mxu0 %v3752
    %v3992 = vpop.f32.mrf.mxu0
    %v3993 = vadd.f32 %v3939, %v3992
    %v3994 = vpop.f32.mrf.mxu0
    %v3995 = vadd.f32 %v3941, %v3994
    %3996 = vmatmul.bf16.gmra.mxu0 %v3768
    %v3997 = vpop.f32.mrf.mxu0
    %v3998 = vadd.f32 %v3944, %v3997
    %v3999 = vpop.f32.mrf.mxu0
    %v4000 = vadd.f32 %v3946, %v3999
    %4001 = vmatmul.bf16.gmra.mxu0 %v3784
    %v4002 = vpop.f32.mrf.mxu0
    %v4003 = vadd.f32 %v3949, %v4002
    %v4004 = vpop.f32.mrf.mxu0
    %v4005 = vadd.f32 %v3951, %v4004
    %4006 = vdwg.mxu0
    %v4007 = vld [vmem:[#allocation3] sm:$0xff]
    %v4008 = vld [vmem:[#allocation3 + $0x8] sm:$0xff]
    %v4009 = vld [vmem:[#allocation3 + $0x10] sm:$0xff]
    %v4010 = vld [vmem:[#allocation3 + $0x18] sm:$0xff]
    %v4011 = vld [vmem:[#allocation3 + $0x20] sm:$0xff]
    %v4012 = vld [vmem:[#allocation3 + $0x28] sm:$0xff]
    %v4013 = vld [vmem:[#allocation3 + $0x30] sm:$0xff]
    %v4014 = vld [vmem:[#allocation3 + $0x38] sm:$0xff]
    %v4015 = vld [vmem:[#allocation3 + $0x40] sm:$0xff]
    %v4016 = vld [vmem:[#allocation3 + $0x48] sm:$0xff]
    %v4017 = vld [vmem:[#allocation3 + $0x50] sm:$0xff]
    %v4018 = vld [vmem:[#allocation3 + $0x58] sm:$0xff]
    %v4019 = vld [vmem:[#allocation3 + $0x60] sm:$0xff]
    %v4020 = vld [vmem:[#allocation3 + $0x68] sm:$0xff]
    %v4021 = vld [vmem:[#allocation3 + $0x70] sm:$0xff]
    %v4022 = vld [vmem:[#allocation3 + $0x78] sm:$0xff]
    %v4023 = vld [vmem:[#allocation3 + $0x80] sm:$0xff]
    %v4024 = vld [vmem:[#allocation3 + $0x88] sm:$0xff]
    %v4025 = vadd.f32 %v4007, %v3963
    %v4026 = vadd.f32 %v4008, %v3965
    %v4027 = vadd.f32 %v4009, %v3968
    %v4028 = vadd.f32 %v4010, %v3970
    %v4029 = vadd.f32 %v4011, %v3973
    %v4030 = vadd.f32 %v4012, %v3975
    %v4031 = vadd.f32 %v4013, %v3978
    %v4032 = vadd.f32 %v4014, %v3980
    %v4033 = vadd.f32 %v4015, %v3983
    %v4034 = vadd.f32 %v4016, %v3985
    %v4035 = vadd.f32 %v4017, %v3988
    %v4036 = vadd.f32 %v4018, %v3990
    %v4037 = vadd.f32 %v4019, %v3993
    %v4038 = vadd.f32 %v4020, %v3995
    %v4039 = vadd.f32 %v4021, %v3998
    %v4040 = vadd.f32 %v4022, %v4000
    %v4041 = vadd.f32 %v4023, %v4003
    %v4042 = vadd.f32 %v4024, %v4005
    %4043 = vst [vmem:[#allocation3] sm:$0xff] %v4025
    %4044 = vst [vmem:[#allocation3 + $0x8] sm:$0xff] %v4026
    %4045 = vst [vmem:[#allocation3 + $0x10] sm:$0xff] %v4027
    %4046 = vst [vmem:[#allocation3 + $0x18] sm:$0xff] %v4028
    %4047 = vst [vmem:[#allocation3 + $0x20] sm:$0xff] %v4029
    %4048 = vst [vmem:[#allocation3 + $0x28] sm:$0xff] %v4030
    %4049 = vst [vmem:[#allocation3 + $0x30] sm:$0xff] %v4031
    %4050 = vst [vmem:[#allocation3 + $0x38] sm:$0xff] %v4032
    %4051 = vst [vmem:[#allocation3 + $0x40] sm:$0xff] %v4033
    %4052 = vst [vmem:[#allocation3 + $0x48] sm:$0xff] %v4034
    %4053 = vst [vmem:[#allocation3 + $0x50] sm:$0xff] %v4035
    %4054 = vst [vmem:[#allocation3 + $0x58] sm:$0xff] %v4036
    %4055 = vst [vmem:[#allocation3 + $0x60] sm:$0xff] %v4037
    %4056 = vst [vmem:[#allocation3 + $0x68] sm:$0xff] %v4038
    %4057 = vst [vmem:[#allocation3 + $0x70] sm:$0xff] %v4039
    %4058 = vst [vmem:[#allocation3 + $0x78] sm:$0xff] %v4040
    %4059 = vst [vmem:[#allocation3 + $0x80] sm:$0xff] %v4041
    %4060 = vst [vmem:[#allocation3 + $0x88] sm:$0xff] %v4042
    %v4061 = vld [vmem:[#allocation2 + $0x10] sm:$0xf0]
    %v4062 = vld [vmem:[#allocation2 + $0x18] sm:$0xf0]
    %v4063 = vld [vmem:[#allocation2 + $0x20] sm:$0xff]
    %v4064 = vld [vmem:[#allocation2 + $0x28] sm:$0xff]
    %v4065 = vld [vmem:[#allocation2 + $0x30] sm:$0xff]
    %v4066 = vld [vmem:[#allocation2 + $0x38] sm:$0xff]
    %v4067 = vld [vmem:[#allocation2 + $0x40] sm:$0xff]
    %v4068 = vld [vmem:[#allocation2 + $0x48] sm:$0xff]
    %v4069 = vld [vmem:[#allocation2 + $0x50] sm:$0xff]
    %v4070 = vld [vmem:[#allocation2 + $0x58] sm:$0xff]
    %v4071 = vld [vmem:[#allocation2 + $0x60] sm:$0xff]
    %v4072 = vld [vmem:[#allocation2 + $0x68] sm:$0xff]
    %v4073 = vld [vmem:[#allocation2 + $0x70] sm:$0xff]
    %v4074 = vld [vmem:[#allocation2 + $0x78] sm:$0xff]
    %v4075 = vld [vmem:[#allocation2 + $0x80] sm:$0xff]
    %v4076 = vld [vmem:[#allocation2 + $0x88] sm:$0xff]
    %v4077 = vld [vmem:[#allocation2 + $0x90] sm:$0xff]
    %v4078 = vld [vmem:[#allocation2 + $0x98] sm:$0xff]
    %v4079 = vld [vmem:[#allocation2 + $0xa0] sm:$0xff]
    %v4080 = vld [vmem:[#allocation2 + $0xa8] sm:$0xff]
    %v4081 = vld [vmem:[#allocation2 + $0xb0] sm:$0xff]
    %v4082 = vld [vmem:[#allocation2 + $0xb8] sm:$0xff]
    %v4083 = vld [vmem:[#allocation2 + $0xc0] sm:$0xff]
    %v4084 = vld [vmem:[#allocation2 + $0xc8] sm:$0xff]
    %v4085 = vld [vmem:[#allocation2 + $0xd0] sm:$0xff]
    %v4086 = vld [vmem:[#allocation2 + $0xd8] sm:$0xff]
    %v4087 = vld [vmem:[#allocation2 + $0xe0] sm:$0xff]
    %v4088 = vld [vmem:[#allocation2 + $0xe8] sm:$0xff]
    %v4089 = vld [vmem:[#allocation2 + $0xf0] sm:$0xff]
    %v4090 = vld [vmem:[#allocation2 + $0xf8] sm:$0xff]
    %v4091 = vld [vmem:[#allocation2 + $0x100] sm:$0xff]
    %v4092 = vld [vmem:[#allocation2 + $0x108] sm:$0xff]
    %v4093 = vld [vmem:[#allocation2 + $0x110] sm:$0xff]
    %v4094 = vld [vmem:[#allocation2 + $0x118] sm:$0xff]
    %v4095 = vld [vmem:[#allocation2 + $0x120] sm:$0xff]
    %v4096 = vld [vmem:[#allocation2 + $0x128] sm:$0xff]
    %v4097 = vld [vmem:[#allocation2 + $0x130] sm:$0xf]
    %v4098 = vld [vmem:[#allocation2 + $0x138] sm:$0xf]
    %v4099 = vpack.c.bf16 %v4063, %v4061
    %v4100 = vpack.c.bf16 %v4064, %v4062
    %v4101 = vpack.c.bf16 %v4067, %v4065
    %v4102 = vpack.c.bf16 %v4068, %v4066
    %v4103 = vpack.c.bf16 %v4071, %v4069
    %v4104 = vpack.c.bf16 %v4072, %v4070
    %v4105 = vpack.c.bf16 %v4075, %v4073
    %v4106 = vpack.c.bf16 %v4076, %v4074
    %v4107 = vpack.c.bf16 %v4079, %v4077
    %v4108 = vpack.c.bf16 %v4080, %v4078
    %v4109 = vpack.c.bf16 %v4083, %v4081
    %v4110 = vpack.c.bf16 %v4084, %v4082
    %v4111 = vpack.c.bf16 %v4087, %v4085
    %v4112 = vpack.c.bf16 %v4088, %v4086
    %v4113 = vpack.c.bf16 %v4091, %v4089
    %v4114 = vpack.c.bf16 %v4092, %v4090
    %v4115 = vpack.c.bf16 %v4095, %v4093
    %v4116 = vpack.c.bf16 %v4096, %v4094
    %v4117 = vpack.c.bf16 %v4097, %v4097
    %v4118 = vpack.c.bf16 %v4098, %v4098
    %s4119 = scalar_lea.vmem %s2, 256
    %v4120 = vld [vmem:[%s4119] sm:$0xf]
    %v4121 = vld [vmem:[%s4119 + $0x4] sm:$0xf]
    %v4122 = vld [vmem:[%s4119 + $0x8] sm:$0xf]
    %v4123 = vld [vmem:[%s4119 + $0xc] sm:$0xf]
    %v4124 = vld [vmem:[%s4119 + $0x10] sm:$0xf]
    %v4125 = vld [vmem:[%s4119 + $0x14] sm:$0xf]
    %v4126 = vld [vmem:[%s4119 + $0x18] sm:$0xf]
    %v4127 = vld [vmem:[%s4119 + $0x1c] sm:$0xf]
    %v4128 = vld [vmem:[%s4119 + $0x20] sm:$0xf]
    %v4129 = vld [vmem:[%s4119 + $0x24] sm:$0xf]
    %v4130 = vld [vmem:[%s4119 + $0x28] sm:$0xf]
    %v4131 = vld [vmem:[%s4119 + $0x2c] sm:$0xf]
    %v4132 = vld [vmem:[%s4119 + $0x30] sm:$0xf]
    %v4133 = vld [vmem:[%s4119 + $0x34] sm:$0xf]
    %v4134 = vld [vmem:[%s4119 + $0x38] sm:$0xf]
    %v4135 = vld [vmem:[%s4119 + $0x3c] sm:$0xf]
    %v4136 = vld [vmem:[%s4119 + $0x40] sm:$0xf]
    %v4137 = vld [vmem:[%s4119 + $0x44] sm:$0xf]
    %v4138 = vld [vmem:[%s4119 + $0x48] sm:$0xf]
    %v4139 = vld [vmem:[%s4119 + $0x4c] sm:$0xf]
    %v4140 = vld [vmem:[%s4119 + $0x50] sm:$0xf]
    %v4141 = vld [vmem:[%s4119 + $0x54] sm:$0xf]
    %v4142 = vld [vmem:[%s4119 + $0x58] sm:$0xf]
    %v4143 = vld [vmem:[%s4119 + $0x5c] sm:$0xf]
    %v4144 = vld [vmem:[%s4119 + $0x60] sm:$0xf]
    %v4145 = vld [vmem:[%s4119 + $0x64] sm:$0xf]
    %v4146 = vld [vmem:[%s4119 + $0x68] sm:$0xf]
    %v4147 = vld [vmem:[%s4119 + $0x6c] sm:$0xf]
    %v4148 = vld [vmem:[%s4119 + $0x70] sm:$0xf]
    %v4149 = vld [vmem:[%s4119 + $0x74] sm:$0xf]
    %v4150 = vld [vmem:[%s4119 + $0x78] sm:$0xf]
    %v4151 = vld [vmem:[%s4119 + $0x7c] sm:$0xf]
    %v4172 = vrot.slane %v4099, 2
    %v4173 = vrot.slane %v4101, 2
    %v4174 = vsel %vm1361, %v4172, %v4173
    %v4175 = vrot.slane %v4100, 2
    %v4176 = vrot.slane %v4102, 2
    %v4177 = vsel %vm1361, %v4175, %v4176
    %v4178 = vrot.slane %v4103, 2
    %v4179 = vsel %vm1361, %v4173, %v4178
    %v4180 = vrot.slane %v4104, 2
    %v4181 = vsel %vm1361, %v4176, %v4180
    %v4182 = vrot.slane %v4105, 2
    %v4183 = vsel %vm1361, %v4178, %v4182
    %v4184 = vrot.slane %v4106, 2
    %v4185 = vsel %vm1361, %v4180, %v4184
    %v4186 = vrot.slane %v4107, 2
    %v4187 = vsel %vm1361, %v4182, %v4186
    %v4188 = vrot.slane %v4108, 2
    %v4189 = vsel %vm1361, %v4184, %v4188
    %v4190 = vrot.slane %v4109, 2
    %v4191 = vsel %vm1361, %v4186, %v4190
    %v4192 = vrot.slane %v4110, 2
    %v4193 = vsel %vm1361, %v4188, %v4192
    %v4194 = vrot.slane %v4111, 2
    %v4195 = vsel %vm1361, %v4190, %v4194
    %v4196 = vrot.slane %v4112, 2
    %v4197 = vsel %vm1361, %v4192, %v4196
    %v4198 = vrot.slane %v4113, 2
    %v4199 = vsel %vm1361, %v4194, %v4198
    %v4200 = vrot.slane %v4114, 2
    %v4201 = vsel %vm1361, %v4196, %v4200
    %v4202 = vrot.slane %v4115, 2
    %v4203 = vsel %vm1361, %v4198, %v4202
    %v4204 = vrot.slane %v4116, 2
    %v4205 = vsel %vm1361, %v4200, %v4204
    %v4206 = vrot.slane %v4117, 2
    %v4207 = vsel %vm1361, %v4202, %v4206
    %v4208 = vrot.slane %v4118, 2
    %v4209 = vsel %vm1361, %v4204, %v4208
    %v4260 = vunpack.c.l.b16 %v4120
    %v4261 = vunpack.c.l.b16 %v4121
    %v4262 = vunpack.c.l.b16 %v4122
    %v4263 = vunpack.c.l.b16 %v4123
    %v4264 = vunpack.c.l.b16 %v4124
    %v4265 = vunpack.c.l.b16 %v4125
    %v4266 = vunpack.c.l.b16 %v4126
    %v4267 = vunpack.c.l.b16 %v4127
    %v4268 = vunpack.c.l.b16 %v4128
    %v4269 = vunpack.c.l.b16 %v4129
    %v4270 = vunpack.c.l.b16 %v4130
    %v4271 = vunpack.c.l.b16 %v4131
    %v4272 = vunpack.c.l.b16 %v4132
    %v4273 = vunpack.c.l.b16 %v4133
    %v4274 = vunpack.c.l.b16 %v4134
    %v4275 = vunpack.c.l.b16 %v4135
    %v4276 = vunpack.c.l.b16 %v4136
    %v4277 = vunpack.c.l.b16 %v4137
    %v4278 = vunpack.c.l.b16 %v4138
    %v4279 = vunpack.c.l.b16 %v4139
    %v4280 = vunpack.c.l.b16 %v4140
    %v4281 = vunpack.c.l.b16 %v4141
    %v4282 = vunpack.c.l.b16 %v4142
    %v4283 = vunpack.c.l.b16 %v4143
    %v4284 = vunpack.c.l.b16 %v4144
    %v4285 = vunpack.c.l.b16 %v4145
    %v4286 = vunpack.c.l.b16 %v4146
    %v4287 = vunpack.c.l.b16 %v4147
    %v4288 = vunpack.c.l.b16 %v4148
    %v4289 = vunpack.c.l.b16 %v4149
    %v4290 = vunpack.c.l.b16 %v4150
    %v4291 = vunpack.c.l.b16 %v4151
    %v4292 = vpack.c.b16 %v4261, %v4260
    %v4293 = vpack.c.b16 %v4263, %v4262
    %v4294 = vpack.c.b16 %v4265, %v4264
    %v4295 = vpack.c.b16 %v4267, %v4266
    %v4296 = vpack.c.b16 %v4269, %v4268
    %v4297 = vpack.c.b16 %v4271, %v4270
    %v4298 = vpack.c.b16 %v4273, %v4272
    %v4299 = vpack.c.b16 %v4275, %v4274
    %v4300 = vpack.c.b16 %v4277, %v4276
    %v4301 = vpack.c.b16 %v4279, %v4278
    %v4302 = vpack.c.b16 %v4281, %v4280
    %v4303 = vpack.c.b16 %v4283, %v4282
    %v4304 = vpack.c.b16 %v4285, %v4284
    %v4305 = vpack.c.b16 %v4287, %v4286
    %v4306 = vpack.c.b16 %v4289, %v4288
    %v4307 = vpack.c.b16 %v4291, %v4290
    %4324 = vmatpush.bf16.msra.mxu0 %v4299
    %4325 = vmatpush.bf16.msra.mxu0 %v4298
    %4326 = vmatpush.bf16.msra.mxu0 %v4297
    %4327 = vmatpush.bf16.msra.mxu0 %v4296
    %4328 = vmatpush.bf16.msra.mxu0 %v4295
    %4329 = vmatpush.bf16.msra.mxu0 %v4294
    %4330 = vmatpush.bf16.msra.mxu0 %v4293
    %4331 = vmatpush.bf16.msra.mxu0 %v4292
    %4332 = vmatmul.bf16.gmra.mxu0 %v4174
    %v4333 = vpop.f32.mrf.mxu0
    %v4334 = vadd.f32 0.0, %v4333
    %v4335 = vpop.f32.mrf.mxu0
    %v4336 = vadd.f32 0.0, %v4335
    %4337 = vmatmul.bf16.gmra.mxu0 %v4179
    %v4338 = vpop.f32.mrf.mxu0
    %v4339 = vadd.f32 0.0, %v4338
    %v4340 = vpop.f32.mrf.mxu0
    %v4341 = vadd.f32 0.0, %v4340
    %4342 = vmatmul.bf16.gmra.mxu0 %v4183
    %v4343 = vpop.f32.mrf.mxu0
    %v4344 = vadd.f32 0.0, %v4343
    %v4345 = vpop.f32.mrf.mxu0
    %v4346 = vadd.f32 0.0, %v4345
    %4347 = vmatmul.bf16.gmra.mxu0 %v4187
    %v4348 = vpop.f32.mrf.mxu0
    %v4349 = vadd.f32 0.0, %v4348
    %v4350 = vpop.f32.mrf.mxu0
    %v4351 = vadd.f32 0.0, %v4350
    %4352 = vmatmul.bf16.gmra.mxu0 %v4191
    %v4353 = vpop.f32.mrf.mxu0
    %v4354 = vadd.f32 0.0, %v4353
    %v4355 = vpop.f32.mrf.mxu0
    %v4356 = vadd.f32 0.0, %v4355
    %4357 = vmatmul.bf16.gmra.mxu0 %v4195
    %v4358 = vpop.f32.mrf.mxu0
    %v4359 = vadd.f32 0.0, %v4358
    %v4360 = vpop.f32.mrf.mxu0
    %v4361 = vadd.f32 0.0, %v4360
    %4362 = vmatmul.bf16.gmra.mxu0 %v4199
    %v4363 = vpop.f32.mrf.mxu0
    %v4364 = vadd.f32 0.0, %v4363
    %v4365 = vpop.f32.mrf.mxu0
    %v4366 = vadd.f32 0.0, %v4365
    %4367 = vmatmul.bf16.gmra.mxu0 %v4203
    %v4368 = vpop.f32.mrf.mxu0
    %v4369 = vadd.f32 0.0, %v4368
    %v4370 = vpop.f32.mrf.mxu0
    %v4371 = vadd.f32 0.0, %v4370
    %4372 = vmatmul.bf16.gmra.mxu0 %v4207
    %v4373 = vpop.f32.mrf.mxu0
    %v4374 = vadd.f32 0.0, %v4373
    %v4375 = vpop.f32.mrf.mxu0
    %v4376 = vadd.f32 0.0, %v4375
    %4377 = vdwg.mxu0
    %4378 = vmatpush.bf16.msra.mxu0 %v4307
    %4379 = vmatpush.bf16.msra.mxu0 %v4306
    %4380 = vmatpush.bf16.msra.mxu0 %v4305
    %4381 = vmatpush.bf16.msra.mxu0 %v4304
    %4382 = vmatpush.bf16.msra.mxu0 %v4303
    %4383 = vmatpush.bf16.msra.mxu0 %v4302
    %4384 = vmatpush.bf16.msra.mxu0 %v4301
    %4385 = vmatpush.bf16.msra.mxu0 %v4300
    %4386 = vmatmul.bf16.gmra.mxu0 %v4177
    %v4387 = vpop.f32.mrf.mxu0
    %v4388 = vadd.f32 %v4334, %v4387
    %v4389 = vpop.f32.mrf.mxu0
    %v4390 = vadd.f32 %v4336, %v4389
    %4391 = vmatmul.bf16.gmra.mxu0 %v4181
    %v4392 = vpop.f32.mrf.mxu0
    %v4393 = vadd.f32 %v4339, %v4392
    %v4394 = vpop.f32.mrf.mxu0
    %v4395 = vadd.f32 %v4341, %v4394
    %4396 = vmatmul.bf16.gmra.mxu0 %v4185
    %v4397 = vpop.f32.mrf.mxu0
    %v4398 = vadd.f32 %v4344, %v4397
    %v4399 = vpop.f32.mrf.mxu0
    %v4400 = vadd.f32 %v4346, %v4399
    %4401 = vmatmul.bf16.gmra.mxu0 %v4189
    %v4402 = vpop.f32.mrf.mxu0
    %v4403 = vadd.f32 %v4349, %v4402
    %v4404 = vpop.f32.mrf.mxu0
    %v4405 = vadd.f32 %v4351, %v4404
    %4406 = vmatmul.bf16.gmra.mxu0 %v4193
    %v4407 = vpop.f32.mrf.mxu0
    %v4408 = vadd.f32 %v4354, %v4407
    %v4409 = vpop.f32.mrf.mxu0
    %v4410 = vadd.f32 %v4356, %v4409
    %4411 = vmatmul.bf16.gmra.mxu0 %v4197
    %v4412 = vpop.f32.mrf.mxu0
    %v4413 = vadd.f32 %v4359, %v4412
    %v4414 = vpop.f32.mrf.mxu0
    %v4415 = vadd.f32 %v4361, %v4414
    %4416 = vmatmul.bf16.gmra.mxu0 %v4201
    %v4417 = vpop.f32.mrf.mxu0
    %v4418 = vadd.f32 %v4364, %v4417
    %v4419 = vpop.f32.mrf.mxu0
    %v4420 = vadd.f32 %v4366, %v4419
    %4421 = vmatmul.bf16.gmra.mxu0 %v4205
    %v4422 = vpop.f32.mrf.mxu0
    %v4423 = vadd.f32 %v4369, %v4422
    %v4424 = vpop.f32.mrf.mxu0
    %v4425 = vadd.f32 %v4371, %v4424
    %4426 = vmatmul.bf16.gmra.mxu0 %v4209
    %v4427 = vpop.f32.mrf.mxu0
    %v4428 = vadd.f32 %v4374, %v4427
    %v4429 = vpop.f32.mrf.mxu0
    %v4430 = vadd.f32 %v4376, %v4429
    %4431 = vdwg.mxu0
    %v4432 = vld [vmem:[#allocation3] sm:$0xff]
    %v4433 = vld [vmem:[#allocation3 + $0x8] sm:$0xff]
    %v4434 = vld [vmem:[#allocation3 + $0x10] sm:$0xff]
    %v4435 = vld [vmem:[#allocation3 + $0x18] sm:$0xff]
    %v4436 = vld [vmem:[#allocation3 + $0x20] sm:$0xff]
    %v4437 = vld [vmem:[#allocation3 + $0x28] sm:$0xff]
    %v4438 = vld [vmem:[#allocation3 + $0x30] sm:$0xff]
    %v4439 = vld [vmem:[#allocation3 + $0x38] sm:$0xff]
    %v4440 = vld [vmem:[#allocation3 + $0x40] sm:$0xff]
    %v4441 = vld [vmem:[#allocation3 + $0x48] sm:$0xff]
    %v4442 = vld [vmem:[#allocation3 + $0x50] sm:$0xff]
    %v4443 = vld [vmem:[#allocation3 + $0x58] sm:$0xff]
    %v4444 = vld [vmem:[#allocation3 + $0x60] sm:$0xff]
    %v4445 = vld [vmem:[#allocation3 + $0x68] sm:$0xff]
    %v4446 = vld [vmem:[#allocation3 + $0x70] sm:$0xff]
    %v4447 = vld [vmem:[#allocation3 + $0x78] sm:$0xff]
    %v4448 = vld [vmem:[#allocation3 + $0x80] sm:$0xff]
    %v4449 = vld [vmem:[#allocation3 + $0x88] sm:$0xff]
    %v4450 = vadd.f32 %v4432, %v4388
    %v4451 = vadd.f32 %v4433, %v4390
    %v4452 = vadd.f32 %v4434, %v4393
    %v4453 = vadd.f32 %v4435, %v4395
    %v4454 = vadd.f32 %v4436, %v4398
    %v4455 = vadd.f32 %v4437, %v4400
    %v4456 = vadd.f32 %v4438, %v4403
    %v4457 = vadd.f32 %v4439, %v4405
    %v4458 = vadd.f32 %v4440, %v4408
    %v4459 = vadd.f32 %v4441, %v4410
    %v4460 = vadd.f32 %v4442, %v4413
    %v4461 = vadd.f32 %v4443, %v4415
    %v4462 = vadd.f32 %v4444, %v4418
    %v4463 = vadd.f32 %v4445, %v4420
    %v4464 = vadd.f32 %v4446, %v4423
    %v4465 = vadd.f32 %v4447, %v4425
    %v4466 = vadd.f32 %v4448, %v4428
    %v4467 = vadd.f32 %v4449, %v4430
    %4468 = vst [vmem:[#allocation3] sm:$0xff] %v4450
    %4469 = vst [vmem:[#allocation3 + $0x8] sm:$0xff] %v4451
    %4470 = vst [vmem:[#allocation3 + $0x10] sm:$0xff] %v4452
    %4471 = vst [vmem:[#allocation3 + $0x18] sm:$0xff] %v4453
    %4472 = vst [vmem:[#allocation3 + $0x20] sm:$0xff] %v4454
    %4473 = vst [vmem:[#allocation3 + $0x28] sm:$0xff] %v4455
    %4474 = vst [vmem:[#allocation3 + $0x30] sm:$0xff] %v4456
    %4475 = vst [vmem:[#allocation3 + $0x38] sm:$0xff] %v4457
    %4476 = vst [vmem:[#allocation3 + $0x40] sm:$0xff] %v4458
    %4477 = vst [vmem:[#allocation3 + $0x48] sm:$0xff] %v4459
    %4478 = vst [vmem:[#allocation3 + $0x50] sm:$0xff] %v4460
    %4479 = vst [vmem:[#allocation3 + $0x58] sm:$0xff] %v4461
    %4480 = vst [vmem:[#allocation3 + $0x60] sm:$0xff] %v4462
    %4481 = vst [vmem:[#allocation3 + $0x68] sm:$0xff] %v4463
    %4482 = vst [vmem:[#allocation3 + $0x70] sm:$0xff] %v4464
    %4483 = vst [vmem:[#allocation3 + $0x78] sm:$0xff] %v4465
    %4484 = vst [vmem:[#allocation3 + $0x80] sm:$0xff] %v4466
    %4485 = vst [vmem:[#allocation3 + $0x88] sm:$0xff] %v4467
    %v4486 = vld [vmem:[#allocation2 + $0x10] sm:$0xe0]
    %v4487 = vld [vmem:[#allocation2 + $0x18] sm:$0xe0]
    %v4488 = vld [vmem:[#allocation2 + $0x20] sm:$0xff]
    %v4489 = vld [vmem:[#allocation2 + $0x28] sm:$0xff]
    %v4490 = vld [vmem:[#allocation2 + $0x30] sm:$0xff]
    %v4491 = vld [vmem:[#allocation2 + $0x38] sm:$0xff]
    %v4492 = vld [vmem:[#allocation2 + $0x40] sm:$0xff]
    %v4493 = vld [vmem:[#allocation2 + $0x48] sm:$0xff]
    %v4494 = vld [vmem:[#allocation2 + $0x50] sm:$0xff]
    %v4495 = vld [vmem:[#allocation2 + $0x58] sm:$0xff]
    %v4496 = vld [vmem:[#allocation2 + $0x60] sm:$0xff]
    %v4497 = vld [vmem:[#allocation2 + $0x68] sm:$0xff]
    %v4498 = vld [vmem:[#allocation2 + $0x70] sm:$0xff]
    %v4499 = vld [vmem:[#allocation2 + $0x78] sm:$0xff]
    %v4500 = vld [vmem:[#allocation2 + $0x80] sm:$0xff]
    %v4501 = vld [vmem:[#allocation2 + $0x88] sm:$0xff]
    %v4502 = vld [vmem:[#allocation2 + $0x90] sm:$0xff]
    %v4503 = vld [vmem:[#allocation2 + $0x98] sm:$0xff]
    %v4504 = vld [vmem:[#allocation2 + $0xa0] sm:$0xff]
    %v4505 = vld [vmem:[#allocation2 + $0xa8] sm:$0xff]
    %v4506 = vld [vmem:[#allocation2 + $0xb0] sm:$0xff]
    %v4507 = vld [vmem:[#allocation2 + $0xb8] sm:$0xff]
    %v4508 = vld [vmem:[#allocation2 + $0xc0] sm:$0xff]
    %v4509 = vld [vmem:[#allocation2 + $0xc8] sm:$0xff]
    %v4510 = vld [vmem:[#allocation2 + $0xd0] sm:$0xff]
    %v4511 = vld [vmem:[#allocation2 + $0xd8] sm:$0xff]
    %v4512 = vld [vmem:[#allocation2 + $0xe0] sm:$0xff]
    %v4513 = vld [vmem:[#allocation2 + $0xe8] sm:$0xff]
    %v4514 = vld [vmem:[#allocation2 + $0xf0] sm:$0xff]
    %v4515 = vld [vmem:[#allocation2 + $0xf8] sm:$0xff]
    %v4516 = vld [vmem:[#allocation2 + $0x100] sm:$0xff]
    %v4517 = vld [vmem:[#allocation2 + $0x108] sm:$0xff]
    %v4518 = vld [vmem:[#allocation2 + $0x110] sm:$0xff]
    %v4519 = vld [vmem:[#allocation2 + $0x118] sm:$0xff]
    %v4520 = vld [vmem:[#allocation2 + $0x120] sm:$0xff]
    %v4521 = vld [vmem:[#allocation2 + $0x128] sm:$0xff]
    %v4522 = vld [vmem:[#allocation2 + $0x130] sm:$0x1f]
    %v4523 = vld [vmem:[#allocation2 + $0x138] sm:$0x1f]
    %v4524 = vpack.c.bf16 %v4488, %v4486
    %v4525 = vpack.c.bf16 %v4489, %v4487
    %v4526 = vpack.c.bf16 %v4492, %v4490
    %v4527 = vpack.c.bf16 %v4493, %v4491
    %v4528 = vpack.c.bf16 %v4496, %v4494
    %v4529 = vpack.c.bf16 %v4497, %v4495
    %v4530 = vpack.c.bf16 %v4500, %v4498
    %v4531 = vpack.c.bf16 %v4501, %v4499
    %v4532 = vpack.c.bf16 %v4504, %v4502
    %v4533 = vpack.c.bf16 %v4505, %v4503
    %v4534 = vpack.c.bf16 %v4508, %v4506
    %v4535 = vpack.c.bf16 %v4509, %v4507
    %v4536 = vpack.c.bf16 %v4512, %v4510
    %v4537 = vpack.c.bf16 %v4513, %v4511
    %v4538 = vpack.c.bf16 %v4516, %v4514
    %v4539 = vpack.c.bf16 %v4517, %v4515
    %v4540 = vpack.c.bf16 %v4520, %v4518
    %v4541 = vpack.c.bf16 %v4521, %v4519
    %v4542 = vpack.c.bf16 %v4522, %v4522
    %v4543 = vpack.c.bf16 %v4523, %v4523
    %s4544 = scalar_lea.vmem %s2, 384
    %v4545 = vld [vmem:[%s4544] sm:$0xf]
    %v4546 = vld [vmem:[%s4544 + $0x4] sm:$0xf]
    %v4547 = vld [vmem:[%s4544 + $0x8] sm:$0xf]
    %v4548 = vld [vmem:[%s4544 + $0xc] sm:$0xf]
    %v4549 = vld [vmem:[%s4544 + $0x10] sm:$0xf]
    %v4550 = vld [vmem:[%s4544 + $0x14] sm:$0xf]
    %v4551 = vld [vmem:[%s4544 + $0x18] sm:$0xf]
    %v4552 = vld [vmem:[%s4544 + $0x1c] sm:$0xf]
    %v4553 = vld [vmem:[%s4544 + $0x20] sm:$0xf]
    %v4554 = vld [vmem:[%s4544 + $0x24] sm:$0xf]
    %v4555 = vld [vmem:[%s4544 + $0x28] sm:$0xf]
    %v4556 = vld [vmem:[%s4544 + $0x2c] sm:$0xf]
    %v4557 = vld [vmem:[%s4544 + $0x30] sm:$0xf]
    %v4558 = vld [vmem:[%s4544 + $0x34] sm:$0xf]
    %v4559 = vld [vmem:[%s4544 + $0x38] sm:$0xf]
    %v4560 = vld [vmem:[%s4544 + $0x3c] sm:$0xf]
    %v4561 = vld [vmem:[%s4544 + $0x40] sm:$0xf]
    %v4562 = vld [vmem:[%s4544 + $0x44] sm:$0xf]
    %v4563 = vld [vmem:[%s4544 + $0x48] sm:$0xf]
    %v4564 = vld [vmem:[%s4544 + $0x4c] sm:$0xf]
    %v4565 = vld [vmem:[%s4544 + $0x50] sm:$0xf]
    %v4566 = vld [vmem:[%s4544 + $0x54] sm:$0xf]
    %v4567 = vld [vmem:[%s4544 + $0x58] sm:$0xf]
    %v4568 = vld [vmem:[%s4544 + $0x5c] sm:$0xf]
    %v4569 = vld [vmem:[%s4544 + $0x60] sm:$0xf]
    %v4570 = vld [vmem:[%s4544 + $0x64] sm:$0xf]
    %v4571 = vld [vmem:[%s4544 + $0x68] sm:$0xf]
    %v4572 = vld [vmem:[%s4544 + $0x6c] sm:$0xf]
    %v4573 = vld [vmem:[%s4544 + $0x70] sm:$0xf]
    %v4574 = vld [vmem:[%s4544 + $0x74] sm:$0xf]
    %v4575 = vld [vmem:[%s4544 + $0x78] sm:$0xf]
    %v4576 = vld [vmem:[%s4544 + $0x7c] sm:$0xf]
    %v4578 = vshrl.u32 %v4524, 16
    %v4580 = vrot.slane %v4578, 2
    %v4581 = vshll.u32 %v4524, 16
    %v4583 = vrot.slane %v4581, 3
    %v4584 = vor.u32 %v4580, %v4583
    %v4586 = vshrl.u32 %v4526, 16
    %v4588 = vrot.slane %v4586, 2
    %v4589 = vshll.u32 %v4526, 16
    %v4591 = vrot.slane %v4589, 3
    %v4592 = vor.u32 %v4588, %v4591
    %v4593 = vsel %vm1963, %v4584, %v4592
    %v4595 = vshrl.u32 %v4525, 16
    %v4597 = vrot.slane %v4595, 2
    %v4598 = vshll.u32 %v4525, 16
    %v4600 = vrot.slane %v4598, 3
    %v4601 = vor.u32 %v4597, %v4600
    %v4603 = vshrl.u32 %v4527, 16
    %v4605 = vrot.slane %v4603, 2
    %v4606 = vshll.u32 %v4527, 16
    %v4608 = vrot.slane %v4606, 3
    %v4609 = vor.u32 %v4605, %v4608
    %v4610 = vsel %vm1963, %v4601, %v4609
    %v4612 = vshrl.u32 %v4528, 16
    %v4614 = vrot.slane %v4612, 2
    %v4615 = vshll.u32 %v4528, 16
    %v4617 = vrot.slane %v4615, 3
    %v4618 = vor.u32 %v4614, %v4617
    %v4619 = vsel %vm1963, %v4592, %v4618
    %v4621 = vshrl.u32 %v4529, 16
    %v4623 = vrot.slane %v4621, 2
    %v4624 = vshll.u32 %v4529, 16
    %v4626 = vrot.slane %v4624, 3
    %v4627 = vor.u32 %v4623, %v4626
    %v4628 = vsel %vm1963, %v4609, %v4627
    %v4630 = vshrl.u32 %v4530, 16
    %v4632 = vrot.slane %v4630, 2
    %v4633 = vshll.u32 %v4530, 16
    %v4635 = vrot.slane %v4633, 3
    %v4636 = vor.u32 %v4632, %v4635
    %v4637 = vsel %vm1963, %v4618, %v4636
    %v4639 = vshrl.u32 %v4531, 16
    %v4641 = vrot.slane %v4639, 2
    %v4642 = vshll.u32 %v4531, 16
    %v4644 = vrot.slane %v4642, 3
    %v4645 = vor.u32 %v4641, %v4644
    %v4646 = vsel %vm1963, %v4627, %v4645
    %v4648 = vshrl.u32 %v4532, 16
    %v4650 = vrot.slane %v4648, 2
    %v4651 = vshll.u32 %v4532, 16
    %v4653 = vrot.slane %v4651, 3
    %v4654 = vor.u32 %v4650, %v4653
    %v4655 = vsel %vm1963, %v4636, %v4654
    %v4657 = vshrl.u32 %v4533, 16
    %v4659 = vrot.slane %v4657, 2
    %v4660 = vshll.u32 %v4533, 16
    %v4662 = vrot.slane %v4660, 3
    %v4663 = vor.u32 %v4659, %v4662
    %v4664 = vsel %vm1963, %v4645, %v4663
    %v4666 = vshrl.u32 %v4534, 16
    %v4668 = vrot.slane %v4666, 2
    %v4669 = vshll.u32 %v4534, 16
    %v4671 = vrot.slane %v4669, 3
    %v4672 = vor.u32 %v4668, %v4671
    %v4673 = vsel %vm1963, %v4654, %v4672
    %v4675 = vshrl.u32 %v4535, 16
    %v4677 = vrot.slane %v4675, 2
    %v4678 = vshll.u32 %v4535, 16
    %v4680 = vrot.slane %v4678, 3
    %v4681 = vor.u32 %v4677, %v4680
    %v4682 = vsel %vm1963, %v4663, %v4681
    %v4684 = vshrl.u32 %v4536, 16
    %v4686 = vrot.slane %v4684, 2
    %v4687 = vshll.u32 %v4536, 16
    %v4689 = vrot.slane %v4687, 3
    %v4690 = vor.u32 %v4686, %v4689
    %v4691 = vsel %vm1963, %v4672, %v4690
    %v4693 = vshrl.u32 %v4537, 16
    %v4695 = vrot.slane %v4693, 2
    %v4696 = vshll.u32 %v4537, 16
    %v4698 = vrot.slane %v4696, 3
    %v4699 = vor.u32 %v4695, %v4698
    %v4700 = vsel %vm1963, %v4681, %v4699
    %v4702 = vshrl.u32 %v4538, 16
    %v4704 = vrot.slane %v4702, 2
    %v4705 = vshll.u32 %v4538, 16
    %v4707 = vrot.slane %v4705, 3
    %v4708 = vor.u32 %v4704, %v4707
    %v4709 = vsel %vm1963, %v4690, %v4708
    %v4711 = vshrl.u32 %v4539, 16
    %v4713 = vrot.slane %v4711, 2
    %v4714 = vshll.u32 %v4539, 16
    %v4716 = vrot.slane %v4714, 3
    %v4717 = vor.u32 %v4713, %v4716
    %v4718 = vsel %vm1963, %v4699, %v4717
    %v4720 = vshrl.u32 %v4540, 16
    %v4722 = vrot.slane %v4720, 2
    %v4723 = vshll.u32 %v4540, 16
    %v4725 = vrot.slane %v4723, 3
    %v4726 = vor.u32 %v4722, %v4725
    %v4727 = vsel %vm1963, %v4708, %v4726
    %v4729 = vshrl.u32 %v4541, 16
    %v4731 = vrot.slane %v4729, 2
    %v4732 = vshll.u32 %v4541, 16
    %v4734 = vrot.slane %v4732, 3
    %v4735 = vor.u32 %v4731, %v4734
    %v4736 = vsel %vm1963, %v4717, %v4735
    %v4738 = vshrl.u32 %v4542, 16
    %v4740 = vrot.slane %v4738, 2
    %v4741 = vshll.u32 %v4542, 16
    %v4743 = vrot.slane %v4741, 3
    %v4744 = vor.u32 %v4740, %v4743
    %v4745 = vsel %vm1963, %v4726, %v4744
    %v4747 = vshrl.u32 %v4543, 16
    %v4749 = vrot.slane %v4747, 2
    %v4750 = vshll.u32 %v4543, 16
    %v4752 = vrot.slane %v4750, 3
    %v4753 = vor.u32 %v4749, %v4752
    %v4754 = vsel %vm1963, %v4735, %v4753
    %v4805 = vunpack.c.l.b16 %v4545
    %v4806 = vunpack.c.l.b16 %v4546
    %v4807 = vunpack.c.l.b16 %v4547
    %v4808 = vunpack.c.l.b16 %v4548
    %v4809 = vunpack.c.l.b16 %v4549
    %v4810 = vunpack.c.l.b16 %v4550
    %v4811 = vunpack.c.l.b16 %v4551
    %v4812 = vunpack.c.l.b16 %v4552
    %v4813 = vunpack.c.l.b16 %v4553
    %v4814 = vunpack.c.l.b16 %v4554
    %v4815 = vunpack.c.l.b16 %v4555
    %v4816 = vunpack.c.l.b16 %v4556
    %v4817 = vunpack.c.l.b16 %v4557
    %v4818 = vunpack.c.l.b16 %v4558
    %v4819 = vunpack.c.l.b16 %v4559
    %v4820 = vunpack.c.l.b16 %v4560
    %v4821 = vunpack.c.l.b16 %v4561
    %v4822 = vunpack.c.l.b16 %v4562
    %v4823 = vunpack.c.l.b16 %v4563
    %v4824 = vunpack.c.l.b16 %v4564
    %v4825 = vunpack.c.l.b16 %v4565
    %v4826 = vunpack.c.l.b16 %v4566
    %v4827 = vunpack.c.l.b16 %v4567
    %v4828 = vunpack.c.l.b16 %v4568
    %v4829 = vunpack.c.l.b16 %v4569
    %v4830 = vunpack.c.l.b16 %v4570
    %v4831 = vunpack.c.l.b16 %v4571
    %v4832 = vunpack.c.l.b16 %v4572
    %v4833 = vunpack.c.l.b16 %v4573
    %v4834 = vunpack.c.l.b16 %v4574
    %v4835 = vunpack.c.l.b16 %v4575
    %v4836 = vunpack.c.l.b16 %v4576
    %v4837 = vpack.c.b16 %v4806, %v4805
    %v4838 = vpack.c.b16 %v4808, %v4807
    %v4839 = vpack.c.b16 %v4810, %v4809
    %v4840 = vpack.c.b16 %v4812, %v4811
    %v4841 = vpack.c.b16 %v4814, %v4813
    %v4842 = vpack.c.b16 %v4816, %v4815
    %v4843 = vpack.c.b16 %v4818, %v4817
    %v4844 = vpack.c.b16 %v4820, %v4819
    %v4845 = vpack.c.b16 %v4822, %v4821
    %v4846 = vpack.c.b16 %v4824, %v4823
    %v4847 = vpack.c.b16 %v4826, %v4825
    %v4848 = vpack.c.b16 %v4828, %v4827
    %v4849 = vpack.c.b16 %v4830, %v4829
    %v4850 = vpack.c.b16 %v4832, %v4831
    %v4851 = vpack.c.b16 %v4834, %v4833
    %v4852 = vpack.c.b16 %v4836, %v4835
    %4869 = vmatpush.bf16.msra.mxu0 %v4844
    %4870 = vmatpush.bf16.msra.mxu0 %v4843
    %4871 = vmatpush.bf16.msra.mxu0 %v4842
    %4872 = vmatpush.bf16.msra.mxu0 %v4841
    %4873 = vmatpush.bf16.msra.mxu0 %v4840
    %4874 = vmatpush.bf16.msra.mxu0 %v4839
    %4875 = vmatpush.bf16.msra.mxu0 %v4838
    %4876 = vmatpush.bf16.msra.mxu0 %v4837
    %4877 = vmatmul.bf16.gmra.mxu0 %v4593
    %v4878 = vpop.f32.mrf.mxu0
    %v4879 = vadd.f32 0.0, %v4878
    %v4880 = vpop.f32.mrf.mxu0
    %v4881 = vadd.f32 0.0, %v4880
    %4882 = vmatmul.bf16.gmra.mxu0 %v4619
    %v4883 = vpop.f32.mrf.mxu0
    %v4884 = vadd.f32 0.0, %v4883
    %v4885 = vpop.f32.mrf.mxu0
    %v4886 = vadd.f32 0.0, %v4885
    %4887 = vmatmul.bf16.gmra.mxu0 %v4637
    %v4888 = vpop.f32.mrf.mxu0
    %v4889 = vadd.f32 0.0, %v4888
    %v4890 = vpop.f32.mrf.mxu0
    %v4891 = vadd.f32 0.0, %v4890
    %4892 = vmatmul.bf16.gmra.mxu0 %v4655
    %v4893 = vpop.f32.mrf.mxu0
    %v4894 = vadd.f32 0.0, %v4893
    %v4895 = vpop.f32.mrf.mxu0
    %v4896 = vadd.f32 0.0, %v4895
    %4897 = vmatmul.bf16.gmra.mxu0 %v4673
    %v4898 = vpop.f32.mrf.mxu0
    %v4899 = vadd.f32 0.0, %v4898
    %v4900 = vpop.f32.mrf.mxu0
    %v4901 = vadd.f32 0.0, %v4900
    %4902 = vmatmul.bf16.gmra.mxu0 %v4691
    %v4903 = vpop.f32.mrf.mxu0
    %v4904 = vadd.f32 0.0, %v4903
    %v4905 = vpop.f32.mrf.mxu0
    %v4906 = vadd.f32 0.0, %v4905
    %4907 = vmatmul.bf16.gmra.mxu0 %v4709
    %v4908 = vpop.f32.mrf.mxu0
    %v4909 = vadd.f32 0.0, %v4908
    %v4910 = vpop.f32.mrf.mxu0
    %v4911 = vadd.f32 0.0, %v4910
    %4912 = vmatmul.bf16.gmra.mxu0 %v4727
    %v4913 = vpop.f32.mrf.mxu0
    %v4914 = vadd.f32 0.0, %v4913
    %v4915 = vpop.f32.mrf.mxu0
    %v4916 = vadd.f32 0.0, %v4915
    %4917 = vmatmul.bf16.gmra.mxu0 %v4745
    %v4918 = vpop.f32.mrf.mxu0
    %v4919 = vadd.f32 0.0, %v4918
    %v4920 = vpop.f32.mrf.mxu0
    %v4921 = vadd.f32 0.0, %v4920
    %4922 = vdwg.mxu0
    %4923 = vmatpush.bf16.msra.mxu0 %v4852
    %4924 = vmatpush.bf16.msra.mxu0 %v4851
    %4925 = vmatpush.bf16.msra.mxu0 %v4850
    %4926 = vmatpush.bf16.msra.mxu0 %v4849
    %4927 = vmatpush.bf16.msra.mxu0 %v4848
    %4928 = vmatpush.bf16.msra.mxu0 %v4847
    %4929 = vmatpush.bf16.msra.mxu0 %v4846
    %4930 = vmatpush.bf16.msra.mxu0 %v4845
    %4931 = vmatmul.bf16.gmra.mxu0 %v4610
    %v4932 = vpop.f32.mrf.mxu0
    %v4933 = vadd.f32 %v4879, %v4932
    %v4934 = vpop.f32.mrf.mxu0
    %v4935 = vadd.f32 %v4881, %v4934
    %4936 = vmatmul.bf16.gmra.mxu0 %v4628
    %v4937 = vpop.f32.mrf.mxu0
    %v4938 = vadd.f32 %v4884, %v4937
    %v4939 = vpop.f32.mrf.mxu0
    %v4940 = vadd.f32 %v4886, %v4939
    %4941 = vmatmul.bf16.gmra.mxu0 %v4646
    %v4942 = vpop.f32.mrf.mxu0
    %v4943 = vadd.f32 %v4889, %v4942
    %v4944 = vpop.f32.mrf.mxu0
    %v4945 = vadd.f32 %v4891, %v4944
    %4946 = vmatmul.bf16.gmra.mxu0 %v4664
    %v4947 = vpop.f32.mrf.mxu0
    %v4948 = vadd.f32 %v4894, %v4947
    %v4949 = vpop.f32.mrf.mxu0
    %v4950 = vadd.f32 %v4896, %v4949
    %4951 = vmatmul.bf16.gmra.mxu0 %v4682
    %v4952 = vpop.f32.mrf.mxu0
    %v4953 = vadd.f32 %v4899, %v4952
    %v4954 = vpop.f32.mrf.mxu0
    %v4955 = vadd.f32 %v4901, %v4954
    %4956 = vmatmul.bf16.gmra.mxu0 %v4700
    %v4957 = vpop.f32.mrf.mxu0
    %v4958 = vadd.f32 %v4904, %v4957
    %v4959 = vpop.f32.mrf.mxu0
    %v4960 = vadd.f32 %v4906, %v4959
    %4961 = vmatmul.bf16.gmra.mxu0 %v4718
    %v4962 = vpop.f32.mrf.mxu0
    %v4963 = vadd.f32 %v4909, %v4962
    %v4964 = vpop.f32.mrf.mxu0
    %v4965 = vadd.f32 %v4911, %v4964
    %4966 = vmatmul.bf16.gmra.mxu0 %v4736
    %v4967 = vpop.f32.mrf.mxu0
    %v4968 = vadd.f32 %v4914, %v4967
    %v4969 = vpop.f32.mrf.mxu0
    %v4970 = vadd.f32 %v4916, %v4969
    %4971 = vmatmul.bf16.gmra.mxu0 %v4754
    %v4972 = vpop.f32.mrf.mxu0
    %v4973 = vadd.f32 %v4919, %v4972
    %v4974 = vpop.f32.mrf.mxu0
    %v4975 = vadd.f32 %v4921, %v4974
    %4976 = vdwg.mxu0
    %v4977 = vld [vmem:[#allocation3] sm:$0xff]
    %v4978 = vld [vmem:[#allocation3 + $0x8] sm:$0xff]
    %v4979 = vld [vmem:[#allocation3 + $0x10] sm:$0xff]
    %v4980 = vld [vmem:[#allocation3 + $0x18] sm:$0xff]
    %v4981 = vld [vmem:[#allocation3 + $0x20] sm:$0xff]
    %v4982 = vld [vmem:[#allocation3 + $0x28] sm:$0xff]
    %v4983 = vld [vmem:[#allocation3 + $0x30] sm:$0xff]
    %v4984 = vld [vmem:[#allocation3 + $0x38] sm:$0xff]
    %v4985 = vld [vmem:[#allocation3 + $0x40] sm:$0xff]
    %v4986 = vld [vmem:[#allocation3 + $0x48] sm:$0xff]
    %v4987 = vld [vmem:[#allocation3 + $0x50] sm:$0xff]
    %v4988 = vld [vmem:[#allocation3 + $0x58] sm:$0xff]
    %v4989 = vld [vmem:[#allocation3 + $0x60] sm:$0xff]
    %v4990 = vld [vmem:[#allocation3 + $0x68] sm:$0xff]
    %v4991 = vld [vmem:[#allocation3 + $0x70] sm:$0xff]
    %v4992 = vld [vmem:[#allocation3 + $0x78] sm:$0xff]
    %v4993 = vld [vmem:[#allocation3 + $0x80] sm:$0xff]
    %v4994 = vld [vmem:[#allocation3 + $0x88] sm:$0xff]
    %v4995 = vadd.f32 %v4977, %v4933
    %v4996 = vadd.f32 %v4978, %v4935
    %v4997 = vadd.f32 %v4979, %v4938
    %v4998 = vadd.f32 %v4980, %v4940
    %v4999 = vadd.f32 %v4981, %v4943
    %v5000 = vadd.f32 %v4982, %v4945
    %v5001 = vadd.f32 %v4983, %v4948
    %v5002 = vadd.f32 %v4984, %v4950
    %v5003 = vadd.f32 %v4985, %v4953
    %v5004 = vadd.f32 %v4986, %v4955
    %v5005 = vadd.f32 %v4987, %v4958
    %v5006 = vadd.f32 %v4988, %v4960
    %v5007 = vadd.f32 %v4989, %v4963
    %v5008 = vadd.f32 %v4990, %v4965
    %v5009 = vadd.f32 %v4991, %v4968
    %v5010 = vadd.f32 %v4992, %v4970
    %v5011 = vadd.f32 %v4993, %v4973
    %v5012 = vadd.f32 %v4994, %v4975
    %5013 = vst [vmem:[#allocation3] sm:$0xff] %v4995
    %5014 = vst [vmem:[#allocation3 + $0x8] sm:$0xff] %v4996
    %5015 = vst [vmem:[#allocation3 + $0x10] sm:$0xff] %v4997
    %5016 = vst [vmem:[#allocation3 + $0x18] sm:$0xff] %v4998
    %5017 = vst [vmem:[#allocation3 + $0x20] sm:$0xff] %v4999
    %5018 = vst [vmem:[#allocation3 + $0x28] sm:$0xff] %v5000
    %5019 = vst [vmem:[#allocation3 + $0x30] sm:$0xff] %v5001
    %5020 = vst [vmem:[#allocation3 + $0x38] sm:$0xff] %v5002
    %5021 = vst [vmem:[#allocation3 + $0x40] sm:$0xff] %v5003
    %5022 = vst [vmem:[#allocation3 + $0x48] sm:$0xff] %v5004
    %5023 = vst [vmem:[#allocation3 + $0x50] sm:$0xff] %v5005
    %5024 = vst [vmem:[#allocation3 + $0x58] sm:$0xff] %v5006
    %5025 = vst [vmem:[#allocation3 + $0x60] sm:$0xff] %v5007
    %5026 = vst [vmem:[#allocation3 + $0x68] sm:$0xff] %v5008
    %5027 = vst [vmem:[#allocation3 + $0x70] sm:$0xff] %v5009
    %5028 = vst [vmem:[#allocation3 + $0x78] sm:$0xff] %v5010
    %5029 = vst [vmem:[#allocation3 + $0x80] sm:$0xff] %v5011
    %5030 = vst [vmem:[#allocation3 + $0x88] sm:$0xff] %v5012
    %v5031 = vld [vmem:[%s7] sm:$0xff]
    %v5032 = vld [vmem:[%s7 + $0x8] sm:$0xff]
    %v5033 = vld [vmem:[%s7 + $0x10] sm:$0xff]
    %v5034 = vld [vmem:[%s7 + $0x18] sm:$0xff]
    %v5035 = vld [vmem:[%s7 + $0x20] sm:$0xff]
    %v5036 = vld [vmem:[%s7 + $0x28] sm:$0xff]
    %v5037 = vld [vmem:[%s7 + $0x30] sm:$0xff]
    %v5038 = vld [vmem:[%s7 + $0x38] sm:$0xff]
    %v5039 = vld [vmem:[%s7 + $0x40] sm:$0xff]
    %v5040 = vld [vmem:[#allocation3] sm:$0xff]
    %v5041 = vld [vmem:[#allocation3 + $0x8] sm:$0xff]
    %v5042 = vld [vmem:[#allocation3 + $0x10] sm:$0xff]
    %v5043 = vld [vmem:[#allocation3 + $0x18] sm:$0xff]
    %v5044 = vld [vmem:[#allocation3 + $0x20] sm:$0xff]
    %v5045 = vld [vmem:[#allocation3 + $0x28] sm:$0xff]
    %v5046 = vld [vmem:[#allocation3 + $0x30] sm:$0xff]
    %v5047 = vld [vmem:[#allocation3 + $0x38] sm:$0xff]
    %v5048 = vld [vmem:[#allocation3 + $0x40] sm:$0xff]
    %v5049 = vmul.f32 %v5040, %v5031
    %v5050 = vmul.f32 %v5041, %v5032
    %v5051 = vmul.f32 %v5042, %v5033
    %v5052 = vmul.f32 %v5043, %v5034
    %v5053 = vmul.f32 %v5044, %v5035
    %v5054 = vmul.f32 %v5045, %v5036
    %v5055 = vmul.f32 %v5046, %v5037
    %v5056 = vmul.f32 %v5047, %v5038
    %v5057 = vmul.f32 %v5048, %v5039
    %v5058 = vadd.f32 %v5049, %v5050
    %v5059 = vadd.f32 %v5058, %v5051
    %v5060 = vadd.f32 %v5059, %v5052
    %v5061 = vadd.f32 %v5060, %v5053
    %v5062 = vadd.f32 %v5061, %v5054
    %v5063 = vadd.f32 %v5062, %v5055
    %v5064 = vadd.f32 %v5063, %v5056
    %v5065 = vadd.f32 %v5064, %v5057
    %v5066 = vrot.slane %v5065, 4
    %v5067 = vadd.f32 %v5065, %v5066
    %v5068 = vrot.slane %v5067, 2
    %v5069 = vadd.f32 %v5067, %v5068
    %v5070 = vrot.slane %v5069, 1
    %v5071 = vadd.f32 %v5069, %v5070
    %v5072 = vadd.f32 %v5071, 0.0
    %v5073 = vmul.f32 %v5049, %v5049
    %v5074 = vmul.f32 %v5050, %v5050
    %v5075 = vmul.f32 %v5051, %v5051
    %v5076 = vmul.f32 %v5052, %v5052
    %v5077 = vmul.f32 %v5053, %v5053
    %v5078 = vmul.f32 %v5054, %v5054
    %v5079 = vmul.f32 %v5055, %v5055
    %v5080 = vmul.f32 %v5056, %v5056
    %v5081 = vmul.f32 %v5057, %v5057
    %v5082 = vadd.f32 %v5073, %v5074
    %v5083 = vadd.f32 %v5082, %v5075
    %v5084 = vadd.f32 %v5083, %v5076
    %v5085 = vadd.f32 %v5084, %v5077
    %v5086 = vadd.f32 %v5085, %v5078
    %v5087 = vadd.f32 %v5086, %v5079
    %v5088 = vadd.f32 %v5087, %v5080
    %v5089 = vadd.f32 %v5088, %v5081
    %v5090 = vrot.slane %v5089, 4
    %v5091 = vadd.f32 %v5089, %v5090
    %v5092 = vrot.slane %v5091, 2
    %v5093 = vadd.f32 %v5091, %v5092
    %v5094 = vrot.slane %v5093, 1
    %v5095 = vadd.f32 %v5093, %v5094
    %v5096 = vadd.f32 %v5095, 0.0
    %v5097 = vld [vmem:[#allocation3 + $0x48] sm:$0xff]
    %v5098 = vld [vmem:[#allocation3 + $0x50] sm:$0xff]
    %v5099 = vld [vmem:[#allocation3 + $0x58] sm:$0xff]
    %v5100 = vld [vmem:[#allocation3 + $0x60] sm:$0xff]
    %v5101 = vld [vmem:[#allocation3 + $0x68] sm:$0xff]
    %v5102 = vld [vmem:[#allocation3 + $0x70] sm:$0xff]
    %v5103 = vld [vmem:[#allocation3 + $0x78] sm:$0xff]
    %v5104 = vld [vmem:[#allocation3 + $0x80] sm:$0xff]
    %v5105 = vld [vmem:[#allocation3 + $0x88] sm:$0xff]
    %v5106 = vmul.f32 %v5097, %v5031
    %v5107 = vmul.f32 %v5098, %v5032
    %v5108 = vmul.f32 %v5099, %v5033
    %v5109 = vmul.f32 %v5100, %v5034
    %v5110 = vmul.f32 %v5101, %v5035
    %v5111 = vmul.f32 %v5102, %v5036
    %v5112 = vmul.f32 %v5103, %v5037
    %v5113 = vmul.f32 %v5104, %v5038
    %v5114 = vmul.f32 %v5105, %v5039
    %v5115 = vadd.f32 %v5106, %v5107
    %v5116 = vadd.f32 %v5115, %v5108
    %v5117 = vadd.f32 %v5116, %v5109
    %v5118 = vadd.f32 %v5117, %v5110
    %v5119 = vadd.f32 %v5118, %v5111
    %v5120 = vadd.f32 %v5119, %v5112
    %v5121 = vadd.f32 %v5120, %v5113
    %v5122 = vadd.f32 %v5121, %v5114
    %v5123 = vrot.slane %v5122, 4
    %v5124 = vadd.f32 %v5122, %v5123
    %v5125 = vrot.slane %v5124, 2
    %v5126 = vadd.f32 %v5124, %v5125
    %v5127 = vrot.slane %v5126, 1
    %v5128 = vadd.f32 %v5126, %v5127
    %v5129 = vadd.f32 %v5072, %v5128
    %v5130 = vmul.f32 %v5106, %v5106
    %v5131 = vmul.f32 %v5107, %v5107
    %v5132 = vmul.f32 %v5108, %v5108
    %v5133 = vmul.f32 %v5109, %v5109
    %v5134 = vmul.f32 %v5110, %v5110
    %v5135 = vmul.f32 %v5111, %v5111
    %v5136 = vmul.f32 %v5112, %v5112
    %v5137 = vmul.f32 %v5113, %v5113
    %v5138 = vmul.f32 %v5114, %v5114
    %v5139 = vadd.f32 %v5130, %v5131
    %v5140 = vadd.f32 %v5139, %v5132
    %v5141 = vadd.f32 %v5140, %v5133
    %v5142 = vadd.f32 %v5141, %v5134
    %v5143 = vadd.f32 %v5142, %v5135
    %v5144 = vadd.f32 %v5143, %v5136
    %v5145 = vadd.f32 %v5144, %v5137
    %v5146 = vadd.f32 %v5145, %v5138
    %v5147 = vrot.slane %v5146, 4
    %v5148 = vadd.f32 %v5146, %v5147
    %v5149 = vrot.slane %v5148, 2
    %v5150 = vadd.f32 %v5148, %v5149
    %v5151 = vrot.slane %v5150, 1
    %v5152 = vadd.f32 %v5150, %v5151
    %v5153 = vadd.f32 %v5096, %v5152
    %v5154 = vsel %vm2868, %v5129, %v5153
    %v5155 = vld [vmem:[%s11] sm:$0xff]
    %v5156 = vld [vmem:[%s11 + $0x8] sm:$0xff]
    %v5157 = vld [vmem:[%s11 + $0x10] sm:$0xff]
    %v5158 = vld [vmem:[%s11 + $0x18] sm:$0xff]
    %v5159 = vld [vmem:[%s11 + $0x20] sm:$0xff]
    %v5160 = vld [vmem:[%s11 + $0x28] sm:$0xff]
    %v5161 = vld [vmem:[%s11 + $0x30] sm:$0xff]
    %v5162 = vld [vmem:[%s11 + $0x38] sm:$0xff]
    %v5163 = vld [vmem:[%s11 + $0x40] sm:$0xff]
    %v5164 = vld [vmem:[%s11 + $0x48] sm:$0xff]
    %v5165 = vld [vmem:[%s11 + $0x50] sm:$0xff]
    %v5166 = vld [vmem:[%s11 + $0x58] sm:$0xff]
    %v5167 = vld [vmem:[%s11 + $0x60] sm:$0xff]
    %v5168 = vld [vmem:[%s11 + $0x68] sm:$0xff]
    %v5169 = vld [vmem:[%s11 + $0x70] sm:$0xff]
    %v5170 = vld [vmem:[%s11 + $0x78] sm:$0xff]
    %5171 = vmatpush.msra.mxu0 %v5170
    %5172 = vmatpush.msra.mxu0 %v5169
    %5173 = vmatpush.msra.mxu0 %v5168
    %5174 = vmatpush.msra.mxu0 %v5167
    %5175 = vmatpush.msra.mxu0 %v5166
    %5176 = vmatpush.msra.mxu0 %v5165
    %5177 = vmatpush.msra.mxu0 %v5164
    %5178 = vmatpush.msra.mxu0 %v5163
    %5179 = vmatpush.msra.mxu0 %v5162
    %5180 = vmatpush.msra.mxu0 %v5161
    %5181 = vmatpush.msra.mxu0 %v5160
    %5182 = vmatpush.msra.mxu0 %v5159
    %5183 = vmatpush.msra.mxu0 %v5158
    %5184 = vmatpush.msra.mxu0 %v5157
    %5185 = vmatpush.msra.mxu0 %v5156
    %5186 = vmatpush.msra.mxu0 %v5155
    %5187 = vmatmul.f32.gmra.mxu0 %v5154
    %v5188 = vpop.f32.mrf.mxu0
    %v5189 = vadd.f32 0.0, %v5188
    %5190 = vdwg.mxu0
    %v5191 = vmul.f32 %v5189, 0.004201681
    %v5192 = vmul.f32 %v5191, %v5191
    %v5194 = vrot.slane %v5192, 7
    %v5196 = vsub.f32 %v5191, %v5194
    %v5197 = vmax.f32 %v5196, 0.0
    %v5198 = vadd.f32 %v5197, 1e-05
    %v5199 = vrsqrt.pop %v5198
    %v5200 = vmul.f32 %v5199, %v5198
    %v5201 = vmul.f32 %v5200, %v5199
    %v5202 = vmul.f32 0.5, %v5201
    %v5203 = vsub.f32 1.5, %v5202
    %v5204 = vmul.f32 %v5199, %v5203
    %vm5205 = vweird.f32 %v5198
    %vm5206 = vweird.f32 %v5199
    %vm5207 = vmor %vm5205, %vm5206
    %v5208 = vsel %vm5207, %v5199, %v5204
    %v5209 = vsel %vm2868, %v5191, %v5208
    %v5210 = vld [vmem:[%s12] sm:$0xff]
    %v5211 = vld [vmem:[%s12 + $0x8] sm:$0xff]
    %v5212 = vld [vmem:[%s12 + $0x10] sm:$0xff]
    %v5213 = vld [vmem:[%s12 + $0x18] sm:$0xff]
    %vm5214 = vcmask 261120
    %v5216 = vsel %vm5214, %v5209, 0
    %5218 = vmatpush.msra.mxu0 0.0
    %5219 = vmatpush.msra.mxu0 0.0
    %5220 = vmatpush.msra.mxu0 0.0
    %5221 = vmatpush.msra.mxu0 0.0
    %5222 = vmatpush.msra.mxu0 0.0
    %5223 = vmatpush.msra.mxu0 0.0
    %5224 = vmatpush.msra.mxu0 0.0
    %5225 = vmatpush.msra.mxu0 0.0
    %5226 = vmatpush.msra.mxu0 0.0
    %5227 = vmatpush.msra.mxu0 0.0
    %5228 = vmatpush.msra.mxu0 0.0
    %5229 = vmatpush.msra.mxu0 0.0
    %5230 = vmatpush.msra.mxu0 %v5213
    %5231 = vmatpush.msra.mxu0 %v5212
    %5232 = vmatpush.msra.mxu0 %v5211
    %5233 = vmatpush.msra.mxu0 %v5210
    %5234 = vmatmul.f32.gmra.mxu0 %v5216
    %v5235 = vpop.f32.mrf.mxu0
    %v5236 = vadd.f32 0.0, %v5235
    %5237 = vdwg.mxu0
    %v5238 = vld [vmem:[%s15] sm:$0x1]
    %v5240 = vperm.slane %v5238, 0
    %v5242 = vmul.f32 %v5236, %v5240
    %v5243 = vld [vmem:[#allocation3] sm:$0xff]
    %v5244 = vld [vmem:[#allocation3 + $0x8] sm:$0xff]
    %v5245 = vld [vmem:[#allocation3 + $0x10] sm:$0xff]
    %v5246 = vld [vmem:[#allocation3 + $0x18] sm:$0xff]
    %v5247 = vld [vmem:[#allocation3 + $0x20] sm:$0xff]
    %v5248 = vld [vmem:[#allocation3 + $0x28] sm:$0xff]
    %v5249 = vld [vmem:[#allocation3 + $0x30] sm:$0xff]
    %v5250 = vld [vmem:[#allocation3 + $0x38] sm:$0xff]
    %v5251 = vld [vmem:[#allocation3 + $0x40] sm:$0xff]
    %v5252 = vperm.slane %v5236, 0
    %v5253 = vsub.f32 %v5243, %v5252
    %v5254 = vsub.f32 %v5244, %v5252
    %v5255 = vsub.f32 %v5245, %v5252
    %v5256 = vsub.f32 %v5246, %v5252
    %v5257 = vsub.f32 %v5247, %v5252
    %v5258 = vsub.f32 %v5248, %v5252
    %v5259 = vsub.f32 %v5249, %v5252
    %v5260 = vsub.f32 %v5250, %v5252
    %v5261 = vsub.f32 %v5251, %v5252
    %v5262 = vsub.f32 %v5097, %v5252
    %v5263 = vsub.f32 %v5098, %v5252
    %v5264 = vsub.f32 %v5099, %v5252
    %v5265 = vsub.f32 %v5100, %v5252
    %v5266 = vsub.f32 %v5101, %v5252
    %v5267 = vsub.f32 %v5102, %v5252
    %v5268 = vsub.f32 %v5103, %v5252
    %v5269 = vsub.f32 %v5104, %v5252
    %v5270 = vsub.f32 %v5105, %v5252
    %v5271 = vperm.slane %v5242, 1
    %v5272 = vmul.f32 %v5253, %v5271
    %v5273 = vmul.f32 %v5254, %v5271
    %v5274 = vmul.f32 %v5255, %v5271
    %v5275 = vmul.f32 %v5256, %v5271
    %v5276 = vmul.f32 %v5257, %v5271
    %v5277 = vmul.f32 %v5258, %v5271
    %v5278 = vmul.f32 %v5259, %v5271
    %v5279 = vmul.f32 %v5260, %v5271
    %v5280 = vmul.f32 %v5261, %v5271
    %v5281 = vmul.f32 %v5262, %v5271
    %v5282 = vmul.f32 %v5263, %v5271
    %v5283 = vmul.f32 %v5264, %v5271
    %v5284 = vmul.f32 %v5265, %v5271
    %v5285 = vmul.f32 %v5266, %v5271
    %v5286 = vmul.f32 %v5267, %v5271
    %v5287 = vmul.f32 %v5268, %v5271
    %v5288 = vmul.f32 %v5269, %v5271
    %v5289 = vmul.f32 %v5270, %v5271
    %v5290 = vld [vmem:[%s16] sm:$0x1]
    %v5292 = vperm.slane %v5290, 0
    %v5294 = vadd.f32 %v5272, %v5292
    %v5295 = vadd.f32 %v5273, %v5292
    %v5296 = vadd.f32 %v5274, %v5292
    %v5297 = vadd.f32 %v5275, %v5292
    %v5298 = vadd.f32 %v5276, %v5292
    %v5299 = vadd.f32 %v5277, %v5292
    %v5300 = vadd.f32 %v5278, %v5292
    %v5301 = vadd.f32 %v5279, %v5292
    %v5302 = vadd.f32 %v5280, %v5292
    %v5303 = vadd.f32 %v5281, %v5292
    %v5304 = vadd.f32 %v5282, %v5292
    %v5305 = vadd.f32 %v5283, %v5292
    %v5306 = vadd.f32 %v5284, %v5292
    %v5307 = vadd.f32 %v5285, %v5292
    %v5308 = vadd.f32 %v5286, %v5292
    %v5309 = vadd.f32 %v5287, %v5292
    %v5310 = vadd.f32 %v5288, %v5292
    %v5311 = vadd.f32 %v5289, %v5292
    %v5312 = vmax.f32 %v5294, 0.0
    %v5313 = vmax.f32 %v5295, 0.0
    %v5314 = vmax.f32 %v5296, 0.0
    %v5315 = vmax.f32 %v5297, 0.0
    %v5316 = vmax.f32 %v5298, 0.0
    %v5317 = vmax.f32 %v5299, 0.0
    %v5318 = vmax.f32 %v5300, 0.0
    %v5319 = vmax.f32 %v5301, 0.0
    %v5320 = vmax.f32 %v5302, 0.0
    %v5321 = vmax.f32 %v5303, 0.0
    %v5322 = vmax.f32 %v5304, 0.0
    %v5323 = vmax.f32 %v5305, 0.0
    %v5324 = vmax.f32 %v5306, 0.0
    %v5325 = vmax.f32 %v5307, 0.0
    %v5326 = vmax.f32 %v5308, 0.0
    %v5327 = vmax.f32 %v5309, 0.0
    %v5328 = vmax.f32 %v5310, 0.0
    %v5329 = vmax.f32 %v5311, 0.0
    %5330 = vst [vmem:[#allocation3] sm:$0xff] %v5312
    %5331 = vst [vmem:[#allocation3 + $0x8] sm:$0xff] %v5313
    %5332 = vst [vmem:[#allocation3 + $0x10] sm:$0xff] %v5314
    %5333 = vst [vmem:[#allocation3 + $0x18] sm:$0xff] %v5315
    %5334 = vst [vmem:[#allocation3 + $0x20] sm:$0xff] %v5316
    %5335 = vst [vmem:[#allocation3 + $0x28] sm:$0xff] %v5317
    %5336 = vst [vmem:[#allocation3 + $0x30] sm:$0xff] %v5318
    %5337 = vst [vmem:[#allocation3 + $0x38] sm:$0xff] %v5319
    %5338 = vst [vmem:[#allocation3 + $0x40] sm:$0xff] %v5320
    %5339 = vst [vmem:[#allocation3 + $0x48] sm:$0xff] %v5321
    %5340 = vst [vmem:[#allocation3 + $0x50] sm:$0xff] %v5322
    %5341 = vst [vmem:[#allocation3 + $0x58] sm:$0xff] %v5323
    %5342 = vst [vmem:[#allocation3 + $0x60] sm:$0xff] %v5324
    %5343 = vst [vmem:[#allocation3 + $0x68] sm:$0xff] %v5325
    %5344 = vst [vmem:[#allocation3 + $0x70] sm:$0xff] %v5326
    %5345 = vst [vmem:[#allocation3 + $0x78] sm:$0xff] %v5327
    %5346 = vst [vmem:[#allocation3 + $0x80] sm:$0xff] %v5328
    %5347 = vst [vmem:[#allocation3 + $0x88] sm:$0xff] %v5329
    %5348 = vst [vmem:[#allocation3 + $0x90] sm:$0xff] 0.0
    %5349 = vst [vmem:[#allocation3 + $0x98] sm:$0xff] 0.0
    %5350 = vst [vmem:[#allocation3 + $0xa0] sm:$0xff] 0.0
    %5351 = vst [vmem:[#allocation3 + $0xa8] sm:$0xff] 0.0
    %v5352 = vld [vmem:[#allocation3] sm:$0xff]
    %v5353 = vld [vmem:[#allocation3 + $0x8] sm:$0xff]
    %v5354 = vld [vmem:[#allocation3 + $0x10] sm:$0xff]
    %v5355 = vld [vmem:[#allocation3 + $0x18] sm:$0xff]
    %v5356 = vld [vmem:[#allocation3 + $0x20] sm:$0xff]
    %v5357 = vld [vmem:[#allocation3 + $0x28] sm:$0xff]
    %v5358 = vld [vmem:[#allocation3 + $0x30] sm:$0xff]
    %v5359 = vld [vmem:[#allocation3 + $0x38] sm:$0xff]
    %v5360 = vld [vmem:[#allocation3 + $0x40] sm:$0xff]
    %v5361 = vld [vmem:[#allocation3 + $0x48] sm:$0xff]
    %v5362 = vld [vmem:[#allocation3 + $0x50] sm:$0xff]
    %v5363 = vld [vmem:[#allocation3 + $0x58] sm:$0xff]
    %v5364 = vld [vmem:[#allocation3 + $0x60] sm:$0xff]
    %v5365 = vld [vmem:[#allocation3 + $0x68] sm:$0xff]
    %v5366 = vld [vmem:[#allocation3 + $0x70] sm:$0xff]
    %v5367 = vld [vmem:[#allocation3 + $0x78] sm:$0xff]
    %v5368 = vld [vmem:[#allocation3 + $0x80] sm:$0xff]
    %v5369 = vld [vmem:[#allocation3 + $0x88] sm:$0xff]
    %v5370 = vpack.c.bf16 %v5353, %v5352
    %v5371 = vpack.c.bf16 %v5355, %v5354
    %v5372 = vpack.c.bf16 %v5357, %v5356
    %v5373 = vpack.c.bf16 %v5359, %v5358
    %v5374 = vpack.c.bf16 %v5361, %v5360
    %v5375 = vpack.c.bf16 %v5363, %v5362
    %v5376 = vpack.c.bf16 %v5365, %v5364
    %v5377 = vpack.c.bf16 %v5367, %v5366
    %v5378 = vpack.c.bf16 %v5369, %v5368
    %v5379 = vld [vmem:[%s3] sm:$0xf]
    %v5380 = vld [vmem:[%s3 + $0x4] sm:$0xf]
    %v5381 = vld [vmem:[%s3 + $0x8] sm:$0xf]
    %v5382 = vld [vmem:[%s3 + $0xc] sm:$0xf]
    %v5383 = vld [vmem:[%s3 + $0x10] sm:$0xf]
    %v5384 = vld [vmem:[%s3 + $0x14] sm:$0xf]
    %v5385 = vld [vmem:[%s3 + $0x18] sm:$0xf]
    %v5386 = vld [vmem:[%s3 + $0x1c] sm:$0xf]
    %v5387 = vld [vmem:[%s3 + $0x20] sm:$0xf]
    %v5388 = vld [vmem:[%s3 + $0x24] sm:$0xf]
    %v5389 = vld [vmem:[%s3 + $0x28] sm:$0xf]
    %v5390 = vld [vmem:[%s3 + $0x2c] sm:$0xf]
    %v5391 = vld [vmem:[%s3 + $0x30] sm:$0xf]
    %v5392 = vld [vmem:[%s3 + $0x34] sm:$0xf]
    %v5393 = vld [vmem:[%s3 + $0x38] sm:$0xf]
    %v5394 = vld [vmem:[%s3 + $0x3c] sm:$0xf]
    %v5411 = vunpack.c.l.b16 %v5379
    %v5412 = vunpack.c.l.b16 %v5380
    %v5413 = vunpack.c.l.b16 %v5381
    %v5414 = vunpack.c.l.b16 %v5382
    %v5415 = vunpack.c.l.b16 %v5383
    %v5416 = vunpack.c.l.b16 %v5384
    %v5417 = vunpack.c.l.b16 %v5385
    %v5418 = vunpack.c.l.b16 %v5386
    %v5419 = vunpack.c.l.b16 %v5387
    %v5420 = vunpack.c.l.b16 %v5388
    %v5421 = vunpack.c.l.b16 %v5389
    %v5422 = vunpack.c.l.b16 %v5390
    %v5423 = vunpack.c.l.b16 %v5391
    %v5424 = vunpack.c.l.b16 %v5392
    %v5425 = vunpack.c.l.b16 %v5393
    %v5426 = vunpack.c.l.b16 %v5394
    %v5427 = vpack.c.b16 %v5412, %v5411
    %v5428 = vpack.c.b16 %v5414, %v5413
    %v5429 = vpack.c.b16 %v5416, %v5415
    %v5430 = vpack.c.b16 %v5418, %v5417
    %v5431 = vpack.c.b16 %v5420, %v5419
    %v5432 = vpack.c.b16 %v5422, %v5421
    %v5433 = vpack.c.b16 %v5424, %v5423
    %v5434 = vpack.c.b16 %v5426, %v5425
    %5443 = vmatpush.bf16.msra.mxu0 %v5434
    %5444 = vmatpush.bf16.msra.mxu0 %v5433
    %5445 = vmatpush.bf16.msra.mxu0 %v5432
    %5446 = vmatpush.bf16.msra.mxu0 %v5431
    %5447 = vmatpush.bf16.msra.mxu0 %v5430
    %5448 = vmatpush.bf16.msra.mxu0 %v5429
    %5449 = vmatpush.bf16.msra.mxu0 %v5428
    %5450 = vmatpush.bf16.msra.mxu0 %v5427
    %5451 = vmatmul.bf16.gmra.mxu0 %v5370
    %v5452 = vpop.f32.mrf.mxu0
    %v5453 = vadd.f32 0.0, %v5452
    %v5454 = vpop.f32.mrf.mxu0
    %v5455 = vadd.f32 0.0, %v5454
    %5456 = vmatmul.bf16.gmra.mxu0 %v5371
    %v5457 = vpop.f32.mrf.mxu0
    %v5458 = vadd.f32 0.0, %v5457
    %v5459 = vpop.f32.mrf.mxu0
    %v5460 = vadd.f32 0.0, %v5459
    %5461 = vmatmul.bf16.gmra.mxu0 %v5372
    %v5462 = vpop.f32.mrf.mxu0
    %v5463 = vadd.f32 0.0, %v5462
    %v5464 = vpop.f32.mrf.mxu0
    %v5465 = vadd.f32 0.0, %v5464
    %5466 = vmatmul.bf16.gmra.mxu0 %v5373
    %v5467 = vpop.f32.mrf.mxu0
    %v5468 = vadd.f32 0.0, %v5467
    %v5469 = vpop.f32.mrf.mxu0
    %v5470 = vadd.f32 0.0, %v5469
    %5471 = vmatmul.bf16.gmra.mxu0 %v5374
    %v5472 = vpop.f32.mrf.mxu0
    %v5473 = vadd.f32 0.0, %v5472
    %v5474 = vpop.f32.mrf.mxu0
    %v5475 = vadd.f32 0.0, %v5474
    %5476 = vmatmul.bf16.gmra.mxu0 %v5375
    %v5477 = vpop.f32.mrf.mxu0
    %v5478 = vadd.f32 0.0, %v5477
    %v5479 = vpop.f32.mrf.mxu0
    %v5480 = vadd.f32 0.0, %v5479
    %5481 = vmatmul.bf16.gmra.mxu0 %v5376
    %v5482 = vpop.f32.mrf.mxu0
    %v5483 = vadd.f32 0.0, %v5482
    %v5484 = vpop.f32.mrf.mxu0
    %v5485 = vadd.f32 0.0, %v5484
    %5486 = vmatmul.bf16.gmra.mxu0 %v5377
    %v5487 = vpop.f32.mrf.mxu0
    %v5488 = vadd.f32 0.0, %v5487
    %v5489 = vpop.f32.mrf.mxu0
    %v5490 = vadd.f32 0.0, %v5489
    %5491 = vmatmul.bf16.gmra.mxu0 %v5378
    %v5492 = vpop.f32.mrf.mxu0
    %v5493 = vadd.f32 0.0, %v5492
    %v5494 = vpop.f32.mrf.mxu0
    %v5495 = vadd.f32 0.0, %v5494
    %5496 = vdwg.mxu0
    %5497 = vst [vmem:[#allocation4] sm:$0xff] %v5453
    %5498 = vst [vmem:[#allocation4 + $0x8] sm:$0xff] %v5455
    %5499 = vst [vmem:[#allocation4 + $0x10] sm:$0xff] %v5458
    %5500 = vst [vmem:[#allocation4 + $0x18] sm:$0xff] %v5460
    %5501 = vst [vmem:[#allocation4 + $0x20] sm:$0xff] %v5463
    %5502 = vst [vmem:[#allocation4 + $0x28] sm:$0xff] %v5465
    %5503 = vst [vmem:[#allocation4 + $0x30] sm:$0xff] %v5468
    %5504 = vst [vmem:[#allocation4 + $0x38] sm:$0xff] %v5470
    %5505 = vst [vmem:[#allocation4 + $0x40] sm:$0xff] %v5473
    %5506 = vst [vmem:[#allocation4 + $0x48] sm:$0xff] %v5475
    %5507 = vst [vmem:[#allocation4 + $0x50] sm:$0xff] %v5478
    %5508 = vst [vmem:[#allocation4 + $0x58] sm:$0xff] %v5480
    %5509 = vst [vmem:[#allocation4 + $0x60] sm:$0xff] %v5483
    %5510 = vst [vmem:[#allocation4 + $0x68] sm:$0xff] %v5485
    %5511 = vst [vmem:[#allocation4 + $0x70] sm:$0xff] %v5488
    %5512 = vst [vmem:[#allocation4 + $0x78] sm:$0xff] %v5490
    %5513 = vst [vmem:[#allocation4 + $0x80] sm:$0xff] %v5493
    %5514 = vst [vmem:[#allocation4 + $0x88] sm:$0xff] %v5495
    %v5515 = vld [vmem:[#allocation3 + $0x1] sm:$0xff]
    %v5516 = vld [vmem:[#allocation3 + $0x9] sm:$0xff]
    %v5517 = vld [vmem:[#allocation3 + $0x11] sm:$0xff]
    %v5518 = vld [vmem:[#allocation3 + $0x19] sm:$0xff]
    %v5519 = vld [vmem:[#allocation3 + $0x21] sm:$0xff]
    %v5520 = vld [vmem:[#allocation3 + $0x29] sm:$0xff]
    %v5521 = vld [vmem:[#allocation3 + $0x31] sm:$0xff]
    %v5522 = vld [vmem:[#allocation3 + $0x39] sm:$0xff]
    %v5523 = vld [vmem:[#allocation3 + $0x41] sm:$0xff]
    %v5524 = vld [vmem:[#allocation3 + $0x49] sm:$0xff]
    %v5525 = vld [vmem:[#allocation3 + $0x51] sm:$0xff]
    %v5526 = vld [vmem:[#allocation3 + $0x59] sm:$0xff]
    %v5527 = vld [vmem:[#allocation3 + $0x61] sm:$0xff]
    %v5528 = vld [vmem:[#allocation3 + $0x69] sm:$0xff]
    %v5529 = vld [vmem:[#allocation3 + $0x71] sm:$0xff]
    %v5530 = vld [vmem:[#allocation3 + $0x79] sm:$0xff]
    %v5531 = vld [vmem:[#allocation3 + $0x81] sm:$0xff]
    %v5532 = vld [vmem:[#allocation3 + $0x89] sm:$0xff]
    %v5533 = vpack.c.bf16 %v5516, %v5515
    %v5534 = vpack.c.bf16 %v5518, %v5517
    %v5535 = vpack.c.bf16 %v5520, %v5519
    %v5536 = vpack.c.bf16 %v5522, %v5521
    %v5537 = vpack.c.bf16 %v5524, %v5523
    %v5538 = vpack.c.bf16 %v5526, %v5525
    %v5539 = vpack.c.bf16 %v5528, %v5527
    %v5540 = vpack.c.bf16 %v5530, %v5529
    %v5541 = vpack.c.bf16 %v5532, %v5531
    %s5542 = scalar_lea.vmem %s3, 64
    %v5543 = vld [vmem:[%s5542] sm:$0xf]
    %v5544 = vld [vmem:[%s5542 + $0x4] sm:$0xf]
    %v5545 = vld [vmem:[%s5542 + $0x8] sm:$0xf]
    %v5546 = vld [vmem:[%s5542 + $0xc] sm:$0xf]
    %v5547 = vld [vmem:[%s5542 + $0x10] sm:$0xf]
    %v5548 = vld [vmem:[%s5542 + $0x14] sm:$0xf]
    %v5549 = vld [vmem:[%s5542 + $0x18] sm:$0xf]
    %v5550 = vld [vmem:[%s5542 + $0x1c] sm:$0xf]
    %v5551 = vld [vmem:[%s5542 + $0x20] sm:$0xf]
    %v5552 = vld [vmem:[%s5542 + $0x24] sm:$0xf]
    %v5553 = vld [vmem:[%s5542 + $0x28] sm:$0xf]
    %v5554 = vld [vmem:[%s5542 + $0x2c] sm:$0xf]
    %v5555 = vld [vmem:[%s5542 + $0x30] sm:$0xf]
    %v5556 = vld [vmem:[%s5542 + $0x34] sm:$0xf]
    %v5557 = vld [vmem:[%s5542 + $0x38] sm:$0xf]
    %v5558 = vld [vmem:[%s5542 + $0x3c] sm:$0xf]
    %v5575 = vunpack.c.l.b16 %v5543
    %v5576 = vunpack.c.l.b16 %v5544
    %v5577 = vunpack.c.l.b16 %v5545
    %v5578 = vunpack.c.l.b16 %v5546
    %v5579 = vunpack.c.l.b16 %v5547
    %v5580 = vunpack.c.l.b16 %v5548
    %v5581 = vunpack.c.l.b16 %v5549
    %v5582 = vunpack.c.l.b16 %v5550
    %v5583 = vunpack.c.l.b16 %v5551
    %v5584 = vunpack.c.l.b16 %v5552
    %v5585 = vunpack.c.l.b16 %v5553
    %v5586 = vunpack.c.l.b16 %v5554
    %v5587 = vunpack.c.l.b16 %v5555
    %v5588 = vunpack.c.l.b16 %v5556
    %v5589 = vunpack.c.l.b16 %v5557
    %v5590 = vunpack.c.l.b16 %v5558
    %v5591 = vpack.c.b16 %v5576, %v5575
    %v5592 = vpack.c.b16 %v5578, %v5577
    %v5593 = vpack.c.b16 %v5580, %v5579
    %v5594 = vpack.c.b16 %v5582, %v5581
    %v5595 = vpack.c.b16 %v5584, %v5583
    %v5596 = vpack.c.b16 %v5586, %v5585
    %v5597 = vpack.c.b16 %v5588, %v5587
    %v5598 = vpack.c.b16 %v5590, %v5589
    %5607 = vmatpush.bf16.msra.mxu0 %v5598
    %5608 = vmatpush.bf16.msra.mxu0 %v5597
    %5609 = vmatpush.bf16.msra.mxu0 %v5596
    %5610 = vmatpush.bf16.msra.mxu0 %v5595
    %5611 = vmatpush.bf16.msra.mxu0 %v5594
    %5612 = vmatpush.bf16.msra.mxu0 %v5593
    %5613 = vmatpush.bf16.msra.mxu0 %v5592
    %5614 = vmatpush.bf16.msra.mxu0 %v5591
    %5615 = vmatmul.bf16.gmra.mxu0 %v5533
    %v5616 = vpop.f32.mrf.mxu0
    %v5617 = vadd.f32 0.0, %v5616
    %v5618 = vpop.f32.mrf.mxu0
    %v5619 = vadd.f32 0.0, %v5618
    %5620 = vmatmul.bf16.gmra.mxu0 %v5534
    %v5621 = vpop.f32.mrf.mxu0
    %v5622 = vadd.f32 0.0, %v5621
    %v5623 = vpop.f32.mrf.mxu0
    %v5624 = vadd.f32 0.0, %v5623
    %5625 = vmatmul.bf16.gmra.mxu0 %v5535
    %v5626 = vpop.f32.mrf.mxu0
    %v5627 = vadd.f32 0.0, %v5626
    %v5628 = vpop.f32.mrf.mxu0
    %v5629 = vadd.f32 0.0, %v5628
    %5630 = vmatmul.bf16.gmra.mxu0 %v5536
    %v5631 = vpop.f32.mrf.mxu0
    %v5632 = vadd.f32 0.0, %v5631
    %v5633 = vpop.f32.mrf.mxu0
    %v5634 = vadd.f32 0.0, %v5633
    %5635 = vmatmul.bf16.gmra.mxu0 %v5537
    %v5636 = vpop.f32.mrf.mxu0
    %v5637 = vadd.f32 0.0, %v5636
    %v5638 = vpop.f32.mrf.mxu0
    %v5639 = vadd.f32 0.0, %v5638
    %5640 = vmatmul.bf16.gmra.mxu0 %v5538
    %v5641 = vpop.f32.mrf.mxu0
    %v5642 = vadd.f32 0.0, %v5641
    %v5643 = vpop.f32.mrf.mxu0
    %v5644 = vadd.f32 0.0, %v5643
    %5645 = vmatmul.bf16.gmra.mxu0 %v5539
    %v5646 = vpop.f32.mrf.mxu0
    %v5647 = vadd.f32 0.0, %v5646
    %v5648 = vpop.f32.mrf.mxu0
    %v5649 = vadd.f32 0.0, %v5648
    %5650 = vmatmul.bf16.gmra.mxu0 %v5540
    %v5651 = vpop.f32.mrf.mxu0
    %v5652 = vadd.f32 0.0, %v5651
    %v5653 = vpop.f32.mrf.mxu0
    %v5654 = vadd.f32 0.0, %v5653
    %5655 = vmatmul.bf16.gmra.mxu0 %v5541
    %v5656 = vpop.f32.mrf.mxu0
    %v5657 = vadd.f32 0.0, %v5656
    %v5658 = vpop.f32.mrf.mxu0
    %v5659 = vadd.f32 0.0, %v5658
    %5660 = vdwg.mxu0
    %v5661 = vld [vmem:[#allocation4] sm:$0xff]
    %v5662 = vld [vmem:[#allocation4 + $0x8] sm:$0xff]
    %v5663 = vld [vmem:[#allocation4 + $0x10] sm:$0xff]
    %v5664 = vld [vmem:[#allocation4 + $0x18] sm:$0xff]
    %v5665 = vld [vmem:[#allocation4 + $0x20] sm:$0xff]
    %v5666 = vld [vmem:[#allocation4 + $0x28] sm:$0xff]
    %v5667 = vld [vmem:[#allocation4 + $0x30] sm:$0xff]
    %v5668 = vld [vmem:[#allocation4 + $0x38] sm:$0xff]
    %v5669 = vld [vmem:[#allocation4 + $0x40] sm:$0xff]
    %v5670 = vld [vmem:[#allocation4 + $0x48] sm:$0xff]
    %v5671 = vld [vmem:[#allocation4 + $0x50] sm:$0xff]
    %v5672 = vld [vmem:[#allocation4 + $0x58] sm:$0xff]
    %v5673 = vld [vmem:[#allocation4 + $0x60] sm:$0xff]
    %v5674 = vld [vmem:[#allocation4 + $0x68] sm:$0xff]
    %v5675 = vld [vmem:[#allocation4 + $0x70] sm:$0xff]
    %v5676 = vld [vmem:[#allocation4 + $0x78] sm:$0xff]
    %v5677 = vld [vmem:[#allocation4 + $0x80] sm:$0xff]
    %v5678 = vld [vmem:[#allocation4 + $0x88] sm:$0xff]
    %v5679 = vadd.f32 %v5661, %v5617
    %v5680 = vadd.f32 %v5662, %v5619
    %v5681 = vadd.f32 %v5663, %v5622
    %v5682 = vadd.f32 %v5664, %v5624
    %v5683 = vadd.f32 %v5665, %v5627
    %v5684 = vadd.f32 %v5666, %v5629
    %v5685 = vadd.f32 %v5667, %v5632
    %v5686 = vadd.f32 %v5668, %v5634
    %v5687 = vadd.f32 %v5669, %v5637
    %v5688 = vadd.f32 %v5670, %v5639
    %v5689 = vadd.f32 %v5671, %v5642
    %v5690 = vadd.f32 %v5672, %v5644
    %v5691 = vadd.f32 %v5673, %v5647
    %v5692 = vadd.f32 %v5674, %v5649
    %v5693 = vadd.f32 %v5675, %v5652
    %v5694 = vadd.f32 %v5676, %v5654
    %v5695 = vadd.f32 %v5677, %v5657
    %v5696 = vadd.f32 %v5678, %v5659
    %5697 = vst [vmem:[#allocation4] sm:$0xff] %v5679
    %5698 = vst [vmem:[#allocation4 + $0x8] sm:$0xff] %v5680
    %5699 = vst [vmem:[#allocation4 + $0x10] sm:$0xff] %v5681
    %5700 = vst [vmem:[#allocation4 + $0x18] sm:$0xff] %v5682
    %5701 = vst [vmem:[#allocation4 + $0x20] sm:$0xff] %v5683
    %5702 = vst [vmem:[#allocation4 + $0x28] sm:$0xff] %v5684
    %5703 = vst [vmem:[#allocation4 + $0x30] sm:$0xff] %v5685
    %5704 = vst [vmem:[#allocation4 + $0x38] sm:$0xff] %v5686
    %5705 = vst [vmem:[#allocation4 + $0x40] sm:$0xff] %v5687
    %5706 = vst [vmem:[#allocation4 + $0x48] sm:$0xff] %v5688
    %5707 = vst [vmem:[#allocation4 + $0x50] sm:$0xff] %v5689
    %5708 = vst [vmem:[#allocation4 + $0x58] sm:$0xff] %v5690
    %5709 = vst [vmem:[#allocation4 + $0x60] sm:$0xff] %v5691
    %5710 = vst [vmem:[#allocation4 + $0x68] sm:$0xff] %v5692
    %5711 = vst [vmem:[#allocation4 + $0x70] sm:$0xff] %v5693
    %5712 = vst [vmem:[#allocation4 + $0x78] sm:$0xff] %v5694
    %5713 = vst [vmem:[#allocation4 + $0x80] sm:$0xff] %v5695
    %5714 = vst [vmem:[#allocation4 + $0x88] sm:$0xff] %v5696
    %v5715 = vld [vmem:[#allocation3 + $0x2] sm:$0xff]
    %v5716 = vld [vmem:[#allocation3 + $0xa] sm:$0xff]
    %v5717 = vld [vmem:[#allocation3 + $0x12] sm:$0xff]
    %v5718 = vld [vmem:[#allocation3 + $0x1a] sm:$0xff]
    %v5719 = vld [vmem:[#allocation3 + $0x22] sm:$0xff]
    %v5720 = vld [vmem:[#allocation3 + $0x2a] sm:$0xff]
    %v5721 = vld [vmem:[#allocation3 + $0x32] sm:$0xff]
    %v5722 = vld [vmem:[#allocation3 + $0x3a] sm:$0xff]
    %v5723 = vld [vmem:[#allocation3 + $0x42] sm:$0xff]
    %v5724 = vld [vmem:[#allocation3 + $0x4a] sm:$0xff]
    %v5725 = vld [vmem:[#allocation3 + $0x52] sm:$0xff]
    %v5726 = vld [vmem:[#allocation3 + $0x5a] sm:$0xff]
    %v5727 = vld [vmem:[#allocation3 + $0x62] sm:$0xff]
    %v5728 = vld [vmem:[#allocation3 + $0x6a] sm:$0xff]
    %v5729 = vld [vmem:[#allocation3 + $0x72] sm:$0xff]
    %v5730 = vld [vmem:[#allocation3 + $0x7a] sm:$0xff]
    %v5731 = vld [vmem:[#allocation3 + $0x82] sm:$0xff]
    %v5732 = vld [vmem:[#allocation3 + $0x8a] sm:$0xff]
    %v5733 = vpack.c.bf16 %v5716, %v5715
    %v5734 = vpack.c.bf16 %v5718, %v5717
    %v5735 = vpack.c.bf16 %v5720, %v5719
    %v5736 = vpack.c.bf16 %v5722, %v5721
    %v5737 = vpack.c.bf16 %v5724, %v5723
    %v5738 = vpack.c.bf16 %v5726, %v5725
    %v5739 = vpack.c.bf16 %v5728, %v5727
    %v5740 = vpack.c.bf16 %v5730, %v5729
    %v5741 = vpack.c.bf16 %v5732, %v5731
    %s5742 = scalar_lea.vmem %s3, 128
    %v5743 = vld [vmem:[%s5742] sm:$0xf]
    %v5744 = vld [vmem:[%s5742 + $0x4] sm:$0xf]
    %v5745 = vld [vmem:[%s5742 + $0x8] sm:$0xf]
    %v5746 = vld [vmem:[%s5742 + $0xc] sm:$0xf]
    %v5747 = vld [vmem:[%s5742 + $0x10] sm:$0xf]
    %v5748 = vld [vmem:[%s5742 + $0x14] sm:$0xf]
    %v5749 = vld [vmem:[%s5742 + $0x18] sm:$0xf]
    %v5750 = vld [vmem:[%s5742 + $0x1c] sm:$0xf]
    %v5751 = vld [vmem:[%s5742 + $0x20] sm:$0xf]
    %v5752 = vld [vmem:[%s5742 + $0x24] sm:$0xf]
    %v5753 = vld [vmem:[%s5742 + $0x28] sm:$0xf]
    %v5754 = vld [vmem:[%s5742 + $0x2c] sm:$0xf]
    %v5755 = vld [vmem:[%s5742 + $0x30] sm:$0xf]
    %v5756 = vld [vmem:[%s5742 + $0x34] sm:$0xf]
    %v5757 = vld [vmem:[%s5742 + $0x38] sm:$0xf]
    %v5758 = vld [vmem:[%s5742 + $0x3c] sm:$0xf]
    %v5775 = vunpack.c.l.b16 %v5743
    %v5776 = vunpack.c.l.b16 %v5744
    %v5777 = vunpack.c.l.b16 %v5745
    %v5778 = vunpack.c.l.b16 %v5746
    %v5779 = vunpack.c.l.b16 %v5747
    %v5780 = vunpack.c.l.b16 %v5748
    %v5781 = vunpack.c.l.b16 %v5749
    %v5782 = vunpack.c.l.b16 %v5750
    %v5783 = vunpack.c.l.b16 %v5751
    %v5784 = vunpack.c.l.b16 %v5752
    %v5785 = vunpack.c.l.b16 %v5753
    %v5786 = vunpack.c.l.b16 %v5754
    %v5787 = vunpack.c.l.b16 %v5755
    %v5788 = vunpack.c.l.b16 %v5756
    %v5789 = vunpack.c.l.b16 %v5757
    %v5790 = vunpack.c.l.b16 %v5758
    %v5791 = vpack.c.b16 %v5776, %v5775
    %v5792 = vpack.c.b16 %v5778, %v5777
    %v5793 = vpack.c.b16 %v5780, %v5779
    %v5794 = vpack.c.b16 %v5782, %v5781
    %v5795 = vpack.c.b16 %v5784, %v5783
    %v5796 = vpack.c.b16 %v5786, %v5785
    %v5797 = vpack.c.b16 %v5788, %v5787
    %v5798 = vpack.c.b16 %v5790, %v5789
    %5807 = vmatpush.bf16.msra.mxu0 %v5798
    %5808 = vmatpush.bf16.msra.mxu0 %v5797
    %5809 = vmatpush.bf16.msra.mxu0 %v5796
    %5810 = vmatpush.bf16.msra.mxu0 %v5795
    %5811 = vmatpush.bf16.msra.mxu0 %v5794
    %5812 = vmatpush.bf16.msra.mxu0 %v5793
    %5813 = vmatpush.bf16.msra.mxu0 %v5792
    %5814 = vmatpush.bf16.msra.mxu0 %v5791
    %5815 = vmatmul.bf16.gmra.mxu0 %v5733
    %v5816 = vpop.f32.mrf.mxu0
    %v5817 = vadd.f32 0.0, %v5816
    %v5818 = vpop.f32.mrf.mxu0
    %v5819 = vadd.f32 0.0, %v5818
    %5820 = vmatmul.bf16.gmra.mxu0 %v5734
    %v5821 = vpop.f32.mrf.mxu0
    %v5822 = vadd.f32 0.0, %v5821
    %v5823 = vpop.f32.mrf.mxu0
    %v5824 = vadd.f32 0.0, %v5823
    %5825 = vmatmul.bf16.gmra.mxu0 %v5735
    %v5826 = vpop.f32.mrf.mxu0
    %v5827 = vadd.f32 0.0, %v5826
    %v5828 = vpop.f32.mrf.mxu0
    %v5829 = vadd.f32 0.0, %v5828
    %5830 = vmatmul.bf16.gmra.mxu0 %v5736
    %v5831 = vpop.f32.mrf.mxu0
    %v5832 = vadd.f32 0.0, %v5831
    %v5833 = vpop.f32.mrf.mxu0
    %v5834 = vadd.f32 0.0, %v5833
    %5835 = vmatmul.bf16.gmra.mxu0 %v5737
    %v5836 = vpop.f32.mrf.mxu0
    %v5837 = vadd.f32 0.0, %v5836
    %v5838 = vpop.f32.mrf.mxu0
    %v5839 = vadd.f32 0.0, %v5838
    %5840 = vmatmul.bf16.gmra.mxu0 %v5738
    %v5841 = vpop.f32.mrf.mxu0
    %v5842 = vadd.f32 0.0, %v5841
    %v5843 = vpop.f32.mrf.mxu0
    %v5844 = vadd.f32 0.0, %v5843
    %5845 = vmatmul.bf16.gmra.mxu0 %v5739
    %v5846 = vpop.f32.mrf.mxu0
    %v5847 = vadd.f32 0.0, %v5846
    %v5848 = vpop.f32.mrf.mxu0
    %v5849 = vadd.f32 0.0, %v5848
    %5850 = vmatmul.bf16.gmra.mxu0 %v5740
    %v5851 = vpop.f32.mrf.mxu0
    %v5852 = vadd.f32 0.0, %v5851
    %v5853 = vpop.f32.mrf.mxu0
    %v5854 = vadd.f32 0.0, %v5853
    %5855 = vmatmul.bf16.gmra.mxu0 %v5741
    %v5856 = vpop.f32.mrf.mxu0
    %v5857 = vadd.f32 0.0, %v5856
    %v5858 = vpop.f32.mrf.mxu0
    %v5859 = vadd.f32 0.0, %v5858
    %5860 = vdwg.mxu0
    %v5861 = vld [vmem:[#allocation4] sm:$0xff]
    %v5862 = vld [vmem:[#allocation4 + $0x8] sm:$0xff]
    %v5863 = vld [vmem:[#allocation4 + $0x10] sm:$0xff]
    %v5864 = vld [vmem:[#allocation4 + $0x18] sm:$0xff]
    %v5865 = vld [vmem:[#allocation4 + $0x20] sm:$0xff]
    %v5866 = vld [vmem:[#allocation4 + $0x28] sm:$0xff]
    %v5867 = vld [vmem:[#allocation4 + $0x30] sm:$0xff]
    %v5868 = vld [vmem:[#allocation4 + $0x38] sm:$0xff]
    %v5869 = vld [vmem:[#allocation4 + $0x40] sm:$0xff]
    %v5870 = vld [vmem:[#allocation4 + $0x48] sm:$0xff]
    %v5871 = vld [vmem:[#allocation4 + $0x50] sm:$0xff]
    %v5872 = vld [vmem:[#allocation4 + $0x58] sm:$0xff]
    %v5873 = vld [vmem:[#allocation4 + $0x60] sm:$0xff]
    %v5874 = vld [vmem:[#allocation4 + $0x68] sm:$0xff]
    %v5875 = vld [vmem:[#allocation4 + $0x70] sm:$0xff]
    %v5876 = vld [vmem:[#allocation4 + $0x78] sm:$0xff]
    %v5877 = vld [vmem:[#allocation4 + $0x80] sm:$0xff]
    %v5878 = vld [vmem:[#allocation4 + $0x88] sm:$0xff]
    %v5879 = vadd.f32 %v5861, %v5817
    %v5880 = vadd.f32 %v5862, %v5819
    %v5881 = vadd.f32 %v5863, %v5822
    %v5882 = vadd.f32 %v5864, %v5824
    %v5883 = vadd.f32 %v5865, %v5827
    %v5884 = vadd.f32 %v5866, %v5829
    %v5885 = vadd.f32 %v5867, %v5832
    %v5886 = vadd.f32 %v5868, %v5834
    %v5887 = vadd.f32 %v5869, %v5837
    %v5888 = vadd.f32 %v5870, %v5839
    %v5889 = vadd.f32 %v5871, %v5842
    %v5890 = vadd.f32 %v5872, %v5844
    %v5891 = vadd.f32 %v5873, %v5847
    %v5892 = vadd.f32 %v5874, %v5849
    %v5893 = vadd.f32 %v5875, %v5852
    %v5894 = vadd.f32 %v5876, %v5854
    %v5895 = vadd.f32 %v5877, %v5857
    %v5896 = vadd.f32 %v5878, %v5859
    %5897 = vst [vmem:[#allocation4] sm:$0xff] %v5879
    %5898 = vst [vmem:[#allocation4 + $0x8] sm:$0xff] %v5880
    %5899 = vst [vmem:[#allocation4 + $0x10] sm:$0xff] %v5881
    %5900 = vst [vmem:[#allocation4 + $0x18] sm:$0xff] %v5882
    %5901 = vst [vmem:[#allocation4 + $0x20] sm:$0xff] %v5883
    %5902 = vst [vmem:[#allocation4 + $0x28] sm:$0xff] %v5884
    %5903 = vst [vmem:[#allocation4 + $0x30] sm:$0xff] %v5885
    %5904 = vst [vmem:[#allocation4 + $0x38] sm:$0xff] %v5886
    %5905 = vst [vmem:[#allocation4 + $0x40] sm:$0xff] %v5887
    %5906 = vst [vmem:[#allocation4 + $0x48] sm:$0xff] %v5888
    %5907 = vst [vmem:[#allocation4 + $0x50] sm:$0xff] %v5889
    %5908 = vst [vmem:[#allocation4 + $0x58] sm:$0xff] %v5890
    %5909 = vst [vmem:[#allocation4 + $0x60] sm:$0xff] %v5891
    %5910 = vst [vmem:[#allocation4 + $0x68] sm:$0xff] %v5892
    %5911 = vst [vmem:[#allocation4 + $0x70] sm:$0xff] %v5893
    %5912 = vst [vmem:[#allocation4 + $0x78] sm:$0xff] %v5894
    %5913 = vst [vmem:[#allocation4 + $0x80] sm:$0xff] %v5895
    %5914 = vst [vmem:[#allocation4 + $0x88] sm:$0xff] %v5896
    %v5915 = vld [vmem:[#allocation3 + $0xc] sm:$0xff]
    %v5916 = vld [vmem:[#allocation3 + $0x14] sm:$0xff]
    %v5917 = vld [vmem:[#allocation3 + $0x1c] sm:$0xff]
    %v5918 = vld [vmem:[#allocation3 + $0x24] sm:$0xff]
    %v5919 = vld [vmem:[#allocation3 + $0x2c] sm:$0xff]
    %v5920 = vld [vmem:[#allocation3 + $0x34] sm:$0xff]
    %v5921 = vld [vmem:[#allocation3 + $0x3c] sm:$0xff]
    %v5922 = vld [vmem:[#allocation3 + $0x44] sm:$0xff]
    %v5923 = vld [vmem:[#allocation3 + $0x4c] sm:$0xff]
    %v5924 = vld [vmem:[#allocation3 + $0x54] sm:$0xff]
    %v5925 = vld [vmem:[#allocation3 + $0x5c] sm:$0xff]
    %v5926 = vld [vmem:[#allocation3 + $0x64] sm:$0xff]
    %v5927 = vld [vmem:[#allocation3 + $0x6c] sm:$0xff]
    %v5928 = vld [vmem:[#allocation3 + $0x74] sm:$0xff]
    %v5929 = vld [vmem:[#allocation3 + $0x7c] sm:$0xff]
    %v5930 = vld [vmem:[#allocation3 + $0x84] sm:$0xff]
    %v5931 = vld [vmem:[#allocation3 + $0x8c] sm:$0xff]
    %v5932 = vld [vmem:[#allocation3 + $0x94] sm:$0xff]
    %v5933 = vpack.c.bf16 %v5916, %v5915
    %v5934 = vpack.c.bf16 %v5918, %v5917
    %v5935 = vpack.c.bf16 %v5920, %v5919
    %v5936 = vpack.c.bf16 %v5922, %v5921
    %v5937 = vpack.c.bf16 %v5924, %v5923
    %v5938 = vpack.c.bf16 %v5926, %v5925
    %v5939 = vpack.c.bf16 %v5928, %v5927
    %v5940 = vpack.c.bf16 %v5930, %v5929
    %v5941 = vpack.c.bf16 %v5932, %v5931
    %s5942 = scalar_lea.vmem %s3, 192
    %v5943 = vld [vmem:[%s5942] sm:$0xf]
    %v5944 = vld [vmem:[%s5942 + $0x4] sm:$0xf]
    %v5945 = vld [vmem:[%s5942 + $0x8] sm:$0xf]
    %v5946 = vld [vmem:[%s5942 + $0xc] sm:$0xf]
    %v5947 = vld [vmem:[%s5942 + $0x10] sm:$0xf]
    %v5948 = vld [vmem:[%s5942 + $0x14] sm:$0xf]
    %v5949 = vld [vmem:[%s5942 + $0x18] sm:$0xf]
    %v5950 = vld [vmem:[%s5942 + $0x1c] sm:$0xf]
    %v5951 = vld [vmem:[%s5942 + $0x20] sm:$0xf]
    %v5952 = vld [vmem:[%s5942 + $0x24] sm:$0xf]
    %v5953 = vld [vmem:[%s5942 + $0x28] sm:$0xf]
    %v5954 = vld [vmem:[%s5942 + $0x2c] sm:$0xf]
    %v5955 = vld [vmem:[%s5942 + $0x30] sm:$0xf]
    %v5956 = vld [vmem:[%s5942 + $0x34] sm:$0xf]
    %v5957 = vld [vmem:[%s5942 + $0x38] sm:$0xf]
    %v5958 = vld [vmem:[%s5942 + $0x3c] sm:$0xf]
    %v5975 = vunpack.c.l.b16 %v5943
    %v5976 = vunpack.c.l.b16 %v5944
    %v5977 = vunpack.c.l.b16 %v5945
    %v5978 = vunpack.c.l.b16 %v5946
    %v5979 = vunpack.c.l.b16 %v5947
    %v5980 = vunpack.c.l.b16 %v5948
    %v5981 = vunpack.c.l.b16 %v5949
    %v5982 = vunpack.c.l.b16 %v5950
    %v5983 = vunpack.c.l.b16 %v5951
    %v5984 = vunpack.c.l.b16 %v5952
    %v5985 = vunpack.c.l.b16 %v5953
    %v5986 = vunpack.c.l.b16 %v5954
    %v5987 = vunpack.c.l.b16 %v5955
    %v5988 = vunpack.c.l.b16 %v5956
    %v5989 = vunpack.c.l.b16 %v5957
    %v5990 = vunpack.c.l.b16 %v5958
    %v5991 = vpack.c.b16 %v5976, %v5975
    %v5992 = vpack.c.b16 %v5978, %v5977
    %v5993 = vpack.c.b16 %v5980, %v5979
    %v5994 = vpack.c.b16 %v5982, %v5981
    %v5995 = vpack.c.b16 %v5984, %v5983
    %v5996 = vpack.c.b16 %v5986, %v5985
    %v5997 = vpack.c.b16 %v5988, %v5987
    %v5998 = vpack.c.b16 %v5990, %v5989
    %6007 = vmatpush.bf16.msra.mxu0 %v5998
    %6008 = vmatpush.bf16.msra.mxu0 %v5997
    %6009 = vmatpush.bf16.msra.mxu0 %v5996
    %6010 = vmatpush.bf16.msra.mxu0 %v5995
    %6011 = vmatpush.bf16.msra.mxu0 %v5994
    %6012 = vmatpush.bf16.msra.mxu0 %v5993
    %6013 = vmatpush.bf16.msra.mxu0 %v5992
    %6014 = vmatpush.bf16.msra.mxu0 %v5991
    %6015 = vmatmul.bf16.gmra.mxu0 %v5933
    %v6016 = vpop.f32.mrf.mxu0
    %v6017 = vadd.f32 0.0, %v6016
    %v6018 = vpop.f32.mrf.mxu0
    %v6019 = vadd.f32 0.0, %v6018
    %6020 = vmatmul.bf16.gmra.mxu0 %v5934
    %v6021 = vpop.f32.mrf.mxu0
    %v6022 = vadd.f32 0.0, %v6021
    %v6023 = vpop.f32.mrf.mxu0
    %v6024 = vadd.f32 0.0, %v6023
    %6025 = vmatmul.bf16.gmra.mxu0 %v5935
    %v6026 = vpop.f32.mrf.mxu0
    %v6027 = vadd.f32 0.0, %v6026
    %v6028 = vpop.f32.mrf.mxu0
    %v6029 = vadd.f32 0.0, %v6028
    %6030 = vmatmul.bf16.gmra.mxu0 %v5936
    %v6031 = vpop.f32.mrf.mxu0
    %v6032 = vadd.f32 0.0, %v6031
    %v6033 = vpop.f32.mrf.mxu0
    %v6034 = vadd.f32 0.0, %v6033
    %6035 = vmatmul.bf16.gmra.mxu0 %v5937
    %v6036 = vpop.f32.mrf.mxu0
    %v6037 = vadd.f32 0.0, %v6036
    %v6038 = vpop.f32.mrf.mxu0
    %v6039 = vadd.f32 0.0, %v6038
    %6040 = vmatmul.bf16.gmra.mxu0 %v5938
    %v6041 = vpop.f32.mrf.mxu0
    %v6042 = vadd.f32 0.0, %v6041
    %v6043 = vpop.f32.mrf.mxu0
    %v6044 = vadd.f32 0.0, %v6043
    %6045 = vmatmul.bf16.gmra.mxu0 %v5939
    %v6046 = vpop.f32.mrf.mxu0
    %v6047 = vadd.f32 0.0, %v6046
    %v6048 = vpop.f32.mrf.mxu0
    %v6049 = vadd.f32 0.0, %v6048
    %6050 = vmatmul.bf16.gmra.mxu0 %v5940
    %v6051 = vpop.f32.mrf.mxu0
    %v6052 = vadd.f32 0.0, %v6051
    %v6053 = vpop.f32.mrf.mxu0
    %v6054 = vadd.f32 0.0, %v6053
    %6055 = vmatmul.bf16.gmra.mxu0 %v5941
    %v6056 = vpop.f32.mrf.mxu0
    %v6057 = vadd.f32 0.0, %v6056
    %v6058 = vpop.f32.mrf.mxu0
    %v6059 = vadd.f32 0.0, %v6058
    %6060 = vdwg.mxu0
    %v6061 = vld [vmem:[#allocation4] sm:$0xff]
    %v6062 = vld [vmem:[#allocation4 + $0x8] sm:$0xff]
    %v6063 = vld [vmem:[#allocation4 + $0x10] sm:$0xff]
    %v6064 = vld [vmem:[#allocation4 + $0x18] sm:$0xff]
    %v6065 = vld [vmem:[#allocation4 + $0x20] sm:$0xff]
    %v6066 = vld [vmem:[#allocation4 + $0x28] sm:$0xff]
    %v6067 = vld [vmem:[#allocation4 + $0x30] sm:$0xff]
    %v6068 = vld [vmem:[#allocation4 + $0x38] sm:$0xff]
    %v6069 = vld [vmem:[#allocation4 + $0x40] sm:$0xff]
    %v6070 = vld [vmem:[#allocation4 + $0x48] sm:$0xff]
    %v6071 = vld [vmem:[#allocation4 + $0x50] sm:$0xff]
    %v6072 = vld [vmem:[#allocation4 + $0x58] sm:$0xff]
    %v6073 = vld [vmem:[#allocation4 + $0x60] sm:$0xff]
    %v6074 = vld [vmem:[#allocation4 + $0x68] sm:$0xff]
    %v6075 = vld [vmem:[#allocation4 + $0x70] sm:$0xff]
    %v6076 = vld [vmem:[#allocation4 + $0x78] sm:$0xff]
    %v6077 = vld [vmem:[#allocation4 + $0x80] sm:$0xff]
    %v6078 = vld [vmem:[#allocation4 + $0x88] sm:$0xff]
    %v6079 = vadd.f32 %v6061, %v6017
    %v6080 = vadd.f32 %v6062, %v6019
    %v6081 = vadd.f32 %v6063, %v6022
    %v6082 = vadd.f32 %v6064, %v6024
    %v6083 = vadd.f32 %v6065, %v6027
    %v6084 = vadd.f32 %v6066, %v6029
    %v6085 = vadd.f32 %v6067, %v6032
    %v6086 = vadd.f32 %v6068, %v6034
    %v6087 = vadd.f32 %v6069, %v6037
    %v6088 = vadd.f32 %v6070, %v6039
    %v6089 = vadd.f32 %v6071, %v6042
    %v6090 = vadd.f32 %v6072, %v6044
    %v6091 = vadd.f32 %v6073, %v6047
    %v6092 = vadd.f32 %v6074, %v6049
    %v6093 = vadd.f32 %v6075, %v6052
    %v6094 = vadd.f32 %v6076, %v6054
    %v6095 = vadd.f32 %v6077, %v6057
    %v6096 = vadd.f32 %v6078, %v6059
    %6097 = vst [vmem:[#allocation4] sm:$0xff] %v6079
    %6098 = vst [vmem:[#allocation4 + $0x8] sm:$0xff] %v6080
    %6099 = vst [vmem:[#allocation4 + $0x10] sm:$0xff] %v6081
    %6100 = vst [vmem:[#allocation4 + $0x18] sm:$0xff] %v6082
    %6101 = vst [vmem:[#allocation4 + $0x20] sm:$0xff] %v6083
    %6102 = vst [vmem:[#allocation4 + $0x28] sm:$0xff] %v6084
    %6103 = vst [vmem:[#allocation4 + $0x30] sm:$0xff] %v6085
    %6104 = vst [vmem:[#allocation4 + $0x38] sm:$0xff] %v6086
    %6105 = vst [vmem:[#allocation4 + $0x40] sm:$0xff] %v6087
    %6106 = vst [vmem:[#allocation4 + $0x48] sm:$0xff] %v6088
    %6107 = vst [vmem:[#allocation4 + $0x50] sm:$0xff] %v6089
    %6108 = vst [vmem:[#allocation4 + $0x58] sm:$0xff] %v6090
    %6109 = vst [vmem:[#allocation4 + $0x60] sm:$0xff] %v6091
    %6110 = vst [vmem:[#allocation4 + $0x68] sm:$0xff] %v6092
    %6111 = vst [vmem:[#allocation4 + $0x70] sm:$0xff] %v6093
    %6112 = vst [vmem:[#allocation4 + $0x78] sm:$0xff] %v6094
    %6113 = vst [vmem:[#allocation4 + $0x80] sm:$0xff] %v6095
    %6114 = vst [vmem:[#allocation4 + $0x88] sm:$0xff] %v6096
    %v6115 = vld [vmem:[#allocation3 + $0xd] sm:$0xff]
    %v6116 = vld [vmem:[#allocation3 + $0x15] sm:$0xff]
    %v6117 = vld [vmem:[#allocation3 + $0x1d] sm:$0xff]
    %v6118 = vld [vmem:[#allocation3 + $0x25] sm:$0xff]
    %v6119 = vld [vmem:[#allocation3 + $0x2d] sm:$0xff]
    %v6120 = vld [vmem:[#allocation3 + $0x35] sm:$0xff]
    %v6121 = vld [vmem:[#allocation3 + $0x3d] sm:$0xff]
    %v6122 = vld [vmem:[#allocation3 + $0x45] sm:$0xff]
    %v6123 = vld [vmem:[#allocation3 + $0x4d] sm:$0xff]
    %v6124 = vld [vmem:[#allocation3 + $0x55] sm:$0xff]
    %v6125 = vld [vmem:[#allocation3 + $0x5d] sm:$0xff]
    %v6126 = vld [vmem:[#allocation3 + $0x65] sm:$0xff]
    %v6127 = vld [vmem:[#allocation3 + $0x6d] sm:$0xff]
    %v6128 = vld [vmem:[#allocation3 + $0x75] sm:$0xff]
    %v6129 = vld [vmem:[#allocation3 + $0x7d] sm:$0xff]
    %v6130 = vld [vmem:[#allocation3 + $0x85] sm:$0xff]
    %v6131 = vld [vmem:[#allocation3 + $0x8d] sm:$0xff]
    %v6132 = vld [vmem:[#allocation3 + $0x95] sm:$0xff]
    %v6133 = vpack.c.bf16 %v6116, %v6115
    %v6134 = vpack.c.bf16 %v6118, %v6117
    %v6135 = vpack.c.bf16 %v6120, %v6119
    %v6136 = vpack.c.bf16 %v6122, %v6121
    %v6137 = vpack.c.bf16 %v6124, %v6123
    %v6138 = vpack.c.bf16 %v6126, %v6125
    %v6139 = vpack.c.bf16 %v6128, %v6127
    %v6140 = vpack.c.bf16 %v6130, %v6129
    %v6141 = vpack.c.bf16 %v6132, %v6131
    %s6142 = scalar_lea.vmem %s3, 256
    %v6143 = vld [vmem:[%s6142] sm:$0xf]
    %v6144 = vld [vmem:[%s6142 + $0x4] sm:$0xf]
    %v6145 = vld [vmem:[%s6142 + $0x8] sm:$0xf]
    %v6146 = vld [vmem:[%s6142 + $0xc] sm:$0xf]
    %v6147 = vld [vmem:[%s6142 + $0x10] sm:$0xf]
    %v6148 = vld [vmem:[%s6142 + $0x14] sm:$0xf]
    %v6149 = vld [vmem:[%s6142 + $0x18] sm:$0xf]
    %v6150 = vld [vmem:[%s6142 + $0x1c] sm:$0xf]
    %v6151 = vld [vmem:[%s6142 + $0x20] sm:$0xf]
    %v6152 = vld [vmem:[%s6142 + $0x24] sm:$0xf]
    %v6153 = vld [vmem:[%s6142 + $0x28] sm:$0xf]
    %v6154 = vld [vmem:[%s6142 + $0x2c] sm:$0xf]
    %v6155 = vld [vmem:[%s6142 + $0x30] sm:$0xf]
    %v6156 = vld [vmem:[%s6142 + $0x34] sm:$0xf]
    %v6157 = vld [vmem:[%s6142 + $0x38] sm:$0xf]
    %v6158 = vld [vmem:[%s6142 + $0x3c] sm:$0xf]
    %v6175 = vunpack.c.l.b16 %v6143
    %v6176 = vunpack.c.l.b16 %v6144
    %v6177 = vunpack.c.l.b16 %v6145
    %v6178 = vunpack.c.l.b16 %v6146
    %v6179 = vunpack.c.l.b16 %v6147
    %v6180 = vunpack.c.l.b16 %v6148
    %v6181 = vunpack.c.l.b16 %v6149
    %v6182 = vunpack.c.l.b16 %v6150
    %v6183 = vunpack.c.l.b16 %v6151
    %v6184 = vunpack.c.l.b16 %v6152
    %v6185 = vunpack.c.l.b16 %v6153
    %v6186 = vunpack.c.l.b16 %v6154
    %v6187 = vunpack.c.l.b16 %v6155
    %v6188 = vunpack.c.l.b16 %v6156
    %v6189 = vunpack.c.l.b16 %v6157
    %v6190 = vunpack.c.l.b16 %v6158
    %v6191 = vpack.c.b16 %v6176, %v6175
    %v6192 = vpack.c.b16 %v6178, %v6177
    %v6193 = vpack.c.b16 %v6180, %v6179
    %v6194 = vpack.c.b16 %v6182, %v6181
    %v6195 = vpack.c.b16 %v6184, %v6183
    %v6196 = vpack.c.b16 %v6186, %v6185
    %v6197 = vpack.c.b16 %v6188, %v6187
    %v6198 = vpack.c.b16 %v6190, %v6189
    %6207 = vmatpush.bf16.msra.mxu0 %v6198
    %6208 = vmatpush.bf16.msra.mxu0 %v6197
    %6209 = vmatpush.bf16.msra.mxu0 %v6196
    %6210 = vmatpush.bf16.msra.mxu0 %v6195
    %6211 = vmatpush.bf16.msra.mxu0 %v6194
    %6212 = vmatpush.bf16.msra.mxu0 %v6193
    %6213 = vmatpush.bf16.msra.mxu0 %v6192
    %6214 = vmatpush.bf16.msra.mxu0 %v6191
    %6215 = vmatmul.bf16.gmra.mxu0 %v6133
    %v6216 = vpop.f32.mrf.mxu0
    %v6217 = vadd.f32 0.0, %v6216
    %v6218 = vpop.f32.mrf.mxu0
    %v6219 = vadd.f32 0.0, %v6218
    %6220 = vmatmul.bf16.gmra.mxu0 %v6134
    %v6221 = vpop.f32.mrf.mxu0
    %v6222 = vadd.f32 0.0, %v6221
    %v6223 = vpop.f32.mrf.mxu0
    %v6224 = vadd.f32 0.0, %v6223
    %6225 = vmatmul.bf16.gmra.mxu0 %v6135
    %v6226 = vpop.f32.mrf.mxu0
    %v6227 = vadd.f32 0.0, %v6226
    %v6228 = vpop.f32.mrf.mxu0
    %v6229 = vadd.f32 0.0, %v6228
    %6230 = vmatmul.bf16.gmra.mxu0 %v6136
    %v6231 = vpop.f32.mrf.mxu0
    %v6232 = vadd.f32 0.0, %v6231
    %v6233 = vpop.f32.mrf.mxu0
    %v6234 = vadd.f32 0.0, %v6233
    %6235 = vmatmul.bf16.gmra.mxu0 %v6137
    %v6236 = vpop.f32.mrf.mxu0
    %v6237 = vadd.f32 0.0, %v6236
    %v6238 = vpop.f32.mrf.mxu0
    %v6239 = vadd.f32 0.0, %v6238
    %6240 = vmatmul.bf16.gmra.mxu0 %v6138
    %v6241 = vpop.f32.mrf.mxu0
    %v6242 = vadd.f32 0.0, %v6241
    %v6243 = vpop.f32.mrf.mxu0
    %v6244 = vadd.f32 0.0, %v6243
    %6245 = vmatmul.bf16.gmra.mxu0 %v6139
    %v6246 = vpop.f32.mrf.mxu0
    %v6247 = vadd.f32 0.0, %v6246
    %v6248 = vpop.f32.mrf.mxu0
    %v6249 = vadd.f32 0.0, %v6248
    %6250 = vmatmul.bf16.gmra.mxu0 %v6140
    %v6251 = vpop.f32.mrf.mxu0
    %v6252 = vadd.f32 0.0, %v6251
    %v6253 = vpop.f32.mrf.mxu0
    %v6254 = vadd.f32 0.0, %v6253
    %6255 = vmatmul.bf16.gmra.mxu0 %v6141
    %v6256 = vpop.f32.mrf.mxu0
    %v6257 = vadd.f32 0.0, %v6256
    %v6258 = vpop.f32.mrf.mxu0
    %v6259 = vadd.f32 0.0, %v6258
    %6260 = vdwg.mxu0
    %v6261 = vld [vmem:[#allocation4] sm:$0xff]
    %v6262 = vld [vmem:[#allocation4 + $0x8] sm:$0xff]
    %v6263 = vld [vmem:[#allocation4 + $0x10] sm:$0xff]
    %v6264 = vld [vmem:[#allocation4 + $0x18] sm:$0xff]
    %v6265 = vld [vmem:[#allocation4 + $0x20] sm:$0xff]
    %v6266 = vld [vmem:[#allocation4 + $0x28] sm:$0xff]
    %v6267 = vld [vmem:[#allocation4 + $0x30] sm:$0xff]
    %v6268 = vld [vmem:[#allocation4 + $0x38] sm:$0xff]
    %v6269 = vld [vmem:[#allocation4 + $0x40] sm:$0xff]
    %v6270 = vld [vmem:[#allocation4 + $0x48] sm:$0xff]
    %v6271 = vld [vmem:[#allocation4 + $0x50] sm:$0xff]
    %v6272 = vld [vmem:[#allocation4 + $0x58] sm:$0xff]
    %v6273 = vld [vmem:[#allocation4 + $0x60] sm:$0xff]
    %v6274 = vld [vmem:[#allocation4 + $0x68] sm:$0xff]
    %v6275 = vld [vmem:[#allocation4 + $0x70] sm:$0xff]
    %v6276 = vld [vmem:[#allocation4 + $0x78] sm:$0xff]
    %v6277 = vld [vmem:[#allocation4 + $0x80] sm:$0xff]
    %v6278 = vld [vmem:[#allocation4 + $0x88] sm:$0xff]
    %v6279 = vadd.f32 %v6261, %v6217
    %v6280 = vadd.f32 %v6262, %v6219
    %v6281 = vadd.f32 %v6263, %v6222
    %v6282 = vadd.f32 %v6264, %v6224
    %v6283 = vadd.f32 %v6265, %v6227
    %v6284 = vadd.f32 %v6266, %v6229
    %v6285 = vadd.f32 %v6267, %v6232
    %v6286 = vadd.f32 %v6268, %v6234
    %v6287 = vadd.f32 %v6269, %v6237
    %v6288 = vadd.f32 %v6270, %v6239
    %v6289 = vadd.f32 %v6271, %v6242
    %v6290 = vadd.f32 %v6272, %v6244
    %v6291 = vadd.f32 %v6273, %v6247
    %v6292 = vadd.f32 %v6274, %v6249
    %v6293 = vadd.f32 %v6275, %v6252
    %v6294 = vadd.f32 %v6276, %v6254
    %v6295 = vadd.f32 %v6277, %v6257
    %v6296 = vadd.f32 %v6278, %v6259
    %6297 = vst [vmem:[#allocation4] sm:$0xff] %v6279
    %6298 = vst [vmem:[#allocation4 + $0x8] sm:$0xff] %v6280
    %6299 = vst [vmem:[#allocation4 + $0x10] sm:$0xff] %v6281
    %6300 = vst [vmem:[#allocation4 + $0x18] sm:$0xff] %v6282
    %6301 = vst [vmem:[#allocation4 + $0x20] sm:$0xff] %v6283
    %6302 = vst [vmem:[#allocation4 + $0x28] sm:$0xff] %v6284
    %6303 = vst [vmem:[#allocation4 + $0x30] sm:$0xff] %v6285
    %6304 = vst [vmem:[#allocation4 + $0x38] sm:$0xff] %v6286
    %6305 = vst [vmem:[#allocation4 + $0x40] sm:$0xff] %v6287
    %6306 = vst [vmem:[#allocation4 + $0x48] sm:$0xff] %v6288
    %6307 = vst [vmem:[#allocation4 + $0x50] sm:$0xff] %v6289
    %6308 = vst [vmem:[#allocation4 + $0x58] sm:$0xff] %v6290
    %6309 = vst [vmem:[#allocation4 + $0x60] sm:$0xff] %v6291
    %6310 = vst [vmem:[#allocation4 + $0x68] sm:$0xff] %v6292
    %6311 = vst [vmem:[#allocation4 + $0x70] sm:$0xff] %v6293
    %6312 = vst [vmem:[#allocation4 + $0x78] sm:$0xff] %v6294
    %6313 = vst [vmem:[#allocation4 + $0x80] sm:$0xff] %v6295
    %6314 = vst [vmem:[#allocation4 + $0x88] sm:$0xff] %v6296
    %v6315 = vld [vmem:[#allocation3 + $0xe] sm:$0xff]
    %v6316 = vld [vmem:[#allocation3 + $0x16] sm:$0xff]
    %v6317 = vld [vmem:[#allocation3 + $0x1e] sm:$0xff]
    %v6318 = vld [vmem:[#allocation3 + $0x26] sm:$0xff]
    %v6319 = vld [vmem:[#allocation3 + $0x2e] sm:$0xff]
    %v6320 = vld [vmem:[#allocation3 + $0x36] sm:$0xff]
    %v6321 = vld [vmem:[#allocation3 + $0x3e] sm:$0xff]
    %v6322 = vld [vmem:[#allocation3 + $0x46] sm:$0xff]
    %v6323 = vld [vmem:[#allocation3 + $0x4e] sm:$0xff]
    %v6324 = vld [vmem:[#allocation3 + $0x56] sm:$0xff]
    %v6325 = vld [vmem:[#allocation3 + $0x5e] sm:$0xff]
    %v6326 = vld [vmem:[#allocation3 + $0x66] sm:$0xff]
    %v6327 = vld [vmem:[#allocation3 + $0x6e] sm:$0xff]
    %v6328 = vld [vmem:[#allocation3 + $0x76] sm:$0xff]
    %v6329 = vld [vmem:[#allocation3 + $0x7e] sm:$0xff]
    %v6330 = vld [vmem:[#allocation3 + $0x86] sm:$0xff]
    %v6331 = vld [vmem:[#allocation3 + $0x8e] sm:$0xff]
    %v6332 = vld [vmem:[#allocation3 + $0x96] sm:$0xff]
    %v6333 = vpack.c.bf16 %v6316, %v6315
    %v6334 = vpack.c.bf16 %v6318, %v6317
    %v6335 = vpack.c.bf16 %v6320, %v6319
    %v6336 = vpack.c.bf16 %v6322, %v6321
    %v6337 = vpack.c.bf16 %v6324, %v6323
    %v6338 = vpack.c.bf16 %v6326, %v6325
    %v6339 = vpack.c.bf16 %v6328, %v6327
    %v6340 = vpack.c.bf16 %v6330, %v6329
    %v6341 = vpack.c.bf16 %v6332, %v6331
    %s6342 = scalar_lea.vmem %s3, 320
    %v6343 = vld [vmem:[%s6342] sm:$0xf]
    %v6344 = vld [vmem:[%s6342 + $0x4] sm:$0xf]
    %v6345 = vld [vmem:[%s6342 + $0x8] sm:$0xf]
    %v6346 = vld [vmem:[%s6342 + $0xc] sm:$0xf]
    %v6347 = vld [vmem:[%s6342 + $0x10] sm:$0xf]
    %v6348 = vld [vmem:[%s6342 + $0x14] sm:$0xf]
    %v6349 = vld [vmem:[%s6342 + $0x18] sm:$0xf]
    %v6350 = vld [vmem:[%s6342 + $0x1c] sm:$0xf]
    %v6351 = vld [vmem:[%s6342 + $0x20] sm:$0xf]
    %v6352 = vld [vmem:[%s6342 + $0x24] sm:$0xf]
    %v6353 = vld [vmem:[%s6342 + $0x28] sm:$0xf]
    %v6354 = vld [vmem:[%s6342 + $0x2c] sm:$0xf]
    %v6355 = vld [vmem:[%s6342 + $0x30] sm:$0xf]
    %v6356 = vld [vmem:[%s6342 + $0x34] sm:$0xf]
    %v6357 = vld [vmem:[%s6342 + $0x38] sm:$0xf]
    %v6358 = vld [vmem:[%s6342 + $0x3c] sm:$0xf]
    %v6375 = vunpack.c.l.b16 %v6343
    %v6376 = vunpack.c.l.b16 %v6344
    %v6377 = vunpack.c.l.b16 %v6345
    %v6378 = vunpack.c.l.b16 %v6346
    %v6379 = vunpack.c.l.b16 %v6347
    %v6380 = vunpack.c.l.b16 %v6348
    %v6381 = vunpack.c.l.b16 %v6349
    %v6382 = vunpack.c.l.b16 %v6350
    %v6383 = vunpack.c.l.b16 %v6351
    %v6384 = vunpack.c.l.b16 %v6352
    %v6385 = vunpack.c.l.b16 %v6353
    %v6386 = vunpack.c.l.b16 %v6354
    %v6387 = vunpack.c.l.b16 %v6355
    %v6388 = vunpack.c.l.b16 %v6356
    %v6389 = vunpack.c.l.b16 %v6357
    %v6390 = vunpack.c.l.b16 %v6358
    %v6391 = vpack.c.b16 %v6376, %v6375
    %v6392 = vpack.c.b16 %v6378, %v6377
    %v6393 = vpack.c.b16 %v6380, %v6379
    %v6394 = vpack.c.b16 %v6382, %v6381
    %v6395 = vpack.c.b16 %v6384, %v6383
    %v6396 = vpack.c.b16 %v6386, %v6385
    %v6397 = vpack.c.b16 %v6388, %v6387
    %v6398 = vpack.c.b16 %v6390, %v6389
    %6407 = vmatpush.bf16.msra.mxu0 %v6398
    %6408 = vmatpush.bf16.msra.mxu0 %v6397
    %6409 = vmatpush.bf16.msra.mxu0 %v6396
    %6410 = vmatpush.bf16.msra.mxu0 %v6395
    %6411 = vmatpush.bf16.msra.mxu0 %v6394
    %6412 = vmatpush.bf16.msra.mxu0 %v6393
    %6413 = vmatpush.bf16.msra.mxu0 %v6392
    %6414 = vmatpush.bf16.msra.mxu0 %v6391
    %6415 = vmatmul.bf16.gmra.mxu0 %v6333
    %v6416 = vpop.f32.mrf.mxu0
    %v6417 = vadd.f32 0.0, %v6416
    %v6418 = vpop.f32.mrf.mxu0
    %v6419 = vadd.f32 0.0, %v6418
    %6420 = vmatmul.bf16.gmra.mxu0 %v6334
    %v6421 = vpop.f32.mrf.mxu0
    %v6422 = vadd.f32 0.0, %v6421
    %v6423 = vpop.f32.mrf.mxu0
    %v6424 = vadd.f32 0.0, %v6423
    %6425 = vmatmul.bf16.gmra.mxu0 %v6335
    %v6426 = vpop.f32.mrf.mxu0
    %v6427 = vadd.f32 0.0, %v6426
    %v6428 = vpop.f32.mrf.mxu0
    %v6429 = vadd.f32 0.0, %v6428
    %6430 = vmatmul.bf16.gmra.mxu0 %v6336
    %v6431 = vpop.f32.mrf.mxu0
    %v6432 = vadd.f32 0.0, %v6431
    %v6433 = vpop.f32.mrf.mxu0
    %v6434 = vadd.f32 0.0, %v6433
    %6435 = vmatmul.bf16.gmra.mxu0 %v6337
    %v6436 = vpop.f32.mrf.mxu0
    %v6437 = vadd.f32 0.0, %v6436
    %v6438 = vpop.f32.mrf.mxu0
    %v6439 = vadd.f32 0.0, %v6438
    %6440 = vmatmul.bf16.gmra.mxu0 %v6338
    %v6441 = vpop.f32.mrf.mxu0
    %v6442 = vadd.f32 0.0, %v6441
    %v6443 = vpop.f32.mrf.mxu0
    %v6444 = vadd.f32 0.0, %v6443
    %6445 = vmatmul.bf16.gmra.mxu0 %v6339
    %v6446 = vpop.f32.mrf.mxu0
    %v6447 = vadd.f32 0.0, %v6446
    %v6448 = vpop.f32.mrf.mxu0
    %v6449 = vadd.f32 0.0, %v6448
    %6450 = vmatmul.bf16.gmra.mxu0 %v6340
    %v6451 = vpop.f32.mrf.mxu0
    %v6452 = vadd.f32 0.0, %v6451
    %v6453 = vpop.f32.mrf.mxu0
    %v6454 = vadd.f32 0.0, %v6453
    %6455 = vmatmul.bf16.gmra.mxu0 %v6341
    %v6456 = vpop.f32.mrf.mxu0
    %v6457 = vadd.f32 0.0, %v6456
    %v6458 = vpop.f32.mrf.mxu0
    %v6459 = vadd.f32 0.0, %v6458
    %6460 = vdwg.mxu0
    %v6461 = vld [vmem:[#allocation4] sm:$0xff]
    %v6462 = vld [vmem:[#allocation4 + $0x8] sm:$0xff]
    %v6463 = vld [vmem:[#allocation4 + $0x10] sm:$0xff]
    %v6464 = vld [vmem:[#allocation4 + $0x18] sm:$0xff]
    %v6465 = vld [vmem:[#allocation4 + $0x20] sm:$0xff]
    %v6466 = vld [vmem:[#allocation4 + $0x28] sm:$0xff]
    %v6467 = vld [vmem:[#allocation4 + $0x30] sm:$0xff]
    %v6468 = vld [vmem:[#allocation4 + $0x38] sm:$0xff]
    %v6469 = vld [vmem:[#allocation4 + $0x40] sm:$0xff]
    %v6470 = vld [vmem:[#allocation4 + $0x48] sm:$0xff]
    %v6471 = vld [vmem:[#allocation4 + $0x50] sm:$0xff]
    %v6472 = vld [vmem:[#allocation4 + $0x58] sm:$0xff]
    %v6473 = vld [vmem:[#allocation4 + $0x60] sm:$0xff]
    %v6474 = vld [vmem:[#allocation4 + $0x68] sm:$0xff]
    %v6475 = vld [vmem:[#allocation4 + $0x70] sm:$0xff]
    %v6476 = vld [vmem:[#allocation4 + $0x78] sm:$0xff]
    %v6477 = vld [vmem:[#allocation4 + $0x80] sm:$0xff]
    %v6478 = vld [vmem:[#allocation4 + $0x88] sm:$0xff]
    %v6479 = vadd.f32 %v6461, %v6417
    %v6480 = vadd.f32 %v6462, %v6419
    %v6481 = vadd.f32 %v6463, %v6422
    %v6482 = vadd.f32 %v6464, %v6424
    %v6483 = vadd.f32 %v6465, %v6427
    %v6484 = vadd.f32 %v6466, %v6429
    %v6485 = vadd.f32 %v6467, %v6432
    %v6486 = vadd.f32 %v6468, %v6434
    %v6487 = vadd.f32 %v6469, %v6437
    %v6488 = vadd.f32 %v6470, %v6439
    %v6489 = vadd.f32 %v6471, %v6442
    %v6490 = vadd.f32 %v6472, %v6444
    %v6491 = vadd.f32 %v6473, %v6447
    %v6492 = vadd.f32 %v6474, %v6449
    %v6493 = vadd.f32 %v6475, %v6452
    %v6494 = vadd.f32 %v6476, %v6454
    %v6495 = vadd.f32 %v6477, %v6457
    %v6496 = vadd.f32 %v6478, %v6459
    %6497 = vst [vmem:[#allocation4] sm:$0xff] %v6479
    %6498 = vst [vmem:[#allocation4 + $0x8] sm:$0xff] %v6480
    %6499 = vst [vmem:[#allocation4 + $0x10] sm:$0xff] %v6481
    %6500 = vst [vmem:[#allocation4 + $0x18] sm:$0xff] %v6482
    %6501 = vst [vmem:[#allocation4 + $0x20] sm:$0xff] %v6483
    %6502 = vst [vmem:[#allocation4 + $0x28] sm:$0xff] %v6484
    %6503 = vst [vmem:[#allocation4 + $0x30] sm:$0xff] %v6485
    %6504 = vst [vmem:[#allocation4 + $0x38] sm:$0xff] %v6486
    %6505 = vst [vmem:[#allocation4 + $0x40] sm:$0xff] %v6487
    %6506 = vst [vmem:[#allocation4 + $0x48] sm:$0xff] %v6488
    %6507 = vst [vmem:[#allocation4 + $0x50] sm:$0xff] %v6489
    %6508 = vst [vmem:[#allocation4 + $0x58] sm:$0xff] %v6490
    %6509 = vst [vmem:[#allocation4 + $0x60] sm:$0xff] %v6491
    %6510 = vst [vmem:[#allocation4 + $0x68] sm:$0xff] %v6492
    %6511 = vst [vmem:[#allocation4 + $0x70] sm:$0xff] %v6493
    %6512 = vst [vmem:[#allocation4 + $0x78] sm:$0xff] %v6494
    %6513 = vst [vmem:[#allocation4 + $0x80] sm:$0xff] %v6495
    %6514 = vst [vmem:[#allocation4 + $0x88] sm:$0xff] %v6496
    %v6515 = vld [vmem:[#allocation3 + $0x18] sm:$0xff]
    %v6516 = vld [vmem:[#allocation3 + $0x20] sm:$0xff]
    %v6517 = vld [vmem:[#allocation3 + $0x28] sm:$0xff]
    %v6518 = vld [vmem:[#allocation3 + $0x30] sm:$0xff]
    %v6519 = vld [vmem:[#allocation3 + $0x38] sm:$0xff]
    %v6520 = vld [vmem:[#allocation3 + $0x40] sm:$0xff]
    %v6521 = vld [vmem:[#allocation3 + $0x48] sm:$0xff]
    %v6522 = vld [vmem:[#allocation3 + $0x50] sm:$0xff]
    %v6523 = vld [vmem:[#allocation3 + $0x58] sm:$0xff]
    %v6524 = vld [vmem:[#allocation3 + $0x60] sm:$0xff]
    %v6525 = vld [vmem:[#allocation3 + $0x68] sm:$0xff]
    %v6526 = vld [vmem:[#allocation3 + $0x70] sm:$0xff]
    %v6527 = vld [vmem:[#allocation3 + $0x78] sm:$0xff]
    %v6528 = vld [vmem:[#allocation3 + $0x80] sm:$0xff]
    %v6529 = vld [vmem:[#allocation3 + $0x88] sm:$0xff]
    %v6530 = vld [vmem:[#allocation3 + $0x90] sm:$0xff]
    %v6531 = vld [vmem:[#allocation3 + $0x98] sm:$0xff]
    %v6532 = vld [vmem:[#allocation3 + $0xa0] sm:$0xff]
    %v6533 = vpack.c.bf16 %v6516, %v6515
    %v6534 = vpack.c.bf16 %v6518, %v6517
    %v6535 = vpack.c.bf16 %v6520, %v6519
    %v6536 = vpack.c.bf16 %v6522, %v6521
    %v6537 = vpack.c.bf16 %v6524, %v6523
    %v6538 = vpack.c.bf16 %v6526, %v6525
    %v6539 = vpack.c.bf16 %v6528, %v6527
    %v6540 = vpack.c.bf16 %v6530, %v6529
    %v6541 = vpack.c.bf16 %v6532, %v6531
    %s6542 = scalar_lea.vmem %s3, 384
    %v6543 = vld [vmem:[%s6542] sm:$0xf]
    %v6544 = vld [vmem:[%s6542 + $0x4] sm:$0xf]
    %v6545 = vld [vmem:[%s6542 + $0x8] sm:$0xf]
    %v6546 = vld [vmem:[%s6542 + $0xc] sm:$0xf]
    %v6547 = vld [vmem:[%s6542 + $0x10] sm:$0xf]
    %v6548 = vld [vmem:[%s6542 + $0x14] sm:$0xf]
    %v6549 = vld [vmem:[%s6542 + $0x18] sm:$0xf]
    %v6550 = vld [vmem:[%s6542 + $0x1c] sm:$0xf]
    %v6551 = vld [vmem:[%s6542 + $0x20] sm:$0xf]
    %v6552 = vld [vmem:[%s6542 + $0x24] sm:$0xf]
    %v6553 = vld [vmem:[%s6542 + $0x28] sm:$0xf]
    %v6554 = vld [vmem:[%s6542 + $0x2c] sm:$0xf]
    %v6555 = vld [vmem:[%s6542 + $0x30] sm:$0xf]
    %v6556 = vld [vmem:[%s6542 + $0x34] sm:$0xf]
    %v6557 = vld [vmem:[%s6542 + $0x38] sm:$0xf]
    %v6558 = vld [vmem:[%s6542 + $0x3c] sm:$0xf]
    %v6575 = vunpack.c.l.b16 %v6543
    %v6576 = vunpack.c.l.b16 %v6544
    %v6577 = vunpack.c.l.b16 %v6545
    %v6578 = vunpack.c.l.b16 %v6546
    %v6579 = vunpack.c.l.b16 %v6547
    %v6580 = vunpack.c.l.b16 %v6548
    %v6581 = vunpack.c.l.b16 %v6549
    %v6582 = vunpack.c.l.b16 %v6550
    %v6583 = vunpack.c.l.b16 %v6551
    %v6584 = vunpack.c.l.b16 %v6552
    %v6585 = vunpack.c.l.b16 %v6553
    %v6586 = vunpack.c.l.b16 %v6554
    %v6587 = vunpack.c.l.b16 %v6555
    %v6588 = vunpack.c.l.b16 %v6556
    %v6589 = vunpack.c.l.b16 %v6557
    %v6590 = vunpack.c.l.b16 %v6558
    %v6591 = vpack.c.b16 %v6576, %v6575
    %v6592 = vpack.c.b16 %v6578, %v6577
    %v6593 = vpack.c.b16 %v6580, %v6579
    %v6594 = vpack.c.b16 %v6582, %v6581
    %v6595 = vpack.c.b16 %v6584, %v6583
    %v6596 = vpack.c.b16 %v6586, %v6585
    %v6597 = vpack.c.b16 %v6588, %v6587
    %v6598 = vpack.c.b16 %v6590, %v6589
    %6607 = vmatpush.bf16.msra.mxu0 %v6598
    %6608 = vmatpush.bf16.msra.mxu0 %v6597
    %6609 = vmatpush.bf16.msra.mxu0 %v6596
    %6610 = vmatpush.bf16.msra.mxu0 %v6595
    %6611 = vmatpush.bf16.msra.mxu0 %v6594
    %6612 = vmatpush.bf16.msra.mxu0 %v6593
    %6613 = vmatpush.bf16.msra.mxu0 %v6592
    %6614 = vmatpush.bf16.msra.mxu0 %v6591
    %6615 = vmatmul.bf16.gmra.mxu0 %v6533
    %v6616 = vpop.f32.mrf.mxu0
    %v6617 = vadd.f32 0.0, %v6616
    %v6618 = vpop.f32.mrf.mxu0
    %v6619 = vadd.f32 0.0, %v6618
    %6620 = vmatmul.bf16.gmra.mxu0 %v6534
    %v6621 = vpop.f32.mrf.mxu0
    %v6622 = vadd.f32 0.0, %v6621
    %v6623 = vpop.f32.mrf.mxu0
    %v6624 = vadd.f32 0.0, %v6623
    %6625 = vmatmul.bf16.gmra.mxu0 %v6535
    %v6626 = vpop.f32.mrf.mxu0
    %v6627 = vadd.f32 0.0, %v6626
    %v6628 = vpop.f32.mrf.mxu0
    %v6629 = vadd.f32 0.0, %v6628
    %6630 = vmatmul.bf16.gmra.mxu0 %v6536
    %v6631 = vpop.f32.mrf.mxu0
    %v6632 = vadd.f32 0.0, %v6631
    %v6633 = vpop.f32.mrf.mxu0
    %v6634 = vadd.f32 0.0, %v6633
    %6635 = vmatmul.bf16.gmra.mxu0 %v6537
    %v6636 = vpop.f32.mrf.mxu0
    %v6637 = vadd.f32 0.0, %v6636
    %v6638 = vpop.f32.mrf.mxu0
    %v6639 = vadd.f32 0.0, %v6638
    %6640 = vmatmul.bf16.gmra.mxu0 %v6538
    %v6641 = vpop.f32.mrf.mxu0
    %v6642 = vadd.f32 0.0, %v6641
    %v6643 = vpop.f32.mrf.mxu0
    %v6644 = vadd.f32 0.0, %v6643
    %6645 = vmatmul.bf16.gmra.mxu0 %v6539
    %v6646 = vpop.f32.mrf.mxu0
    %v6647 = vadd.f32 0.0, %v6646
    %v6648 = vpop.f32.mrf.mxu0
    %v6649 = vadd.f32 0.0, %v6648
    %6650 = vmatmul.bf16.gmra.mxu0 %v6540
    %v6651 = vpop.f32.mrf.mxu0
    %v6652 = vadd.f32 0.0, %v6651
    %v6653 = vpop.f32.mrf.mxu0
    %v6654 = vadd.f32 0.0, %v6653
    %6655 = vmatmul.bf16.gmra.mxu0 %v6541
    %v6656 = vpop.f32.mrf.mxu0
    %v6657 = vadd.f32 0.0, %v6656
    %v6658 = vpop.f32.mrf.mxu0
    %v6659 = vadd.f32 0.0, %v6658
    %6660 = vdwg.mxu0
    %v6661 = vld [vmem:[#allocation4] sm:$0xff]
    %v6662 = vld [vmem:[#allocation4 + $0x8] sm:$0xff]
    %v6663 = vld [vmem:[#allocation4 + $0x10] sm:$0xff]
    %v6664 = vld [vmem:[#allocation4 + $0x18] sm:$0xff]
    %v6665 = vld [vmem:[#allocation4 + $0x20] sm:$0xff]
    %v6666 = vld [vmem:[#allocation4 + $0x28] sm:$0xff]
    %v6667 = vld [vmem:[#allocation4 + $0x30] sm:$0xff]
    %v6668 = vld [vmem:[#allocation4 + $0x38] sm:$0xff]
    %v6669 = vld [vmem:[#allocation4 + $0x40] sm:$0xff]
    %v6670 = vld [vmem:[#allocation4 + $0x48] sm:$0xff]
    %v6671 = vld [vmem:[#allocation4 + $0x50] sm:$0xff]
    %v6672 = vld [vmem:[#allocation4 + $0x58] sm:$0xff]
    %v6673 = vld [vmem:[#allocation4 + $0x60] sm:$0xff]
    %v6674 = vld [vmem:[#allocation4 + $0x68] sm:$0xff]
    %v6675 = vld [vmem:[#allocation4 + $0x70] sm:$0xff]
    %v6676 = vld [vmem:[#allocation4 + $0x78] sm:$0xff]
    %v6677 = vld [vmem:[#allocation4 + $0x80] sm:$0xff]
    %v6678 = vld [vmem:[#allocation4 + $0x88] sm:$0xff]
    %v6679 = vadd.f32 %v6661, %v6617
    %v6680 = vadd.f32 %v6662, %v6619
    %v6681 = vadd.f32 %v6663, %v6622
    %v6682 = vadd.f32 %v6664, %v6624
    %v6683 = vadd.f32 %v6665, %v6627
    %v6684 = vadd.f32 %v6666, %v6629
    %v6685 = vadd.f32 %v6667, %v6632
    %v6686 = vadd.f32 %v6668, %v6634
    %v6687 = vadd.f32 %v6669, %v6637
    %v6688 = vadd.f32 %v6670, %v6639
    %v6689 = vadd.f32 %v6671, %v6642
    %v6690 = vadd.f32 %v6672, %v6644
    %v6691 = vadd.f32 %v6673, %v6647
    %v6692 = vadd.f32 %v6674, %v6649
    %v6693 = vadd.f32 %v6675, %v6652
    %v6694 = vadd.f32 %v6676, %v6654
    %v6695 = vadd.f32 %v6677, %v6657
    %v6696 = vadd.f32 %v6678, %v6659
    %6697 = vst [vmem:[#allocation4] sm:$0xff] %v6679
    %6698 = vst [vmem:[#allocation4 + $0x8] sm:$0xff] %v6680
    %6699 = vst [vmem:[#allocation4 + $0x10] sm:$0xff] %v6681
    %6700 = vst [vmem:[#allocation4 + $0x18] sm:$0xff] %v6682
    %6701 = vst [vmem:[#allocation4 + $0x20] sm:$0xff] %v6683
    %6702 = vst [vmem:[#allocation4 + $0x28] sm:$0xff] %v6684
    %6703 = vst [vmem:[#allocation4 + $0x30] sm:$0xff] %v6685
    %6704 = vst [vmem:[#allocation4 + $0x38] sm:$0xff] %v6686
    %6705 = vst [vmem:[#allocation4 + $0x40] sm:$0xff] %v6687
    %6706 = vst [vmem:[#allocation4 + $0x48] sm:$0xff] %v6688
    %6707 = vst [vmem:[#allocation4 + $0x50] sm:$0xff] %v6689
    %6708 = vst [vmem:[#allocation4 + $0x58] sm:$0xff] %v6690
    %6709 = vst [vmem:[#allocation4 + $0x60] sm:$0xff] %v6691
    %6710 = vst [vmem:[#allocation4 + $0x68] sm:$0xff] %v6692
    %6711 = vst [vmem:[#allocation4 + $0x70] sm:$0xff] %v6693
    %6712 = vst [vmem:[#allocation4 + $0x78] sm:$0xff] %v6694
    %6713 = vst [vmem:[#allocation4 + $0x80] sm:$0xff] %v6695
    %6714 = vst [vmem:[#allocation4 + $0x88] sm:$0xff] %v6696
    %v6715 = vld [vmem:[#allocation3 + $0x19] sm:$0xff]
    %v6716 = vld [vmem:[#allocation3 + $0x21] sm:$0xff]
    %v6717 = vld [vmem:[#allocation3 + $0x29] sm:$0xff]
    %v6718 = vld [vmem:[#allocation3 + $0x31] sm:$0xff]
    %v6719 = vld [vmem:[#allocation3 + $0x39] sm:$0xff]
    %v6720 = vld [vmem:[#allocation3 + $0x41] sm:$0xff]
    %v6721 = vld [vmem:[#allocation3 + $0x49] sm:$0xff]
    %v6722 = vld [vmem:[#allocation3 + $0x51] sm:$0xff]
    %v6723 = vld [vmem:[#allocation3 + $0x59] sm:$0xff]
    %v6724 = vld [vmem:[#allocation3 + $0x61] sm:$0xff]
    %v6725 = vld [vmem:[#allocation3 + $0x69] sm:$0xff]
    %v6726 = vld [vmem:[#allocation3 + $0x71] sm:$0xff]
    %v6727 = vld [vmem:[#allocation3 + $0x79] sm:$0xff]
    %v6728 = vld [vmem:[#allocation3 + $0x81] sm:$0xff]
    %v6729 = vld [vmem:[#allocation3 + $0x89] sm:$0xff]
    %v6730 = vld [vmem:[#allocation3 + $0x91] sm:$0xff]
    %v6731 = vld [vmem:[#allocation3 + $0x99] sm:$0xff]
    %v6732 = vld [vmem:[#allocation3 + $0xa1] sm:$0xff]
    %v6733 = vpack.c.bf16 %v6716, %v6715
    %v6734 = vpack.c.bf16 %v6718, %v6717
    %v6735 = vpack.c.bf16 %v6720, %v6719
    %v6736 = vpack.c.bf16 %v6722, %v6721
    %v6737 = vpack.c.bf16 %v6724, %v6723
    %v6738 = vpack.c.bf16 %v6726, %v6725
    %v6739 = vpack.c.bf16 %v6728, %v6727
    %v6740 = vpack.c.bf16 %v6730, %v6729
    %v6741 = vpack.c.bf16 %v6732, %v6731
    %s6742 = scalar_lea.vmem %s3, 448
    %v6743 = vld [vmem:[%s6742] sm:$0xf]
    %v6744 = vld [vmem:[%s6742 + $0x4] sm:$0xf]
    %v6745 = vld [vmem:[%s6742 + $0x8] sm:$0xf]
    %v6746 = vld [vmem:[%s6742 + $0xc] sm:$0xf]
    %v6747 = vld [vmem:[%s6742 + $0x10] sm:$0xf]
    %v6748 = vld [vmem:[%s6742 + $0x14] sm:$0xf]
    %v6749 = vld [vmem:[%s6742 + $0x18] sm:$0xf]
    %v6750 = vld [vmem:[%s6742 + $0x1c] sm:$0xf]
    %v6751 = vld [vmem:[%s6742 + $0x20] sm:$0xf]
    %v6752 = vld [vmem:[%s6742 + $0x24] sm:$0xf]
    %v6753 = vld [vmem:[%s6742 + $0x28] sm:$0xf]
    %v6754 = vld [vmem:[%s6742 + $0x2c] sm:$0xf]
    %v6755 = vld [vmem:[%s6742 + $0x30] sm:$0xf]
    %v6756 = vld [vmem:[%s6742 + $0x34] sm:$0xf]
    %v6757 = vld [vmem:[%s6742 + $0x38] sm:$0xf]
    %v6758 = vld [vmem:[%s6742 + $0x3c] sm:$0xf]
    %v6775 = vunpack.c.l.b16 %v6743
    %v6776 = vunpack.c.l.b16 %v6744
    %v6777 = vunpack.c.l.b16 %v6745
    %v6778 = vunpack.c.l.b16 %v6746
    %v6779 = vunpack.c.l.b16 %v6747
    %v6780 = vunpack.c.l.b16 %v6748
    %v6781 = vunpack.c.l.b16 %v6749
    %v6782 = vunpack.c.l.b16 %v6750
    %v6783 = vunpack.c.l.b16 %v6751
    %v6784 = vunpack.c.l.b16 %v6752
    %v6785 = vunpack.c.l.b16 %v6753
    %v6786 = vunpack.c.l.b16 %v6754
    %v6787 = vunpack.c.l.b16 %v6755
    %v6788 = vunpack.c.l.b16 %v6756
    %v6789 = vunpack.c.l.b16 %v6757
    %v6790 = vunpack.c.l.b16 %v6758
    %v6791 = vpack.c.b16 %v6776, %v6775
    %v6792 = vpack.c.b16 %v6778, %v6777
    %v6793 = vpack.c.b16 %v6780, %v6779
    %v6794 = vpack.c.b16 %v6782, %v6781
    %v6795 = vpack.c.b16 %v6784, %v6783
    %v6796 = vpack.c.b16 %v6786, %v6785
    %v6797 = vpack.c.b16 %v6788, %v6787
    %v6798 = vpack.c.b16 %v6790, %v6789
    %6807 = vmatpush.bf16.msra.mxu0 %v6798
    %6808 = vmatpush.bf16.msra.mxu0 %v6797
    %6809 = vmatpush.bf16.msra.mxu0 %v6796
    %6810 = vmatpush.bf16.msra.mxu0 %v6795
    %6811 = vmatpush.bf16.msra.mxu0 %v6794
    %6812 = vmatpush.bf16.msra.mxu0 %v6793
    %6813 = vmatpush.bf16.msra.mxu0 %v6792
    %6814 = vmatpush.bf16.msra.mxu0 %v6791
    %6815 = vmatmul.bf16.gmra.mxu0 %v6733
    %v6816 = vpop.f32.mrf.mxu0
    %v6817 = vadd.f32 0.0, %v6816
    %v6818 = vpop.f32.mrf.mxu0
    %v6819 = vadd.f32 0.0, %v6818
    %6820 = vmatmul.bf16.gmra.mxu0 %v6734
    %v6821 = vpop.f32.mrf.mxu0
    %v6822 = vadd.f32 0.0, %v6821
    %v6823 = vpop.f32.mrf.mxu0
    %v6824 = vadd.f32 0.0, %v6823
    %6825 = vmatmul.bf16.gmra.mxu0 %v6735
    %v6826 = vpop.f32.mrf.mxu0
    %v6827 = vadd.f32 0.0, %v6826
    %v6828 = vpop.f32.mrf.mxu0
    %v6829 = vadd.f32 0.0, %v6828
    %6830 = vmatmul.bf16.gmra.mxu0 %v6736
    %v6831 = vpop.f32.mrf.mxu0
    %v6832 = vadd.f32 0.0, %v6831
    %v6833 = vpop.f32.mrf.mxu0
    %v6834 = vadd.f32 0.0, %v6833
    %6835 = vmatmul.bf16.gmra.mxu0 %v6737
    %v6836 = vpop.f32.mrf.mxu0
    %v6837 = vadd.f32 0.0, %v6836
    %v6838 = vpop.f32.mrf.mxu0
    %v6839 = vadd.f32 0.0, %v6838
    %6840 = vmatmul.bf16.gmra.mxu0 %v6738
    %v6841 = vpop.f32.mrf.mxu0
    %v6842 = vadd.f32 0.0, %v6841
    %v6843 = vpop.f32.mrf.mxu0
    %v6844 = vadd.f32 0.0, %v6843
    %6845 = vmatmul.bf16.gmra.mxu0 %v6739
    %v6846 = vpop.f32.mrf.mxu0
    %v6847 = vadd.f32 0.0, %v6846
    %v6848 = vpop.f32.mrf.mxu0
    %v6849 = vadd.f32 0.0, %v6848
    %6850 = vmatmul.bf16.gmra.mxu0 %v6740
    %v6851 = vpop.f32.mrf.mxu0
    %v6852 = vadd.f32 0.0, %v6851
    %v6853 = vpop.f32.mrf.mxu0
    %v6854 = vadd.f32 0.0, %v6853
    %6855 = vmatmul.bf16.gmra.mxu0 %v6741
    %v6856 = vpop.f32.mrf.mxu0
    %v6857 = vadd.f32 0.0, %v6856
    %v6858 = vpop.f32.mrf.mxu0
    %v6859 = vadd.f32 0.0, %v6858
    %6860 = vdwg.mxu0
    %v6861 = vld [vmem:[#allocation4] sm:$0xff]
    %v6862 = vld [vmem:[#allocation4 + $0x8] sm:$0xff]
    %v6863 = vld [vmem:[#allocation4 + $0x10] sm:$0xff]
    %v6864 = vld [vmem:[#allocation4 + $0x18] sm:$0xff]
    %v6865 = vld [vmem:[#allocation4 + $0x20] sm:$0xff]
    %v6866 = vld [vmem:[#allocation4 + $0x28] sm:$0xff]
    %v6867 = vld [vmem:[#allocation4 + $0x30] sm:$0xff]
    %v6868 = vld [vmem:[#allocation4 + $0x38] sm:$0xff]
    %v6869 = vld [vmem:[#allocation4 + $0x40] sm:$0xff]
    %v6870 = vld [vmem:[#allocation4 + $0x48] sm:$0xff]
    %v6871 = vld [vmem:[#allocation4 + $0x50] sm:$0xff]
    %v6872 = vld [vmem:[#allocation4 + $0x58] sm:$0xff]
    %v6873 = vld [vmem:[#allocation4 + $0x60] sm:$0xff]
    %v6874 = vld [vmem:[#allocation4 + $0x68] sm:$0xff]
    %v6875 = vld [vmem:[#allocation4 + $0x70] sm:$0xff]
    %v6876 = vld [vmem:[#allocation4 + $0x78] sm:$0xff]
    %v6877 = vld [vmem:[#allocation4 + $0x80] sm:$0xff]
    %v6878 = vld [vmem:[#allocation4 + $0x88] sm:$0xff]
    %v6879 = vadd.f32 %v6861, %v6817
    %v6880 = vadd.f32 %v6862, %v6819
    %v6881 = vadd.f32 %v6863, %v6822
    %v6882 = vadd.f32 %v6864, %v6824
    %v6883 = vadd.f32 %v6865, %v6827
    %v6884 = vadd.f32 %v6866, %v6829
    %v6885 = vadd.f32 %v6867, %v6832
    %v6886 = vadd.f32 %v6868, %v6834
    %v6887 = vadd.f32 %v6869, %v6837
    %v6888 = vadd.f32 %v6870, %v6839
    %v6889 = vadd.f32 %v6871, %v6842
    %v6890 = vadd.f32 %v6872, %v6844
    %v6891 = vadd.f32 %v6873, %v6847
    %v6892 = vadd.f32 %v6874, %v6849
    %v6893 = vadd.f32 %v6875, %v6852
    %v6894 = vadd.f32 %v6876, %v6854
    %v6895 = vadd.f32 %v6877, %v6857
    %v6896 = vadd.f32 %v6878, %v6859
    %6897 = vst [vmem:[#allocation4] sm:$0xff] %v6879
    %6898 = vst [vmem:[#allocation4 + $0x8] sm:$0xff] %v6880
    %6899 = vst [vmem:[#allocation4 + $0x10] sm:$0xff] %v6881
    %6900 = vst [vmem:[#allocation4 + $0x18] sm:$0xff] %v6882
    %6901 = vst [vmem:[#allocation4 + $0x20] sm:$0xff] %v6883
    %6902 = vst [vmem:[#allocation4 + $0x28] sm:$0xff] %v6884
    %6903 = vst [vmem:[#allocation4 + $0x30] sm:$0xff] %v6885
    %6904 = vst [vmem:[#allocation4 + $0x38] sm:$0xff] %v6886
    %6905 = vst [vmem:[#allocation4 + $0x40] sm:$0xff] %v6887
    %6906 = vst [vmem:[#allocation4 + $0x48] sm:$0xff] %v6888
    %6907 = vst [vmem:[#allocation4 + $0x50] sm:$0xff] %v6889
    %6908 = vst [vmem:[#allocation4 + $0x58] sm:$0xff] %v6890
    %6909 = vst [vmem:[#allocation4 + $0x60] sm:$0xff] %v6891
    %6910 = vst [vmem:[#allocation4 + $0x68] sm:$0xff] %v6892
    %6911 = vst [vmem:[#allocation4 + $0x70] sm:$0xff] %v6893
    %6912 = vst [vmem:[#allocation4 + $0x78] sm:$0xff] %v6894
    %6913 = vst [vmem:[#allocation4 + $0x80] sm:$0xff] %v6895
    %6914 = vst [vmem:[#allocation4 + $0x88] sm:$0xff] %v6896
    %v6915 = vld [vmem:[#allocation3 + $0x1a] sm:$0xff]
    %v6916 = vld [vmem:[#allocation3 + $0x22] sm:$0xff]
    %v6917 = vld [vmem:[#allocation3 + $0x2a] sm:$0xff]
    %v6918 = vld [vmem:[#allocation3 + $0x32] sm:$0xff]
    %v6919 = vld [vmem:[#allocation3 + $0x3a] sm:$0xff]
    %v6920 = vld [vmem:[#allocation3 + $0x42] sm:$0xff]
    %v6921 = vld [vmem:[#allocation3 + $0x4a] sm:$0xff]
    %v6922 = vld [vmem:[#allocation3 + $0x52] sm:$0xff]
    %v6923 = vld [vmem:[#allocation3 + $0x5a] sm:$0xff]
    %v6924 = vld [vmem:[#allocation3 + $0x62] sm:$0xff]
    %v6925 = vld [vmem:[#allocation3 + $0x6a] sm:$0xff]
    %v6926 = vld [vmem:[#allocation3 + $0x72] sm:$0xff]
    %v6927 = vld [vmem:[#allocation3 + $0x7a] sm:$0xff]
    %v6928 = vld [vmem:[#allocation3 + $0x82] sm:$0xff]
    %v6929 = vld [vmem:[#allocation3 + $0x8a] sm:$0xff]
    %v6930 = vld [vmem:[#allocation3 + $0x92] sm:$0xff]
    %v6931 = vld [vmem:[#allocation3 + $0x9a] sm:$0xff]
    %v6932 = vld [vmem:[#allocation3 + $0xa2] sm:$0xff]
    %v6933 = vpack.c.bf16 %v6916, %v6915
    %v6934 = vpack.c.bf16 %v6918, %v6917
    %v6935 = vpack.c.bf16 %v6920, %v6919
    %v6936 = vpack.c.bf16 %v6922, %v6921
    %v6937 = vpack.c.bf16 %v6924, %v6923
    %v6938 = vpack.c.bf16 %v6926, %v6925
    %v6939 = vpack.c.bf16 %v6928, %v6927
    %v6940 = vpack.c.bf16 %v6930, %v6929
    %v6941 = vpack.c.bf16 %v6932, %v6931
    %s6942 = scalar_lea.vmem %s3, 512
    %v6943 = vld [vmem:[%s6942] sm:$0xf]
    %v6944 = vld [vmem:[%s6942 + $0x4] sm:$0xf]
    %v6945 = vld [vmem:[%s6942 + $0x8] sm:$0xf]
    %v6946 = vld [vmem:[%s6942 + $0xc] sm:$0xf]
    %v6947 = vld [vmem:[%s6942 + $0x10] sm:$0xf]
    %v6948 = vld [vmem:[%s6942 + $0x14] sm:$0xf]
    %v6949 = vld [vmem:[%s6942 + $0x18] sm:$0xf]
    %v6950 = vld [vmem:[%s6942 + $0x1c] sm:$0xf]
    %v6951 = vld [vmem:[%s6942 + $0x20] sm:$0xf]
    %v6952 = vld [vmem:[%s6942 + $0x24] sm:$0xf]
    %v6953 = vld [vmem:[%s6942 + $0x28] sm:$0xf]
    %v6954 = vld [vmem:[%s6942 + $0x2c] sm:$0xf]
    %v6955 = vld [vmem:[%s6942 + $0x30] sm:$0xf]
    %v6956 = vld [vmem:[%s6942 + $0x34] sm:$0xf]
    %v6957 = vld [vmem:[%s6942 + $0x38] sm:$0xf]
    %v6958 = vld [vmem:[%s6942 + $0x3c] sm:$0xf]
    %v6975 = vunpack.c.l.b16 %v6943
    %v6976 = vunpack.c.l.b16 %v6944
    %v6977 = vunpack.c.l.b16 %v6945
    %v6978 = vunpack.c.l.b16 %v6946
    %v6979 = vunpack.c.l.b16 %v6947
    %v6980 = vunpack.c.l.b16 %v6948
    %v6981 = vunpack.c.l.b16 %v6949
    %v6982 = vunpack.c.l.b16 %v6950
    %v6983 = vunpack.c.l.b16 %v6951
    %v6984 = vunpack.c.l.b16 %v6952
    %v6985 = vunpack.c.l.b16 %v6953
    %v6986 = vunpack.c.l.b16 %v6954
    %v6987 = vunpack.c.l.b16 %v6955
    %v6988 = vunpack.c.l.b16 %v6956
    %v6989 = vunpack.c.l.b16 %v6957
    %v6990 = vunpack.c.l.b16 %v6958
    %v6991 = vpack.c.b16 %v6976, %v6975
    %v6992 = vpack.c.b16 %v6978, %v6977
    %v6993 = vpack.c.b16 %v6980, %v6979
    %v6994 = vpack.c.b16 %v6982, %v6981
    %v6995 = vpack.c.b16 %v6984, %v6983
    %v6996 = vpack.c.b16 %v6986, %v6985
    %v6997 = vpack.c.b16 %v6988, %v6987
    %v6998 = vpack.c.b16 %v6990, %v6989
    %7007 = vmatpush.bf16.msra.mxu0 %v6998
    %7008 = vmatpush.bf16.msra.mxu0 %v6997
    %7009 = vmatpush.bf16.msra.mxu0 %v6996
    %7010 = vmatpush.bf16.msra.mxu0 %v6995
    %7011 = vmatpush.bf16.msra.mxu0 %v6994
    %7012 = vmatpush.bf16.msra.mxu0 %v6993
    %7013 = vmatpush.bf16.msra.mxu0 %v6992
    %7014 = vmatpush.bf16.msra.mxu0 %v6991
    %7015 = vmatmul.bf16.gmra.mxu0 %v6933
    %v7016 = vpop.f32.mrf.mxu0
    %v7017 = vadd.f32 0.0, %v7016
    %v7018 = vpop.f32.mrf.mxu0
    %v7019 = vadd.f32 0.0, %v7018
    %7020 = vmatmul.bf16.gmra.mxu0 %v6934
    %v7021 = vpop.f32.mrf.mxu0
    %v7022 = vadd.f32 0.0, %v7021
    %v7023 = vpop.f32.mrf.mxu0
    %v7024 = vadd.f32 0.0, %v7023
    %7025 = vmatmul.bf16.gmra.mxu0 %v6935
    %v7026 = vpop.f32.mrf.mxu0
    %v7027 = vadd.f32 0.0, %v7026
    %v7028 = vpop.f32.mrf.mxu0
    %v7029 = vadd.f32 0.0, %v7028
    %7030 = vmatmul.bf16.gmra.mxu0 %v6936
    %v7031 = vpop.f32.mrf.mxu0
    %v7032 = vadd.f32 0.0, %v7031
    %v7033 = vpop.f32.mrf.mxu0
    %v7034 = vadd.f32 0.0, %v7033
    %7035 = vmatmul.bf16.gmra.mxu0 %v6937
    %v7036 = vpop.f32.mrf.mxu0
    %v7037 = vadd.f32 0.0, %v7036
    %v7038 = vpop.f32.mrf.mxu0
    %v7039 = vadd.f32 0.0, %v7038
    %7040 = vmatmul.bf16.gmra.mxu0 %v6938
    %v7041 = vpop.f32.mrf.mxu0
    %v7042 = vadd.f32 0.0, %v7041
    %v7043 = vpop.f32.mrf.mxu0
    %v7044 = vadd.f32 0.0, %v7043
    %7045 = vmatmul.bf16.gmra.mxu0 %v6939
    %v7046 = vpop.f32.mrf.mxu0
    %v7047 = vadd.f32 0.0, %v7046
    %v7048 = vpop.f32.mrf.mxu0
    %v7049 = vadd.f32 0.0, %v7048
    %7050 = vmatmul.bf16.gmra.mxu0 %v6940
    %v7051 = vpop.f32.mrf.mxu0
    %v7052 = vadd.f32 0.0, %v7051
    %v7053 = vpop.f32.mrf.mxu0
    %v7054 = vadd.f32 0.0, %v7053
    %7055 = vmatmul.bf16.gmra.mxu0 %v6941
    %v7056 = vpop.f32.mrf.mxu0
    %v7057 = vadd.f32 0.0, %v7056
    %v7058 = vpop.f32.mrf.mxu0
    %v7059 = vadd.f32 0.0, %v7058
    %7060 = vdwg.mxu0
    %v7061 = vld [vmem:[#allocation4] sm:$0xff]
    %v7062 = vld [vmem:[#allocation4 + $0x8] sm:$0xff]
    %v7063 = vld [vmem:[#allocation4 + $0x10] sm:$0xff]
    %v7064 = vld [vmem:[#allocation4 + $0x18] sm:$0xff]
    %v7065 = vld [vmem:[#allocation4 + $0x20] sm:$0xff]
    %v7066 = vld [vmem:[#allocation4 + $0x28] sm:$0xff]
    %v7067 = vld [vmem:[#allocation4 + $0x30] sm:$0xff]
    %v7068 = vld [vmem:[#allocation4 + $0x38] sm:$0xff]
    %v7069 = vld [vmem:[#allocation4 + $0x40] sm:$0xff]
    %v7070 = vld [vmem:[#allocation4 + $0x48] sm:$0xff]
    %v7071 = vld [vmem:[#allocation4 + $0x50] sm:$0xff]
    %v7072 = vld [vmem:[#allocation4 + $0x58] sm:$0xff]
    %v7073 = vld [vmem:[#allocation4 + $0x60] sm:$0xff]
    %v7074 = vld [vmem:[#allocation4 + $0x68] sm:$0xff]
    %v7075 = vld [vmem:[#allocation4 + $0x70] sm:$0xff]
    %v7076 = vld [vmem:[#allocation4 + $0x78] sm:$0xff]
    %v7077 = vld [vmem:[#allocation4 + $0x80] sm:$0xff]
    %v7078 = vld [vmem:[#allocation4 + $0x88] sm:$0xff]
    %v7079 = vadd.f32 %v7061, %v7017
    %v7080 = vadd.f32 %v7062, %v7019
    %v7081 = vadd.f32 %v7063, %v7022
    %v7082 = vadd.f32 %v7064, %v7024
    %v7083 = vadd.f32 %v7065, %v7027
    %v7084 = vadd.f32 %v7066, %v7029
    %v7085 = vadd.f32 %v7067, %v7032
    %v7086 = vadd.f32 %v7068, %v7034
    %v7087 = vadd.f32 %v7069, %v7037
    %v7088 = vadd.f32 %v7070, %v7039
    %v7089 = vadd.f32 %v7071, %v7042
    %v7090 = vadd.f32 %v7072, %v7044
    %v7091 = vadd.f32 %v7073, %v7047
    %v7092 = vadd.f32 %v7074, %v7049
    %v7093 = vadd.f32 %v7075, %v7052
    %v7094 = vadd.f32 %v7076, %v7054
    %v7095 = vadd.f32 %v7077, %v7057
    %v7096 = vadd.f32 %v7078, %v7059
    %7097 = vst [vmem:[#allocation4] sm:$0xff] %v7079
    %7098 = vst [vmem:[#allocation4 + $0x8] sm:$0xff] %v7080
    %7099 = vst [vmem:[#allocation4 + $0x10] sm:$0xff] %v7081
    %7100 = vst [vmem:[#allocation4 + $0x18] sm:$0xff] %v7082
    %7101 = vst [vmem:[#allocation4 + $0x20] sm:$0xff] %v7083
    %7102 = vst [vmem:[#allocation4 + $0x28] sm:$0xff] %v7084
    %7103 = vst [vmem:[#allocation4 + $0x30] sm:$0xff] %v7085
    %7104 = vst [vmem:[#allocation4 + $0x38] sm:$0xff] %v7086
    %7105 = vst [vmem:[#allocation4 + $0x40] sm:$0xff] %v7087
    %7106 = vst [vmem:[#allocation4 + $0x48] sm:$0xff] %v7088
    %7107 = vst [vmem:[#allocation4 + $0x50] sm:$0xff] %v7089
    %7108 = vst [vmem:[#allocation4 + $0x58] sm:$0xff] %v7090
    %7109 = vst [vmem:[#allocation4 + $0x60] sm:$0xff] %v7091
    %7110 = vst [vmem:[#allocation4 + $0x68] sm:$0xff] %v7092
    %7111 = vst [vmem:[#allocation4 + $0x70] sm:$0xff] %v7093
    %7112 = vst [vmem:[#allocation4 + $0x78] sm:$0xff] %v7094
    %7113 = vst [vmem:[#allocation4 + $0x80] sm:$0xff] %v7095
    %7114 = vst [vmem:[#allocation4 + $0x88] sm:$0xff] %v7096
    %v7115 = vld [vmem:[%s8] sm:$0xff]
    %v7116 = vld [vmem:[%s8 + $0x8] sm:$0xff]
    %v7117 = vld [vmem:[%s8 + $0x10] sm:$0xff]
    %v7118 = vld [vmem:[%s8 + $0x18] sm:$0xff]
    %v7119 = vld [vmem:[%s8 + $0x20] sm:$0xff]
    %v7120 = vld [vmem:[%s8 + $0x28] sm:$0xff]
    %v7121 = vld [vmem:[%s8 + $0x30] sm:$0xff]
    %v7122 = vld [vmem:[%s8 + $0x38] sm:$0xff]
    %v7123 = vld [vmem:[%s8 + $0x40] sm:$0xff]
    %v7124 = vld [vmem:[#allocation4] sm:$0xff]
    %v7125 = vld [vmem:[#allocation4 + $0x8] sm:$0xff]
    %v7126 = vld [vmem:[#allocation4 + $0x10] sm:$0xff]
    %v7127 = vld [vmem:[#allocation4 + $0x18] sm:$0xff]
    %v7128 = vld [vmem:[#allocation4 + $0x20] sm:$0xff]
    %v7129 = vld [vmem:[#allocation4 + $0x28] sm:$0xff]
    %v7130 = vld [vmem:[#allocation4 + $0x30] sm:$0xff]
    %v7131 = vld [vmem:[#allocation4 + $0x38] sm:$0xff]
    %v7132 = vld [vmem:[#allocation4 + $0x40] sm:$0xff]
    %7134 = vset.pattern.permute.xlu0 0
    %7135 = vperm.xlu0 %7134, %v7115
    %v7136 = vpop.permute.xlu0 %7135
    %7139 = vset.pattern.permute.xlu0 0
    %7140 = vperm.xlu0 %7139, %v7116
    %v7141 = vpop.permute.xlu0 %7140
    %7144 = vset.pattern.permute.xlu0 0
    %7145 = vperm.xlu0 %7144, %v7117
    %v7146 = vpop.permute.xlu0 %7145
    %7149 = vset.pattern.permute.xlu0 0
    %7150 = vperm.xlu0 %7149, %v7118
    %v7151 = vpop.permute.xlu0 %7150
    %7154 = vset.pattern.permute.xlu0 0
    %7155 = vperm.xlu0 %7154, %v7119
    %v7156 = vpop.permute.xlu0 %7155
    %7159 = vset.pattern.permute.xlu0 0
    %7160 = vperm.xlu0 %7159, %v7120
    %v7161 = vpop.permute.xlu0 %7160
    %7164 = vset.pattern.permute.xlu0 0
    %7165 = vperm.xlu0 %7164, %v7121
    %v7166 = vpop.permute.xlu0 %7165
    %7169 = vset.pattern.permute.xlu0 0
    %7170 = vperm.xlu0 %7169, %v7122
    %v7171 = vpop.permute.xlu0 %7170
    %7174 = vset.pattern.permute.xlu0 0
    %7175 = vperm.xlu0 %7174, %v7123
    %v7176 = vpop.permute.xlu0 %7175
    %v7178 = vmul.f32 %v7124, %v7136
    %v7179 = vmul.f32 %v7125, %v7141
    %v7180 = vmul.f32 %v7126, %v7146
    %v7181 = vmul.f32 %v7127, %v7151
    %v7182 = vmul.f32 %v7128, %v7156
    %v7183 = vmul.f32 %v7129, %v7161
    %v7184 = vmul.f32 %v7130, %v7166
    %v7185 = vmul.f32 %v7131, %v7171
    %v7186 = vmul.f32 %v7132, %v7176
    %v7187 = vadd.f32 %v7178, %v7179
    %v7188 = vadd.f32 %v7187, %v7180
    %v7189 = vadd.f32 %v7188, %v7181
    %v7190 = vadd.f32 %v7189, %v7182
    %v7191 = vadd.f32 %v7190, %v7183
    %v7192 = vadd.f32 %v7191, %v7184
    %v7193 = vadd.f32 %v7192, %v7185
    %v7194 = vadd.f32 %v7193, %v7186
    %v7195 = vrot.slane %v7194, 4
    %v7196 = vadd.f32 %v7194, %v7195
    %v7197 = vrot.slane %v7196, 2
    %v7198 = vadd.f32 %v7196, %v7197
    %v7199 = vrot.slane %v7198, 1
    %v7200 = vadd.f32 %v7198, %v7199
    %v7201 = vadd.f32 %v7200, 0.0
    %v7202 = vmul.f32 %v7178, %v7178
    %v7203 = vmul.f32 %v7179, %v7179
    %v7204 = vmul.f32 %v7180, %v7180
    %v7205 = vmul.f32 %v7181, %v7181
    %v7206 = vmul.f32 %v7182, %v7182
    %v7207 = vmul.f32 %v7183, %v7183
    %v7208 = vmul.f32 %v7184, %v7184
    %v7209 = vmul.f32 %v7185, %v7185
    %v7210 = vmul.f32 %v7186, %v7186
    %v7211 = vadd.f32 %v7202, %v7203
    %v7212 = vadd.f32 %v7211, %v7204
    %v7213 = vadd.f32 %v7212, %v7205
    %v7214 = vadd.f32 %v7213, %v7206
    %v7215 = vadd.f32 %v7214, %v7207
    %v7216 = vadd.f32 %v7215, %v7208
    %v7217 = vadd.f32 %v7216, %v7209
    %v7218 = vadd.f32 %v7217, %v7210
    %v7219 = vrot.slane %v7218, 4
    %v7220 = vadd.f32 %v7218, %v7219
    %v7221 = vrot.slane %v7220, 2
    %v7222 = vadd.f32 %v7220, %v7221
    %v7223 = vrot.slane %v7222, 1
    %v7224 = vadd.f32 %v7222, %v7223
    %v7225 = vadd.f32 %v7224, 0.0
    %v7226 = vld [vmem:[#allocation4 + $0x48] sm:$0xff]
    %v7227 = vld [vmem:[#allocation4 + $0x50] sm:$0xff]
    %v7228 = vld [vmem:[#allocation4 + $0x58] sm:$0xff]
    %v7229 = vld [vmem:[#allocation4 + $0x60] sm:$0xff]
    %v7230 = vld [vmem:[#allocation4 + $0x68] sm:$0xff]
    %v7231 = vld [vmem:[#allocation4 + $0x70] sm:$0xff]
    %v7232 = vld [vmem:[#allocation4 + $0x78] sm:$0xff]
    %v7233 = vld [vmem:[#allocation4 + $0x80] sm:$0xff]
    %v7234 = vld [vmem:[#allocation4 + $0x88] sm:$0xff]
    %v7235 = vmul.f32 %v7226, %v7136
    %v7236 = vmul.f32 %v7227, %v7141
    %v7237 = vmul.f32 %v7228, %v7146
    %v7238 = vmul.f32 %v7229, %v7151
    %v7239 = vmul.f32 %v7230, %v7156
    %v7240 = vmul.f32 %v7231, %v7161
    %v7241 = vmul.f32 %v7232, %v7166
    %v7242 = vmul.f32 %v7233, %v7171
    %v7243 = vmul.f32 %v7234, %v7176
    %v7244 = vadd.f32 %v7235, %v7236
    %v7245 = vadd.f32 %v7244, %v7237
    %v7246 = vadd.f32 %v7245, %v7238
    %v7247 = vadd.f32 %v7246, %v7239
    %v7248 = vadd.f32 %v7247, %v7240
    %v7249 = vadd.f32 %v7248, %v7241
    %v7250 = vadd.f32 %v7249, %v7242
    %v7251 = vadd.f32 %v7250, %v7243
    %v7252 = vrot.slane %v7251, 4
    %v7253 = vadd.f32 %v7251, %v7252
    %v7254 = vrot.slane %v7253, 2
    %v7255 = vadd.f32 %v7253, %v7254
    %v7256 = vrot.slane %v7255, 1
    %v7257 = vadd.f32 %v7255, %v7256
    %v7258 = vadd.f32 %v7201, %v7257
    %v7259 = vmul.f32 %v7235, %v7235
    %v7260 = vmul.f32 %v7236, %v7236
    %v7261 = vmul.f32 %v7237, %v7237
    %v7262 = vmul.f32 %v7238, %v7238
    %v7263 = vmul.f32 %v7239, %v7239
    %v7264 = vmul.f32 %v7240, %v7240
    %v7265 = vmul.f32 %v7241, %v7241
    %v7266 = vmul.f32 %v7242, %v7242
    %v7267 = vmul.f32 %v7243, %v7243
    %v7268 = vadd.f32 %v7259, %v7260
    %v7269 = vadd.f32 %v7268, %v7261
    %v7270 = vadd.f32 %v7269, %v7262
    %v7271 = vadd.f32 %v7270, %v7263
    %v7272 = vadd.f32 %v7271, %v7264
    %v7273 = vadd.f32 %v7272, %v7265
    %v7274 = vadd.f32 %v7273, %v7266
    %v7275 = vadd.f32 %v7274, %v7267
    %v7276 = vrot.slane %v7275, 4
    %v7277 = vadd.f32 %v7275, %v7276
    %v7278 = vrot.slane %v7277, 2
    %v7279 = vadd.f32 %v7277, %v7278
    %v7280 = vrot.slane %v7279, 1
    %v7281 = vadd.f32 %v7279, %v7280
    %v7282 = vadd.f32 %v7225, %v7281
    %v7283 = vsel %vm2868, %v7258, %v7282
    %v7284 = vmul.f32 %v7283, 0.035714287
    %v7285 = vmul.f32 %v7284, %v7284
    %v7287 = vrot.slane %v7285, 7
    %v7289 = vsub.f32 %v7284, %v7287
    %v7290 = vmax.f32 %v7289, 0.0
    %v7291 = vadd.f32 %v7290, 1e-05
    %v7292 = vrsqrt.pop %v7291
    %v7293 = vmul.f32 %v7292, %v7291
    %v7294 = vmul.f32 %v7293, %v7292
    %v7295 = vmul.f32 0.5, %v7294
    %v7296 = vsub.f32 1.5, %v7295
    %v7297 = vmul.f32 %v7292, %v7296
    %vm7298 = vweird.f32 %v7291
    %vm7299 = vweird.f32 %v7292
    %vm7300 = vmor %vm7298, %vm7299
    %v7301 = vsel %vm7300, %v7292, %v7297
    %v7302 = vsel %vm2868, %v7284, %v7301
    %v7303 = vld [vmem:[%s17] sm:$0x1]
    %v7305 = vperm.slane %v7303, 0
    %v7307 = vmul.f32 %v7302, %v7305
    %v7308 = vld [vmem:[#allocation4] sm:$0xff]
    %v7309 = vld [vmem:[#allocation4 + $0x8] sm:$0xff]
    %v7310 = vld [vmem:[#allocation4 + $0x10] sm:$0xff]
    %v7311 = vld [vmem:[#allocation4 + $0x18] sm:$0xff]
    %v7312 = vld [vmem:[#allocation4 + $0x20] sm:$0xff]
    %v7313 = vld [vmem:[#allocation4 + $0x28] sm:$0xff]
    %v7314 = vld [vmem:[#allocation4 + $0x30] sm:$0xff]
    %v7315 = vld [vmem:[#allocation4 + $0x38] sm:$0xff]
    %v7316 = vld [vmem:[#allocation4 + $0x40] sm:$0xff]
    %v7317 = vperm.slane %v7302, 0
    %v7318 = vsub.f32 %v7308, %v7317
    %v7319 = vsub.f32 %v7309, %v7317
    %v7320 = vsub.f32 %v7310, %v7317
    %v7321 = vsub.f32 %v7311, %v7317
    %v7322 = vsub.f32 %v7312, %v7317
    %v7323 = vsub.f32 %v7313, %v7317
    %v7324 = vsub.f32 %v7314, %v7317
    %v7325 = vsub.f32 %v7315, %v7317
    %v7326 = vsub.f32 %v7316, %v7317
    %v7327 = vsub.f32 %v7226, %v7317
    %v7328 = vsub.f32 %v7227, %v7317
    %v7329 = vsub.f32 %v7228, %v7317
    %v7330 = vsub.f32 %v7229, %v7317
    %v7331 = vsub.f32 %v7230, %v7317
    %v7332 = vsub.f32 %v7231, %v7317
    %v7333 = vsub.f32 %v7232, %v7317
    %v7334 = vsub.f32 %v7233, %v7317
    %v7335 = vsub.f32 %v7234, %v7317
    %v7336 = vperm.slane %v7307, 1
    %v7337 = vmul.f32 %v7318, %v7336
    %v7338 = vmul.f32 %v7319, %v7336
    %v7339 = vmul.f32 %v7320, %v7336
    %v7340 = vmul.f32 %v7321, %v7336
    %v7341 = vmul.f32 %v7322, %v7336
    %v7342 = vmul.f32 %v7323, %v7336
    %v7343 = vmul.f32 %v7324, %v7336
    %v7344 = vmul.f32 %v7325, %v7336
    %v7345 = vmul.f32 %v7326, %v7336
    %v7346 = vmul.f32 %v7327, %v7336
    %v7347 = vmul.f32 %v7328, %v7336
    %v7348 = vmul.f32 %v7329, %v7336
    %v7349 = vmul.f32 %v7330, %v7336
    %v7350 = vmul.f32 %v7331, %v7336
    %v7351 = vmul.f32 %v7332, %v7336
    %v7352 = vmul.f32 %v7333, %v7336
    %v7353 = vmul.f32 %v7334, %v7336
    %v7354 = vmul.f32 %v7335, %v7336
    %v7355 = vld [vmem:[%s18] sm:$0x1]
    %v7357 = vperm.slane %v7355, 0
    %v7359 = vadd.f32 %v7337, %v7357
    %v7360 = vadd.f32 %v7338, %v7357
    %v7361 = vadd.f32 %v7339, %v7357
    %v7362 = vadd.f32 %v7340, %v7357
    %v7363 = vadd.f32 %v7341, %v7357
    %v7364 = vadd.f32 %v7342, %v7357
    %v7365 = vadd.f32 %v7343, %v7357
    %v7366 = vadd.f32 %v7344, %v7357
    %v7367 = vadd.f32 %v7345, %v7357
    %v7368 = vadd.f32 %v7346, %v7357
    %v7369 = vadd.f32 %v7347, %v7357
    %v7370 = vadd.f32 %v7348, %v7357
    %v7371 = vadd.f32 %v7349, %v7357
    %v7372 = vadd.f32 %v7350, %v7357
    %v7373 = vadd.f32 %v7351, %v7357
    %v7374 = vadd.f32 %v7352, %v7357
    %v7375 = vadd.f32 %v7353, %v7357
    %v7376 = vadd.f32 %v7354, %v7357
    %v7377 = vmax.f32 %v7359, 0.0
    %v7378 = vmax.f32 %v7360, 0.0
    %v7379 = vmax.f32 %v7361, 0.0
    %v7380 = vmax.f32 %v7362, 0.0
    %v7381 = vmax.f32 %v7363, 0.0
    %v7382 = vmax.f32 %v7364, 0.0
    %v7383 = vmax.f32 %v7365, 0.0
    %v7384 = vmax.f32 %v7366, 0.0
    %v7385 = vmax.f32 %v7367, 0.0
    %v7386 = vmax.f32 %v7368, 0.0
    %v7387 = vmax.f32 %v7369, 0.0
    %v7388 = vmax.f32 %v7370, 0.0
    %v7389 = vmax.f32 %v7371, 0.0
    %v7390 = vmax.f32 %v7372, 0.0
    %v7391 = vmax.f32 %v7373, 0.0
    %v7392 = vmax.f32 %v7374, 0.0
    %v7393 = vmax.f32 %v7375, 0.0
    %v7394 = vmax.f32 %v7376, 0.0
    %7395 = vst [vmem:[#allocation4] sm:$0xff] %v7377
    %7396 = vst [vmem:[#allocation4 + $0x8] sm:$0xff] %v7378
    %7397 = vst [vmem:[#allocation4 + $0x10] sm:$0xff] %v7379
    %7398 = vst [vmem:[#allocation4 + $0x18] sm:$0xff] %v7380
    %7399 = vst [vmem:[#allocation4 + $0x20] sm:$0xff] %v7381
    %7400 = vst [vmem:[#allocation4 + $0x28] sm:$0xff] %v7382
    %7401 = vst [vmem:[#allocation4 + $0x30] sm:$0xff] %v7383
    %7402 = vst [vmem:[#allocation4 + $0x38] sm:$0xff] %v7384
    %7403 = vst [vmem:[#allocation4 + $0x40] sm:$0xff] %v7385
    %7404 = vst [vmem:[#allocation4 + $0x48] sm:$0xff] %v7386
    %7405 = vst [vmem:[#allocation4 + $0x50] sm:$0xff] %v7387
    %7406 = vst [vmem:[#allocation4 + $0x58] sm:$0xff] %v7388
    %7407 = vst [vmem:[#allocation4 + $0x60] sm:$0xff] %v7389
    %7408 = vst [vmem:[#allocation4 + $0x68] sm:$0xff] %v7390
    %7409 = vst [vmem:[#allocation4 + $0x70] sm:$0xff] %v7391
    %7410 = vst [vmem:[#allocation4 + $0x78] sm:$0xff] %v7392
    %7411 = vst [vmem:[#allocation4 + $0x80] sm:$0xff] %v7393
    %7412 = vst [vmem:[#allocation4 + $0x88] sm:$0xff] %v7394
    %7413 = vst [vmem:[#allocation4 + $0x90] sm:$0xff] 0.0
    %7414 = vst [vmem:[#allocation4 + $0x98] sm:$0xff] 0.0
    %7415 = vst [vmem:[#allocation4 + $0xa0] sm:$0xff] 0.0
    %7416 = vst [vmem:[#allocation4 + $0xa8] sm:$0xff] 0.0
    %v7417 = vld [vmem:[#allocation4] ss:$72 sm:$0x3]
    %v7418 = vpack.c.bf16 %v7417, %v7417
    %v7419 = vld [vmem:[%s4] sm:$0xf]
    %v7420 = vld [vmem:[%s4 + $0x4] sm:$0xf]
    %v7421 = vld [vmem:[%s4 + $0x8] sm:$0xf]
    %v7422 = vld [vmem:[%s4 + $0xc] sm:$0xf]
    %v7423 = vld [vmem:[%s4 + $0x10] sm:$0xf]
    %v7424 = vld [vmem:[%s4 + $0x14] sm:$0xf]
    %v7425 = vld [vmem:[%s4 + $0x18] sm:$0xf]
    %v7426 = vld [vmem:[%s4 + $0x1c] sm:$0xf]
    %v7427 = vld [vmem:[%s4 + $0x20] sm:$0xf]
    %v7428 = vld [vmem:[%s4 + $0x24] sm:$0xf]
    %v7429 = vld [vmem:[%s4 + $0x28] sm:$0xf]
    %v7430 = vld [vmem:[%s4 + $0x2c] sm:$0xf]
    %v7431 = vld [vmem:[%s4 + $0x30] sm:$0xf]
    %v7432 = vld [vmem:[%s4 + $0x34] sm:$0xf]
    %v7433 = vld [vmem:[%s4 + $0x38] sm:$0xf]
    %v7434 = vld [vmem:[%s4 + $0x3c] sm:$0xf]
    %s7435 = scalar_lea.vmem [#allocation4], 1
    %v7436 = vld [vmem:[%s7435] ss:$72 sm:$0x3]
    %v7437 = vpack.c.bf16 %v7436, %v7436
    %s7438 = scalar_lea.vmem %s4, 64
    %v7439 = vld [vmem:[%s7438] sm:$0xf]
    %v7440 = vld [vmem:[%s7438 + $0x4] sm:$0xf]
    %v7441 = vld [vmem:[%s7438 + $0x8] sm:$0xf]
    %v7442 = vld [vmem:[%s7438 + $0xc] sm:$0xf]
    %v7443 = vld [vmem:[%s7438 + $0x10] sm:$0xf]
    %v7444 = vld [vmem:[%s7438 + $0x14] sm:$0xf]
    %v7445 = vld [vmem:[%s7438 + $0x18] sm:$0xf]
    %v7446 = vld [vmem:[%s7438 + $0x1c] sm:$0xf]
    %v7447 = vld [vmem:[%s7438 + $0x20] sm:$0xf]
    %v7448 = vld [vmem:[%s7438 + $0x24] sm:$0xf]
    %v7449 = vld [vmem:[%s7438 + $0x28] sm:$0xf]
    %v7450 = vld [vmem:[%s7438 + $0x2c] sm:$0xf]
    %v7451 = vld [vmem:[%s7438 + $0x30] sm:$0xf]
    %v7452 = vld [vmem:[%s7438 + $0x34] sm:$0xf]
    %v7453 = vld [vmem:[%s7438 + $0x38] sm:$0xf]
    %v7454 = vld [vmem:[%s7438 + $0x3c] sm:$0xf]
    %v7471 = vunpack.c.l.b16 %v7439
    %v7472 = vunpack.c.l.b16 %v7440
    %v7473 = vunpack.c.l.b16 %v7441
    %v7474 = vunpack.c.l.b16 %v7442
    %v7475 = vunpack.c.l.b16 %v7443
    %v7476 = vunpack.c.l.b16 %v7444
    %v7477 = vunpack.c.l.b16 %v7445
    %v7478 = vunpack.c.l.b16 %v7446
    %v7479 = vunpack.c.l.b16 %v7447
    %v7480 = vunpack.c.l.b16 %v7448
    %v7481 = vunpack.c.l.b16 %v7449
    %v7482 = vunpack.c.l.b16 %v7450
    %v7483 = vunpack.c.l.b16 %v7451
    %v7484 = vunpack.c.l.b16 %v7452
    %v7485 = vunpack.c.l.b16 %v7453
    %v7486 = vunpack.c.l.b16 %v7454
    %v7487 = vpack.c.b16 %v7472, %v7471
    %v7488 = vpack.c.b16 %v7474, %v7473
    %v7489 = vpack.c.b16 %v7476, %v7475
    %v7490 = vpack.c.b16 %v7478, %v7477
    %v7491 = vpack.c.b16 %v7480, %v7479
    %v7492 = vpack.c.b16 %v7482, %v7481
    %v7493 = vpack.c.b16 %v7484, %v7483
    %v7494 = vpack.c.b16 %v7486, %v7485
    %7503 = vmatpush.bf16.msra.mxu0 %v7494
    %7504 = vmatpush.bf16.msra.mxu0 %v7493
    %7505 = vmatpush.bf16.msra.mxu0 %v7492
    %7506 = vmatpush.bf16.msra.mxu0 %v7491
    %7507 = vmatpush.bf16.msra.mxu0 %v7490
    %7508 = vmatpush.bf16.msra.mxu0 %v7489
    %7509 = vmatpush.bf16.msra.mxu0 %v7488
    %7510 = vmatpush.bf16.msra.mxu0 %v7487
    %7511 = vmatmul.bf16.gmra.mxu0 %v7437
    %v7512 = vpop.f32.mrf.mxu0
    %v7513 = vadd.f32 0.0, %v7512
    %v7514 = vpop.f32.mrf.mxu0
    %7515 = vdwg.mxu0
    %v7532 = vunpack.c.l.b16 %v7419
    %v7533 = vunpack.c.l.b16 %v7420
    %v7534 = vunpack.c.l.b16 %v7421
    %v7535 = vunpack.c.l.b16 %v7422
    %v7536 = vunpack.c.l.b16 %v7423
    %v7537 = vunpack.c.l.b16 %v7424
    %v7538 = vunpack.c.l.b16 %v7425
    %v7539 = vunpack.c.l.b16 %v7426
    %v7540 = vunpack.c.l.b16 %v7427
    %v7541 = vunpack.c.l.b16 %v7428
    %v7542 = vunpack.c.l.b16 %v7429
    %v7543 = vunpack.c.l.b16 %v7430
    %v7544 = vunpack.c.l.b16 %v7431
    %v7545 = vunpack.c.l.b16 %v7432
    %v7546 = vunpack.c.l.b16 %v7433
    %v7547 = vunpack.c.l.b16 %v7434
    %v7548 = vpack.c.b16 %v7533, %v7532
    %v7549 = vpack.c.b16 %v7535, %v7534
    %v7550 = vpack.c.b16 %v7537, %v7536
    %v7551 = vpack.c.b16 %v7539, %v7538
    %v7552 = vpack.c.b16 %v7541, %v7540
    %v7553 = vpack.c.b16 %v7543, %v7542
    %v7554 = vpack.c.b16 %v7545, %v7544
    %v7555 = vpack.c.b16 %v7547, %v7546
    %7564 = vmatpush.bf16.msra.mxu0 %v7555
    %7565 = vmatpush.bf16.msra.mxu0 %v7554
    %7566 = vmatpush.bf16.msra.mxu0 %v7553
    %7567 = vmatpush.bf16.msra.mxu0 %v7552
    %7568 = vmatpush.bf16.msra.mxu0 %v7551
    %7569 = vmatpush.bf16.msra.mxu0 %v7550
    %7570 = vmatpush.bf16.msra.mxu0 %v7549
    %7571 = vmatpush.bf16.msra.mxu0 %v7548
    %7572 = vmatmul.bf16.gmra.mxu0 %v7418
    %v7573 = vpop.f32.mrf.mxu0
    %v7574 = vadd.f32 %v7513, %v7573
    %v7575 = vpop.f32.mrf.mxu0
    %7576 = vdwg.mxu0
    %s7577 = scalar_lea.vmem [#allocation4], 2
    %v7578 = vld [vmem:[%s7577] ss:$72 sm:$0x3]
    %v7579 = vpack.c.bf16 %v7578, %v7578
    %s7580 = scalar_lea.vmem %s4, 128
    %v7581 = vld [vmem:[%s7580] sm:$0xf]
    %v7582 = vld [vmem:[%s7580 + $0x4] sm:$0xf]
    %v7583 = vld [vmem:[%s7580 + $0x8] sm:$0xf]
    %v7584 = vld [vmem:[%s7580 + $0xc] sm:$0xf]
    %v7585 = vld [vmem:[%s7580 + $0x10] sm:$0xf]
    %v7586 = vld [vmem:[%s7580 + $0x14] sm:$0xf]
    %v7587 = vld [vmem:[%s7580 + $0x18] sm:$0xf]
    %v7588 = vld [vmem:[%s7580 + $0x1c] sm:$0xf]
    %v7589 = vld [vmem:[%s7580 + $0x20] sm:$0xf]
    %v7590 = vld [vmem:[%s7580 + $0x24] sm:$0xf]
    %v7591 = vld [vmem:[%s7580 + $0x28] sm:$0xf]
    %v7592 = vld [vmem:[%s7580 + $0x2c] sm:$0xf]
    %v7593 = vld [vmem:[%s7580 + $0x30] sm:$0xf]
    %v7594 = vld [vmem:[%s7580 + $0x34] sm:$0xf]
    %v7595 = vld [vmem:[%s7580 + $0x38] sm:$0xf]
    %v7596 = vld [vmem:[%s7580 + $0x3c] sm:$0xf]
    %v7613 = vunpack.c.l.b16 %v7581
    %v7614 = vunpack.c.l.b16 %v7582
    %v7615 = vunpack.c.l.b16 %v7583
    %v7616 = vunpack.c.l.b16 %v7584
    %v7617 = vunpack.c.l.b16 %v7585
    %v7618 = vunpack.c.l.b16 %v7586
    %v7619 = vunpack.c.l.b16 %v7587
    %v7620 = vunpack.c.l.b16 %v7588
    %v7621 = vunpack.c.l.b16 %v7589
    %v7622 = vunpack.c.l.b16 %v7590
    %v7623 = vunpack.c.l.b16 %v7591
    %v7624 = vunpack.c.l.b16 %v7592
    %v7625 = vunpack.c.l.b16 %v7593
    %v7626 = vunpack.c.l.b16 %v7594
    %v7627 = vunpack.c.l.b16 %v7595
    %v7628 = vunpack.c.l.b16 %v7596
    %v7629 = vpack.c.b16 %v7614, %v7613
    %v7630 = vpack.c.b16 %v7616, %v7615
    %v7631 = vpack.c.b16 %v7618, %v7617
    %v7632 = vpack.c.b16 %v7620, %v7619
    %v7633 = vpack.c.b16 %v7622, %v7621
    %v7634 = vpack.c.b16 %v7624, %v7623
    %v7635 = vpack.c.b16 %v7626, %v7625
    %v7636 = vpack.c.b16 %v7628, %v7627
    %7645 = vmatpush.bf16.msra.mxu0 %v7636
    %7646 = vmatpush.bf16.msra.mxu0 %v7635
    %7647 = vmatpush.bf16.msra.mxu0 %v7634
    %7648 = vmatpush.bf16.msra.mxu0 %v7633
    %7649 = vmatpush.bf16.msra.mxu0 %v7632
    %7650 = vmatpush.bf16.msra.mxu0 %v7631
    %7651 = vmatpush.bf16.msra.mxu0 %v7630
    %7652 = vmatpush.bf16.msra.mxu0 %v7629
    %7653 = vmatmul.bf16.gmra.mxu0 %v7579
    %v7654 = vpop.f32.mrf.mxu0
    %v7655 = vadd.f32 0.0, %v7654
    %v7656 = vpop.f32.mrf.mxu0
    %7657 = vdwg.mxu0
    %v7658 = vadd.f32 %v7574, %v7655
    %s7659 = scalar_lea.vmem [#allocation4], 3
    %v7660 = vld [vmem:[%s7659] ss:$72 sm:$0x3]
    %v7661 = vpack.c.bf16 %v7660, %v7660
    %s7662 = scalar_lea.vmem %s4, 192
    %v7663 = vld [vmem:[%s7662] sm:$0xf]
    %v7664 = vld [vmem:[%s7662 + $0x4] sm:$0xf]
    %v7665 = vld [vmem:[%s7662 + $0x8] sm:$0xf]
    %v7666 = vld [vmem:[%s7662 + $0xc] sm:$0xf]
    %v7667 = vld [vmem:[%s7662 + $0x10] sm:$0xf]
    %v7668 = vld [vmem:[%s7662 + $0x14] sm:$0xf]
    %v7669 = vld [vmem:[%s7662 + $0x18] sm:$0xf]
    %v7670 = vld [vmem:[%s7662 + $0x1c] sm:$0xf]
    %v7671 = vld [vmem:[%s7662 + $0x20] sm:$0xf]
    %v7672 = vld [vmem:[%s7662 + $0x24] sm:$0xf]
    %v7673 = vld [vmem:[%s7662 + $0x28] sm:$0xf]
    %v7674 = vld [vmem:[%s7662 + $0x2c] sm:$0xf]
    %v7675 = vld [vmem:[%s7662 + $0x30] sm:$0xf]
    %v7676 = vld [vmem:[%s7662 + $0x34] sm:$0xf]
    %v7677 = vld [vmem:[%s7662 + $0x38] sm:$0xf]
    %v7678 = vld [vmem:[%s7662 + $0x3c] sm:$0xf]
    %v7695 = vunpack.c.l.b16 %v7663
    %v7696 = vunpack.c.l.b16 %v7664
    %v7697 = vunpack.c.l.b16 %v7665
    %v7698 = vunpack.c.l.b16 %v7666
    %v7699 = vunpack.c.l.b16 %v7667
    %v7700 = vunpack.c.l.b16 %v7668
    %v7701 = vunpack.c.l.b16 %v7669
    %v7702 = vunpack.c.l.b16 %v7670
    %v7703 = vunpack.c.l.b16 %v7671
    %v7704 = vunpack.c.l.b16 %v7672
    %v7705 = vunpack.c.l.b16 %v7673
    %v7706 = vunpack.c.l.b16 %v7674
    %v7707 = vunpack.c.l.b16 %v7675
    %v7708 = vunpack.c.l.b16 %v7676
    %v7709 = vunpack.c.l.b16 %v7677
    %v7710 = vunpack.c.l.b16 %v7678
    %v7711 = vpack.c.b16 %v7696, %v7695
    %v7712 = vpack.c.b16 %v7698, %v7697
    %v7713 = vpack.c.b16 %v7700, %v7699
    %v7714 = vpack.c.b16 %v7702, %v7701
    %v7715 = vpack.c.b16 %v7704, %v7703
    %v7716 = vpack.c.b16 %v7706, %v7705
    %v7717 = vpack.c.b16 %v7708, %v7707
    %v7718 = vpack.c.b16 %v7710, %v7709
    %7727 = vmatpush.bf16.msra.mxu0 %v7718
    %7728 = vmatpush.bf16.msra.mxu0 %v7717
    %7729 = vmatpush.bf16.msra.mxu0 %v7716
    %7730 = vmatpush.bf16.msra.mxu0 %v7715
    %7731 = vmatpush.bf16.msra.mxu0 %v7714
    %7732 = vmatpush.bf16.msra.mxu0 %v7713
    %7733 = vmatpush.bf16.msra.mxu0 %v7712
    %7734 = vmatpush.bf16.msra.mxu0 %v7711
    %7735 = vmatmul.bf16.gmra.mxu0 %v7661
    %v7736 = vpop.f32.mrf.mxu0
    %v7737 = vadd.f32 0.0, %v7736
    %v7738 = vpop.f32.mrf.mxu0
    %7739 = vdwg.mxu0
    %v7740 = vadd.f32 %v7658, %v7737
    %s7741 = scalar_lea.vmem [#allocation4], 4
    %v7742 = vld [vmem:[%s7741] ss:$72 sm:$0x3]
    %v7743 = vpack.c.bf16 %v7742, %v7742
    %s7744 = scalar_lea.vmem %s4, 256
    %v7745 = vld [vmem:[%s7744] sm:$0xf]
    %v7746 = vld [vmem:[%s7744 + $0x4] sm:$0xf]
    %v7747 = vld [vmem:[%s7744 + $0x8] sm:$0xf]
    %v7748 = vld [vmem:[%s7744 + $0xc] sm:$0xf]
    %v7749 = vld [vmem:[%s7744 + $0x10] sm:$0xf]
    %v7750 = vld [vmem:[%s7744 + $0x14] sm:$0xf]
    %v7751 = vld [vmem:[%s7744 + $0x18] sm:$0xf]
    %v7752 = vld [vmem:[%s7744 + $0x1c] sm:$0xf]
    %v7753 = vld [vmem:[%s7744 + $0x20] sm:$0xf]
    %v7754 = vld [vmem:[%s7744 + $0x24] sm:$0xf]
    %v7755 = vld [vmem:[%s7744 + $0x28] sm:$0xf]
    %v7756 = vld [vmem:[%s7744 + $0x2c] sm:$0xf]
    %v7757 = vld [vmem:[%s7744 + $0x30] sm:$0xf]
    %v7758 = vld [vmem:[%s7744 + $0x34] sm:$0xf]
    %v7759 = vld [vmem:[%s7744 + $0x38] sm:$0xf]
    %v7760 = vld [vmem:[%s7744 + $0x3c] sm:$0xf]
    %v7777 = vunpack.c.l.b16 %v7745
    %v7778 = vunpack.c.l.b16 %v7746
    %v7779 = vunpack.c.l.b16 %v7747
    %v7780 = vunpack.c.l.b16 %v7748
    %v7781 = vunpack.c.l.b16 %v7749
    %v7782 = vunpack.c.l.b16 %v7750
    %v7783 = vunpack.c.l.b16 %v7751
    %v7784 = vunpack.c.l.b16 %v7752
    %v7785 = vunpack.c.l.b16 %v7753
    %v7786 = vunpack.c.l.b16 %v7754
    %v7787 = vunpack.c.l.b16 %v7755
    %v7788 = vunpack.c.l.b16 %v7756
    %v7789 = vunpack.c.l.b16 %v7757
    %v7790 = vunpack.c.l.b16 %v7758
    %v7791 = vunpack.c.l.b16 %v7759
    %v7792 = vunpack.c.l.b16 %v7760
    %v7793 = vpack.c.b16 %v7778, %v7777
    %v7794 = vpack.c.b16 %v7780, %v7779
    %v7795 = vpack.c.b16 %v7782, %v7781
    %v7796 = vpack.c.b16 %v7784, %v7783
    %v7797 = vpack.c.b16 %v7786, %v7785
    %v7798 = vpack.c.b16 %v7788, %v7787
    %v7799 = vpack.c.b16 %v7790, %v7789
    %v7800 = vpack.c.b16 %v7792, %v7791
    %7809 = vmatpush.bf16.msra.mxu0 %v7800
    %7810 = vmatpush.bf16.msra.mxu0 %v7799
    %7811 = vmatpush.bf16.msra.mxu0 %v7798
    %7812 = vmatpush.bf16.msra.mxu0 %v7797
    %7813 = vmatpush.bf16.msra.mxu0 %v7796
    %7814 = vmatpush.bf16.msra.mxu0 %v7795
    %7815 = vmatpush.bf16.msra.mxu0 %v7794
    %7816 = vmatpush.bf16.msra.mxu0 %v7793
    %7817 = vmatmul.bf16.gmra.mxu0 %v7743
    %v7818 = vpop.f32.mrf.mxu0
    %v7819 = vadd.f32 0.0, %v7818
    %v7820 = vpop.f32.mrf.mxu0
    %7821 = vdwg.mxu0
    %v7822 = vadd.f32 %v7740, %v7819
    %s7823 = scalar_lea.vmem [#allocation4], 5
    %v7824 = vld [vmem:[%s7823] ss:$72 sm:$0x3]
    %v7825 = vpack.c.bf16 %v7824, %v7824
    %s7826 = scalar_lea.vmem %s4, 320
    %v7827 = vld [vmem:[%s7826] sm:$0xf]
    %v7828 = vld [vmem:[%s7826 + $0x4] sm:$0xf]
    %v7829 = vld [vmem:[%s7826 + $0x8] sm:$0xf]
    %v7830 = vld [vmem:[%s7826 + $0xc] sm:$0xf]
    %v7831 = vld [vmem:[%s7826 + $0x10] sm:$0xf]
    %v7832 = vld [vmem:[%s7826 + $0x14] sm:$0xf]
    %v7833 = vld [vmem:[%s7826 + $0x18] sm:$0xf]
    %v7834 = vld [vmem:[%s7826 + $0x1c] sm:$0xf]
    %v7835 = vld [vmem:[%s7826 + $0x20] sm:$0xf]
    %v7836 = vld [vmem:[%s7826 + $0x24] sm:$0xf]
    %v7837 = vld [vmem:[%s7826 + $0x28] sm:$0xf]
    %v7838 = vld [vmem:[%s7826 + $0x2c] sm:$0xf]
    %v7839 = vld [vmem:[%s7826 + $0x30] sm:$0xf]
    %v7840 = vld [vmem:[%s7826 + $0x34] sm:$0xf]
    %v7841 = vld [vmem:[%s7826 + $0x38] sm:$0xf]
    %v7842 = vld [vmem:[%s7826 + $0x3c] sm:$0xf]
    %v7859 = vunpack.c.l.b16 %v7827
    %v7860 = vunpack.c.l.b16 %v7828
    %v7861 = vunpack.c.l.b16 %v7829
    %v7862 = vunpack.c.l.b16 %v7830
    %v7863 = vunpack.c.l.b16 %v7831
    %v7864 = vunpack.c.l.b16 %v7832
    %v7865 = vunpack.c.l.b16 %v7833
    %v7866 = vunpack.c.l.b16 %v7834
    %v7867 = vunpack.c.l.b16 %v7835
    %v7868 = vunpack.c.l.b16 %v7836
    %v7869 = vunpack.c.l.b16 %v7837
    %v7870 = vunpack.c.l.b16 %v7838
    %v7871 = vunpack.c.l.b16 %v7839
    %v7872 = vunpack.c.l.b16 %v7840
    %v7873 = vunpack.c.l.b16 %v7841
    %v7874 = vunpack.c.l.b16 %v7842
    %v7875 = vpack.c.b16 %v7860, %v7859
    %v7876 = vpack.c.b16 %v7862, %v7861
    %v7877 = vpack.c.b16 %v7864, %v7863
    %v7878 = vpack.c.b16 %v7866, %v7865
    %v7879 = vpack.c.b16 %v7868, %v7867
    %v7880 = vpack.c.b16 %v7870, %v7869
    %v7881 = vpack.c.b16 %v7872, %v7871
    %v7882 = vpack.c.b16 %v7874, %v7873
    %7891 = vmatpush.bf16.msra.mxu0 %v7882
    %7892 = vmatpush.bf16.msra.mxu0 %v7881
    %7893 = vmatpush.bf16.msra.mxu0 %v7880
    %7894 = vmatpush.bf16.msra.mxu0 %v7879
    %7895 = vmatpush.bf16.msra.mxu0 %v7878
    %7896 = vmatpush.bf16.msra.mxu0 %v7877
    %7897 = vmatpush.bf16.msra.mxu0 %v7876
    %7898 = vmatpush.bf16.msra.mxu0 %v7875
    %7899 = vmatmul.bf16.gmra.mxu0 %v7825
    %v7900 = vpop.f32.mrf.mxu0
    %v7901 = vadd.f32 0.0, %v7900
    %v7902 = vpop.f32.mrf.mxu0
    %7903 = vdwg.mxu0
    %v7904 = vadd.f32 %v7822, %v7901
    %s7905 = scalar_lea.vmem [#allocation4], 6
    %v7906 = vld [vmem:[%s7905] ss:$72 sm:$0x3]
    %v7907 = vpack.c.bf16 %v7906, %v7906
    %s7908 = scalar_lea.vmem %s4, 384
    %v7909 = vld [vmem:[%s7908] sm:$0xf]
    %v7910 = vld [vmem:[%s7908 + $0x4] sm:$0xf]
    %v7911 = vld [vmem:[%s7908 + $0x8] sm:$0xf]
    %v7912 = vld [vmem:[%s7908 + $0xc] sm:$0xf]
    %v7913 = vld [vmem:[%s7908 + $0x10] sm:$0xf]
    %v7914 = vld [vmem:[%s7908 + $0x14] sm:$0xf]
    %v7915 = vld [vmem:[%s7908 + $0x18] sm:$0xf]
    %v7916 = vld [vmem:[%s7908 + $0x1c] sm:$0xf]
    %v7917 = vld [vmem:[%s7908 + $0x20] sm:$0xf]
    %v7918 = vld [vmem:[%s7908 + $0x24] sm:$0xf]
    %v7919 = vld [vmem:[%s7908 + $0x28] sm:$0xf]
    %v7920 = vld [vmem:[%s7908 + $0x2c] sm:$0xf]
    %v7921 = vld [vmem:[%s7908 + $0x30] sm:$0xf]
    %v7922 = vld [vmem:[%s7908 + $0x34] sm:$0xf]
    %v7923 = vld [vmem:[%s7908 + $0x38] sm:$0xf]
    %v7924 = vld [vmem:[%s7908 + $0x3c] sm:$0xf]
    %v7941 = vunpack.c.l.b16 %v7909
    %v7942 = vunpack.c.l.b16 %v7910
    %v7943 = vunpack.c.l.b16 %v7911
    %v7944 = vunpack.c.l.b16 %v7912
    %v7945 = vunpack.c.l.b16 %v7913
    %v7946 = vunpack.c.l.b16 %v7914
    %v7947 = vunpack.c.l.b16 %v7915
    %v7948 = vunpack.c.l.b16 %v7916
    %v7949 = vunpack.c.l.b16 %v7917
    %v7950 = vunpack.c.l.b16 %v7918
    %v7951 = vunpack.c.l.b16 %v7919
    %v7952 = vunpack.c.l.b16 %v7920
    %v7953 = vunpack.c.l.b16 %v7921
    %v7954 = vunpack.c.l.b16 %v7922
    %v7955 = vunpack.c.l.b16 %v7923
    %v7956 = vunpack.c.l.b16 %v7924
    %v7957 = vpack.c.b16 %v7942, %v7941
    %v7958 = vpack.c.b16 %v7944, %v7943
    %v7959 = vpack.c.b16 %v7946, %v7945
    %v7960 = vpack.c.b16 %v7948, %v7947
    %v7961 = vpack.c.b16 %v7950, %v7949
    %v7962 = vpack.c.b16 %v7952, %v7951
    %v7963 = vpack.c.b16 %v7954, %v7953
    %v7964 = vpack.c.b16 %v7956, %v7955
    %7973 = vmatpush.bf16.msra.mxu0 %v7964
    %7974 = vmatpush.bf16.msra.mxu0 %v7963
    %7975 = vmatpush.bf16.msra.mxu0 %v7962
    %7976 = vmatpush.bf16.msra.mxu0 %v7961
    %7977 = vmatpush.bf16.msra.mxu0 %v7960
    %7978 = vmatpush.bf16.msra.mxu0 %v7959
    %7979 = vmatpush.bf16.msra.mxu0 %v7958
    %7980 = vmatpush.bf16.msra.mxu0 %v7957
    %7981 = vmatmul.bf16.gmra.mxu0 %v7907
    %v7982 = vpop.f32.mrf.mxu0
    %v7983 = vadd.f32 0.0, %v7982
    %v7984 = vpop.f32.mrf.mxu0
    %7985 = vdwg.mxu0
    %v7986 = vadd.f32 %v7904, %v7983
    %s7987 = scalar_lea.vmem [#allocation4], 12
    %v7988 = vld [vmem:[%s7987] ss:$72 sm:$0x3]
    %v7989 = vpack.c.bf16 %v7988, %v7988
    %s7990 = scalar_lea.vmem %s4, 448
    %v7991 = vld [vmem:[%s7990] sm:$0xf]
    %v7992 = vld [vmem:[%s7990 + $0x4] sm:$0xf]
    %v7993 = vld [vmem:[%s7990 + $0x8] sm:$0xf]
    %v7994 = vld [vmem:[%s7990 + $0xc] sm:$0xf]
    %v7995 = vld [vmem:[%s7990 + $0x10] sm:$0xf]
    %v7996 = vld [vmem:[%s7990 + $0x14] sm:$0xf]
    %v7997 = vld [vmem:[%s7990 + $0x18] sm:$0xf]
    %v7998 = vld [vmem:[%s7990 + $0x1c] sm:$0xf]
    %v7999 = vld [vmem:[%s7990 + $0x20] sm:$0xf]
    %v8000 = vld [vmem:[%s7990 + $0x24] sm:$0xf]
    %v8001 = vld [vmem:[%s7990 + $0x28] sm:$0xf]
    %v8002 = vld [vmem:[%s7990 + $0x2c] sm:$0xf]
    %v8003 = vld [vmem:[%s7990 + $0x30] sm:$0xf]
    %v8004 = vld [vmem:[%s7990 + $0x34] sm:$0xf]
    %v8005 = vld [vmem:[%s7990 + $0x38] sm:$0xf]
    %v8006 = vld [vmem:[%s7990 + $0x3c] sm:$0xf]
    %v8023 = vunpack.c.l.b16 %v7991
    %v8024 = vunpack.c.l.b16 %v7992
    %v8025 = vunpack.c.l.b16 %v7993
    %v8026 = vunpack.c.l.b16 %v7994
    %v8027 = vunpack.c.l.b16 %v7995
    %v8028 = vunpack.c.l.b16 %v7996
    %v8029 = vunpack.c.l.b16 %v7997
    %v8030 = vunpack.c.l.b16 %v7998
    %v8031 = vunpack.c.l.b16 %v7999
    %v8032 = vunpack.c.l.b16 %v8000
    %v8033 = vunpack.c.l.b16 %v8001
    %v8034 = vunpack.c.l.b16 %v8002
    %v8035 = vunpack.c.l.b16 %v8003
    %v8036 = vunpack.c.l.b16 %v8004
    %v8037 = vunpack.c.l.b16 %v8005
    %v8038 = vunpack.c.l.b16 %v8006
    %v8039 = vpack.c.b16 %v8024, %v8023
    %v8040 = vpack.c.b16 %v8026, %v8025
    %v8041 = vpack.c.b16 %v8028, %v8027
    %v8042 = vpack.c.b16 %v8030, %v8029
    %v8043 = vpack.c.b16 %v8032, %v8031
    %v8044 = vpack.c.b16 %v8034, %v8033
    %v8045 = vpack.c.b16 %v8036, %v8035
    %v8046 = vpack.c.b16 %v8038, %v8037
    %8055 = vmatpush.bf16.msra.mxu0 %v8046
    %8056 = vmatpush.bf16.msra.mxu0 %v8045
    %8057 = vmatpush.bf16.msra.mxu0 %v8044
    %8058 = vmatpush.bf16.msra.mxu0 %v8043
    %8059 = vmatpush.bf16.msra.mxu0 %v8042
    %8060 = vmatpush.bf16.msra.mxu0 %v8041
    %8061 = vmatpush.bf16.msra.mxu0 %v8040
    %8062 = vmatpush.bf16.msra.mxu0 %v8039
    %8063 = vmatmul.bf16.gmra.mxu0 %v7989
    %v8064 = vpop.f32.mrf.mxu0
    %v8065 = vadd.f32 0.0, %v8064
    %v8066 = vpop.f32.mrf.mxu0
    %8067 = vdwg.mxu0
    %v8068 = vadd.f32 %v7986, %v8065
    %s8069 = scalar_lea.vmem [#allocation4], 13
    %v8070 = vld [vmem:[%s8069] ss:$72 sm:$0x3]
    %v8071 = vpack.c.bf16 %v8070, %v8070
    %s8072 = scalar_lea.vmem %s4, 512
    %v8073 = vld [vmem:[%s8072] sm:$0xf]
    %v8074 = vld [vmem:[%s8072 + $0x4] sm:$0xf]
    %v8075 = vld [vmem:[%s8072 + $0x8] sm:$0xf]
    %v8076 = vld [vmem:[%s8072 + $0xc] sm:$0xf]
    %v8077 = vld [vmem:[%s8072 + $0x10] sm:$0xf]
    %v8078 = vld [vmem:[%s8072 + $0x14] sm:$0xf]
    %v8079 = vld [vmem:[%s8072 + $0x18] sm:$0xf]
    %v8080 = vld [vmem:[%s8072 + $0x1c] sm:$0xf]
    %v8081 = vld [vmem:[%s8072 + $0x20] sm:$0xf]
    %v8082 = vld [vmem:[%s8072 + $0x24] sm:$0xf]
    %v8083 = vld [vmem:[%s8072 + $0x28] sm:$0xf]
    %v8084 = vld [vmem:[%s8072 + $0x2c] sm:$0xf]
    %v8085 = vld [vmem:[%s8072 + $0x30] sm:$0xf]
    %v8086 = vld [vmem:[%s8072 + $0x34] sm:$0xf]
    %v8087 = vld [vmem:[%s8072 + $0x38] sm:$0xf]
    %v8088 = vld [vmem:[%s8072 + $0x3c] sm:$0xf]
    %v8105 = vunpack.c.l.b16 %v8073
    %v8106 = vunpack.c.l.b16 %v8074
    %v8107 = vunpack.c.l.b16 %v8075
    %v8108 = vunpack.c.l.b16 %v8076
    %v8109 = vunpack.c.l.b16 %v8077
    %v8110 = vunpack.c.l.b16 %v8078
    %v8111 = vunpack.c.l.b16 %v8079
    %v8112 = vunpack.c.l.b16 %v8080
    %v8113 = vunpack.c.l.b16 %v8081
    %v8114 = vunpack.c.l.b16 %v8082
    %v8115 = vunpack.c.l.b16 %v8083
    %v8116 = vunpack.c.l.b16 %v8084
    %v8117 = vunpack.c.l.b16 %v8085
    %v8118 = vunpack.c.l.b16 %v8086
    %v8119 = vunpack.c.l.b16 %v8087
    %v8120 = vunpack.c.l.b16 %v8088
    %v8121 = vpack.c.b16 %v8106, %v8105
    %v8122 = vpack.c.b16 %v8108, %v8107
    %v8123 = vpack.c.b16 %v8110, %v8109
    %v8124 = vpack.c.b16 %v8112, %v8111
    %v8125 = vpack.c.b16 %v8114, %v8113
    %v8126 = vpack.c.b16 %v8116, %v8115
    %v8127 = vpack.c.b16 %v8118, %v8117
    %v8128 = vpack.c.b16 %v8120, %v8119
    %8137 = vmatpush.bf16.msra.mxu0 %v8128
    %8138 = vmatpush.bf16.msra.mxu0 %v8127
    %8139 = vmatpush.bf16.msra.mxu0 %v8126
    %8140 = vmatpush.bf16.msra.mxu0 %v8125
    %8141 = vmatpush.bf16.msra.mxu0 %v8124
    %8142 = vmatpush.bf16.msra.mxu0 %v8123
    %8143 = vmatpush.bf16.msra.mxu0 %v8122
    %8144 = vmatpush.bf16.msra.mxu0 %v8121
    %8145 = vmatmul.bf16.gmra.mxu0 %v8071
    %v8146 = vpop.f32.mrf.mxu0
    %v8147 = vadd.f32 0.0, %v8146
    %v8148 = vpop.f32.mrf.mxu0
    %8149 = vdwg.mxu0
    %v8150 = vadd.f32 %v8068, %v8147
    %s8151 = scalar_lea.vmem [#allocation4], 14
    %v8152 = vld [vmem:[%s8151] ss:$72 sm:$0x3]
    %v8153 = vpack.c.bf16 %v8152, %v8152
    %s8154 = scalar_lea.vmem %s4, 576
    %v8155 = vld [vmem:[%s8154] sm:$0xf]
    %v8156 = vld [vmem:[%s8154 + $0x4] sm:$0xf]
    %v8157 = vld [vmem:[%s8154 + $0x8] sm:$0xf]
    %v8158 = vld [vmem:[%s8154 + $0xc] sm:$0xf]
    %v8159 = vld [vmem:[%s8154 + $0x10] sm:$0xf]
    %v8160 = vld [vmem:[%s8154 + $0x14] sm:$0xf]
    %v8161 = vld [vmem:[%s8154 + $0x18] sm:$0xf]
    %v8162 = vld [vmem:[%s8154 + $0x1c] sm:$0xf]
    %v8163 = vld [vmem:[%s8154 + $0x20] sm:$0xf]
    %v8164 = vld [vmem:[%s8154 + $0x24] sm:$0xf]
    %v8165 = vld [vmem:[%s8154 + $0x28] sm:$0xf]
    %v8166 = vld [vmem:[%s8154 + $0x2c] sm:$0xf]
    %v8167 = vld [vmem:[%s8154 + $0x30] sm:$0xf]
    %v8168 = vld [vmem:[%s8154 + $0x34] sm:$0xf]
    %v8169 = vld [vmem:[%s8154 + $0x38] sm:$0xf]
    %v8170 = vld [vmem:[%s8154 + $0x3c] sm:$0xf]
    %v8187 = vunpack.c.l.b16 %v8155
    %v8188 = vunpack.c.l.b16 %v8156
    %v8189 = vunpack.c.l.b16 %v8157
    %v8190 = vunpack.c.l.b16 %v8158
    %v8191 = vunpack.c.l.b16 %v8159
    %v8192 = vunpack.c.l.b16 %v8160
    %v8193 = vunpack.c.l.b16 %v8161
    %v8194 = vunpack.c.l.b16 %v8162
    %v8195 = vunpack.c.l.b16 %v8163
    %v8196 = vunpack.c.l.b16 %v8164
    %v8197 = vunpack.c.l.b16 %v8165
    %v8198 = vunpack.c.l.b16 %v8166
    %v8199 = vunpack.c.l.b16 %v8167
    %v8200 = vunpack.c.l.b16 %v8168
    %v8201 = vunpack.c.l.b16 %v8169
    %v8202 = vunpack.c.l.b16 %v8170
    %v8203 = vpack.c.b16 %v8188, %v8187
    %v8204 = vpack.c.b16 %v8190, %v8189
    %v8205 = vpack.c.b16 %v8192, %v8191
    %v8206 = vpack.c.b16 %v8194, %v8193
    %v8207 = vpack.c.b16 %v8196, %v8195
    %v8208 = vpack.c.b16 %v8198, %v8197
    %v8209 = vpack.c.b16 %v8200, %v8199
    %v8210 = vpack.c.b16 %v8202, %v8201
    %8219 = vmatpush.bf16.msra.mxu0 %v8210
    %8220 = vmatpush.bf16.msra.mxu0 %v8209
    %8221 = vmatpush.bf16.msra.mxu0 %v8208
    %8222 = vmatpush.bf16.msra.mxu0 %v8207
    %8223 = vmatpush.bf16.msra.mxu0 %v8206
    %8224 = vmatpush.bf16.msra.mxu0 %v8205
    %8225 = vmatpush.bf16.msra.mxu0 %v8204
    %8226 = vmatpush.bf16.msra.mxu0 %v8203
    %8227 = vmatmul.bf16.gmra.mxu0 %v8153
    %v8228 = vpop.f32.mrf.mxu0
    %v8229 = vadd.f32 0.0, %v8228
    %v8230 = vpop.f32.mrf.mxu0
    %8231 = vdwg.mxu0
    %v8232 = vadd.f32 %v8150, %v8229
    %s8233 = scalar_lea.vmem [#allocation4], 15
    %v8234 = vld [vmem:[%s8233] ss:$72 sm:$0x3]
    %v8235 = vpack.c.bf16 %v8234, %v8234
    %s8236 = scalar_lea.vmem %s4, 640
    %v8237 = vld [vmem:[%s8236] sm:$0xf]
    %v8238 = vld [vmem:[%s8236 + $0x4] sm:$0xf]
    %v8239 = vld [vmem:[%s8236 + $0x8] sm:$0xf]
    %v8240 = vld [vmem:[%s8236 + $0xc] sm:$0xf]
    %v8241 = vld [vmem:[%s8236 + $0x10] sm:$0xf]
    %v8242 = vld [vmem:[%s8236 + $0x14] sm:$0xf]
    %v8243 = vld [vmem:[%s8236 + $0x18] sm:$0xf]
    %v8244 = vld [vmem:[%s8236 + $0x1c] sm:$0xf]
    %v8245 = vld [vmem:[%s8236 + $0x20] sm:$0xf]
    %v8246 = vld [vmem:[%s8236 + $0x24] sm:$0xf]
    %v8247 = vld [vmem:[%s8236 + $0x28] sm:$0xf]
    %v8248 = vld [vmem:[%s8236 + $0x2c] sm:$0xf]
    %v8249 = vld [vmem:[%s8236 + $0x30] sm:$0xf]
    %v8250 = vld [vmem:[%s8236 + $0x34] sm:$0xf]
    %v8251 = vld [vmem:[%s8236 + $0x38] sm:$0xf]
    %v8252 = vld [vmem:[%s8236 + $0x3c] sm:$0xf]
    %v8269 = vunpack.c.l.b16 %v8237
    %v8270 = vunpack.c.l.b16 %v8238
    %v8271 = vunpack.c.l.b16 %v8239
    %v8272 = vunpack.c.l.b16 %v8240
    %v8273 = vunpack.c.l.b16 %v8241
    %v8274 = vunpack.c.l.b16 %v8242
    %v8275 = vunpack.c.l.b16 %v8243
    %v8276 = vunpack.c.l.b16 %v8244
    %v8277 = vunpack.c.l.b16 %v8245
    %v8278 = vunpack.c.l.b16 %v8246
    %v8279 = vunpack.c.l.b16 %v8247
    %v8280 = vunpack.c.l.b16 %v8248
    %v8281 = vunpack.c.l.b16 %v8249
    %v8282 = vunpack.c.l.b16 %v8250
    %v8283 = vunpack.c.l.b16 %v8251
    %v8284 = vunpack.c.l.b16 %v8252
    %v8285 = vpack.c.b16 %v8270, %v8269
    %v8286 = vpack.c.b16 %v8272, %v8271
    %v8287 = vpack.c.b16 %v8274, %v8273
    %v8288 = vpack.c.b16 %v8276, %v8275
    %v8289 = vpack.c.b16 %v8278, %v8277
    %v8290 = vpack.c.b16 %v8280, %v8279
    %v8291 = vpack.c.b16 %v8282, %v8281
    %v8292 = vpack.c.b16 %v8284, %v8283
    %8301 = vmatpush.bf16.msra.mxu0 %v8292
    %8302 = vmatpush.bf16.msra.mxu0 %v8291
    %8303 = vmatpush.bf16.msra.mxu0 %v8290
    %8304 = vmatpush.bf16.msra.mxu0 %v8289
    %8305 = vmatpush.bf16.msra.mxu0 %v8288
    %8306 = vmatpush.bf16.msra.mxu0 %v8287
    %8307 = vmatpush.bf16.msra.mxu0 %v8286
    %8308 = vmatpush.bf16.msra.mxu0 %v8285
    %8309 = vmatmul.bf16.gmra.mxu0 %v8235
    %v8310 = vpop.f32.mrf.mxu0
    %v8311 = vadd.f32 0.0, %v8310
    %v8312 = vpop.f32.mrf.mxu0
    %8313 = vdwg.mxu0
    %v8314 = vadd.f32 %v8232, %v8311
    %s8315 = scalar_lea.vmem [#allocation4], 16
    %v8316 = vld [vmem:[%s8315] ss:$72 sm:$0x3]
    %v8317 = vpack.c.bf16 %v8316, %v8316
    %s8318 = scalar_lea.vmem %s4, 704
    %v8319 = vld [vmem:[%s8318] sm:$0xf]
    %v8320 = vld [vmem:[%s8318 + $0x4] sm:$0xf]
    %v8321 = vld [vmem:[%s8318 + $0x8] sm:$0xf]
    %v8322 = vld [vmem:[%s8318 + $0xc] sm:$0xf]
    %v8323 = vld [vmem:[%s8318 + $0x10] sm:$0xf]
    %v8324 = vld [vmem:[%s8318 + $0x14] sm:$0xf]
    %v8325 = vld [vmem:[%s8318 + $0x18] sm:$0xf]
    %v8326 = vld [vmem:[%s8318 + $0x1c] sm:$0xf]
    %v8327 = vld [vmem:[%s8318 + $0x20] sm:$0xf]
    %v8328 = vld [vmem:[%s8318 + $0x24] sm:$0xf]
    %v8329 = vld [vmem:[%s8318 + $0x28] sm:$0xf]
    %v8330 = vld [vmem:[%s8318 + $0x2c] sm:$0xf]
    %v8331 = vld [vmem:[%s8318 + $0x30] sm:$0xf]
    %v8332 = vld [vmem:[%s8318 + $0x34] sm:$0xf]
    %v8333 = vld [vmem:[%s8318 + $0x38] sm:$0xf]
    %v8334 = vld [vmem:[%s8318 + $0x3c] sm:$0xf]
    %v8351 = vunpack.c.l.b16 %v8319
    %v8352 = vunpack.c.l.b16 %v8320
    %v8353 = vunpack.c.l.b16 %v8321
    %v8354 = vunpack.c.l.b16 %v8322
    %v8355 = vunpack.c.l.b16 %v8323
    %v8356 = vunpack.c.l.b16 %v8324
    %v8357 = vunpack.c.l.b16 %v8325
    %v8358 = vunpack.c.l.b16 %v8326
    %v8359 = vunpack.c.l.b16 %v8327
    %v8360 = vunpack.c.l.b16 %v8328
    %v8361 = vunpack.c.l.b16 %v8329
    %v8362 = vunpack.c.l.b16 %v8330
    %v8363 = vunpack.c.l.b16 %v8331
    %v8364 = vunpack.c.l.b16 %v8332
    %v8365 = vunpack.c.l.b16 %v8333
    %v8366 = vunpack.c.l.b16 %v8334
    %v8367 = vpack.c.b16 %v8352, %v8351
    %v8368 = vpack.c.b16 %v8354, %v8353
    %v8369 = vpack.c.b16 %v8356, %v8355
    %v8370 = vpack.c.b16 %v8358, %v8357
    %v8371 = vpack.c.b16 %v8360, %v8359
    %v8372 = vpack.c.b16 %v8362, %v8361
    %v8373 = vpack.c.b16 %v8364, %v8363
    %v8374 = vpack.c.b16 %v8366, %v8365
    %8383 = vmatpush.bf16.msra.mxu0 %v8374
    %8384 = vmatpush.bf16.msra.mxu0 %v8373
    %8385 = vmatpush.bf16.msra.mxu0 %v8372
    %8386 = vmatpush.bf16.msra.mxu0 %v8371
    %8387 = vmatpush.bf16.msra.mxu0 %v8370
    %8388 = vmatpush.bf16.msra.mxu0 %v8369
    %8389 = vmatpush.bf16.msra.mxu0 %v8368
    %8390 = vmatpush.bf16.msra.mxu0 %v8367
    %8391 = vmatmul.bf16.gmra.mxu0 %v8317
    %v8392 = vpop.f32.mrf.mxu0
    %v8393 = vadd.f32 0.0, %v8392
    %v8394 = vpop.f32.mrf.mxu0
    %8395 = vdwg.mxu0
    %v8396 = vadd.f32 %v8314, %v8393
    %s8397 = scalar_lea.vmem [#allocation4], 17
    %v8398 = vld [vmem:[%s8397] ss:$72 sm:$0x3]
    %v8399 = vpack.c.bf16 %v8398, %v8398
    %s8400 = scalar_lea.vmem %s4, 768
    %v8401 = vld [vmem:[%s8400] sm:$0xf]
    %v8402 = vld [vmem:[%s8400 + $0x4] sm:$0xf]
    %v8403 = vld [vmem:[%s8400 + $0x8] sm:$0xf]
    %v8404 = vld [vmem:[%s8400 + $0xc] sm:$0xf]
    %v8405 = vld [vmem:[%s8400 + $0x10] sm:$0xf]
    %v8406 = vld [vmem:[%s8400 + $0x14] sm:$0xf]
    %v8407 = vld [vmem:[%s8400 + $0x18] sm:$0xf]
    %v8408 = vld [vmem:[%s8400 + $0x1c] sm:$0xf]
    %v8409 = vld [vmem:[%s8400 + $0x20] sm:$0xf]
    %v8410 = vld [vmem:[%s8400 + $0x24] sm:$0xf]
    %v8411 = vld [vmem:[%s8400 + $0x28] sm:$0xf]
    %v8412 = vld [vmem:[%s8400 + $0x2c] sm:$0xf]
    %v8413 = vld [vmem:[%s8400 + $0x30] sm:$0xf]
    %v8414 = vld [vmem:[%s8400 + $0x34] sm:$0xf]
    %v8415 = vld [vmem:[%s8400 + $0x38] sm:$0xf]
    %v8416 = vld [vmem:[%s8400 + $0x3c] sm:$0xf]
    %v8433 = vunpack.c.l.b16 %v8401
    %v8434 = vunpack.c.l.b16 %v8402
    %v8435 = vunpack.c.l.b16 %v8403
    %v8436 = vunpack.c.l.b16 %v8404
    %v8437 = vunpack.c.l.b16 %v8405
    %v8438 = vunpack.c.l.b16 %v8406
    %v8439 = vunpack.c.l.b16 %v8407
    %v8440 = vunpack.c.l.b16 %v8408
    %v8441 = vunpack.c.l.b16 %v8409
    %v8442 = vunpack.c.l.b16 %v8410
    %v8443 = vunpack.c.l.b16 %v8411
    %v8444 = vunpack.c.l.b16 %v8412
    %v8445 = vunpack.c.l.b16 %v8413
    %v8446 = vunpack.c.l.b16 %v8414
    %v8447 = vunpack.c.l.b16 %v8415
    %v8448 = vunpack.c.l.b16 %v8416
    %v8449 = vpack.c.b16 %v8434, %v8433
    %v8450 = vpack.c.b16 %v8436, %v8435
    %v8451 = vpack.c.b16 %v8438, %v8437
    %v8452 = vpack.c.b16 %v8440, %v8439
    %v8453 = vpack.c.b16 %v8442, %v8441
    %v8454 = vpack.c.b16 %v8444, %v8443
    %v8455 = vpack.c.b16 %v8446, %v8445
    %v8456 = vpack.c.b16 %v8448, %v8447
    %8465 = vmatpush.bf16.msra.mxu0 %v8456
    %8466 = vmatpush.bf16.msra.mxu0 %v8455
    %8467 = vmatpush.bf16.msra.mxu0 %v8454
    %8468 = vmatpush.bf16.msra.mxu0 %v8453
    %8469 = vmatpush.bf16.msra.mxu0 %v8452
    %8470 = vmatpush.bf16.msra.mxu0 %v8451
    %8471 = vmatpush.bf16.msra.mxu0 %v8450
    %8472 = vmatpush.bf16.msra.mxu0 %v8449
    %8473 = vmatmul.bf16.gmra.mxu0 %v8399
    %v8474 = vpop.f32.mrf.mxu0
    %v8475 = vadd.f32 0.0, %v8474
    %v8476 = vpop.f32.mrf.mxu0
    %8477 = vdwg.mxu0
    %v8478 = vadd.f32 %v8396, %v8475
    %s8479 = scalar_lea.vmem [#allocation4], 18
    %v8480 = vld [vmem:[%s8479] ss:$72 sm:$0x3]
    %v8481 = vpack.c.bf16 %v8480, %v8480
    %s8482 = scalar_lea.vmem %s4, 832
    %v8483 = vld [vmem:[%s8482] sm:$0xf]
    %v8484 = vld [vmem:[%s8482 + $0x4] sm:$0xf]
    %v8485 = vld [vmem:[%s8482 + $0x8] sm:$0xf]
    %v8486 = vld [vmem:[%s8482 + $0xc] sm:$0xf]
    %v8487 = vld [vmem:[%s8482 + $0x10] sm:$0xf]
    %v8488 = vld [vmem:[%s8482 + $0x14] sm:$0xf]
    %v8489 = vld [vmem:[%s8482 + $0x18] sm:$0xf]
    %v8490 = vld [vmem:[%s8482 + $0x1c] sm:$0xf]
    %v8491 = vld [vmem:[%s8482 + $0x20] sm:$0xf]
    %v8492 = vld [vmem:[%s8482 + $0x24] sm:$0xf]
    %v8493 = vld [vmem:[%s8482 + $0x28] sm:$0xf]
    %v8494 = vld [vmem:[%s8482 + $0x2c] sm:$0xf]
    %v8495 = vld [vmem:[%s8482 + $0x30] sm:$0xf]
    %v8496 = vld [vmem:[%s8482 + $0x34] sm:$0xf]
    %v8497 = vld [vmem:[%s8482 + $0x38] sm:$0xf]
    %v8498 = vld [vmem:[%s8482 + $0x3c] sm:$0xf]
    %v8515 = vunpack.c.l.b16 %v8483
    %v8516 = vunpack.c.l.b16 %v8484
    %v8517 = vunpack.c.l.b16 %v8485
    %v8518 = vunpack.c.l.b16 %v8486
    %v8519 = vunpack.c.l.b16 %v8487
    %v8520 = vunpack.c.l.b16 %v8488
    %v8521 = vunpack.c.l.b16 %v8489
    %v8522 = vunpack.c.l.b16 %v8490
    %v8523 = vunpack.c.l.b16 %v8491
    %v8524 = vunpack.c.l.b16 %v8492
    %v8525 = vunpack.c.l.b16 %v8493
    %v8526 = vunpack.c.l.b16 %v8494
    %v8527 = vunpack.c.l.b16 %v8495
    %v8528 = vunpack.c.l.b16 %v8496
    %v8529 = vunpack.c.l.b16 %v8497
    %v8530 = vunpack.c.l.b16 %v8498
    %v8531 = vpack.c.b16 %v8516, %v8515
    %v8532 = vpack.c.b16 %v8518, %v8517
    %v8533 = vpack.c.b16 %v8520, %v8519
    %v8534 = vpack.c.b16 %v8522, %v8521
    %v8535 = vpack.c.b16 %v8524, %v8523
    %v8536 = vpack.c.b16 %v8526, %v8525
    %v8537 = vpack.c.b16 %v8528, %v8527
    %v8538 = vpack.c.b16 %v8530, %v8529
    %8547 = vmatpush.bf16.msra.mxu0 %v8538
    %8548 = vmatpush.bf16.msra.mxu0 %v8537
    %8549 = vmatpush.bf16.msra.mxu0 %v8536
    %8550 = vmatpush.bf16.msra.mxu0 %v8535
    %8551 = vmatpush.bf16.msra.mxu0 %v8534
    %8552 = vmatpush.bf16.msra.mxu0 %v8533
    %8553 = vmatpush.bf16.msra.mxu0 %v8532
    %8554 = vmatpush.bf16.msra.mxu0 %v8531
    %8555 = vmatmul.bf16.gmra.mxu0 %v8481
    %v8556 = vpop.f32.mrf.mxu0
    %v8557 = vadd.f32 0.0, %v8556
    %v8558 = vpop.f32.mrf.mxu0
    %8559 = vdwg.mxu0
    %v8560 = vadd.f32 %v8478, %v8557
    %v8561 = vld [vmem:[%s5] sm:$0x1]
    %v8563 = vperm.slane %v8561, 0
    %v8565 = vadd.f32 %v8560, %v8563
    %vm8566 = vcmask 9216
    %8567 = vst.msk [vmem:[#allocation5] sm:$0x3] %vm8566, %v8565
    // Predicated region
    $region78: #{forward.1} parent=1 // pred_check
      _
    $region79: #{forward.1} parent=1 // pred_check_branch
      %8569 = sbr.rel (0) target = $region81
    $region80: #{forward.1} parent=1 // pred_region
      %8571 = vsyncadd [#allocation6], 0
      %s8573 = sshll.u32 [#allocation5], 4
      %s8574 = int_to_ptr.vmem [resolvable:$true] %s8573
      %s8575 = sshll.u32 %s19, 4
      %s8576 = int_to_ptr.hbm [resolvable:$true] %s8575
      %8578 = dma.vmem_to_hbm [thread:$0]  %s8574, 32, %s8576, [#allocation6]
    $region81: #{forward.1} parent=1 // pred_fallthru
      _
    // Predicated region
    $region82: #{forward.1} parent=1 // pred_check
      _
    $region83: #{forward.1} parent=1 // pred_check_branch
      %8580 = sbr.rel (0) target = $region85
    $region84: #{forward.1} parent=1 // pred_region
      %8582 = dma.done [#allocation6], 32
    $region85: #{forward.1} parent=1 // pred_fallthru
      _
    %8583 = vsyncpa [#allocation6], 1

</llo_original>
